<compile_context>
chip_gen: v7x
topology: tpu7x:2x2x1
jax: 0.10.0
libtpu: 0.0.40
codegen_flags: <defaults>
</compile_context>

<pallas_src>
import functools
import math

import jax
import jax.numpy as jnp
import numpy as np
from jax import lax
from jax.experimental import pallas as pl
from jax.experimental.pallas import tpu as pltpu

_BBOX_XFORM_CLIP = math.log(1000.0 / 16)
_LANE = 128      # lane-dense output width for matmul result slabs
_CIN_PAD = 8     # RGB input channels padded 3 -> 8 for a clean MXU operand


# ----------------------------------------------------------------------------
# Kernel 1: backbone 3x3 stride-2 conv (+ReLU) as a stride-1 2x2 conv over a
# space-to-depth input.  grid=(N,), whole image resident in VMEM, in-kernel
# im2col -> a single K=128 MXU dot.
# ----------------------------------------------------------------------------
def _backbone_kernel(x_ref, w_ref, b_ref, o_ref, *, out_h, out_w):
    # x_ref: [out_h+1, out_w+1, 4*Cp] bf16 (space-to-depth padded image, one image)
    taps = []
    for ky in range(2):
        for kx in range(2):
            p = x_ref[pl.ds(ky, out_h), pl.ds(kx, out_w), :]      # [out_h,out_w,32]
            taps.append(p.reshape(out_h * out_w, p.shape[-1]))
    patches = jnp.concatenate(taps, axis=-1)                       # [HW, 128] bf16
    acc = jnp.dot(patches, w_ref[...], preferred_element_type=jnp.float32)
    y = jnp.maximum(acc + b_ref[...], 0.0)                         # f32 elementwise
    o_ref[...] = y.astype(o_ref.dtype)                             # [HW, Cf] bf16


def backbone_conv(xs2d, w_bb, b_bb, out_h, out_w):
    n, hs, ws, cs = xs2d.shape
    cout = w_bb.shape[-1]
    return pl.pallas_call(
        functools.partial(_backbone_kernel, out_h=out_h, out_w=out_w),
        out_shape=jax.ShapeDtypeStruct((n, out_h * out_w, cout), jnp.bfloat16),
        grid_spec=pltpu.PrefetchScalarGridSpec(
            num_scalar_prefetch=0,
            grid=(n,),
            in_specs=[
                pl.BlockSpec((None, hs, ws, cs), lambda i: (i, 0, 0, 0)),
                pl.BlockSpec((w_bb.shape[0], cout), lambda i: (0, 0)),
                pl.BlockSpec((1, cout), lambda i: (0, 0)),
            ],
            out_specs=pl.BlockSpec((None, out_h * out_w, cout), lambda i: (i, 0, 0)),
        ),
        compiler_params=pltpu.CompilerParams(dimension_semantics=("parallel",)),
    )(xs2d, w_bb, b_bb)


# ----------------------------------------------------------------------------
# Kernel 2: RPN 3x3 conv (+ReLU) fused with the objectness / bbox-delta head.
# One im2col dot (K=9*Cf) + one head dot; single lane-dense [HW, 128] f32 output.
#   col 0      objectness logit
#   cols 1:5   anchor deltas
#   cols 5:128 zero padding
# ----------------------------------------------------------------------------
def _rpn_kernel(x_ref, w_ref, b_ref, wh_ref, bh_ref, o_ref, *, out_h, out_w):
    taps = []
    for ky in range(3):
        for kx in range(3):
            p = x_ref[pl.ds(ky, out_h), pl.ds(kx, out_w), :]      # [out_h,out_w,Cf]
            taps.append(p.reshape(out_h * out_w, p.shape[-1]))
    patches = jnp.concatenate(taps, axis=-1)                       # [HW, 9*Cf] bf16
    t = jnp.dot(patches, w_ref[...], preferred_element_type=jnp.float32) + b_ref[...]
    t = jnp.maximum(t, 0.0).astype(wh_ref.dtype)                   # [HW, Cf] bf16
    head = jnp.dot(t, wh_ref[...], preferred_element_type=jnp.float32) + bh_ref[...]
    o_ref[...] = head                                              # [HW, 128] f32


def rpn_conv_head(xpad, w_conv, b_conv, w_head, b_head, out_h, out_w):
    n, hp, wp, cin = xpad.shape
    return pl.pallas_call(
        functools.partial(_rpn_kernel, out_h=out_h, out_w=out_w),
        out_shape=jax.ShapeDtypeStruct((n, out_h * out_w, _LANE), jnp.float32),
        grid_spec=pltpu.PrefetchScalarGridSpec(
            num_scalar_prefetch=0,
            grid=(n,),
            in_specs=[
                pl.BlockSpec((None, hp, wp, cin), lambda i: (i, 0, 0, 0)),
                pl.BlockSpec((9 * cin, cin), lambda i: (0, 0)),
                pl.BlockSpec((1, cin), lambda i: (0, 0)),
                pl.BlockSpec((cin, _LANE), lambda i: (0, 0)),
                pl.BlockSpec((1, _LANE), lambda i: (0, 0)),
            ],
            out_specs=pl.BlockSpec((None, out_h * out_w, _LANE), lambda i: (i, 0, 0)),
        ),
        compiler_params=pltpu.CompilerParams(dimension_semantics=("parallel",)),
    )(xpad, w_conv, b_conv, w_head, b_head)


# ----------------------------------------------------------------------------
# Kernel 3: RoIAlign as an MXU matmul:  pooled = interp @ feat.
#   interp: [N, M*PP_pad, Hf*Wf]  bilinear interpolation weights (built in JAX)
#   feat:   [N, Hf*Wf, C]
# ----------------------------------------------------------------------------
def _roi_pool_kernel(interp_ref, feat_ref, o_ref):
    o_ref[...] = jnp.dot(interp_ref[...], feat_ref[...],
                         preferred_element_type=jnp.float32).astype(o_ref.dtype)


def roi_pool_matmul(interp, feats_flat):
    n, rows, hw = interp.shape
    c = feats_flat.shape[-1]
    return pl.pallas_call(
        _roi_pool_kernel,
        out_shape=jax.ShapeDtypeStruct((n, rows, c), jnp.bfloat16),
        grid_spec=pltpu.PrefetchScalarGridSpec(
            num_scalar_prefetch=0,
            grid=(n,),
            in_specs=[
                pl.BlockSpec((None, rows, hw), lambda i: (i, 0, 0)),
                pl.BlockSpec((None, hw, c), lambda i: (i, 0, 0)),
            ],
            out_specs=pl.BlockSpec((None, rows, c), lambda i: (i, 0, 0)),
        ),
        compiler_params=pltpu.CompilerParams(dimension_semantics=("parallel",)),
    )(interp, feats_flat)


# ----------------------------------------------------------------------------
# Kernel 4: fused RoI box head + predictor:
#   fc6 -> relu -> fc7 -> relu -> [cls | bbox | pad] matmul -> masked softmax.
# Output lane-dense [M, 128] f32 slab:
#   cols [0,C) softmax class scores, cols [C,5C) bbox deltas, rest zero.
# ----------------------------------------------------------------------------
def _box_head_kernel(x_ref, w6_ref, b6_ref, w7_ref, b7_ref, wp_ref, bp_ref, o_ref,
                     *, num_classes):
    h = jnp.dot(x_ref[...], w6_ref[...], preferred_element_type=jnp.float32) + b6_ref[...]
    h = jnp.maximum(h, 0.0).astype(w7_ref.dtype)
    h = jnp.dot(h, w7_ref[...], preferred_element_type=jnp.float32) + b7_ref[...]
    h = jnp.maximum(h, 0.0).astype(wp_ref.dtype)
    logits = jnp.dot(h, wp_ref[...], preferred_element_type=jnp.float32) + bp_ref[...]

    col = lax.broadcasted_iota(jnp.int32, logits.shape, 1)
    is_cls = col < num_classes
    neg = jnp.full_like(logits, -1e30)
    mx = jnp.max(jnp.where(is_cls, logits, neg), axis=-1, keepdims=True)
    e = jnp.exp(jnp.where(is_cls, logits - mx, neg))
    s = jnp.sum(e, axis=-1, keepdims=True)
    probs = e * pl.reciprocal(s, approx=True)
    o_ref[...] = jnp.where(is_cls, probs, logits)


# ----------------------------------------------------------------------------
# Box utilities (torchvision BoxCoder semantics), batched over leading dims.
# ----------------------------------------------------------------------------
def decode_boxes(deltas, boxes, weights):
    wx, wy, ww, wh = weights
    widths = boxes[..., 2] - boxes[..., 0]
    heights = boxes[..., 3] - boxes[..., 1]
    ctr_x = boxes[..., 0] + 0.5 * widths
    ctr_y = boxes[..., 1] + 0.5 * heights
    dx = deltas[..., 0] / wx
    dy = deltas[..., 1] / wy
    dw = jnp.minimum(deltas[..., 2] / ww, _BBOX_XFORM_CLIP)
    dh = jnp.minimum(deltas[..., 3] / wh, _BBOX_XFORM_CLIP)
    pcx = dx * widths + ctr_x
    pcy = dy * heights + ctr_y
    pw = jnp.exp(dw) * widths
    ph = jnp.exp(dh) * heights
    return jnp.stack([pcx - 0.5 * pw, pcy - 0.5 * ph,
                      pcx + 0.5 * pw, pcy + 0.5 * ph], axis=-1)


def clip_boxes(boxes, size):
    h, w = size
    return jnp.stack(
        [jnp.clip(boxes[..., 0], 0.0, float(w)), jnp.clip(boxes[..., 1], 0.0, float(h)),
         jnp.clip(boxes[..., 2], 0.0, float(w)), jnp.clip(boxes[..., 3], 0.0, float(h))],
        axis=-1)


def make_anchors(feat_h, feat_w, stride, size):
    ys = (jnp.arange(feat_h, dtype=jnp.float32) + 0.5) * stride
    xs = (jnp.arange(feat_w, dtype=jnp.float32) + 0.5) * stride
    cy, cx = jnp.meshgrid(ys, xs, indexing="ij")
    half = size / 2.0
    return jnp.stack([cx - half, cy - half, cx + half, cy + half], axis=-1).reshape(-1, 4)


# ----------------------------------------------------------------------------
# Bilinear interpolation matrix for RoIAlign-as-matmul (per image).
# Returns [M * pool_pad, Hf*Wf]; rows p >= pool*pool are zero padding so that the
# pooled feature per ROI is already the fc6-aligned 896-wide vector.
# TODO(synk): torchvision RoIAlign sampling_ratio / aligned handling and degenerate-box
#             clamping are simplified (sampling_ratio=1, no min-size clamp).
# ----------------------------------------------------------------------------
def build_interp(boxes, spatial_scale, pool, pool_pad, feat_h, feat_w):
    m = boxes.shape[0]
    b = boxes * spatial_scale
    x1, y1, x2, y2 = b[:, 0], b[:, 1], b[:, 2], b[:, 3]
    bw = (x2 - x1) / pool
    bh = (y2 - y1) / pool
    centers = jnp.arange(pool, dtype=jnp.float32) + 0.5
    sx = x1[:, None] + centers[None, :] * bw[:, None]
    sy = y1[:, None] + centers[None, :] * bh[:, None]
    yy = jnp.broadcast_to(sy[:, :, None], (m, pool, pool)).reshape(m * pool * pool)
    xx = jnp.broadcast_to(sx[:, None, :], (m, pool, pool)).reshape(m * pool * pool)
    y0 = jnp.floor(yy)
    x0 = jnp.floor(xx)
    y0i = jnp.clip(y0.astype(jnp.int32), 0, feat_h - 1)
    x0i = jnp.clip(x0.astype(jnp.int32), 0, feat_w - 1)
    y1i = jnp.clip(y0i + 1, 0, feat_h - 1)
    x1i = jnp.clip(x0i + 1, 0, feat_w - 1)
    wy = jnp.clip(yy - y0, 0.0, 1.0)
    wx = jnp.clip(xx - x0, 0.0, 1.0)
    hw = feat_h * feat_w
    cols = jnp.arange(hw, dtype=jnp.int32)[None, :]

    def scatter(yi, xi, wgt):
        return (cols == (yi * feat_w + xi)[:, None]).astype(jnp.float32) * wgt[:, None]

    interp = (scatter(y0i, x0i, (1 - wy) * (1 - wx))
              + scatter(y0i, x1i, (1 - wy) * wx)
              + scatter(y1i, x0i, wy * (1 - wx))
              + scatter(y1i, x1i, wy * wx))                       # [M*PP, HW]
    interp = interp.reshape(m, pool * pool, hw)
    interp = jnp.pad(interp, ((0, 0), (0, pool_pad - pool * pool), (0, 0)))
    return interp.reshape(m * pool_pad, hw)


# ----------------------------------------------------------------------------
# The model
# ----------------------------------------------------------------------------
class MaskRCNNPallas:
    def __init__(self, key, num_classes=8, feat_ch=16, rep_size=64, pool=7, top_k=16,
                 anchor_size=8.0):
        self.num_classes = num_classes
        self.feat_ch = feat_ch
        self.rep_size = rep_size
        self.pool = pool
        self.top_k = top_k
        self.anchor_size = anchor_size

        ks = jax.random.split(key, 8)
        wq = lambda k, s, sc=0.05: sc * jax.random.normal(k, s, jnp.float32)

        # raw parameters (PyTorch layouts)
        backbone_w = wq(ks[0], (feat_ch, 3, 3, 3))           # OIHW
        rpn_conv_w = wq(ks[1], (feat_ch, feat_ch, 3, 3))     # OIHW
        rpn_cls_w = wq(ks[2], (feat_ch, 1))
        rpn_bbox_w = wq(ks[3], (feat_ch, 4))
        fc6_w = wq(ks[4], (feat_ch * pool * pool, rep_size))
        fc7_w = wq(ks[5], (rep_size, rep_size))
        cls_w = wq(ks[6], (rep_size, num_classes))
        bbox_w = wq(ks[7], (rep_size, num_classes * 4))

        # ---- backbone weight: space-to-depth form of the stride-2 3x3 conv ----
        # input super-pixel channel index = sub_r*2*Cp + sub_c*Cp + c
        w_hwio = jnp.transpose(backbone_w, (2, 3, 1, 0))     # [3,3,Cin,Cout]
        ws2d = jnp.zeros((2, 2, 2, 2, _CIN_PAD, feat_ch), jnp.float32)
        for ky in range(3):
            for kx in range(3):
                ws2d = ws2d.at[ky // 2, kx // 2, ky % 2, kx % 2, :3, :].set(w_hwio[ky, kx])
        self.backbone_w = ws2d.reshape(16 * _CIN_PAD, feat_ch).astype(jnp.bfloat16)  # [128,Cf]
        self.backbone_b = jnp.zeros((1, feat_ch), jnp.float32)

        # ---- RPN conv weight: im2col HWIO flatten [9*Cf, Cf] ----
        self.rpn_conv_w = (jnp.transpose(rpn_conv_w, (2, 3, 1, 0))
                           .reshape(9 * feat_ch, feat_ch).astype(jnp.bfloat16))
        self.rpn_conv_b = jnp.zeros((1, feat_ch), jnp.float32)
        # fused RPN predictor: col 0 = objectness, cols 1:5 = box deltas, rest zero pad
        self.rpn_head_w = jnp.pad(jnp.concatenate([rpn_cls_w, rpn_bbox_w], axis=1),
                                  ((0, 0), (0, _LANE - 5))).astype(jnp.bfloat16)
        self.rpn_head_b = jnp.zeros((1, _LANE), jnp.float32)

        # ---- fused box head (TwoMLPHead + FastRCNNPredictor) ----
        # fc6 K padded 784 -> 896 (7*128) via padded pooled samples; weight rows
        # permuted from PyTorch (c, py, px) flatten order to our (p, c) pooled layout.
        pp = pool * pool
        k_pad = ((feat_ch * pp + _LANE - 1) // _LANE) * _LANE
        assert k_pad % feat_ch == 0
        self.pool_pad = k_pad // feat_ch                     # 56 for pool=7, Cf=16
        fc6_perm = jnp.zeros((self.pool_pad, feat_ch, rep_size), jnp.float32)
        fc6_perm = fc6_perm.at[:pp].set(
            fc6_w.reshape(feat_ch, pp, rep_size).transpose(1, 0, 2))
        self.fc6_w = fc6_perm.reshape(k_pad, rep_size).astype(jnp.bfloat16)
        self.fc6_b = jnp.zeros((1, rep_size), jnp.float32)
        self.fc7_w = fc7_w.astype(jnp.bfloat16)
        self.fc7_b = jnp.zeros((1, rep_size), jnp.float32)
        # cols [0,C) = class logits, cols [C,5C) = bbox deltas, rest zero pad
        self.pred_w = jnp.pad(jnp.concatenate([cls_w, bbox_w], axis=1),
                              ((0, 0), (0, _LANE - 5 * num_classes))).astype(jnp.bfloat16)
        self.pred_b = jnp.zeros((1, _LANE), jnp.float32)

        self._forward = jax.jit(self._forward_impl)

    # fused fc6/fc7/predictor (+ masked softmax) — one pallas_call, 2-block grid over M
    def _fused_head(self, pooled_bf16):
        m, kdim = pooled_bf16.shape
        m_blk = m // 2 if (m % 16 == 0 and m >= 32) else m
        grid = (m // m_blk,)
        r = self.rep_size
        return pl.pallas_call(
            functools.partial(_box_head_kernel, num_classes=self.num_classes),
            out_shape=jax.ShapeDtypeStruct((m, _LANE), jnp.float32),
            grid_spec=pltpu.PrefetchScalarGridSpec(
                num_scalar_prefetch=0,
                grid=grid,
                in_specs=[
                    pl.BlockSpec((m_blk, kdim), lambda i: (i, 0)),
                    pl.BlockSpec((kdim, r), lambda i: (0, 0)),
                    pl.BlockSpec((1, r), lambda i: (0, 0)),
                    pl.BlockSpec((r, r), lambda i: (0, 0)),
                    pl.BlockSpec((1, r), lambda i: (0, 0)),
                    pl.BlockSpec((r, _LANE), lambda i: (0, 0)),
                    pl.BlockSpec((1, _LANE), lambda i: (0, 0)),
                ],
                out_specs=pl.BlockSpec((m_blk, _LANE), lambda i: (i, 0)),
            ),
            compiler_params=pltpu.CompilerParams(dimension_semantics=("parallel",)),
        )(pooled_bf16, self.fc6_w, self.fc6_b, self.fc7_w, self.fc7_b,
          self.pred_w, self.pred_b)

    def _forward_impl(self, images_nchw):
        n, c, h, w = images_nchw.shape
        assert h % 2 == 0 and w % 2 == 0
        nc = self.num_classes
        cf = self.feat_ch
        k = self.top_k

        # ----- transform (normalize). TODO(synk): torchvision resize/batching omitted.
        mean = jnp.array([0.485, 0.456, 0.406], jnp.float32)
        std = jnp.array([0.229, 0.224, 0.225], jnp.float32)
        x = (images_nchw - mean[None, :, None, None]) / std[None, :, None, None]
        x = jnp.transpose(x, (0, 2, 3, 1))                                    # NHWC
        x = jnp.pad(x, ((0, 0), (1, 1), (1, 1), (0, _CIN_PAD - c)))           # pad+C 3->8
        hs, ws = (h + 2) // 2, (w + 2) // 2
        x = x.reshape(n, hs, 2, ws, 2, _CIN_PAD).transpose(0, 1, 3, 2, 4, 5)  # space-to-depth
        x = x.reshape(n, hs, ws, 4 * _CIN_PAD).astype(jnp.bfloat16)

        # ----- backbone: stride-2 3x3 conv + ReLU (single im2col dot per image)
        hf, wf = h // 2, w // 2
        feats_flat = backbone_conv(x, self.backbone_w, self.backbone_b, hf, wf)  # [N,HW,Cf]
        spatial_scale = hf / h

        # ----- RPN: 3x3 conv fused with objectness / delta predictor (one kernel)
        feats_nhwc = feats_flat.reshape(n, hf, wf, cf)
        tpad = jnp.pad(feats_nhwc, ((0, 0), (1, 1), (1, 1), (0, 0)))
        rpn_slab = rpn_conv_head(tpad, self.rpn_conv_w, self.rpn_conv_b,
                                 self.rpn_head_w, self.rpn_head_b, hf, wf)    # [N,HW,128]
        obj = rpn_slab[:, :, 0]                                               # [N, A]
        rpn_deltas = rpn_slab[:, :, 1:5]                                      # [N, A, 4]

        # ----- proposals (batched decode + clip + top-k)
        # TODO(synk): RPN NMS / min-size filtering has no clean Pallas equivalent; top-k only.
        anchors = make_anchors(hf, wf, stride=h // hf, size=self.anchor_size)
        boxes = decode_boxes(rpn_deltas, anchors, (1.0, 1.0, 1.0, 1.0))
        boxes = clip_boxes(boxes, (h, w))
        _, idx = lax.top_k(obj, k)
        proposals = jnp.take_along_axis(boxes, idx[..., None], axis=1)        # [N, K, 4]

        # ----- RoI heads, round 1: matmul roi-align -> fused head -> regression
        interp_fn = jax.vmap(lambda bx: build_interp(bx, spatial_scale, self.pool,
                                                     self.pool_pad, hf, wf))
        interp1 = interp_fn(proposals).astype(jnp.bfloat16)                   # [N,K*56,HW]
        pooled1 = roi_pool_matmul(interp1, feats_flat)                        # [N,K*56,Cf]
        pooled1 = pooled1.reshape(n * k, self.pool_pad * cf)                  # [M, 896] free
        out1 = self._fused_head(pooled1)                                      # [M, 128] f32
        m = n * k
        scores1 = out1[:, :nc]
        deltas1 = out1[:, nc:5 * nc].reshape(m, nc, 4)
        best = jnp.argmax(scores1[:, 1:], axis=-1) + 1                        # best non-bg class
        deltas_sel = deltas1[jnp.arange(m), best]
        det = decode_boxes(deltas_sel, proposals.reshape(m, 4), (10.0, 10.0, 5.0, 5.0))
        det = clip_boxes(det, (h, w))
        # TODO(synk): roi_heads score threshold / per-class NMS omitted; all top_k boxes kept.
        det_boxes = det.reshape(n, k, 4)

        # ----- extra MaskRCNN_ round: re-pool regressed boxes -> softmax score distribution
        interp2 = interp_fn(det_boxes).astype(jnp.bfloat16)
        pooled2 = roi_pool_matmul(interp2, feats_flat).reshape(n * k, self.pool_pad * cf)
        out2 = self._fused_head(pooled2)
        pred_scores = out2[:, :nc].reshape(n, k, nc)

        # ----- postprocess: rescale to original sizes (identity here, kept for parity)
        ratio = jnp.array([1.0, 1.0, 1.0, 1.0], jnp.float32)
        det_boxes = det_boxes * ratio[None, None, :]
        return det_boxes, pred_scores

    def __call__(self, images_nchw):
        det_boxes, pred_scores = self._forward(images_nchw)
        return [{"boxes": det_boxes[i], "scores": pred_scores[i]}
                for i in range(det_boxes.shape[0])]


# ----------------------------------------------------------------------------
if __name__ == "__main__":
    key = jax.random.PRNGKey(0)
    k_model, k_img = jax.random.split(key)
    model = MaskRCNNPallas(k_model, num_classes=8, feat_ch=16, rep_size=64,
                           pool=7, top_k=16)

    # batch of 2 RGB images, 32x32, NCHW, values in [0, 1]
    images = jax.random.uniform(k_img, (2, 3, 32, 32), jnp.float32)

    detections = model(images)
    detections = jax.block_until_ready(detections)

    for det in detections:
        assert det["boxes"].shape == (16, 4)
        assert det["scores"].shape == (16, 8)
        assert np.all(np.isfinite(np.asarray(det["boxes"])))
        assert np.all(np.isfinite(np.asarray(det["scores"])))
        # scores are a softmax distribution over all classes
        # (tolerance accounts for the approximate-reciprocal normalization)
        np.testing.assert_allclose(np.asarray(det["scores"]).sum(-1), 1.0, atol=1e-2)

    print("KERNEL_OK")
</pallas_src>

<mosaic_0001>
module attributes {stable_mosaic.version = 11 : i64} {
  func.func @_backbone_kernel(%arg0: i32, %arg1: memref<1x17x17x32xbf16, #tpu.memory_space<vmem>>, %arg2: memref<128x16xbf16, #tpu.memory_space<vmem>>, %arg3: memref<1x16xf32, #tpu.memory_space<vmem>>, %arg4: memref<1x256x16xbf16, #tpu.memory_space<vmem>>) attributes {dimension_semantics = [#tpu.dimension_semantics<parallel>], iteration_bounds = array<i64: 2>, scalar_prefetch = 0 : i64, scratch_operands = 0 : i64, tpu.core_type = #tpu.core_type<tc>, window_params = [{transform_indices = @transform_0, window_bounds = array<i64: 1, 17, 17, 32>}, {pipeline_mode = #tpu.pipeline_mode<synchronous>, transform_indices = @transform_1, window_bounds = array<i64: 128, 16>}, {pipeline_mode = #tpu.pipeline_mode<synchronous>, transform_indices = @transform_2, window_bounds = array<i64: 1, 16>}, {transform_indices = @transform_3, window_bounds = array<i64: 1, 256, 16>}]} {
    %c0 = arith.constant 0 : index
    %c0_0 = arith.constant 0 : index
    %c0_1 = arith.constant 0 : index
    %c0_2 = arith.constant 0 : index
    %0 = vector.load %arg1[%c0, %c0_0, %c0_1, %c0_2] : memref<1x17x17x32xbf16, #tpu.memory_space<vmem>>, vector<1x16x16x32xbf16>
    %1 = vector.shape_cast %0 : vector<1x16x16x32xbf16> to vector<16x16x32xbf16>
    %2 = vector.shape_cast %1 : vector<16x16x32xbf16> to vector<256x32xbf16>
    %c0_3 = arith.constant 0 : index
    %c0_4 = arith.constant 0 : index
    %c1 = arith.constant 1 : index
    %c0_5 = arith.constant 0 : index
    %3 = vector.load %arg1[%c0_3, %c0_4, %c1, %c0_5] : memref<1x17x17x32xbf16, #tpu.memory_space<vmem>>, vector<1x16x16x32xbf16>
    %4 = vector.shape_cast %3 : vector<1x16x16x32xbf16> to vector<16x16x32xbf16>
    %5 = vector.shape_cast %4 : vector<16x16x32xbf16> to vector<256x32xbf16>
    %c0_6 = arith.constant 0 : index
    %c1_7 = arith.constant 1 : index
    %c0_8 = arith.constant 0 : index
    %c0_9 = arith.constant 0 : index
    %6 = vector.load %arg1[%c0_6, %c1_7, %c0_8, %c0_9] : memref<1x17x17x32xbf16, #tpu.memory_space<vmem>>, vector<1x16x16x32xbf16>
    %7 = vector.shape_cast %6 : vector<1x16x16x32xbf16> to vector<16x16x32xbf16>
    %8 = vector.shape_cast %7 : vector<16x16x32xbf16> to vector<256x32xbf16>
    %c0_10 = arith.constant 0 : index
    %c1_11 = arith.constant 1 : index
    %c1_12 = arith.constant 1 : index
    %c0_13 = arith.constant 0 : index
    %9 = vector.load %arg1[%c0_10, %c1_11, %c1_12, %c0_13] : memref<1x17x17x32xbf16, #tpu.memory_space<vmem>>, vector<1x16x16x32xbf16>
    %10 = vector.shape_cast %9 : vector<1x16x16x32xbf16> to vector<16x16x32xbf16>
    %11 = vector.shape_cast %10 : vector<16x16x32xbf16> to vector<256x32xbf16>
    %12 = tpu.concatenate %2, %5, %8, %11 in 1 : vector<256x32xbf16>, vector<256x32xbf16>, vector<256x32xbf16>, vector<256x32xbf16> -> vector<256x128xbf16>
    %c0_14 = arith.constant 0 : index
    %c0_15 = arith.constant 0 : index
    %13 = vector.load %arg2[%c0_14, %c0_15] : memref<128x16xbf16, #tpu.memory_space<vmem>>, vector<128x16xbf16>
    %cst = arith.constant dense<0.000000e+00> : vector<256x16xf32>
    %14 = tpu.matmul %12, %13, %cst {dimension_numbers = #tpu.dot_dimension_numbers<[1], [0], [0], [1], [0, 0, 1, 1], [], []>} : vector<256x128xbf16>, vector<128x16xbf16>, vector<256x16xf32> -> vector<256x16xf32>
    %c0_16 = arith.constant 0 : index
    %c0_17 = arith.constant 0 : index
    %15 = vector.load %arg3[%c0_16, %c0_17] : memref<1x16xf32, #tpu.memory_space<vmem>>, vector<1x16xf32>
    %16 = vector.broadcast %15 : vector<1x16xf32> to vector<256x16xf32>
    %17 = arith.addf %14, %16 : vector<256x16xf32>
    %cst_18 = arith.constant 0.000000e+00 : f32
    %18 = vector.broadcast %cst_18 : f32 to vector<256x16xf32>
    %19 = arith.maximumf %17, %18 : vector<256x16xf32>
    %20 = arith.truncf %19 : vector<256x16xf32> to vector<256x16xbf16>
    %c0_19 = arith.constant 0 : index
    %c0_20 = arith.constant 0 : index
    %c0_21 = arith.constant 0 : index
    %21 = vector.load %arg4[%c0_19, %c0_20, %c0_21] : memref<1x256x16xbf16, #tpu.memory_space<vmem>>, vector<1x256x16xbf16>
    %22 = vector.shape_cast %21 : vector<1x256x16xbf16> to vector<256x16xbf16>
    %23 = vector.shape_cast %20 : vector<256x16xbf16> to vector<1x256x16xbf16>
    tpu.vector_store %arg4[%c0_19, %c0_20, %c0_21], %23 {strides = array<i32>} : memref<1x256x16xbf16, #tpu.memory_space<vmem>>, vector<1x256x16xbf16>,
    return
  }
  func.func @transform_0(%arg0: i32) -> (i32, i32, i32, i32) {
    %c0_i32 = arith.constant 0 : i32
    %c0_i32_0 = arith.constant 0 : i32
    %c0_i32_1 = arith.constant 0 : i32
    %c0_i32_2 = arith.constant 0 : i32
    return %arg0, %c0_i32, %c0_i32_0, %c0_i32_1 : i32, i32, i32, i32
  }
  func.func @transform_1(%arg0: i32) -> (i32, i32) {
    %c0_i32 = arith.constant 0 : i32
    %c0_i32_0 = arith.constant 0 : i32
    %c0_i32_1 = arith.constant 0 : i32
    return %c0_i32, %c0_i32_0 : i32, i32
  }
  func.func @transform_2(%arg0: i32) -> (i32, i32) {
    %c0_i32 = arith.constant 0 : i32
    %c0_i32_0 = arith.constant 0 : i32
    %c0_i32_1 = arith.constant 0 : i32
    return %c0_i32, %c0_i32_0 : i32, i32
  }
  func.func @transform_3(%arg0: i32) -> (i32, i32, i32) {
    %c0_i32 = arith.constant 0 : i32
    %c0_i32_0 = arith.constant 0 : i32
    %c0_i32_1 = arith.constant 0 : i32
    return %arg0, %c0_i32, %c0_i32_0 : i32, i32, i32
  }
}

module attributes {stable_mosaic.version = 11 : i64} {
  func.func @_rpn_kernel(%arg0: i32, %arg1: memref<1x18x18x16xbf16, #tpu.memory_space<vmem>>, %arg2: memref<144x16xbf16, #tpu.memory_space<vmem>>, %arg3: memref<1x16xf32, #tpu.memory_space<vmem>>, %arg4: memref<16x128xbf16, #tpu.memory_space<vmem>>, %arg5: memref<1x128xf32, #tpu.memory_space<vmem>>, %arg6: memref<1x256x128xf32, #tpu.memory_space<vmem>>) attributes {dimension_semantics = [#tpu.dimension_semantics<parallel>], iteration_bounds = array<i64: 2>, scalar_prefetch = 0 : i64, scratch_operands = 0 : i64, tpu.core_type = #tpu.core_type<tc>, window_params = [{transform_indices = @transform_0, window_bounds = array<i64: 1, 18, 18, 16>}, {pipeline_mode = #tpu.pipeline_mode<synchronous>, transform_indices = @transform_1, window_bounds = array<i64: 144, 16>}, {pipeline_mode = #tpu.pipeline_mode<synchronous>, transform_indices = @transform_2, window_bounds = array<i64: 1, 16>}, {pipeline_mode = #tpu.pipeline_mode<synchronous>, transform_indices = @transform_3, window_bounds = array<i64: 16, 128>}, {pipeline_mode = #tpu.pipeline_mode<synchronous>, transform_indices = @transform_4, window_bounds = array<i64: 1, 128>}, {transform_indices = @transform_5, window_bounds = array<i64: 1, 256, 128>}]} {
    %c0 = arith.constant 0 : index
    %c0_0 = arith.constant 0 : index
    %c0_1 = arith.constant 0 : index
    %c0_2 = arith.constant 0 : index
    %0 = vector.load %arg1[%c0, %c0_0, %c0_1, %c0_2] : memref<1x18x18x16xbf16, #tpu.memory_space<vmem>>, vector<1x16x16x16xbf16>
    %1 = vector.shape_cast %0 : vector<1x16x16x16xbf16> to vector<16x16x16xbf16>
    %2 = vector.shape_cast %1 : vector<16x16x16xbf16> to vector<256x16xbf16>
    %c0_3 = arith.constant 0 : index
    %c0_4 = arith.constant 0 : index
    %c1 = arith.constant 1 : index
    %c0_5 = arith.constant 0 : index
    %3 = vector.load %arg1[%c0_3, %c0_4, %c1, %c0_5] : memref<1x18x18x16xbf16, #tpu.memory_space<vmem>>, vector<1x16x16x16xbf16>
    %4 = vector.shape_cast %3 : vector<1x16x16x16xbf16> to vector<16x16x16xbf16>
    %5 = vector.shape_cast %4 : vector<16x16x16xbf16> to vector<256x16xbf16>
    %c0_6 = arith.constant 0 : index
    %c0_7 = arith.constant 0 : index
    %c2 = arith.constant 2 : index
    %c0_8 = arith.constant 0 : index
    %6 = vector.load %arg1[%c0_6, %c0_7, %c2, %c0_8] : memref<1x18x18x16xbf16, #tpu.memory_space<vmem>>, vector<1x16x16x16xbf16>
    %7 = vector.shape_cast %6 : vector<1x16x16x16xbf16> to vector<16x16x16xbf16>
    %8 = vector.shape_cast %7 : vector<16x16x16xbf16> to vector<256x16xbf16>
    %c0_9 = arith.constant 0 : index
    %c1_10 = arith.constant 1 : index
    %c0_11 = arith.constant 0 : index
    %c0_12 = arith.constant 0 : index
    %9 = vector.load %arg1[%c0_9, %c1_10, %c0_11, %c0_12] : memref<1x18x18x16xbf16, #tpu.memory_space<vmem>>, vector<1x16x16x16xbf16>
    %10 = vector.shape_cast %9 : vector<1x16x16x16xbf16> to vector<16x16x16xbf16>
    %11 = vector.shape_cast %10 : vector<16x16x16xbf16> to vector<256x16xbf16>
    %c0_13 = arith.constant 0 : index
    %c1_14 = arith.constant 1 : index
    %c1_15 = arith.constant 1 : index
    %c0_16 = arith.constant 0 : index
    %12 = vector.load %arg1[%c0_13, %c1_14, %c1_15, %c0_16] : memref<1x18x18x16xbf16, #tpu.memory_space<vmem>>, vector<1x16x16x16xbf16>
    %13 = vector.shape_cast %12 : vector<1x16x16x16xbf16> to vector<16x16x16xbf16>
    %14 = vector.shape_cast %13 : vector<16x16x16xbf16> to vector<256x16xbf16>
    %c0_17 = arith.constant 0 : index
    %c1_18 = arith.constant 1 : index
    %c2_19 = arith.constant 2 : index
    %c0_20 = arith.constant 0 : index
    %15 = vector.load %arg1[%c0_17, %c1_18, %c2_19, %c0_20] : memref<1x18x18x16xbf16, #tpu.memory_space<vmem>>, vector<1x16x16x16xbf16>
    %16 = vector.shape_cast %15 : vector<1x16x16x16xbf16> to vector<16x16x16xbf16>
    %17 = vector.shape_cast %16 : vector<16x16x16xbf16> to vector<256x16xbf16>
    %c0_21 = arith.constant 0 : index
    %c2_22 = arith.constant 2 : index
    %c0_23 = arith.constant 0 : index
    %c0_24 = arith.constant 0 : index
    %18 = vector.load %arg1[%c0_21, %c2_22, %c0_23, %c0_24] : memref<1x18x18x16xbf16, #tpu.memory_space<vmem>>, vector<1x16x16x16xbf16>
    %19 = vector.shape_cast %18 : vector<1x16x16x16xbf16> to vector<16x16x16xbf16>
    %20 = vector.shape_cast %19 : vector<16x16x16xbf16> to vector<256x16xbf16>
    %c0_25 = arith.constant 0 : index
    %c2_26 = arith.constant 2 : index
    %c1_27 = arith.constant 1 : index
    %c0_28 = arith.constant 0 : index
    %21 = vector.load %arg1[%c0_25, %c2_26, %c1_27, %c0_28] : memref<1x18x18x16xbf16, #tpu.memory_space<vmem>>, vector<1x16x16x16xbf16>
    %22 = vector.shape_cast %21 : vector<1x16x16x16xbf16> to vector<16x16x16xbf16>
    %23 = vector.shape_cast %22 : vector<16x16x16xbf16> to vector<256x16xbf16>
    %c0_29 = arith.constant 0 : index
    %c2_30 = arith.constant 2 : index
    %c2_31 = arith.constant 2 : index
    %c0_32 = arith.constant 0 : index
    %24 = vector.load %arg1[%c0_29, %c2_30, %c2_31, %c0_32] : memref<1x18x18x16xbf16, #tpu.memory_space<vmem>>, vector<1x16x16x16xbf16>
    %25 = vector.shape_cast %24 : vector<1x16x16x16xbf16> to vector<16x16x16xbf16>
    %26 = vector.shape_cast %25 : vector<16x16x16xbf16> to vector<256x16xbf16>
    %27 = tpu.concatenate %2, %5, %8, %11, %14, %17, %20, %23, %26 in 1 : vector<256x16xbf16>, vector<256x16xbf16>, vector<256x16xbf16>, vector<256x16xbf16>, vector<256x16xbf16>, vector<256x16xbf16>, vector<256x16xbf16>, vector<256x16xbf16>, vector<256x16xbf16> -> vector<256x144xbf16>
    %c0_33 = arith.constant 0 : index
    %c0_34 = arith.constant 0 : index
    %28 = vector.load %arg2[%c0_33, %c0_34] : memref<144x16xbf16, #tpu.memory_space<vmem>>, vector<144x16xbf16>
    %cst = arith.constant dense<0.000000e+00> : vector<256x16xf32>
    %29 = tpu.matmul %27, %28, %cst {dimension_numbers = #tpu.dot_dimension_numbers<[1], [0], [0], [1], [0, 0, 1, 1], [], []>} : vector<256x144xbf16>, vector<144x16xbf16>, vector<256x16xf32> -> vector<256x16xf32>
    %c0_35 = arith.constant 0 : index
    %c0_36 = arith.constant 0 : index
    %30 = vector.load %arg3[%c0_35, %c0_36] : memref<1x16xf32, #tpu.memory_space<vmem>>, vector<1x16xf32>
    %31 = vector.broadcast %30 : vector<1x16xf32> to vector<256x16xf32>
    %32 = arith.addf %29, %31 : vector<256x16xf32>
    %cst_37 = arith.constant 0.000000e+00 : f32
    %33 = vector.broadcast %cst_37 : f32 to vector<256x16xf32>
    %34 = arith.maximumf %32, %33 : vector<256x16xf32>
    %35 = arith.truncf %34 : vector<256x16xf32> to vector<256x16xbf16>
    %c0_38 = arith.constant 0 : index
    %c0_39 = arith.constant 0 : index
    %36 = vector.load %arg4[%c0_38, %c0_39] : memref<16x128xbf16, #tpu.memory_space<vmem>>, vector<16x128xbf16>
    %cst_40 = arith.constant dense<0.000000e+00> : vector<256x128xf32>
    %37 = tpu.matmul %35, %36, %cst_40 {dimension_numbers = #tpu.dot_dimension_numbers<[1], [0], [0], [1], [0, 0, 1, 1], [], []>} : vector<256x16xbf16>, vector<16x128xbf16>, vector<256x128xf32> -> vector<256x128xf32>
    %c0_41 = arith.constant 0 : index
    %c0_42 = arith.constant 0 : index
    %38 = vector.load %arg5[%c0_41, %c0_42] : memref<1x128xf32, #tpu.memory_space<vmem>>, vector<1x128xf32>
    %39 = vector.broadcast %38 : vector<1x128xf32> to vector<256x128xf32>
    %40 = arith.addf %37, %39 : vector<256x128xf32>
    %c0_43 = arith.constant 0 : index
    %c0_44 = arith.constant 0 : index
    %c0_45 = arith.constant 0 : index
    %41 = vector.load %arg6[%c0_43, %c0_44, %c0_45] : memref<1x256x128xf32, #tpu.memory_space<vmem>>, vector<1x256x128xf32>
    %42 = vector.shape_cast %41 : vector<1x256x128xf32> to vector<256x128xf32>
    %43 = vector.shape_cast %40 : vector<256x128xf32> to vector<1x256x128xf32>
    tpu.vector_store %arg6[%c0_43, %c0_44, %c0_45], %43 {strides = array<i32>} : memref<1x256x128xf32, #tpu.memory_space<vmem>>, vector<1x256x128xf32>,
    return
  }
  func.func @transform_0(%arg0: i32) -> (i32, i32, i32, i32) {
    %c0_i32 = arith.constant 0 : i32
    %c0_i32_0 = arith.constant 0 : i32
    %c0_i32_1 = arith.constant 0 : i32
    %c0_i32_2 = arith.constant 0 : i32
    return %arg0, %c0_i32, %c0_i32_0, %c0_i32_1 : i32, i32, i32, i32
  }
  func.func @transform_1(%arg0: i32) -> (i32, i32) {
    %c0_i32 = arith.constant 0 : i32
    %c0_i32_0 = arith.constant 0 : i32
    %c0_i32_1 = arith.constant 0 : i32
    return %c0_i32, %c0_i32_0 : i32, i32
  }
  func.func @transform_2(%arg0: i32) -> (i32, i32) {
    %c0_i32 = arith.constant 0 : i32
    %c0_i32_0 = arith.constant 0 : i32
    %c0_i32_1 = arith.constant 0 : i32
    return %c0_i32, %c0_i32_0 : i32, i32
  }
  func.func @transform_3(%arg0: i32) -> (i32, i32) {
    %c0_i32 = arith.constant 0 : i32
    %c0_i32_0 = arith.constant 0 : i32
    %c0_i32_1 = arith.constant 0 : i32
    return %c0_i32, %c0_i32_0 : i32, i32
  }
  func.func @transform_4(%arg0: i32) -> (i32, i32) {
    %c0_i32 = arith.constant 0 : i32
    %c0_i32_0 = arith.constant 0 : i32
    %c0_i32_1 = arith.constant 0 : i32
    return %c0_i32, %c0_i32_0 : i32, i32
  }
  func.func @transform_5(%arg0: i32) -> (i32, i32, i32) {
    %c0_i32 = arith.constant 0 : i32
    %c0_i32_0 = arith.constant 0 : i32
    %c0_i32_1 = arith.constant 0 : i32
    return %arg0, %c0_i32, %c0_i32_0 : i32, i32, i32
  }
}

module attributes {stable_mosaic.version = 11 : i64} {
  func.func @_roi_pool_kernel(%arg0: i32, %arg1: memref<1x896x256xbf16, #tpu.memory_space<vmem>>, %arg2: memref<1x256x16xbf16, #tpu.memory_space<vmem>>, %arg3: memref<1x896x16xbf16, #tpu.memory_space<vmem>>) attributes {dimension_semantics = [#tpu.dimension_semantics<parallel>], iteration_bounds = array<i64: 2>, scalar_prefetch = 0 : i64, scratch_operands = 0 : i64, tpu.core_type = #tpu.core_type<tc>, window_params = [{transform_indices = @transform_0, window_bounds = array<i64: 1, 896, 256>}, {transform_indices = @transform_1, window_bounds = array<i64: 1, 256, 16>}, {transform_indices = @transform_2, window_bounds = array<i64: 1, 896, 16>}]} {
    %c0 = arith.constant 0 : index
    %c0_0 = arith.constant 0 : index
    %c0_1 = arith.constant 0 : index
    %0 = vector.load %arg1[%c0, %c0_0, %c0_1] : memref<1x896x256xbf16, #tpu.memory_space<vmem>>, vector<1x896x256xbf16>
    %1 = vector.shape_cast %0 : vector<1x896x256xbf16> to vector<896x256xbf16>
    %c0_2 = arith.constant 0 : index
    %c0_3 = arith.constant 0 : index
    %c0_4 = arith.constant 0 : index
    %2 = vector.load %arg2[%c0_2, %c0_3, %c0_4] : memref<1x256x16xbf16, #tpu.memory_space<vmem>>, vector<1x256x16xbf16>
    %3 = vector.shape_cast %2 : vector<1x256x16xbf16> to vector<256x16xbf16>
    %cst = arith.constant dense<0.000000e+00> : vector<896x16xf32>
    %4 = tpu.matmul %1, %3, %cst {dimension_numbers = #tpu.dot_dimension_numbers<[1], [0], [0], [1], [0, 0, 1, 1], [], []>} : vector<896x256xbf16>, vector<256x16xbf16>, vector<896x16xf32> -> vector<896x16xf32>
    %5 = arith.truncf %4 : vector<896x16xf32> to vector<896x16xbf16>
    %c0_5 = arith.constant 0 : index
    %c0_6 = arith.constant 0 : index
    %c0_7 = arith.constant 0 : index
    %6 = vector.load %arg3[%c0_5, %c0_6, %c0_7] : memref<1x896x16xbf16, #tpu.memory_space<vmem>>, vector<1x896x16xbf16>
    %7 = vector.shape_cast %6 : vector<1x896x16xbf16> to vector<896x16xbf16>
    %8 = vector.shape_cast %5 : vector<896x16xbf16> to vector<1x896x16xbf16>
    tpu.vector_store %arg3[%c0_5, %c0_6, %c0_7], %8 {strides = array<i32>} : memref<1x896x16xbf16, #tpu.memory_space<vmem>>, vector<1x896x16xbf16>,
    return
  }
  func.func @transform_0(%arg0: i32) -> (i32, i32, i32) {
    %c0_i32 = arith.constant 0 : i32
    %c0_i32_0 = arith.constant 0 : i32
    %c0_i32_1 = arith.constant 0 : i32
    return %arg0, %c0_i32, %c0_i32_0 : i32, i32, i32
  }
  func.func @transform_1(%arg0: i32) -> (i32, i32, i32) {
    %c0_i32 = arith.constant 0 : i32
    %c0_i32_0 = arith.constant 0 : i32
    %c0_i32_1 = arith.constant 0 : i32
    return %arg0, %c0_i32, %c0_i32_0 : i32, i32, i32
  }
  func.func @transform_2(%arg0: i32) -> (i32, i32, i32) {
    %c0_i32 = arith.constant 0 : i32
    %c0_i32_0 = arith.constant 0 : i32
    %c0_i32_1 = arith.constant 0 : i32
    return %arg0, %c0_i32, %c0_i32_0 : i32, i32, i32
  }
}

module attributes {stable_mosaic.version = 11 : i64} {
  func.func @_box_head_kernel(%arg0: i32, %arg1: memref<16x896xbf16, #tpu.memory_space<vmem>>, %arg2: memref<896x64xbf16, #tpu.memory_space<vmem>>, %arg3: memref<1x64xf32, #tpu.memory_space<vmem>>, %arg4: memref<64x64xbf16, #tpu.memory_space<vmem>>, %arg5: memref<1x64xf32, #tpu.memory_space<vmem>>, %arg6: memref<64x128xbf16, #tpu.memory_space<vmem>>, %arg7: memref<1x128xf32, #tpu.memory_space<vmem>>, %arg8: memref<16x128xf32, #tpu.memory_space<vmem>>) attributes {dimension_semantics = [#tpu.dimension_semantics<parallel>], iteration_bounds = array<i64: 2>, scalar_prefetch = 0 : i64, scratch_operands = 0 : i64, tpu.core_type = #tpu.core_type<tc>, window_params = [{transform_indices = @transform_0, window_bounds = array<i64: 16, 896>}, {pipeline_mode = #tpu.pipeline_mode<synchronous>, transform_indices = @transform_1, window_bounds = array<i64: 896, 64>}, {pipeline_mode = #tpu.pipeline_mode<synchronous>, transform_indices = @transform_2, window_bounds = array<i64: 1, 64>}, {pipeline_mode = #tpu.pipeline_mode<synchronous>, transform_indices = @transform_3, window_bounds = array<i64: 64, 64>}, {pipeline_mode = #tpu.pipeline_mode<synchronous>, transform_indices = @transform_4, window_bounds = array<i64: 1, 64>}, {pipeline_mode = #tpu.pipeline_mode<synchronous>, transform_indices = @transform_5, window_bounds = array<i64: 64, 128>}, {pipeline_mode = #tpu.pipeline_mode<synchronous>, transform_indices = @transform_6, window_bounds = array<i64: 1, 128>}, {transform_indices = @transform_7, window_bounds = array<i64: 16, 128>}]} {
    %c0 = arith.constant 0 : index
    %c0_0 = arith.constant 0 : index
    %0 = vector.load %arg1[%c0, %c0_0] : memref<16x896xbf16, #tpu.memory_space<vmem>>, vector<16x896xbf16>
    %c0_1 = arith.constant 0 : index
    %c0_2 = arith.constant 0 : index
    %1 = vector.load %arg2[%c0_1, %c0_2] : memref<896x64xbf16, #tpu.memory_space<vmem>>, vector<896x64xbf16>
    %cst = arith.constant dense<0.000000e+00> : vector<16x64xf32>
    %2 = tpu.matmul %0, %1, %cst {dimension_numbers = #tpu.dot_dimension_numbers<[1], [0], [0], [1], [0, 0, 1, 1], [], []>} : vector<16x896xbf16>, vector<896x64xbf16>, vector<16x64xf32> -> vector<16x64xf32>
    %c0_3 = arith.constant 0 : index
    %c0_4 = arith.constant 0 : index
    %3 = vector.load %arg3[%c0_3, %c0_4] : memref<1x64xf32, #tpu.memory_space<vmem>>, vector<1x64xf32>
    %4 = vector.broadcast %3 : vector<1x64xf32> to vector<16x64xf32>
    %5 = arith.addf %2, %4 : vector<16x64xf32>
    %cst_5 = arith.constant 0.000000e+00 : f32
    %6 = vector.broadcast %cst_5 : f32 to vector<16x64xf32>
    %7 = arith.maximumf %5, %6 : vector<16x64xf32>
    %8 = arith.truncf %7 : vector<16x64xf32> to vector<16x64xbf16>
    %c0_6 = arith.constant 0 : index
    %c0_7 = arith.constant 0 : index
    %9 = vector.load %arg4[%c0_6, %c0_7] : memref<64x64xbf16, #tpu.memory_space<vmem>>, vector<64x64xbf16>
    %cst_8 = arith.constant dense<0.000000e+00> : vector<16x64xf32>
    %10 = tpu.matmul %8, %9, %cst_8 {dimension_numbers = #tpu.dot_dimension_numbers<[1], [0], [0], [1], [0, 0, 1, 1], [], []>} : vector<16x64xbf16>, vector<64x64xbf16>, vector<16x64xf32> -> vector<16x64xf32>
    %c0_9 = arith.constant 0 : index
    %c0_10 = arith.constant 0 : index
    %11 = vector.load %arg5[%c0_9, %c0_10] : memref<1x64xf32, #tpu.memory_space<vmem>>, vector<1x64xf32>
    %12 = vector.broadcast %11 : vector<1x64xf32> to vector<16x64xf32>
    %13 = arith.addf %10, %12 : vector<16x64xf32>
    %cst_11 = arith.constant 0.000000e+00 : f32
    %14 = vector.broadcast %cst_11 : f32 to vector<16x64xf32>
    %15 = arith.maximumf %13, %14 : vector<16x64xf32>
    %16 = arith.truncf %15 : vector<16x64xf32> to vector<16x64xbf16>
    %c0_12 = arith.constant 0 : index
    %c0_13 = arith.constant 0 : index
    %17 = vector.load %arg6[%c0_12, %c0_13] : memref<64x128xbf16, #tpu.memory_space<vmem>>, vector<64x128xbf16>
    %cst_14 = arith.constant dense<0.000000e+00> : vector<16x128xf32>
    %18 = tpu.matmul %16, %17, %cst_14 {dimension_numbers = #tpu.dot_dimension_numbers<[1], [0], [0], [1], [0, 0, 1, 1], [], []>} : vector<16x64xbf16>, vector<64x128xbf16>, vector<16x128xf32> -> vector<16x128xf32>
    %c0_15 = arith.constant 0 : index
    %c0_16 = arith.constant 0 : index
    %19 = vector.load %arg7[%c0_15, %c0_16] : memref<1x128xf32, #tpu.memory_space<vmem>>, vector<1x128xf32>
    %20 = vector.broadcast %19 : vector<1x128xf32> to vector<16x128xf32>
    %21 = arith.addf %18, %20 : vector<16x128xf32>
    %22 = tpu.iota {dimensions = array<i32: 1>} : vector<16x128xi32>
    %c8_i32 = arith.constant 8 : i32
    %23 = vector.broadcast %c8_i32 : i32 to vector<16x128xi32>
    %24 = arith.cmpi slt, %22, %23 : vector<16x128xi32>
    %cst_17 = arith.constant -1.000000e+30 : f32
    %25 = vector.broadcast %cst_17 : f32 to vector<16x128xf32>
    %26 = arith.select %24, %21, %25 : vector<16x128xi1>, vector<16x128xf32>
    %cst_18 = arith.constant dense<0xFF800000> : vector<16xf32>
    %27 = vector.multi_reduction <maximumf>, %26, %cst_18 [1] : vector<16x128xf32> to vector<16xf32>
    %28 = vector.shape_cast %27 : vector<16xf32> to vector<16x1xf32>
    %29 = vector.broadcast %28 : vector<16x1xf32> to vector<16x128xf32>
    %30 = arith.subf %21, %29 : vector<16x128xf32>
    %31 = arith.select %24, %30, %25 : vector<16x128xi1>, vector<16x128xf32>
    %32 = math.exp %31 : vector<16x128xf32>
    %cst_19 = arith.constant dense<0.000000e+00> : vector<16xf32>
    %33 = vector.multi_reduction <add>, %32, %cst_19 [1] : vector<16x128xf32> to vector<16xf32>
    %34 = vector.shape_cast %33 : vector<16xf32> to vector<16x1xf32>
    %35 = tpu.reciprocal %34 {approx = true} : vector<16x1xf32> -> vector<16x1xf32>
    %36 = vector.broadcast %35 : vector<16x1xf32> to vector<16x128xf32>
    %37 = arith.mulf %32, %36 : vector<16x128xf32>
    %38 = arith.select %24, %37, %21 : vector<16x128xi1>, vector<16x128xf32>
    %c0_20 = arith.constant 0 : index
    %c0_21 = arith.constant 0 : index
    %39 = vector.load %arg8[%c0_20, %c0_21] : memref<16x128xf32, #tpu.memory_space<vmem>>, vector<16x128xf32>
    tpu.vector_store %arg8[%c0_20, %c0_21], %38 {strides = array<i32>} : memref<16x128xf32, #tpu.memory_space<vmem>>, vector<16x128xf32>,
    return
  }
  func.func @transform_0(%arg0: i32) -> (i32, i32) {
    %c0_i32 = arith.constant 0 : i32
    %c0_i32_0 = arith.constant 0 : i32
    return %arg0, %c0_i32 : i32, i32
  }
  func.func @transform_1(%arg0: i32) -> (i32, i32) {
    %c0_i32 = arith.constant 0 : i32
    %c0_i32_0 = arith.constant 0 : i32
    %c0_i32_1 = arith.constant 0 : i32
    return %c0_i32, %c0_i32_0 : i32, i32
  }
  func.func @transform_2(%arg0: i32) -> (i32, i32) {
    %c0_i32 = arith.constant 0 : i32
    %c0_i32_0 = arith.constant 0 : i32
    %c0_i32_1 = arith.constant 0 : i32
    return %c0_i32, %c0_i32_0 : i32, i32
  }
  func.func @transform_3(%arg0: i32) -> (i32, i32) {
    %c0_i32 = arith.constant 0 : i32
    %c0_i32_0 = arith.constant 0 : i32
    %c0_i32_1 = arith.constant 0 : i32
    return %c0_i32, %c0_i32_0 : i32, i32
  }
  func.func @transform_4(%arg0: i32) -> (i32, i32) {
    %c0_i32 = arith.constant 0 : i32
    %c0_i32_0 = arith.constant 0 : i32
    %c0_i32_1 = arith.constant 0 : i32
    return %c0_i32, %c0_i32_0 : i32, i32
  }
  func.func @transform_5(%arg0: i32) -> (i32, i32) {
    %c0_i32 = arith.constant 0 : i32
    %c0_i32_0 = arith.constant 0 : i32
    %c0_i32_1 = arith.constant 0 : i32
    return %c0_i32, %c0_i32_0 : i32, i32
  }
  func.func @transform_6(%arg0: i32) -> (i32, i32) {
    %c0_i32 = arith.constant 0 : i32
    %c0_i32_0 = arith.constant 0 : i32
    %c0_i32_1 = arith.constant 0 : i32
    return %c0_i32, %c0_i32_0 : i32, i32
  }
  func.func @transform_7(%arg0: i32) -> (i32, i32) {
    %c0_i32 = arith.constant 0 : i32
    %c0_i32_0 = arith.constant 0 : i32
    return %arg0, %c0_i32 : i32, i32
  }
}

</mosaic_0001>

<llo_original>
// kernel: _forward_impl.6
$region0: #{_forward_impl.6}
  #allocation0 [shape = 'u32[]', space=smem, size = 0x4, offset = 0x4, fixed_abs, tag = 'smem constant byte address 0x4 - core index']
  #allocation1 [shape = 'u32[144,128]{1,0:T(1,128)}', space=vmem, size = 0x12000, scoped, tag = 'internal scratch']
  %s0 = inlined_call_operand.vmem [shape: bf16[2,17,17,32], index: 0, kind: input, shape index: {}]
  %s1 = inlined_call_operand.vmem [shape: bf16[128,16], index: 1, kind: input, shape index: {}]
  %s2 = inlined_call_operand.vmem [shape: f32[1,16], index: 2, kind: input, shape index: {}]
  %s3 = inlined_call_operand.vmem [shape: bf16[2,256,16], index: 3, kind: output, shape index: {}]
  %s4 = sld [smem:[#allocation0]]
  $region45: #{_forward_impl.6} parent=0
    _
  %s6 = ssub.s32 1, %s4
  %s7 = scalar_select 0, %s6, %s4
  loop: start=0, step=1, limit=4
  $region2: #{_forward_impl.6} parent=0 // loop_pre_header
    _
  $region3: #{_forward_impl.6} parent=0 // loop_header
    %s9 = sphi 0, %s13
    %p10 = scmp.ge.s32.totalorder %s9, 4
    %s19 = sphi 0, %s21
    %s22 = sphi 0, %s19
    %s23 = sphi 0, %s22
    %s39 = sphi 0, %s23
    %s43 = sphi 0, %s43
    %s45 = sphi 0, %s43
    %s46 = sphi 0, %s45
    %s60 = sphi 0, %s46
    %s64 = sphi 0, %s64
    %s66 = sphi 0, %s64
    %s67 = sphi 0, %s66
    %s81 = sphi 0, %s67
    %s87 = sphi 0, %s89
    %s90 = sphi 0, %s87
    %s91 = sphi 0, %s90
    %s107 = sphi 0, %s91
  $region4: #{_forward_impl.6} parent=0 // loop_header_branch
    %12 = sbr.rel (%p10) target = $region8
  $region5: #{_forward_impl.6} parent=0 // loop_body
    %s14 = ssub.s32 %s9, 1
    %s15 = ssub.s32 %s9, 2
    %s16 = sadd.s32 %s9, 1
    %s17 = ssub.s32 %s9, %s16
    %p18 = scmp.eq.s32.totalorder %s17, 0
    %s20 = sadd.s32 %s19, 1
    %s21 = scalar_select %p18, %s19, %s20
    %p24 = pneg %p18
    %p25 = scmp.eq.s32.totalorder %s9, 1
    %p26 = por %p24, %p25
    %p27 = scmp.ne.s32.totalorder %s19, %s22
    %p28 = scmp.eq.s32.totalorder %s9, 0
    %p29 = por %p27, %p28
    %p30 = scmp.ne.s32.totalorder %s19, %s22
    %p31 = scmp.eq.s32.totalorder %s14, 1
    %p32 = por %p30, %p31
    %p33 = scmp.ne.s32.totalorder %s22, %s23
    %p34 = scmp.eq.s32.totalorder %s14, 0
    %p35 = por %p33, %p34
    %p36 = scmp.ne.s32.totalorder %s22, %s23
    %p37 = scmp.eq.s32.totalorder %s15, 1
    %p38 = por %p36, %p37
    %p40 = scmp.ne.s32.totalorder %s23, %s39
    %p41 = scmp.eq.s32.totalorder %s15, 0
    %p42 = por %p40, %p41
    %s44 = sadd.s32 %s43, 1
    %p47 = scmp.eq.s32.totalorder %s9, 1
    %p48 = scmp.ne.s32.totalorder %s43, %s45
    %p49 = scmp.eq.s32.totalorder %s9, 0
    %p50 = por %p48, %p49
    %p51 = scmp.ne.s32.totalorder %s43, %s45
    %p52 = scmp.eq.s32.totalorder %s14, 1
    %p53 = por %p51, %p52
    %p54 = scmp.ne.s32.totalorder %s45, %s46
    %p55 = scmp.eq.s32.totalorder %s14, 0
    %p56 = por %p54, %p55
    %p57 = scmp.ne.s32.totalorder %s45, %s46
    %p58 = scmp.eq.s32.totalorder %s15, 1
    %p59 = por %p57, %p58
    %p61 = scmp.ne.s32.totalorder %s46, %s60
    %p62 = scmp.eq.s32.totalorder %s15, 0
    %p63 = por %p61, %p62
    %s65 = sadd.s32 %s64, 1
    %p68 = scmp.eq.s32.totalorder %s9, 1
    %p69 = scmp.ne.s32.totalorder %s64, %s66
    %p70 = scmp.eq.s32.totalorder %s9, 0
    %p71 = por %p69, %p70
    %p72 = scmp.ne.s32.totalorder %s64, %s66
    %p73 = scmp.eq.s32.totalorder %s14, 1
    %p74 = por %p72, %p73
    %p75 = scmp.ne.s32.totalorder %s66, %s67
    %p76 = scmp.eq.s32.totalorder %s14, 0
    %p77 = por %p75, %p76
    %p78 = scmp.ne.s32.totalorder %s66, %s67
    %p79 = scmp.eq.s32.totalorder %s15, 1
    %p80 = por %p78, %p79
    %p82 = scmp.ne.s32.totalorder %s67, %s81
    %p83 = scmp.eq.s32.totalorder %s15, 0
    %p84 = por %p82, %p83
    %s85 = ssub.s32 %s9, %s16
    %p86 = scmp.eq.s32.totalorder %s85, 0
    %s88 = sadd.s32 %s87, 1
    %s89 = scalar_select %p86, %s87, %s88
    %p92 = pneg %p86
    %p93 = scmp.eq.s32.totalorder %s9, 1
    %p94 = por %p92, %p93
    %p95 = scmp.ne.s32.totalorder %s87, %s90
    %p96 = scmp.eq.s32.totalorder %s9, 0
    %p97 = por %p95, %p96
    %p98 = scmp.ne.s32.totalorder %s87, %s90
    %p99 = scmp.eq.s32.totalorder %s14, 1
    %p100 = por %p98, %p99
    %p101 = scmp.ne.s32.totalorder %s90, %s91
    %p102 = scmp.eq.s32.totalorder %s14, 0
    %p103 = por %p101, %p102
    %p104 = scmp.ne.s32.totalorder %s90, %s91
    %p105 = scmp.eq.s32.totalorder %s15, 1
    %p106 = por %p104, %p105
    %p108 = scmp.ne.s32.totalorder %s91, %s107
    %p109 = scmp.eq.s32.totalorder %s15, 0
    %p110 = por %p108, %p109
    %p111 = scmp.le.s32.totalorder 1, %s9
    %p112 = scmp.lt.s32.totalorder %s9, 3
    %p113 = pnand %p111, %p112
    %p114 = pneg %p113
    // Predicated region
    $region9: #{_forward_impl.6} parent=5 // pred_check
      _
    $region10: #{_forward_impl.6} parent=5 // pred_check_branch
      %116 = sbr.rel (%p113) target = $region12
    $region11: #{_forward_impl.6} parent=5 // pred_region
      %s117 = ssub.s32 %s9, 1
      // Predicated region
      $region13: #{_forward_impl.6} parent=11 // pred_check
        %p118 = pneg %p56
      $region14: #{_forward_impl.6} parent=11 // pred_check_branch
        %120 = sbr.rel (%p118) target = $region16
      $region15: #{_forward_impl.6} parent=11 // pred_region
        _
      $region16: #{_forward_impl.6} parent=11 // pred_fallthru
        _
      // Predicated region
      $region17: #{_forward_impl.6} parent=11 // pred_check
        %p121 = pneg %p77
      $region18: #{_forward_impl.6} parent=11 // pred_check_branch
        %123 = sbr.rel (%p121) target = $region20
      $region19: #{_forward_impl.6} parent=11 // pred_region
        _
      $region20: #{_forward_impl.6} parent=11 // pred_fallthru
        _
    $region12: #{_forward_impl.6} parent=5 // pred_fallthru
      _
    %p124 = scmp.lt.s32.totalorder %s9, 2
    // Predicated region
    $region21: #{_forward_impl.6} parent=5 // pred_check
      %p125 = pneg %p124
    $region22: #{_forward_impl.6} parent=5 // pred_check_branch
      %127 = sbr.rel (%p125) target = $region24
    $region23: #{_forward_impl.6} parent=5 // pred_region
      // Predicated region
      $region25: #{_forward_impl.6} parent=23 // pred_check
        %p128 = pneg %p29
      $region26: #{_forward_impl.6} parent=23 // pred_check_branch
        %130 = sbr.rel (%p128) target = $region28
      $region27: #{_forward_impl.6} parent=23 // pred_region
        %p131 = scmp.lt.s32.totalorder %s9, 1
        %s132 = scalar_select %p131, %s9, 1
        %s133 = smul.addr %s132, 51
        %s134 = smul.addr %s133, 4
        %s135 = scalar_lea.vmem %s0, %s134
      $region28: #{_forward_impl.6} parent=23 // pred_fallthru
        _
    $region24: #{_forward_impl.6} parent=5 // pred_fallthru
      _
    %p136 = scmp.le.s32.totalorder 1, %s9
    %p137 = scmp.lt.s32.totalorder %s9, 3
    %p138 = pnand %p136, %p137
    %p139 = pneg %p138
    // Predicated region
    $region29: #{_forward_impl.6} parent=5 // pred_check
      _
    $region30: #{_forward_impl.6} parent=5 // pred_check_branch
      %141 = sbr.rel (%p138) target = $region32
    $region31: #{_forward_impl.6} parent=5 // pred_region
      %s142 = ssub.s32 %s9, 1
      %p143 = scmp.lt.s32.totalorder %s14, 1
      %s144 = scalar_select %p143, %s14, 1
      %s145 = smul.addr %s144, 51
      %s146 = smul.addr %s145, 4
      %s147 = scalar_lea.vmem %s0, %s146
      %p148 = pneg %p35
      %p149 = pneg %p32
      %p150 = pneg %p56
      %p151 = pneg %p53
      %p152 = pneg %p77
      %p153 = pneg %p74
      %p154 = pneg %p103
      %p155 = pneg %p100
      %p156 = scmp.lt.s32.totalorder %s14, 1
      %s157 = scalar_select %p156, %s14, 1
      %s158 = smul.addr %s157, 32
      %s159 = smul.addr %s158, 4
      %s160 = scalar_lea.vmem %s3, %s159
      %p161 = scmp.lt.s32.totalorder %s14, 1
      %s162 = scalar_select %p161, %s14, 1
      %s163 = smul.addr %s162, 51
      %s164 = smul.addr %s163, 4
      %s165 = scalar_lea.vmem %s0, %s164
      %p166 = scmp.lt.s32.totalorder %s14, 1
      %s167 = scalar_select %p166, %s14, 1
      %s168 = smul.addr %s167, 32
      %s169 = smul.addr %s168, 4
      %s170 = scalar_lea.vmem %s3, %s169
      %v172 = vld [vmem:[%s165] sm:$0xf]
      %v173 = vld [vmem:[%s165 + $0x4] sm:$0xf]
      %v174 = vld [vmem:[%s165 + $0xc] sm:$0xf]
      %v175 = vld [vmem:[%s165 + $0x10] sm:$0xf]
      %v176 = vld [vmem:[%s165 + $0x18] sm:$0xf]
      %v177 = vld [vmem:[%s165 + $0x1c] sm:$0xf]
      %v178 = vld [vmem:[%s165 + $0x24] sm:$0xf]
      %v179 = vld [vmem:[%s165 + $0x28] sm:$0xf]
      %v180 = vld [vmem:[%s165 + $0x30] sm:$0xf]
      %v181 = vld [vmem:[%s165 + $0x34] sm:$0xf]
      %v182 = vld [vmem:[%s165 + $0x3c] sm:$0xf]
      %v183 = vld [vmem:[%s165 + $0x40] sm:$0xf]
      %v184 = vld [vmem:[%s165 + $0x48] sm:$0xf]
      %v185 = vld [vmem:[%s165 + $0x4c] sm:$0xf]
      %v186 = vld [vmem:[%s165 + $0x54] sm:$0xf]
      %v187 = vld [vmem:[%s165 + $0x58] sm:$0xf]
      %v188 = vld [vmem:[%s165 + $0x60] sm:$0xf]
      %v189 = vld [vmem:[%s165 + $0x64] sm:$0xf]
      %v190 = vld [vmem:[%s165 + $0x6c] sm:$0xf]
      %v191 = vld [vmem:[%s165 + $0x70] sm:$0xf]
      %v192 = vld [vmem:[%s165 + $0x78] sm:$0xf]
      %v193 = vld [vmem:[%s165 + $0x7c] sm:$0xf]
      %v194 = vld [vmem:[%s165 + $0x84] sm:$0xf]
      %v195 = vld [vmem:[%s165 + $0x88] sm:$0xf]
      %v196 = vld [vmem:[%s165 + $0x90] sm:$0xf]
      %v197 = vld [vmem:[%s165 + $0x94] sm:$0xf]
      %v198 = vld [vmem:[%s165 + $0x9c] sm:$0xf]
      %v199 = vld [vmem:[%s165 + $0xa0] sm:$0xf]
      %v200 = vld [vmem:[%s165 + $0xa8] sm:$0xf]
      %v201 = vld [vmem:[%s165 + $0xac] sm:$0xf]
      %v202 = vld [vmem:[%s165 + $0xb4] sm:$0xf]
      %v203 = vld [vmem:[%s165 + $0xb8] sm:$0xf]
      %v204 = vld [vmem:[%s165 + $0x8] sm:$0x1]
      %v205 = vld [vmem:[%s165 + $0x14] sm:$0x1]
      %v206 = vld [vmem:[%s165 + $0x20] sm:$0x1]
      %v207 = vld [vmem:[%s165 + $0x2c] sm:$0x1]
      %v208 = vld [vmem:[%s165 + $0x38] sm:$0x1]
      %v209 = vld [vmem:[%s165 + $0x44] sm:$0x1]
      %v210 = vld [vmem:[%s165 + $0x50] sm:$0x1]
      %v211 = vld [vmem:[%s165 + $0x5c] sm:$0x1]
      %v212 = vld [vmem:[%s165 + $0x68] sm:$0x1]
      %v213 = vld [vmem:[%s165 + $0x74] sm:$0x1]
      %v214 = vld [vmem:[%s165 + $0x80] sm:$0x1]
      %v215 = vld [vmem:[%s165 + $0x8c] sm:$0x1]
      %v216 = vld [vmem:[%s165 + $0x98] sm:$0x1]
      %v217 = vld [vmem:[%s165 + $0xa4] sm:$0x1]
      %v218 = vld [vmem:[%s165 + $0xb0] sm:$0x1]
      %v219 = vld [vmem:[%s165 + $0xbc] sm:$0x1]
      %vm220 = vsmask.f32 3328
      %vm221 = vsmask.f32 7440
      %vm222 = vmor %vm220, %vm221
      %v224 = vshrl.u32 %v172, 16
      %v226 = vrot.slane %v224, 4
      %v227 = vshll.u32 %v172, 16
      %v229 = vrot.slane %v227, 5
      %v230 = vor.u32 %v226, %v229
      %v231 = vrot.slane %v230, 4
      %v233 = vshll.u32 %v173, 16
      %v235 = vrot.slane %v233, 5
      %v236 = vsel %vm222, %v231, %v235
      %v237 = vshrl.u32 %v173, 16
      %v239 = vrot.slane %v237, 4
      %v240 = vor.u32 %v239, %v235
      %v241 = vrot.slane %v240, 4
      %v243 = vshll.u32 %v204, 16
      %v245 = vrot.slane %v243, 5
      %v246 = vsel %vm222, %v241, %v245
      %v248 = vshrl.u32 %v174, 16
      %v250 = vrot.slane %v248, 4
      %v251 = vshll.u32 %v174, 16
      %v253 = vrot.slane %v251, 5
      %v254 = vor.u32 %v250, %v253
      %v255 = vrot.slane %v254, 4
      %v257 = vshll.u32 %v175, 16
      %v259 = vrot.slane %v257, 5
      %v260 = vsel %vm222, %v255, %v259
      %v261 = vshrl.u32 %v175, 16
      %v263 = vrot.slane %v261, 4
      %v264 = vor.u32 %v263, %v259
      %v265 = vrot.slane %v264, 4
      %v267 = vshll.u32 %v205, 16
      %v269 = vrot.slane %v267, 5
      %v270 = vsel %vm222, %v265, %v269
      %v272 = vshrl.u32 %v176, 16
      %v274 = vrot.slane %v272, 4
      %v275 = vshll.u32 %v176, 16
      %v277 = vrot.slane %v275, 5
      %v278 = vor.u32 %v274, %v277
      %v279 = vrot.slane %v278, 4
      %v281 = vshll.u32 %v177, 16
      %v283 = vrot.slane %v281, 5
      %v284 = vsel %vm222, %v279, %v283
      %v285 = vshrl.u32 %v177, 16
      %v287 = vrot.slane %v285, 4
      %v288 = vor.u32 %v287, %v283
      %v289 = vrot.slane %v288, 4
      %v291 = vshll.u32 %v206, 16
      %v293 = vrot.slane %v291, 5
      %v294 = vsel %vm222, %v289, %v293
      %v296 = vshrl.u32 %v178, 16
      %v298 = vrot.slane %v296, 4
      %v299 = vshll.u32 %v178, 16
      %v301 = vrot.slane %v299, 5
      %v302 = vor.u32 %v298, %v301
      %v303 = vrot.slane %v302, 4
      %v305 = vshll.u32 %v179, 16
      %v307 = vrot.slane %v305, 5
      %v308 = vsel %vm222, %v303, %v307
      %v309 = vshrl.u32 %v179, 16
      %v311 = vrot.slane %v309, 4
      %v312 = vor.u32 %v311, %v307
      %v313 = vrot.slane %v312, 4
      %v315 = vshll.u32 %v207, 16
      %v317 = vrot.slane %v315, 5
      %v318 = vsel %vm222, %v313, %v317
      %v320 = vshrl.u32 %v180, 16
      %v322 = vrot.slane %v320, 4
      %v323 = vshll.u32 %v180, 16
      %v325 = vrot.slane %v323, 5
      %v326 = vor.u32 %v322, %v325
      %v327 = vrot.slane %v326, 4
      %v329 = vshll.u32 %v181, 16
      %v331 = vrot.slane %v329, 5
      %v332 = vsel %vm222, %v327, %v331
      %v333 = vshrl.u32 %v181, 16
      %v335 = vrot.slane %v333, 4
      %v336 = vor.u32 %v335, %v331
      %v337 = vrot.slane %v336, 4
      %v339 = vshll.u32 %v208, 16
      %v341 = vrot.slane %v339, 5
      %v342 = vsel %vm222, %v337, %v341
      %v344 = vshrl.u32 %v182, 16
      %v346 = vrot.slane %v344, 4
      %v347 = vshll.u32 %v182, 16
      %v349 = vrot.slane %v347, 5
      %v350 = vor.u32 %v346, %v349
      %v351 = vrot.slane %v350, 4
      %v353 = vshll.u32 %v183, 16
      %v355 = vrot.slane %v353, 5
      %v356 = vsel %vm222, %v351, %v355
      %v357 = vshrl.u32 %v183, 16
      %v359 = vrot.slane %v357, 4
      %v360 = vor.u32 %v359, %v355
      %v361 = vrot.slane %v360, 4
      %v363 = vshll.u32 %v209, 16
      %v365 = vrot.slane %v363, 5
      %v366 = vsel %vm222, %v361, %v365
      %v368 = vshrl.u32 %v184, 16
      %v370 = vrot.slane %v368, 4
      %v371 = vshll.u32 %v184, 16
      %v373 = vrot.slane %v371, 5
      %v374 = vor.u32 %v370, %v373
      %v375 = vrot.slane %v374, 4
      %v377 = vshll.u32 %v185, 16
      %v379 = vrot.slane %v377, 5
      %v380 = vsel %vm222, %v375, %v379
      %v381 = vshrl.u32 %v185, 16
      %v383 = vrot.slane %v381, 4
      %v384 = vor.u32 %v383, %v379
      %v385 = vrot.slane %v384, 4
      %v387 = vshll.u32 %v210, 16
      %v389 = vrot.slane %v387, 5
      %v390 = vsel %vm222, %v385, %v389
      %v392 = vshrl.u32 %v186, 16
      %v394 = vrot.slane %v392, 4
      %v395 = vshll.u32 %v186, 16
      %v397 = vrot.slane %v395, 5
      %v398 = vor.u32 %v394, %v397
      %v399 = vrot.slane %v398, 4
      %v401 = vshll.u32 %v187, 16
      %v403 = vrot.slane %v401, 5
      %v404 = vsel %vm222, %v399, %v403
      %v405 = vshrl.u32 %v187, 16
      %v407 = vrot.slane %v405, 4
      %v408 = vor.u32 %v407, %v403
      %v409 = vrot.slane %v408, 4
      %v411 = vshll.u32 %v211, 16
      %v413 = vrot.slane %v411, 5
      %v414 = vsel %vm222, %v409, %v413
      %v416 = vshrl.u32 %v188, 16
      %v418 = vrot.slane %v416, 4
      %v419 = vshll.u32 %v188, 16
      %v421 = vrot.slane %v419, 5
      %v422 = vor.u32 %v418, %v421
      %v423 = vrot.slane %v422, 4
      %v425 = vshll.u32 %v189, 16
      %v427 = vrot.slane %v425, 5
      %v428 = vsel %vm222, %v423, %v427
      %v429 = vshrl.u32 %v189, 16
      %v431 = vrot.slane %v429, 4
      %v432 = vor.u32 %v431, %v427
      %v433 = vrot.slane %v432, 4
      %v435 = vshll.u32 %v212, 16
      %v437 = vrot.slane %v435, 5
      %v438 = vsel %vm222, %v433, %v437
      %v440 = vshrl.u32 %v190, 16
      %v442 = vrot.slane %v440, 4
      %v443 = vshll.u32 %v190, 16
      %v445 = vrot.slane %v443, 5
      %v446 = vor.u32 %v442, %v445
      %v447 = vrot.slane %v446, 4
      %v449 = vshll.u32 %v191, 16
      %v451 = vrot.slane %v449, 5
      %v452 = vsel %vm222, %v447, %v451
      %v453 = vshrl.u32 %v191, 16
      %v455 = vrot.slane %v453, 4
      %v456 = vor.u32 %v455, %v451
      %v457 = vrot.slane %v456, 4
      %v459 = vshll.u32 %v213, 16
      %v461 = vrot.slane %v459, 5
      %v462 = vsel %vm222, %v457, %v461
      %v464 = vshrl.u32 %v192, 16
      %v466 = vrot.slane %v464, 4
      %v467 = vshll.u32 %v192, 16
      %v469 = vrot.slane %v467, 5
      %v470 = vor.u32 %v466, %v469
      %v471 = vrot.slane %v470, 4
      %v473 = vshll.u32 %v193, 16
      %v475 = vrot.slane %v473, 5
      %v476 = vsel %vm222, %v471, %v475
      %v477 = vshrl.u32 %v193, 16
      %v479 = vrot.slane %v477, 4
      %v480 = vor.u32 %v479, %v475
      %v481 = vrot.slane %v480, 4
      %v483 = vshll.u32 %v214, 16
      %v485 = vrot.slane %v483, 5
      %v486 = vsel %vm222, %v481, %v485
      %v488 = vshrl.u32 %v194, 16
      %v490 = vrot.slane %v488, 4
      %v491 = vshll.u32 %v194, 16
      %v493 = vrot.slane %v491, 5
      %v494 = vor.u32 %v490, %v493
      %v495 = vrot.slane %v494, 4
      %v497 = vshll.u32 %v195, 16
      %v499 = vrot.slane %v497, 5
      %v500 = vsel %vm222, %v495, %v499
      %v501 = vshrl.u32 %v195, 16
      %v503 = vrot.slane %v501, 4
      %v504 = vor.u32 %v503, %v499
      %v505 = vrot.slane %v504, 4
      %v507 = vshll.u32 %v215, 16
      %v509 = vrot.slane %v507, 5
      %v510 = vsel %vm222, %v505, %v509
      %v512 = vshrl.u32 %v196, 16
      %v514 = vrot.slane %v512, 4
      %v515 = vshll.u32 %v196, 16
      %v517 = vrot.slane %v515, 5
      %v518 = vor.u32 %v514, %v517
      %v519 = vrot.slane %v518, 4
      %v521 = vshll.u32 %v197, 16
      %v523 = vrot.slane %v521, 5
      %v524 = vsel %vm222, %v519, %v523
      %v525 = vshrl.u32 %v197, 16
      %v527 = vrot.slane %v525, 4
      %v528 = vor.u32 %v527, %v523
      %v529 = vrot.slane %v528, 4
      %v531 = vshll.u32 %v216, 16
      %v533 = vrot.slane %v531, 5
      %v534 = vsel %vm222, %v529, %v533
      %v536 = vshrl.u32 %v198, 16
      %v538 = vrot.slane %v536, 4
      %v539 = vshll.u32 %v198, 16
      %v541 = vrot.slane %v539, 5
      %v542 = vor.u32 %v538, %v541
      %v543 = vrot.slane %v542, 4
      %v545 = vshll.u32 %v199, 16
      %v547 = vrot.slane %v545, 5
      %v548 = vsel %vm222, %v543, %v547
      %v549 = vshrl.u32 %v199, 16
      %v551 = vrot.slane %v549, 4
      %v552 = vor.u32 %v551, %v547
      %v553 = vrot.slane %v552, 4
      %v555 = vshll.u32 %v217, 16
      %v557 = vrot.slane %v555, 5
      %v558 = vsel %vm222, %v553, %v557
      %v560 = vshrl.u32 %v200, 16
      %v562 = vrot.slane %v560, 4
      %v563 = vshll.u32 %v200, 16
      %v565 = vrot.slane %v563, 5
      %v566 = vor.u32 %v562, %v565
      %v567 = vrot.slane %v566, 4
      %v569 = vshll.u32 %v201, 16
      %v571 = vrot.slane %v569, 5
      %v572 = vsel %vm222, %v567, %v571
      %v573 = vshrl.u32 %v201, 16
      %v575 = vrot.slane %v573, 4
      %v576 = vor.u32 %v575, %v571
      %v577 = vrot.slane %v576, 4
      %v579 = vshll.u32 %v218, 16
      %v581 = vrot.slane %v579, 5
      %v582 = vsel %vm222, %v577, %v581
      %v584 = vshrl.u32 %v202, 16
      %v586 = vrot.slane %v584, 4
      %v587 = vshll.u32 %v202, 16
      %v589 = vrot.slane %v587, 5
      %v590 = vor.u32 %v586, %v589
      %v591 = vrot.slane %v590, 4
      %v593 = vshll.u32 %v203, 16
      %v595 = vrot.slane %v593, 5
      %v596 = vsel %vm222, %v591, %v595
      %v597 = vshrl.u32 %v203, 16
      %v599 = vrot.slane %v597, 4
      %v600 = vor.u32 %v599, %v595
      %v601 = vrot.slane %v600, 4
      %v603 = vshll.u32 %v219, 16
      %v605 = vrot.slane %v603, 5
      %v606 = vsel %vm222, %v601, %v605
      %s607 = scalar_lea.vmem %s165, 12
      %v608 = vld [vmem:[%s607] sm:$0xf]
      %v609 = vld [vmem:[%s607 + $0x4] sm:$0xf]
      %v610 = vld [vmem:[%s607 + $0xc] sm:$0xf]
      %v611 = vld [vmem:[%s607 + $0x10] sm:$0xf]
      %v612 = vld [vmem:[%s607 + $0x18] sm:$0xf]
      %v613 = vld [vmem:[%s607 + $0x1c] sm:$0xf]
      %v614 = vld [vmem:[%s607 + $0x24] sm:$0xf]
      %v615 = vld [vmem:[%s607 + $0x28] sm:$0xf]
      %v616 = vld [vmem:[%s607 + $0x30] sm:$0xf]
      %v617 = vld [vmem:[%s607 + $0x34] sm:$0xf]
      %v618 = vld [vmem:[%s607 + $0x3c] sm:$0xf]
      %v619 = vld [vmem:[%s607 + $0x40] sm:$0xf]
      %v620 = vld [vmem:[%s607 + $0x48] sm:$0xf]
      %v621 = vld [vmem:[%s607 + $0x4c] sm:$0xf]
      %v622 = vld [vmem:[%s607 + $0x54] sm:$0xf]
      %v623 = vld [vmem:[%s607 + $0x58] sm:$0xf]
      %v624 = vld [vmem:[%s607 + $0x60] sm:$0xf]
      %v625 = vld [vmem:[%s607 + $0x64] sm:$0xf]
      %v626 = vld [vmem:[%s607 + $0x6c] sm:$0xf]
      %v627 = vld [vmem:[%s607 + $0x70] sm:$0xf]
      %v628 = vld [vmem:[%s607 + $0x78] sm:$0xf]
      %v629 = vld [vmem:[%s607 + $0x7c] sm:$0xf]
      %v630 = vld [vmem:[%s607 + $0x84] sm:$0xf]
      %v631 = vld [vmem:[%s607 + $0x88] sm:$0xf]
      %v632 = vld [vmem:[%s607 + $0x90] sm:$0xf]
      %v633 = vld [vmem:[%s607 + $0x94] sm:$0xf]
      %v634 = vld [vmem:[%s607 + $0x9c] sm:$0xf]
      %v635 = vld [vmem:[%s607 + $0xa0] sm:$0xf]
      %v636 = vld [vmem:[%s607 + $0xa8] sm:$0xf]
      %v637 = vld [vmem:[%s607 + $0xac] sm:$0xf]
      %v638 = vld [vmem:[%s607 + $0xb4] sm:$0xf]
      %v639 = vld [vmem:[%s607 + $0xb8] sm:$0xf]
      %v640 = vld [vmem:[%s607 + $0x8] sm:$0x1]
      %v641 = vld [vmem:[%s607 + $0x14] sm:$0x1]
      %v642 = vld [vmem:[%s607 + $0x20] sm:$0x1]
      %v643 = vld [vmem:[%s607 + $0x2c] sm:$0x1]
      %v644 = vld [vmem:[%s607 + $0x38] sm:$0x1]
      %v645 = vld [vmem:[%s607 + $0x44] sm:$0x1]
      %v646 = vld [vmem:[%s607 + $0x50] sm:$0x1]
      %v647 = vld [vmem:[%s607 + $0x5c] sm:$0x1]
      %v648 = vld [vmem:[%s607 + $0x68] sm:$0x1]
      %v649 = vld [vmem:[%s607 + $0x74] sm:$0x1]
      %v650 = vld [vmem:[%s607 + $0x80] sm:$0x1]
      %v651 = vld [vmem:[%s607 + $0x8c] sm:$0x1]
      %v652 = vld [vmem:[%s607 + $0x98] sm:$0x1]
      %v653 = vld [vmem:[%s607 + $0xa4] sm:$0x1]
      %v654 = vld [vmem:[%s607 + $0xb0] sm:$0x1]
      %v655 = vld [vmem:[%s607 + $0xbc] sm:$0x1]
      %v657 = vshrl.u32 %v608, 16
      %v659 = vrot.slane %v657, 4
      %v660 = vshll.u32 %v608, 16
      %v662 = vrot.slane %v660, 5
      %v663 = vor.u32 %v659, %v662
      %v664 = vrot.slane %v663, 4
      %v666 = vshll.u32 %v609, 16
      %v668 = vrot.slane %v666, 5
      %v669 = vsel %vm222, %v664, %v668
      %v670 = vshrl.u32 %v609, 16
      %v672 = vrot.slane %v670, 4
      %v673 = vor.u32 %v672, %v668
      %v674 = vrot.slane %v673, 4
      %v676 = vshll.u32 %v640, 16
      %v678 = vrot.slane %v676, 5
      %v679 = vsel %vm222, %v674, %v678
      %v681 = vshrl.u32 %v610, 16
      %v683 = vrot.slane %v681, 4
      %v684 = vshll.u32 %v610, 16
      %v686 = vrot.slane %v684, 5
      %v687 = vor.u32 %v683, %v686
      %v688 = vrot.slane %v687, 4
      %v690 = vshll.u32 %v611, 16
      %v692 = vrot.slane %v690, 5
      %v693 = vsel %vm222, %v688, %v692
      %v694 = vshrl.u32 %v611, 16
      %v696 = vrot.slane %v694, 4
      %v697 = vor.u32 %v696, %v692
      %v698 = vrot.slane %v697, 4
      %v700 = vshll.u32 %v641, 16
      %v702 = vrot.slane %v700, 5
      %v703 = vsel %vm222, %v698, %v702
      %v705 = vshrl.u32 %v612, 16
      %v707 = vrot.slane %v705, 4
      %v708 = vshll.u32 %v612, 16
      %v710 = vrot.slane %v708, 5
      %v711 = vor.u32 %v707, %v710
      %v712 = vrot.slane %v711, 4
      %v714 = vshll.u32 %v613, 16
      %v716 = vrot.slane %v714, 5
      %v717 = vsel %vm222, %v712, %v716
      %v718 = vshrl.u32 %v613, 16
      %v720 = vrot.slane %v718, 4
      %v721 = vor.u32 %v720, %v716
      %v722 = vrot.slane %v721, 4
      %v724 = vshll.u32 %v642, 16
      %v726 = vrot.slane %v724, 5
      %v727 = vsel %vm222, %v722, %v726
      %v729 = vshrl.u32 %v614, 16
      %v731 = vrot.slane %v729, 4
      %v732 = vshll.u32 %v614, 16
      %v734 = vrot.slane %v732, 5
      %v735 = vor.u32 %v731, %v734
      %v736 = vrot.slane %v735, 4
      %v738 = vshll.u32 %v615, 16
      %v740 = vrot.slane %v738, 5
      %v741 = vsel %vm222, %v736, %v740
      %v742 = vshrl.u32 %v615, 16
      %v744 = vrot.slane %v742, 4
      %v745 = vor.u32 %v744, %v740
      %v746 = vrot.slane %v745, 4
      %v748 = vshll.u32 %v643, 16
      %v750 = vrot.slane %v748, 5
      %v751 = vsel %vm222, %v746, %v750
      %v753 = vshrl.u32 %v616, 16
      %v755 = vrot.slane %v753, 4
      %v756 = vshll.u32 %v616, 16
      %v758 = vrot.slane %v756, 5
      %v759 = vor.u32 %v755, %v758
      %v760 = vrot.slane %v759, 4
      %v762 = vshll.u32 %v617, 16
      %v764 = vrot.slane %v762, 5
      %v765 = vsel %vm222, %v760, %v764
      %v766 = vshrl.u32 %v617, 16
      %v768 = vrot.slane %v766, 4
      %v769 = vor.u32 %v768, %v764
      %v770 = vrot.slane %v769, 4
      %v772 = vshll.u32 %v644, 16
      %v774 = vrot.slane %v772, 5
      %v775 = vsel %vm222, %v770, %v774
      %v777 = vshrl.u32 %v618, 16
      %v779 = vrot.slane %v777, 4
      %v780 = vshll.u32 %v618, 16
      %v782 = vrot.slane %v780, 5
      %v783 = vor.u32 %v779, %v782
      %v784 = vrot.slane %v783, 4
      %v786 = vshll.u32 %v619, 16
      %v788 = vrot.slane %v786, 5
      %v789 = vsel %vm222, %v784, %v788
      %v790 = vshrl.u32 %v619, 16
      %v792 = vrot.slane %v790, 4
      %v793 = vor.u32 %v792, %v788
      %v794 = vrot.slane %v793, 4
      %v796 = vshll.u32 %v645, 16
      %v798 = vrot.slane %v796, 5
      %v799 = vsel %vm222, %v794, %v798
      %v801 = vshrl.u32 %v620, 16
      %v803 = vrot.slane %v801, 4
      %v804 = vshll.u32 %v620, 16
      %v806 = vrot.slane %v804, 5
      %v807 = vor.u32 %v803, %v806
      %v808 = vrot.slane %v807, 4
      %v810 = vshll.u32 %v621, 16
      %v812 = vrot.slane %v810, 5
      %v813 = vsel %vm222, %v808, %v812
      %v814 = vshrl.u32 %v621, 16
      %v816 = vrot.slane %v814, 4
      %v817 = vor.u32 %v816, %v812
      %v818 = vrot.slane %v817, 4
      %v820 = vshll.u32 %v646, 16
      %v822 = vrot.slane %v820, 5
      %v823 = vsel %vm222, %v818, %v822
      %v825 = vshrl.u32 %v622, 16
      %v827 = vrot.slane %v825, 4
      %v828 = vshll.u32 %v622, 16
      %v830 = vrot.slane %v828, 5
      %v831 = vor.u32 %v827, %v830
      %v832 = vrot.slane %v831, 4
      %v834 = vshll.u32 %v623, 16
      %v836 = vrot.slane %v834, 5
      %v837 = vsel %vm222, %v832, %v836
      %v838 = vshrl.u32 %v623, 16
      %v840 = vrot.slane %v838, 4
      %v841 = vor.u32 %v840, %v836
      %v842 = vrot.slane %v841, 4
      %v844 = vshll.u32 %v647, 16
      %v846 = vrot.slane %v844, 5
      %v847 = vsel %vm222, %v842, %v846
      %v849 = vshrl.u32 %v624, 16
      %v851 = vrot.slane %v849, 4
      %v852 = vshll.u32 %v624, 16
      %v854 = vrot.slane %v852, 5
      %v855 = vor.u32 %v851, %v854
      %v856 = vrot.slane %v855, 4
      %v858 = vshll.u32 %v625, 16
      %v860 = vrot.slane %v858, 5
      %v861 = vsel %vm222, %v856, %v860
      %v862 = vshrl.u32 %v625, 16
      %v864 = vrot.slane %v862, 4
      %v865 = vor.u32 %v864, %v860
      %v866 = vrot.slane %v865, 4
      %v868 = vshll.u32 %v648, 16
      %v870 = vrot.slane %v868, 5
      %v871 = vsel %vm222, %v866, %v870
      %v873 = vshrl.u32 %v626, 16
      %v875 = vrot.slane %v873, 4
      %v876 = vshll.u32 %v626, 16
      %v878 = vrot.slane %v876, 5
      %v879 = vor.u32 %v875, %v878
      %v880 = vrot.slane %v879, 4
      %v882 = vshll.u32 %v627, 16
      %v884 = vrot.slane %v882, 5
      %v885 = vsel %vm222, %v880, %v884
      %v886 = vshrl.u32 %v627, 16
      %v888 = vrot.slane %v886, 4
      %v889 = vor.u32 %v888, %v884
      %v890 = vrot.slane %v889, 4
      %v892 = vshll.u32 %v649, 16
      %v894 = vrot.slane %v892, 5
      %v895 = vsel %vm222, %v890, %v894
      %v897 = vshrl.u32 %v628, 16
      %v899 = vrot.slane %v897, 4
      %v900 = vshll.u32 %v628, 16
      %v902 = vrot.slane %v900, 5
      %v903 = vor.u32 %v899, %v902
      %v904 = vrot.slane %v903, 4
      %v906 = vshll.u32 %v629, 16
      %v908 = vrot.slane %v906, 5
      %v909 = vsel %vm222, %v904, %v908
      %v910 = vshrl.u32 %v629, 16
      %v912 = vrot.slane %v910, 4
      %v913 = vor.u32 %v912, %v908
      %v914 = vrot.slane %v913, 4
      %v916 = vshll.u32 %v650, 16
      %v918 = vrot.slane %v916, 5
      %v919 = vsel %vm222, %v914, %v918
      %v921 = vshrl.u32 %v630, 16
      %v923 = vrot.slane %v921, 4
      %v924 = vshll.u32 %v630, 16
      %v926 = vrot.slane %v924, 5
      %v927 = vor.u32 %v923, %v926
      %v928 = vrot.slane %v927, 4
      %v930 = vshll.u32 %v631, 16
      %v932 = vrot.slane %v930, 5
      %v933 = vsel %vm222, %v928, %v932
      %v934 = vshrl.u32 %v631, 16
      %v936 = vrot.slane %v934, 4
      %v937 = vor.u32 %v936, %v932
      %v938 = vrot.slane %v937, 4
      %v940 = vshll.u32 %v651, 16
      %v942 = vrot.slane %v940, 5
      %v943 = vsel %vm222, %v938, %v942
      %v945 = vshrl.u32 %v632, 16
      %v947 = vrot.slane %v945, 4
      %v948 = vshll.u32 %v632, 16
      %v950 = vrot.slane %v948, 5
      %v951 = vor.u32 %v947, %v950
      %v952 = vrot.slane %v951, 4
      %v954 = vshll.u32 %v633, 16
      %v956 = vrot.slane %v954, 5
      %v957 = vsel %vm222, %v952, %v956
      %v958 = vshrl.u32 %v633, 16
      %v960 = vrot.slane %v958, 4
      %v961 = vor.u32 %v960, %v956
      %v962 = vrot.slane %v961, 4
      %v964 = vshll.u32 %v652, 16
      %v966 = vrot.slane %v964, 5
      %v967 = vsel %vm222, %v962, %v966
      %v969 = vshrl.u32 %v634, 16
      %v971 = vrot.slane %v969, 4
      %v972 = vshll.u32 %v634, 16
      %v974 = vrot.slane %v972, 5
      %v975 = vor.u32 %v971, %v974
      %v976 = vrot.slane %v975, 4
      %v978 = vshll.u32 %v635, 16
      %v980 = vrot.slane %v978, 5
      %v981 = vsel %vm222, %v976, %v980
      %v982 = vshrl.u32 %v635, 16
      %v984 = vrot.slane %v982, 4
      %v985 = vor.u32 %v984, %v980
      %v986 = vrot.slane %v985, 4
      %v988 = vshll.u32 %v653, 16
      %v990 = vrot.slane %v988, 5
      %v991 = vsel %vm222, %v986, %v990
      %v993 = vshrl.u32 %v636, 16
      %v995 = vrot.slane %v993, 4
      %v996 = vshll.u32 %v636, 16
      %v998 = vrot.slane %v996, 5
      %v999 = vor.u32 %v995, %v998
      %v1000 = vrot.slane %v999, 4
      %v1002 = vshll.u32 %v637, 16
      %v1004 = vrot.slane %v1002, 5
      %v1005 = vsel %vm222, %v1000, %v1004
      %v1006 = vshrl.u32 %v637, 16
      %v1008 = vrot.slane %v1006, 4
      %v1009 = vor.u32 %v1008, %v1004
      %v1010 = vrot.slane %v1009, 4
      %v1012 = vshll.u32 %v654, 16
      %v1014 = vrot.slane %v1012, 5
      %v1015 = vsel %vm222, %v1010, %v1014
      %v1017 = vshrl.u32 %v638, 16
      %v1019 = vrot.slane %v1017, 4
      %v1020 = vshll.u32 %v638, 16
      %v1022 = vrot.slane %v1020, 5
      %v1023 = vor.u32 %v1019, %v1022
      %v1024 = vrot.slane %v1023, 4
      %v1026 = vshll.u32 %v639, 16
      %v1028 = vrot.slane %v1026, 5
      %v1029 = vsel %vm222, %v1024, %v1028
      %v1030 = vshrl.u32 %v639, 16
      %v1032 = vrot.slane %v1030, 4
      %v1033 = vor.u32 %v1032, %v1028
      %v1034 = vrot.slane %v1033, 4
      %v1036 = vshll.u32 %v655, 16
      %v1038 = vrot.slane %v1036, 5
      %v1039 = vsel %vm222, %v1034, %v1038
      %v1072 = vunpack.c.l.b16 %v172
      %v1073 = vunpack.c.l.b16 %v173
      %v1074 = vunpack.c.l.b16 %v174
      %v1075 = vunpack.c.l.b16 %v175
      %v1076 = vunpack.c.l.b16 %v176
      %v1077 = vunpack.c.l.b16 %v177
      %v1078 = vunpack.c.l.b16 %v178
      %v1079 = vunpack.c.l.b16 %v179
      %v1080 = vunpack.c.l.b16 %v180
      %v1081 = vunpack.c.l.b16 %v181
      %v1082 = vunpack.c.l.b16 %v182
      %v1083 = vunpack.c.l.b16 %v183
      %v1084 = vunpack.c.l.b16 %v184
      %v1085 = vunpack.c.l.b16 %v185
      %v1086 = vunpack.c.l.b16 %v186
      %v1087 = vunpack.c.l.b16 %v187
      %v1088 = vunpack.c.l.b16 %v188
      %v1089 = vunpack.c.l.b16 %v189
      %v1090 = vunpack.c.l.b16 %v190
      %v1091 = vunpack.c.l.b16 %v191
      %v1092 = vunpack.c.l.b16 %v192
      %v1093 = vunpack.c.l.b16 %v193
      %v1094 = vunpack.c.l.b16 %v194
      %v1095 = vunpack.c.l.b16 %v195
      %v1096 = vunpack.c.l.b16 %v196
      %v1097 = vunpack.c.l.b16 %v197
      %v1098 = vunpack.c.l.b16 %v198
      %v1099 = vunpack.c.l.b16 %v199
      %v1100 = vunpack.c.l.b16 %v200
      %v1101 = vunpack.c.l.b16 %v201
      %v1102 = vunpack.c.l.b16 %v202
      %v1103 = vunpack.c.l.b16 %v203
      %v1104 = vpack.c.b16 %v1073, %v1072
      %v1105 = vpack.c.b16 %v1075, %v1074
      %v1106 = vpack.c.b16 %v1077, %v1076
      %v1107 = vpack.c.b16 %v1079, %v1078
      %v1108 = vpack.c.b16 %v1081, %v1080
      %v1109 = vpack.c.b16 %v1083, %v1082
      %v1110 = vpack.c.b16 %v1085, %v1084
      %v1111 = vpack.c.b16 %v1087, %v1086
      %v1112 = vpack.c.b16 %v1089, %v1088
      %v1113 = vpack.c.b16 %v1091, %v1090
      %v1114 = vpack.c.b16 %v1093, %v1092
      %v1115 = vpack.c.b16 %v1095, %v1094
      %v1116 = vpack.c.b16 %v1097, %v1096
      %v1117 = vpack.c.b16 %v1099, %v1098
      %v1118 = vpack.c.b16 %v1101, %v1100
      %v1119 = vpack.c.b16 %v1103, %v1102
      %v1120 = vunpack.c.l.b16 %v236
      %v1121 = vunpack.c.l.b16 %v246
      %v1122 = vunpack.c.l.b16 %v260
      %v1123 = vunpack.c.l.b16 %v270
      %v1124 = vunpack.c.l.b16 %v284
      %v1125 = vunpack.c.l.b16 %v294
      %v1126 = vunpack.c.l.b16 %v308
      %v1127 = vunpack.c.l.b16 %v318
      %v1128 = vunpack.c.l.b16 %v332
      %v1129 = vunpack.c.l.b16 %v342
      %v1130 = vunpack.c.l.b16 %v356
      %v1131 = vunpack.c.l.b16 %v366
      %v1132 = vunpack.c.l.b16 %v380
      %v1133 = vunpack.c.l.b16 %v390
      %v1134 = vunpack.c.l.b16 %v404
      %v1135 = vunpack.c.l.b16 %v414
      %v1136 = vunpack.c.l.b16 %v428
      %v1137 = vunpack.c.l.b16 %v438
      %v1138 = vunpack.c.l.b16 %v452
      %v1139 = vunpack.c.l.b16 %v462
      %v1140 = vunpack.c.l.b16 %v476
      %v1141 = vunpack.c.l.b16 %v486
      %v1142 = vunpack.c.l.b16 %v500
      %v1143 = vunpack.c.l.b16 %v510
      %v1144 = vunpack.c.l.b16 %v524
      %v1145 = vunpack.c.l.b16 %v534
      %v1146 = vunpack.c.l.b16 %v548
      %v1147 = vunpack.c.l.b16 %v558
      %v1148 = vunpack.c.l.b16 %v572
      %v1149 = vunpack.c.l.b16 %v582
      %v1150 = vunpack.c.l.b16 %v596
      %v1151 = vunpack.c.l.b16 %v606
      %v1152 = vpack.c.b16 %v1121, %v1120
      %v1153 = vpack.c.b16 %v1123, %v1122
      %v1154 = vpack.c.b16 %v1125, %v1124
      %v1155 = vpack.c.b16 %v1127, %v1126
      %v1156 = vpack.c.b16 %v1129, %v1128
      %v1157 = vpack.c.b16 %v1131, %v1130
      %v1158 = vpack.c.b16 %v1133, %v1132
      %v1159 = vpack.c.b16 %v1135, %v1134
      %v1160 = vpack.c.b16 %v1137, %v1136
      %v1161 = vpack.c.b16 %v1139, %v1138
      %v1162 = vpack.c.b16 %v1141, %v1140
      %v1163 = vpack.c.b16 %v1143, %v1142
      %v1164 = vpack.c.b16 %v1145, %v1144
      %v1165 = vpack.c.b16 %v1147, %v1146
      %v1166 = vpack.c.b16 %v1149, %v1148
      %v1167 = vpack.c.b16 %v1151, %v1150
      %1168 = vrot.lane.b32.xlu0 %v1152, 32
      %v1169 = vpop.permute.xlu0 %1168
      %1170 = vrot.lane.b32.xlu0 %v1153, 32
      %v1171 = vpop.permute.xlu0 %1170
      %1172 = vrot.lane.b32.xlu0 %v1154, 32
      %v1173 = vpop.permute.xlu0 %1172
      %1174 = vrot.lane.b32.xlu0 %v1155, 32
      %v1175 = vpop.permute.xlu0 %1174
      %1176 = vrot.lane.b32.xlu0 %v1156, 32
      %v1177 = vpop.permute.xlu0 %1176
      %1178 = vrot.lane.b32.xlu0 %v1157, 32
      %v1179 = vpop.permute.xlu0 %1178
      %1180 = vrot.lane.b32.xlu0 %v1158, 32
      %v1181 = vpop.permute.xlu0 %1180
      %1182 = vrot.lane.b32.xlu0 %v1159, 32
      %v1183 = vpop.permute.xlu0 %1182
      %1184 = vrot.lane.b32.xlu0 %v1160, 32
      %v1185 = vpop.permute.xlu0 %1184
      %1186 = vrot.lane.b32.xlu0 %v1161, 32
      %v1187 = vpop.permute.xlu0 %1186
      %1188 = vrot.lane.b32.xlu0 %v1162, 32
      %v1189 = vpop.permute.xlu0 %1188
      %1190 = vrot.lane.b32.xlu0 %v1163, 32
      %v1191 = vpop.permute.xlu0 %1190
      %1192 = vrot.lane.b32.xlu0 %v1164, 32
      %v1193 = vpop.permute.xlu0 %1192
      %1194 = vrot.lane.b32.xlu0 %v1165, 32
      %v1195 = vpop.permute.xlu0 %1194
      %1196 = vrot.lane.b32.xlu0 %v1166, 32
      %v1197 = vpop.permute.xlu0 %1196
      %1198 = vrot.lane.b32.xlu0 %v1167, 32
      %v1199 = vpop.permute.xlu0 %1198
      %v1232 = vunpack.c.l.b16 %v608
      %v1233 = vunpack.c.l.b16 %v609
      %v1234 = vunpack.c.l.b16 %v610
      %v1235 = vunpack.c.l.b16 %v611
      %v1236 = vunpack.c.l.b16 %v612
      %v1237 = vunpack.c.l.b16 %v613
      %v1238 = vunpack.c.l.b16 %v614
      %v1239 = vunpack.c.l.b16 %v615
      %v1240 = vunpack.c.l.b16 %v616
      %v1241 = vunpack.c.l.b16 %v617
      %v1242 = vunpack.c.l.b16 %v618
      %v1243 = vunpack.c.l.b16 %v619
      %v1244 = vunpack.c.l.b16 %v620
      %v1245 = vunpack.c.l.b16 %v621
      %v1246 = vunpack.c.l.b16 %v622
      %v1247 = vunpack.c.l.b16 %v623
      %v1248 = vunpack.c.l.b16 %v624
      %v1249 = vunpack.c.l.b16 %v625
      %v1250 = vunpack.c.l.b16 %v626
      %v1251 = vunpack.c.l.b16 %v627
      %v1252 = vunpack.c.l.b16 %v628
      %v1253 = vunpack.c.l.b16 %v629
      %v1254 = vunpack.c.l.b16 %v630
      %v1255 = vunpack.c.l.b16 %v631
      %v1256 = vunpack.c.l.b16 %v632
      %v1257 = vunpack.c.l.b16 %v633
      %v1258 = vunpack.c.l.b16 %v634
      %v1259 = vunpack.c.l.b16 %v635
      %v1260 = vunpack.c.l.b16 %v636
      %v1261 = vunpack.c.l.b16 %v637
      %v1262 = vunpack.c.l.b16 %v638
      %v1263 = vunpack.c.l.b16 %v639
      %v1264 = vpack.c.b16 %v1233, %v1232
      %v1265 = vpack.c.b16 %v1235, %v1234
      %v1266 = vpack.c.b16 %v1237, %v1236
      %v1267 = vpack.c.b16 %v1239, %v1238
      %v1268 = vpack.c.b16 %v1241, %v1240
      %v1269 = vpack.c.b16 %v1243, %v1242
      %v1270 = vpack.c.b16 %v1245, %v1244
      %v1271 = vpack.c.b16 %v1247, %v1246
      %v1272 = vpack.c.b16 %v1249, %v1248
      %v1273 = vpack.c.b16 %v1251, %v1250
      %v1274 = vpack.c.b16 %v1253, %v1252
      %v1275 = vpack.c.b16 %v1255, %v1254
      %v1276 = vpack.c.b16 %v1257, %v1256
      %v1277 = vpack.c.b16 %v1259, %v1258
      %v1278 = vpack.c.b16 %v1261, %v1260
      %v1279 = vpack.c.b16 %v1263, %v1262
      %1280 = vrot.lane.b32.xlu0 %v1264, 64
      %v1281 = vpop.permute.xlu0 %1280
      %1282 = vrot.lane.b32.xlu0 %v1265, 64
      %v1283 = vpop.permute.xlu0 %1282
      %1284 = vrot.lane.b32.xlu0 %v1266, 64
      %v1285 = vpop.permute.xlu0 %1284
      %1286 = vrot.lane.b32.xlu0 %v1267, 64
      %v1287 = vpop.permute.xlu0 %1286
      %1288 = vrot.lane.b32.xlu0 %v1268, 64
      %v1289 = vpop.permute.xlu0 %1288
      %1290 = vrot.lane.b32.xlu0 %v1269, 64
      %v1291 = vpop.permute.xlu0 %1290
      %1292 = vrot.lane.b32.xlu0 %v1270, 64
      %v1293 = vpop.permute.xlu0 %1292
      %1294 = vrot.lane.b32.xlu0 %v1271, 64
      %v1295 = vpop.permute.xlu0 %1294
      %1296 = vrot.lane.b32.xlu0 %v1272, 64
      %v1297 = vpop.permute.xlu0 %1296
      %1298 = vrot.lane.b32.xlu0 %v1273, 64
      %v1299 = vpop.permute.xlu0 %1298
      %1300 = vrot.lane.b32.xlu0 %v1274, 64
      %v1301 = vpop.permute.xlu0 %1300
      %1302 = vrot.lane.b32.xlu0 %v1275, 64
      %v1303 = vpop.permute.xlu0 %1302
      %1304 = vrot.lane.b32.xlu0 %v1276, 64
      %v1305 = vpop.permute.xlu0 %1304
      %1306 = vrot.lane.b32.xlu0 %v1277, 64
      %v1307 = vpop.permute.xlu0 %1306
      %1308 = vrot.lane.b32.xlu0 %v1278, 64
      %v1309 = vpop.permute.xlu0 %1308
      %1310 = vrot.lane.b32.xlu0 %v1279, 64
      %v1311 = vpop.permute.xlu0 %1310
      %v1312 = vunpack.c.l.b16 %v669
      %v1313 = vunpack.c.l.b16 %v679
      %v1314 = vunpack.c.l.b16 %v693
      %v1315 = vunpack.c.l.b16 %v703
      %v1316 = vunpack.c.l.b16 %v717
      %v1317 = vunpack.c.l.b16 %v727
      %v1318 = vunpack.c.l.b16 %v741
      %v1319 = vunpack.c.l.b16 %v751
      %v1320 = vunpack.c.l.b16 %v765
      %v1321 = vunpack.c.l.b16 %v775
      %v1322 = vunpack.c.l.b16 %v789
      %v1323 = vunpack.c.l.b16 %v799
      %v1324 = vunpack.c.l.b16 %v813
      %v1325 = vunpack.c.l.b16 %v823
      %v1326 = vunpack.c.l.b16 %v837
      %v1327 = vunpack.c.l.b16 %v847
      %v1328 = vunpack.c.l.b16 %v861
      %v1329 = vunpack.c.l.b16 %v871
      %v1330 = vunpack.c.l.b16 %v885
      %v1331 = vunpack.c.l.b16 %v895
      %v1332 = vunpack.c.l.b16 %v909
      %v1333 = vunpack.c.l.b16 %v919
      %v1334 = vunpack.c.l.b16 %v933
      %v1335 = vunpack.c.l.b16 %v943
      %v1336 = vunpack.c.l.b16 %v957
      %v1337 = vunpack.c.l.b16 %v967
      %v1338 = vunpack.c.l.b16 %v981
      %v1339 = vunpack.c.l.b16 %v991
      %v1340 = vunpack.c.l.b16 %v1005
      %v1341 = vunpack.c.l.b16 %v1015
      %v1342 = vunpack.c.l.b16 %v1029
      %v1343 = vunpack.c.l.b16 %v1039
      %v1344 = vpack.c.b16 %v1313, %v1312
      %v1345 = vpack.c.b16 %v1315, %v1314
      %v1346 = vpack.c.b16 %v1317, %v1316
      %v1347 = vpack.c.b16 %v1319, %v1318
      %v1348 = vpack.c.b16 %v1321, %v1320
      %v1349 = vpack.c.b16 %v1323, %v1322
      %v1350 = vpack.c.b16 %v1325, %v1324
      %v1351 = vpack.c.b16 %v1327, %v1326
      %v1352 = vpack.c.b16 %v1329, %v1328
      %v1353 = vpack.c.b16 %v1331, %v1330
      %v1354 = vpack.c.b16 %v1333, %v1332
      %v1355 = vpack.c.b16 %v1335, %v1334
      %v1356 = vpack.c.b16 %v1337, %v1336
      %v1357 = vpack.c.b16 %v1339, %v1338
      %v1358 = vpack.c.b16 %v1341, %v1340
      %v1359 = vpack.c.b16 %v1343, %v1342
      %1360 = vrot.lane.b32.xlu0 %v1344, 96
      %v1361 = vpop.permute.xlu0 %1360
      %1362 = vrot.lane.b32.xlu0 %v1345, 96
      %v1363 = vpop.permute.xlu0 %1362
      %1364 = vrot.lane.b32.xlu0 %v1346, 96
      %v1365 = vpop.permute.xlu0 %1364
      %1366 = vrot.lane.b32.xlu0 %v1347, 96
      %v1367 = vpop.permute.xlu0 %1366
      %1368 = vrot.lane.b32.xlu0 %v1348, 96
      %v1369 = vpop.permute.xlu0 %1368
      %1370 = vrot.lane.b32.xlu0 %v1349, 96
      %v1371 = vpop.permute.xlu0 %1370
      %1372 = vrot.lane.b32.xlu0 %v1350, 96
      %v1373 = vpop.permute.xlu0 %1372
      %1374 = vrot.lane.b32.xlu0 %v1351, 96
      %v1375 = vpop.permute.xlu0 %1374
      %1376 = vrot.lane.b32.xlu0 %v1352, 96
      %v1377 = vpop.permute.xlu0 %1376
      %1378 = vrot.lane.b32.xlu0 %v1353, 96
      %v1379 = vpop.permute.xlu0 %1378
      %1380 = vrot.lane.b32.xlu0 %v1354, 96
      %v1381 = vpop.permute.xlu0 %1380
      %1382 = vrot.lane.b32.xlu0 %v1355, 96
      %v1383 = vpop.permute.xlu0 %1382
      %1384 = vrot.lane.b32.xlu0 %v1356, 96
      %v1385 = vpop.permute.xlu0 %1384
      %1386 = vrot.lane.b32.xlu0 %v1357, 96
      %v1387 = vpop.permute.xlu0 %1386
      %1388 = vrot.lane.b32.xlu0 %v1358, 96
      %v1389 = vpop.permute.xlu0 %1388
      %1390 = vrot.lane.b32.xlu0 %v1359, 96
      %v1391 = vpop.permute.xlu0 %1390
      %vm1392 = vcmask 261120
      %v1395 = vsel %vm1392, %v1104, %v1169
      %v1398 = vsel %vm1392, %v1105, %v1171
      %v1401 = vsel %vm1392, %v1106, %v1173
      %v1404 = vsel %vm1392, %v1107, %v1175
      %v1407 = vsel %vm1392, %v1108, %v1177
      %v1410 = vsel %vm1392, %v1109, %v1179
      %v1413 = vsel %vm1392, %v1110, %v1181
      %v1416 = vsel %vm1392, %v1111, %v1183
      %v1419 = vsel %vm1392, %v1112, %v1185
      %v1422 = vsel %vm1392, %v1113, %v1187
      %v1425 = vsel %vm1392, %v1114, %v1189
      %v1428 = vsel %vm1392, %v1115, %v1191
      %v1431 = vsel %vm1392, %v1116, %v1193
      %v1434 = vsel %vm1392, %v1117, %v1195
      %v1437 = vsel %vm1392, %v1118, %v1197
      %v1440 = vsel %vm1392, %v1119, %v1199
      %vm1441 = vcmask 523264
      %v1443 = vsel %vm1441, %v1395, %v1281
      %v1445 = vsel %vm1441, %v1398, %v1283
      %v1447 = vsel %vm1441, %v1401, %v1285
      %v1449 = vsel %vm1441, %v1404, %v1287
      %v1451 = vsel %vm1441, %v1407, %v1289
      %v1453 = vsel %vm1441, %v1410, %v1291
      %v1455 = vsel %vm1441, %v1413, %v1293
      %v1457 = vsel %vm1441, %v1416, %v1295
      %v1459 = vsel %vm1441, %v1419, %v1297
      %v1461 = vsel %vm1441, %v1422, %v1299
      %v1463 = vsel %vm1441, %v1425, %v1301
      %v1465 = vsel %vm1441, %v1428, %v1303
      %v1467 = vsel %vm1441, %v1431, %v1305
      %v1469 = vsel %vm1441, %v1434, %v1307
      %v1471 = vsel %vm1441, %v1437, %v1309
      %v1473 = vsel %vm1441, %v1440, %v1311
      %vm1474 = vcmask 785408
      %v1476 = vsel %vm1474, %v1443, %v1361
      %v1479 = vsel %vm1474, %v1445, %v1363
      %v1482 = vsel %vm1474, %v1447, %v1365
      %v1485 = vsel %vm1474, %v1449, %v1367
      %v1488 = vsel %vm1474, %v1451, %v1369
      %v1491 = vsel %vm1474, %v1453, %v1371
      %v1494 = vsel %vm1474, %v1455, %v1373
      %v1497 = vsel %vm1474, %v1457, %v1375
      %v1500 = vsel %vm1474, %v1459, %v1377
      %v1503 = vsel %vm1474, %v1461, %v1379
      %v1506 = vsel %vm1474, %v1463, %v1381
      %v1509 = vsel %vm1474, %v1465, %v1383
      %v1512 = vsel %vm1474, %v1467, %v1385
      %v1515 = vsel %vm1474, %v1469, %v1387
      %v1518 = vsel %vm1474, %v1471, %v1389
      %v1521 = vsel %vm1474, %v1473, %v1391
      %v1523 = vld [vmem:[%s1] sm:$0xf]
      %v1524 = vld [vmem:[%s1 + $0x4] sm:$0xf]
      %v1525 = vld [vmem:[%s1 + $0x8] sm:$0xf]
      %v1526 = vld [vmem:[%s1 + $0xc] sm:$0xf]
      %v1527 = vld [vmem:[%s1 + $0x10] sm:$0xf]
      %v1528 = vld [vmem:[%s1 + $0x14] sm:$0xf]
      %v1529 = vld [vmem:[%s1 + $0x18] sm:$0xf]
      %v1530 = vld [vmem:[%s1 + $0x1c] sm:$0xf]
      %v1531 = vld [vmem:[%s1 + $0x20] sm:$0xf]
      %v1532 = vld [vmem:[%s1 + $0x24] sm:$0xf]
      %v1533 = vld [vmem:[%s1 + $0x28] sm:$0xf]
      %v1534 = vld [vmem:[%s1 + $0x2c] sm:$0xf]
      %v1535 = vld [vmem:[%s1 + $0x30] sm:$0xf]
      %v1536 = vld [vmem:[%s1 + $0x34] sm:$0xf]
      %v1537 = vld [vmem:[%s1 + $0x38] sm:$0xf]
      %v1538 = vld [vmem:[%s1 + $0x3c] sm:$0xf]
      %v1539 = vld [vmem:[%s2] sm:$0x1]
      %v1541 = vlaneseq
      %v1542 = vshrl.u32 %v1541, 7
      %v1543 = vsub.s32 0, %v1542
      %v1544 = vrot.slane %v1539, %v1543
      %v1562 = vunpack.c.l.b16 %v1523
      %v1563 = vunpack.c.l.b16 %v1524
      %v1564 = vunpack.c.l.b16 %v1525
      %v1565 = vunpack.c.l.b16 %v1526
      %v1566 = vunpack.c.l.b16 %v1527
      %v1567 = vunpack.c.l.b16 %v1528
      %v1568 = vunpack.c.l.b16 %v1529
      %v1569 = vunpack.c.l.b16 %v1530
      %v1570 = vunpack.c.l.b16 %v1531
      %v1571 = vunpack.c.l.b16 %v1532
      %v1572 = vunpack.c.l.b16 %v1533
      %v1573 = vunpack.c.l.b16 %v1534
      %v1574 = vunpack.c.l.b16 %v1535
      %v1575 = vunpack.c.l.b16 %v1536
      %v1576 = vunpack.c.l.b16 %v1537
      %v1577 = vunpack.c.l.b16 %v1538
      %v1578 = vpack.c.b16 %v1563, %v1562
      %v1579 = vpack.c.b16 %v1565, %v1564
      %v1580 = vpack.c.b16 %v1567, %v1566
      %v1581 = vpack.c.b16 %v1569, %v1568
      %v1582 = vpack.c.b16 %v1571, %v1570
      %v1583 = vpack.c.b16 %v1573, %v1572
      %v1584 = vpack.c.b16 %v1575, %v1574
      %v1585 = vpack.c.b16 %v1577, %v1576
      %1594 = vmatprep.subr.bf16.mxu0 0
      %1595 = vmatpush1.bf16.msra.mxu0 %v1578
      %1596 = vmatprep.subr.bf16.mxu0 0
      %1597 = vmatpush1.bf16.msra.mxu0 %v1579
      %1598 = vmatprep.subr.bf16.mxu0 0
      %1599 = vmatpush1.bf16.msra.mxu0 %v1580
      %1600 = vmatprep.subr.bf16.mxu0 0
      %1601 = vmatpush1.bf16.msra.mxu0 %v1581
      %1602 = vmatprep.subr.bf16.mxu0 0
      %1603 = vmatpush1.bf16.msra.mxu0 %v1582
      %1604 = vmatprep.subr.bf16.mxu0 0
      %1605 = vmatpush1.bf16.msra.mxu0 %v1583
      %1606 = vmatprep.subr.bf16.mxu0 0
      %1607 = vmatpush1.bf16.msra.mxu0 %v1584
      %1608 = vmatprep.subr.bf16.mxu0 0
      %1609 = vmatpush1.bf16.msra.mxu0 %v1585
      %1610 = vmatprep.subr.bf16.mxu0 0
      %1611 = vmatpush1.bf16.msra.mxu0 0
      %1612 = vmatprep.subr.bf16.mxu0 0
      %1613 = vmatpush1.bf16.msra.mxu0 0
      %1614 = vmatprep.subr.bf16.mxu0 0
      %1615 = vmatpush1.bf16.msra.mxu0 0
      %1616 = vmatprep.subr.bf16.mxu0 0
      %1617 = vmatpush1.bf16.msra.mxu0 0
      %1618 = vmatprep.subr.bf16.mxu0 0
      %1619 = vmatpush1.bf16.msra.mxu0 0
      %1620 = vmatprep.subr.bf16.mxu0 0
      %1621 = vmatpush1.bf16.msra.mxu0 0
      %1622 = vmatprep.subr.bf16.mxu0 0
      %1623 = vmatpush1.bf16.msra.mxu0 0
      %1624 = vmatprep.subr.bf16.mxu0 0
      %1625 = vmatpush1.bf16.msra.mxu0 0
      %1626 = vmatprep.mubr.bf16.mxu0 0
      %1627 = vmatmul.mubr.bf16.gmra.mrb[0].mxu0 %v1476
      %v1628 = vpop.f32.mrb[0].mxu0
      %v1629 = vadd.f32 %v1544, %v1628
      %v1630 = vpop.f32.mrb[0].mxu0
      %v1631 = vpop.f32.mrb[0].mxu0
      %v1632 = vadd.f32 %v1544, %v1631
      %v1633 = vpop.f32.mrb[0].mxu0
      %1634 = vmatprep.mubr.bf16.mxu0 0
      %1635 = vmatmul.mubr.bf16.gmra.mrb[0].mxu0 %v1479
      %v1636 = vpop.f32.mrb[0].mxu0
      %v1637 = vadd.f32 %v1544, %v1636
      %v1638 = vpop.f32.mrb[0].mxu0
      %v1639 = vpop.f32.mrb[0].mxu0
      %v1640 = vadd.f32 %v1544, %v1639
      %v1641 = vpop.f32.mrb[0].mxu0
      %1642 = vmatprep.mubr.bf16.mxu0 0
      %1643 = vmatmul.mubr.bf16.gmra.mrb[0].mxu0 %v1482
      %v1644 = vpop.f32.mrb[0].mxu0
      %v1645 = vadd.f32 %v1544, %v1644
      %v1646 = vpop.f32.mrb[0].mxu0
      %v1647 = vpop.f32.mrb[0].mxu0
      %v1648 = vadd.f32 %v1544, %v1647
      %v1649 = vpop.f32.mrb[0].mxu0
      %1650 = vmatprep.mubr.bf16.mxu0 0
      %1651 = vmatmul.mubr.bf16.gmra.mrb[0].mxu0 %v1485
      %v1652 = vpop.f32.mrb[0].mxu0
      %v1653 = vadd.f32 %v1544, %v1652
      %v1654 = vpop.f32.mrb[0].mxu0
      %v1655 = vpop.f32.mrb[0].mxu0
      %v1656 = vadd.f32 %v1544, %v1655
      %v1657 = vpop.f32.mrb[0].mxu0
      %1658 = vmatprep.mubr.bf16.mxu0 0
      %1659 = vmatmul.mubr.bf16.gmra.mrb[0].mxu0 %v1488
      %v1660 = vpop.f32.mrb[0].mxu0
      %v1661 = vadd.f32 %v1544, %v1660
      %v1662 = vpop.f32.mrb[0].mxu0
      %v1663 = vpop.f32.mrb[0].mxu0
      %v1664 = vadd.f32 %v1544, %v1663
      %v1665 = vpop.f32.mrb[0].mxu0
      %1666 = vmatprep.mubr.bf16.mxu0 0
      %1667 = vmatmul.mubr.bf16.gmra.mrb[0].mxu0 %v1491
      %v1668 = vpop.f32.mrb[0].mxu0
      %v1669 = vadd.f32 %v1544, %v1668
      %v1670 = vpop.f32.mrb[0].mxu0
      %v1671 = vpop.f32.mrb[0].mxu0
      %v1672 = vadd.f32 %v1544, %v1671
      %v1673 = vpop.f32.mrb[0].mxu0
      %1674 = vmatprep.mubr.bf16.mxu0 0
      %1675 = vmatmul.mubr.bf16.gmra.mrb[0].mxu0 %v1494
      %v1676 = vpop.f32.mrb[0].mxu0
      %v1677 = vadd.f32 %v1544, %v1676
      %v1678 = vpop.f32.mrb[0].mxu0
      %v1679 = vpop.f32.mrb[0].mxu0
      %v1680 = vadd.f32 %v1544, %v1679
      %v1681 = vpop.f32.mrb[0].mxu0
      %1682 = vmatprep.mubr.bf16.mxu0 0
      %1683 = vmatmul.mubr.bf16.gmra.mrb[0].mxu0 %v1497
      %v1684 = vpop.f32.mrb[0].mxu0
      %v1685 = vadd.f32 %v1544, %v1684
      %v1686 = vpop.f32.mrb[0].mxu0
      %v1687 = vpop.f32.mrb[0].mxu0
      %v1688 = vadd.f32 %v1544, %v1687
      %v1689 = vpop.f32.mrb[0].mxu0
      %1690 = vmatprep.mubr.bf16.mxu0 0
      %1691 = vmatmul.mubr.bf16.gmra.mrb[0].mxu0 %v1500
      %v1692 = vpop.f32.mrb[0].mxu0
      %v1693 = vadd.f32 %v1544, %v1692
      %v1694 = vpop.f32.mrb[0].mxu0
      %v1695 = vpop.f32.mrb[0].mxu0
      %v1696 = vadd.f32 %v1544, %v1695
      %v1697 = vpop.f32.mrb[0].mxu0
      %1698 = vmatprep.mubr.bf16.mxu0 0
      %1699 = vmatmul.mubr.bf16.gmra.mrb[0].mxu0 %v1503
      %v1700 = vpop.f32.mrb[0].mxu0
      %v1701 = vadd.f32 %v1544, %v1700
      %v1702 = vpop.f32.mrb[0].mxu0
      %v1703 = vpop.f32.mrb[0].mxu0
      %v1704 = vadd.f32 %v1544, %v1703
      %v1705 = vpop.f32.mrb[0].mxu0
      %1706 = vmatprep.mubr.bf16.mxu0 0
      %1707 = vmatmul.mubr.bf16.gmra.mrb[0].mxu0 %v1506
      %v1708 = vpop.f32.mrb[0].mxu0
      %v1709 = vadd.f32 %v1544, %v1708
      %v1710 = vpop.f32.mrb[0].mxu0
      %v1711 = vpop.f32.mrb[0].mxu0
      %v1712 = vadd.f32 %v1544, %v1711
      %v1713 = vpop.f32.mrb[0].mxu0
      %1714 = vmatprep.mubr.bf16.mxu0 0
      %1715 = vmatmul.mubr.bf16.gmra.mrb[0].mxu0 %v1509
      %v1716 = vpop.f32.mrb[0].mxu0
      %v1717 = vadd.f32 %v1544, %v1716
      %v1718 = vpop.f32.mrb[0].mxu0
      %v1719 = vpop.f32.mrb[0].mxu0
      %v1720 = vadd.f32 %v1544, %v1719
      %v1721 = vpop.f32.mrb[0].mxu0
      %1722 = vmatprep.mubr.bf16.mxu0 0
      %1723 = vmatmul.mubr.bf16.gmra.mrb[0].mxu0 %v1512
      %v1724 = vpop.f32.mrb[0].mxu0
      %v1725 = vadd.f32 %v1544, %v1724
      %v1726 = vpop.f32.mrb[0].mxu0
      %v1727 = vpop.f32.mrb[0].mxu0
      %v1728 = vadd.f32 %v1544, %v1727
      %v1729 = vpop.f32.mrb[0].mxu0
      %1730 = vmatprep.mubr.bf16.mxu0 0
      %1731 = vmatmul.mubr.bf16.gmra.mrb[0].mxu0 %v1515
      %v1732 = vpop.f32.mrb[0].mxu0
      %v1733 = vadd.f32 %v1544, %v1732
      %v1734 = vpop.f32.mrb[0].mxu0
      %v1735 = vpop.f32.mrb[0].mxu0
      %v1736 = vadd.f32 %v1544, %v1735
      %v1737 = vpop.f32.mrb[0].mxu0
      %1738 = vmatprep.mubr.bf16.mxu0 0
      %1739 = vmatmul.mubr.bf16.gmra.mrb[0].mxu0 %v1518
      %v1740 = vpop.f32.mrb[0].mxu0
      %v1741 = vadd.f32 %v1544, %v1740
      %v1742 = vpop.f32.mrb[0].mxu0
      %v1743 = vpop.f32.mrb[0].mxu0
      %v1744 = vadd.f32 %v1544, %v1743
      %v1745 = vpop.f32.mrb[0].mxu0
      %1746 = vmatprep.mubr.bf16.mxu0 0
      %1747 = vmatmul.mubr.bf16.gmra.mrb[0].mxu0 %v1521
      %v1748 = vpop.f32.mrb[0].mxu0
      %v1749 = vadd.f32 %v1544, %v1748
      %v1750 = vpop.f32.mrb[0].mxu0
      %v1751 = vpop.f32.mrb[0].mxu0
      %v1752 = vadd.f32 %v1544, %v1751
      %v1753 = vpop.f32.mrb[0].mxu0
      %1754 = vdwg.mxu0
      %v1755 = vmax.f32 %v1629, 0.0
      %v1756 = vmax.f32 %v1632, 0.0
      %v1757 = vmax.f32 %v1637, 0.0
      %v1758 = vmax.f32 %v1640, 0.0
      %v1759 = vmax.f32 %v1645, 0.0
      %v1760 = vmax.f32 %v1648, 0.0
      %v1761 = vmax.f32 %v1653, 0.0
      %v1762 = vmax.f32 %v1656, 0.0
      %v1763 = vmax.f32 %v1661, 0.0
      %v1764 = vmax.f32 %v1664, 0.0
      %v1765 = vmax.f32 %v1669, 0.0
      %v1766 = vmax.f32 %v1672, 0.0
      %v1767 = vmax.f32 %v1677, 0.0
      %v1768 = vmax.f32 %v1680, 0.0
      %v1769 = vmax.f32 %v1685, 0.0
      %v1770 = vmax.f32 %v1688, 0.0
      %v1771 = vmax.f32 %v1693, 0.0
      %v1772 = vmax.f32 %v1696, 0.0
      %v1773 = vmax.f32 %v1701, 0.0
      %v1774 = vmax.f32 %v1704, 0.0
      %v1775 = vmax.f32 %v1709, 0.0
      %v1776 = vmax.f32 %v1712, 0.0
      %v1777 = vmax.f32 %v1717, 0.0
      %v1778 = vmax.f32 %v1720, 0.0
      %v1779 = vmax.f32 %v1725, 0.0
      %v1780 = vmax.f32 %v1728, 0.0
      %v1781 = vmax.f32 %v1733, 0.0
      %v1782 = vmax.f32 %v1736, 0.0
      %v1783 = vmax.f32 %v1741, 0.0
      %v1784 = vmax.f32 %v1744, 0.0
      %v1785 = vmax.f32 %v1749, 0.0
      %v1786 = vmax.f32 %v1752, 0.0
      %v1787 = vpack.c.bf16 %v1756, %v1755
      %v1788 = vpack.c.bf16 %v1758, %v1757
      %v1789 = vpack.c.bf16 %v1760, %v1759
      %v1790 = vpack.c.bf16 %v1762, %v1761
      %v1791 = vpack.c.bf16 %v1764, %v1763
      %v1792 = vpack.c.bf16 %v1766, %v1765
      %v1793 = vpack.c.bf16 %v1768, %v1767
      %v1794 = vpack.c.bf16 %v1770, %v1769
      %v1795 = vpack.c.bf16 %v1772, %v1771
      %v1796 = vpack.c.bf16 %v1774, %v1773
      %v1797 = vpack.c.bf16 %v1776, %v1775
      %v1798 = vpack.c.bf16 %v1778, %v1777
      %v1799 = vpack.c.bf16 %v1780, %v1779
      %v1800 = vpack.c.bf16 %v1782, %v1781
      %v1801 = vpack.c.bf16 %v1784, %v1783
      %v1802 = vpack.c.bf16 %v1786, %v1785
      %v1819 = vunpack.c.l.b16 %v1787
      %v1820 = vunpack.c.h.b16 %v1787
      %v1821 = vunpack.c.l.b16 %v1788
      %v1822 = vunpack.c.h.b16 %v1788
      %v1823 = vunpack.c.l.b16 %v1789
      %v1824 = vunpack.c.h.b16 %v1789
      %v1825 = vunpack.c.l.b16 %v1790
      %v1826 = vunpack.c.h.b16 %v1790
      %v1827 = vunpack.c.l.b16 %v1791
      %v1828 = vunpack.c.h.b16 %v1791
      %v1829 = vunpack.c.l.b16 %v1792
      %v1830 = vunpack.c.h.b16 %v1792
      %v1831 = vunpack.c.l.b16 %v1793
      %v1832 = vunpack.c.h.b16 %v1793
      %v1833 = vunpack.c.l.b16 %v1794
      %v1834 = vunpack.c.h.b16 %v1794
      %v1835 = vunpack.c.l.b16 %v1795
      %v1836 = vunpack.c.h.b16 %v1795
      %v1837 = vunpack.c.l.b16 %v1796
      %v1838 = vunpack.c.h.b16 %v1796
      %v1839 = vunpack.c.l.b16 %v1797
      %v1840 = vunpack.c.h.b16 %v1797
      %v1841 = vunpack.c.l.b16 %v1798
      %v1842 = vunpack.c.h.b16 %v1798
      %v1843 = vunpack.c.l.b16 %v1799
      %v1844 = vunpack.c.h.b16 %v1799
      %v1845 = vunpack.c.l.b16 %v1800
      %v1846 = vunpack.c.h.b16 %v1800
      %v1847 = vunpack.c.l.b16 %v1801
      %v1848 = vunpack.c.h.b16 %v1801
      %v1849 = vunpack.c.l.b16 %v1802
      %v1850 = vunpack.c.h.b16 %v1802
      %v1851 = vpack.c.b16 %v1819, %v1819
      %v1852 = vpack.c.b16 %v1820, %v1820
      %v1853 = vpack.c.b16 %v1821, %v1821
      %v1854 = vpack.c.b16 %v1822, %v1822
      %v1855 = vpack.c.b16 %v1823, %v1823
      %v1856 = vpack.c.b16 %v1824, %v1824
      %v1857 = vpack.c.b16 %v1825, %v1825
      %v1858 = vpack.c.b16 %v1826, %v1826
      %v1859 = vpack.c.b16 %v1827, %v1827
      %v1860 = vpack.c.b16 %v1828, %v1828
      %v1861 = vpack.c.b16 %v1829, %v1829
      %v1862 = vpack.c.b16 %v1830, %v1830
      %v1863 = vpack.c.b16 %v1831, %v1831
      %v1864 = vpack.c.b16 %v1832, %v1832
      %v1865 = vpack.c.b16 %v1833, %v1833
      %v1866 = vpack.c.b16 %v1834, %v1834
      %v1867 = vpack.c.b16 %v1835, %v1835
      %v1868 = vpack.c.b16 %v1836, %v1836
      %v1869 = vpack.c.b16 %v1837, %v1837
      %v1870 = vpack.c.b16 %v1838, %v1838
      %v1871 = vpack.c.b16 %v1839, %v1839
      %v1872 = vpack.c.b16 %v1840, %v1840
      %v1873 = vpack.c.b16 %v1841, %v1841
      %v1874 = vpack.c.b16 %v1842, %v1842
      %v1875 = vpack.c.b16 %v1843, %v1843
      %v1876 = vpack.c.b16 %v1844, %v1844
      %v1877 = vpack.c.b16 %v1845, %v1845
      %v1878 = vpack.c.b16 %v1846, %v1846
      %v1879 = vpack.c.b16 %v1847, %v1847
      %v1880 = vpack.c.b16 %v1848, %v1848
      %v1881 = vpack.c.b16 %v1849, %v1849
      %v1882 = vpack.c.b16 %v1850, %v1850
      %vm1915 = vcmask 125952
      %1916 = vst.msk [vmem:[%s170] sm:$0xf] %vm1915, %v1851
      %1917 = vst.msk [vmem:[%s170 + $0x4] sm:$0xf] %vm1915, %v1852
      %1918 = vst.msk [vmem:[%s170 + $0x8] sm:$0xf] %vm1915, %v1853
      %1919 = vst.msk [vmem:[%s170 + $0xc] sm:$0xf] %vm1915, %v1854
      %1920 = vst.msk [vmem:[%s170 + $0x10] sm:$0xf] %vm1915, %v1855
      %1921 = vst.msk [vmem:[%s170 + $0x14] sm:$0xf] %vm1915, %v1856
      %1922 = vst.msk [vmem:[%s170 + $0x18] sm:$0xf] %vm1915, %v1857
      %1923 = vst.msk [vmem:[%s170 + $0x1c] sm:$0xf] %vm1915, %v1858
      %1924 = vst.msk [vmem:[%s170 + $0x20] sm:$0xf] %vm1915, %v1859
      %1925 = vst.msk [vmem:[%s170 + $0x24] sm:$0xf] %vm1915, %v1860
      %1926 = vst.msk [vmem:[%s170 + $0x28] sm:$0xf] %vm1915, %v1861
      %1927 = vst.msk [vmem:[%s170 + $0x2c] sm:$0xf] %vm1915, %v1862
      %1928 = vst.msk [vmem:[%s170 + $0x30] sm:$0xf] %vm1915, %v1863
      %1929 = vst.msk [vmem:[%s170 + $0x34] sm:$0xf] %vm1915, %v1864
      %1930 = vst.msk [vmem:[%s170 + $0x38] sm:$0xf] %vm1915, %v1865
      %1931 = vst.msk [vmem:[%s170 + $0x3c] sm:$0xf] %vm1915, %v1866
      %1932 = vst.msk [vmem:[%s170 + $0x40] sm:$0xf] %vm1915, %v1867
      %1933 = vst.msk [vmem:[%s170 + $0x44] sm:$0xf] %vm1915, %v1868
      %1934 = vst.msk [vmem:[%s170 + $0x48] sm:$0xf] %vm1915, %v1869
      %1935 = vst.msk [vmem:[%s170 + $0x4c] sm:$0xf] %vm1915, %v1870
      %1936 = vst.msk [vmem:[%s170 + $0x50] sm:$0xf] %vm1915, %v1871
      %1937 = vst.msk [vmem:[%s170 + $0x54] sm:$0xf] %vm1915, %v1872
      %1938 = vst.msk [vmem:[%s170 + $0x58] sm:$0xf] %vm1915, %v1873
      %1939 = vst.msk [vmem:[%s170 + $0x5c] sm:$0xf] %vm1915, %v1874
      %1940 = vst.msk [vmem:[%s170 + $0x60] sm:$0xf] %vm1915, %v1875
      %1941 = vst.msk [vmem:[%s170 + $0x64] sm:$0xf] %vm1915, %v1876
      %1942 = vst.msk [vmem:[%s170 + $0x68] sm:$0xf] %vm1915, %v1877
      %1943 = vst.msk [vmem:[%s170 + $0x6c] sm:$0xf] %vm1915, %v1878
      %1944 = vst.msk [vmem:[%s170 + $0x70] sm:$0xf] %vm1915, %v1879
      %1945 = vst.msk [vmem:[%s170 + $0x74] sm:$0xf] %vm1915, %v1880
      %1946 = vst.msk [vmem:[%s170 + $0x78] sm:$0xf] %vm1915, %v1881
      %1947 = vst.msk [vmem:[%s170 + $0x7c] sm:$0xf] %vm1915, %v1882
      %p1948 = scmp.lt.s32.totalorder %s14, 1
      %s1949 = scalar_select %p1948, %s14, 1
      %s1950 = smul.addr %s1949, 32
      %s1951 = smul.addr %s1950, 4
      %s1952 = scalar_lea.vmem %s3, %s1951
      // Predicated region
      $region33: #{_forward_impl.6} parent=31 // pred_check
        %p1953 = pneg %p100
      $region34: #{_forward_impl.6} parent=31 // pred_check_branch
        %1955 = sbr.rel (%p1953) target = $region36
      $region35: #{_forward_impl.6} parent=31 // pred_region
        _
      $region36: #{_forward_impl.6} parent=31 // pred_fallthru
        _
    $region32: #{_forward_impl.6} parent=5 // pred_fallthru
      _
    %p1956 = scmp.le.s32.totalorder 2, %s9
    // Predicated region
    $region37: #{_forward_impl.6} parent=5 // pred_check
      %p1957 = pneg %p1956
    $region38: #{_forward_impl.6} parent=5 // pred_check_branch
      %1959 = sbr.rel (%p1957) target = $region40
    $region39: #{_forward_impl.6} parent=5 // pred_region
      %s1960 = ssub.s32 %s9, 2
      // Predicated region
      $region41: #{_forward_impl.6} parent=39 // pred_check
        %p1961 = pneg %p106
      $region42: #{_forward_impl.6} parent=39 // pred_check_branch
        %1963 = sbr.rel (%p1961) target = $region44
      $region43: #{_forward_impl.6} parent=39 // pred_region
        %p1964 = scmp.lt.s32.totalorder %s15, 1
        %s1965 = scalar_select %p1964, %s15, 1
        %s1966 = smul.addr %s1965, 32
        %s1967 = smul.addr %s1966, 4
        %s1968 = scalar_lea.vmem %s3, %s1967
      $region44: #{_forward_impl.6} parent=39 // pred_fallthru
        _
    $region40: #{_forward_impl.6} parent=5 // pred_fallthru
      _
  $region6: #{_forward_impl.6} parent=0 // loop_footer
    %s13 = sadd.s32 1, %s9
  $region7: #{_forward_impl.6} parent=0 // loop_footer_branch
    %8 = sbr.rel target = $region3
  $region8: #{_forward_impl.6} parent=0 // loop_exit
    _

// kernel: _forward_impl.7
$region0: #{_forward_impl.7}
  #allocation0 [shape = 'u32[]', space=smem, size = 0x4, offset = 0x4, fixed_abs, tag = 'smem constant byte address 0x4 - core index']
  #allocation1 [shape = 'u32[144,128]{1,0:T(1,128)}', space=vmem, size = 0x12000, scoped, tag = 'internal scratch']
  %s0 = inlined_call_operand.vmem [shape: bf16[2,18,18,16], index: 0, kind: input, shape index: {}]
  %s1 = inlined_call_operand.vmem [shape: bf16[144,16], index: 1, kind: input, shape index: {}]
  %s2 = inlined_call_operand.vmem [shape: f32[1,16], index: 2, kind: input, shape index: {}]
  %s3 = inlined_call_operand.vmem [shape: bf16[16,128], index: 3, kind: input, shape index: {}]
  %s4 = inlined_call_operand.vmem [shape: f32[1,128], index: 4, kind: input, shape index: {}]
  %s5 = inlined_call_operand.vmem [shape: f32[2,256,128], index: 5, kind: output, shape index: {}]
  %s6 = sld [smem:[#allocation0]]
  $region53: #{_forward_impl.7} parent=0
    _
  %s8 = ssub.s32 1, %s6
  %s9 = scalar_select 0, %s8, %s6
  loop: start=0, step=1, limit=4
  $region2: #{_forward_impl.7} parent=0 // loop_pre_header
    _
  $region3: #{_forward_impl.7} parent=0 // loop_header
    %s11 = sphi 0, %s15
    %p12 = scmp.ge.s32.totalorder %s11, 4
    %s21 = sphi 0, %s23
    %s24 = sphi 0, %s21
    %s25 = sphi 0, %s24
    %s41 = sphi 0, %s25
    %s45 = sphi 0, %s45
    %s47 = sphi 0, %s45
    %s48 = sphi 0, %s47
    %s62 = sphi 0, %s48
    %s66 = sphi 0, %s66
    %s68 = sphi 0, %s66
    %s69 = sphi 0, %s68
    %s83 = sphi 0, %s69
    %s87 = sphi 0, %s87
    %s89 = sphi 0, %s87
    %s90 = sphi 0, %s89
    %s104 = sphi 0, %s90
    %s108 = sphi 0, %s108
    %s110 = sphi 0, %s108
    %s111 = sphi 0, %s110
    %s125 = sphi 0, %s111
    %s131 = sphi 0, %s133
    %s134 = sphi 0, %s131
    %s135 = sphi 0, %s134
    %s151 = sphi 0, %s135
  $region4: #{_forward_impl.7} parent=0 // loop_header_branch
    %14 = sbr.rel (%p12) target = $region8
  $region5: #{_forward_impl.7} parent=0 // loop_body
    %s16 = ssub.s32 %s11, 1
    %s17 = ssub.s32 %s11, 2
    %s18 = sadd.s32 %s11, 1
    %s19 = ssub.s32 %s11, %s18
    %p20 = scmp.eq.s32.totalorder %s19, 0
    %s22 = sadd.s32 %s21, 1
    %s23 = scalar_select %p20, %s21, %s22
    %p26 = pneg %p20
    %p27 = scmp.eq.s32.totalorder %s11, 1
    %p28 = por %p26, %p27
    %p29 = scmp.ne.s32.totalorder %s21, %s24
    %p30 = scmp.eq.s32.totalorder %s11, 0
    %p31 = por %p29, %p30
    %p32 = scmp.ne.s32.totalorder %s21, %s24
    %p33 = scmp.eq.s32.totalorder %s16, 1
    %p34 = por %p32, %p33
    %p35 = scmp.ne.s32.totalorder %s24, %s25
    %p36 = scmp.eq.s32.totalorder %s16, 0
    %p37 = por %p35, %p36
    %p38 = scmp.ne.s32.totalorder %s24, %s25
    %p39 = scmp.eq.s32.totalorder %s17, 1
    %p40 = por %p38, %p39
    %p42 = scmp.ne.s32.totalorder %s25, %s41
    %p43 = scmp.eq.s32.totalorder %s17, 0
    %p44 = por %p42, %p43
    %s46 = sadd.s32 %s45, 1
    %p49 = scmp.eq.s32.totalorder %s11, 1
    %p50 = scmp.ne.s32.totalorder %s45, %s47
    %p51 = scmp.eq.s32.totalorder %s11, 0
    %p52 = por %p50, %p51
    %p53 = scmp.ne.s32.totalorder %s45, %s47
    %p54 = scmp.eq.s32.totalorder %s16, 1
    %p55 = por %p53, %p54
    %p56 = scmp.ne.s32.totalorder %s47, %s48
    %p57 = scmp.eq.s32.totalorder %s16, 0
    %p58 = por %p56, %p57
    %p59 = scmp.ne.s32.totalorder %s47, %s48
    %p60 = scmp.eq.s32.totalorder %s17, 1
    %p61 = por %p59, %p60
    %p63 = scmp.ne.s32.totalorder %s48, %s62
    %p64 = scmp.eq.s32.totalorder %s17, 0
    %p65 = por %p63, %p64
    %s67 = sadd.s32 %s66, 1
    %p70 = scmp.eq.s32.totalorder %s11, 1
    %p71 = scmp.ne.s32.totalorder %s66, %s68
    %p72 = scmp.eq.s32.totalorder %s11, 0
    %p73 = por %p71, %p72
    %p74 = scmp.ne.s32.totalorder %s66, %s68
    %p75 = scmp.eq.s32.totalorder %s16, 1
    %p76 = por %p74, %p75
    %p77 = scmp.ne.s32.totalorder %s68, %s69
    %p78 = scmp.eq.s32.totalorder %s16, 0
    %p79 = por %p77, %p78
    %p80 = scmp.ne.s32.totalorder %s68, %s69
    %p81 = scmp.eq.s32.totalorder %s17, 1
    %p82 = por %p80, %p81
    %p84 = scmp.ne.s32.totalorder %s69, %s83
    %p85 = scmp.eq.s32.totalorder %s17, 0
    %p86 = por %p84, %p85
    %s88 = sadd.s32 %s87, 1
    %p91 = scmp.eq.s32.totalorder %s11, 1
    %p92 = scmp.ne.s32.totalorder %s87, %s89
    %p93 = scmp.eq.s32.totalorder %s11, 0
    %p94 = por %p92, %p93
    %p95 = scmp.ne.s32.totalorder %s87, %s89
    %p96 = scmp.eq.s32.totalorder %s16, 1
    %p97 = por %p95, %p96
    %p98 = scmp.ne.s32.totalorder %s89, %s90
    %p99 = scmp.eq.s32.totalorder %s16, 0
    %p100 = por %p98, %p99
    %p101 = scmp.ne.s32.totalorder %s89, %s90
    %p102 = scmp.eq.s32.totalorder %s17, 1
    %p103 = por %p101, %p102
    %p105 = scmp.ne.s32.totalorder %s90, %s104
    %p106 = scmp.eq.s32.totalorder %s17, 0
    %p107 = por %p105, %p106
    %s109 = sadd.s32 %s108, 1
    %p112 = scmp.eq.s32.totalorder %s11, 1
    %p113 = scmp.ne.s32.totalorder %s108, %s110
    %p114 = scmp.eq.s32.totalorder %s11, 0
    %p115 = por %p113, %p114
    %p116 = scmp.ne.s32.totalorder %s108, %s110
    %p117 = scmp.eq.s32.totalorder %s16, 1
    %p118 = por %p116, %p117
    %p119 = scmp.ne.s32.totalorder %s110, %s111
    %p120 = scmp.eq.s32.totalorder %s16, 0
    %p121 = por %p119, %p120
    %p122 = scmp.ne.s32.totalorder %s110, %s111
    %p123 = scmp.eq.s32.totalorder %s17, 1
    %p124 = por %p122, %p123
    %p126 = scmp.ne.s32.totalorder %s111, %s125
    %p127 = scmp.eq.s32.totalorder %s17, 0
    %p128 = por %p126, %p127
    %s129 = ssub.s32 %s11, %s18
    %p130 = scmp.eq.s32.totalorder %s129, 0
    %s132 = sadd.s32 %s131, 1
    %s133 = scalar_select %p130, %s131, %s132
    %p136 = pneg %p130
    %p137 = scmp.eq.s32.totalorder %s11, 1
    %p138 = por %p136, %p137
    %p139 = scmp.ne.s32.totalorder %s131, %s134
    %p140 = scmp.eq.s32.totalorder %s11, 0
    %p141 = por %p139, %p140
    %p142 = scmp.ne.s32.totalorder %s131, %s134
    %p143 = scmp.eq.s32.totalorder %s16, 1
    %p144 = por %p142, %p143
    %p145 = scmp.ne.s32.totalorder %s134, %s135
    %p146 = scmp.eq.s32.totalorder %s16, 0
    %p147 = por %p145, %p146
    %p148 = scmp.ne.s32.totalorder %s134, %s135
    %p149 = scmp.eq.s32.totalorder %s17, 1
    %p150 = por %p148, %p149
    %p152 = scmp.ne.s32.totalorder %s135, %s151
    %p153 = scmp.eq.s32.totalorder %s17, 0
    %p154 = por %p152, %p153
    %p155 = scmp.le.s32.totalorder 1, %s11
    %p156 = scmp.lt.s32.totalorder %s11, 3
    %p157 = pnand %p155, %p156
    %p158 = pneg %p157
    // Predicated region
    $region9: #{_forward_impl.7} parent=5 // pred_check
      _
    $region10: #{_forward_impl.7} parent=5 // pred_check_branch
      %160 = sbr.rel (%p157) target = $region12
    $region11: #{_forward_impl.7} parent=5 // pred_region
      %s161 = ssub.s32 %s11, 1
      // Predicated region
      $region13: #{_forward_impl.7} parent=11 // pred_check
        %p162 = pneg %p58
      $region14: #{_forward_impl.7} parent=11 // pred_check_branch
        %164 = sbr.rel (%p162) target = $region16
      $region15: #{_forward_impl.7} parent=11 // pred_region
        _
      $region16: #{_forward_impl.7} parent=11 // pred_fallthru
        _
      // Predicated region
      $region17: #{_forward_impl.7} parent=11 // pred_check
        %p165 = pneg %p79
      $region18: #{_forward_impl.7} parent=11 // pred_check_branch
        %167 = sbr.rel (%p165) target = $region20
      $region19: #{_forward_impl.7} parent=11 // pred_region
        _
      $region20: #{_forward_impl.7} parent=11 // pred_fallthru
        _
      // Predicated region
      $region21: #{_forward_impl.7} parent=11 // pred_check
        %p168 = pneg %p100
      $region22: #{_forward_impl.7} parent=11 // pred_check_branch
        %170 = sbr.rel (%p168) target = $region24
      $region23: #{_forward_impl.7} parent=11 // pred_region
        _
      $region24: #{_forward_impl.7} parent=11 // pred_fallthru
        _
      // Predicated region
      $region25: #{_forward_impl.7} parent=11 // pred_check
        %p171 = pneg %p121
      $region26: #{_forward_impl.7} parent=11 // pred_check_branch
        %173 = sbr.rel (%p171) target = $region28
      $region27: #{_forward_impl.7} parent=11 // pred_region
        _
      $region28: #{_forward_impl.7} parent=11 // pred_fallthru
        _
    $region12: #{_forward_impl.7} parent=5 // pred_fallthru
      _
    %p174 = scmp.lt.s32.totalorder %s11, 2
    // Predicated region
    $region29: #{_forward_impl.7} parent=5 // pred_check
      %p175 = pneg %p174
    $region30: #{_forward_impl.7} parent=5 // pred_check_branch
      %177 = sbr.rel (%p175) target = $region32
    $region31: #{_forward_impl.7} parent=5 // pred_region
      // Predicated region
      $region33: #{_forward_impl.7} parent=31 // pred_check
        %p178 = pneg %p31
      $region34: #{_forward_impl.7} parent=31 // pred_check_branch
        %180 = sbr.rel (%p178) target = $region36
      $region35: #{_forward_impl.7} parent=31 // pred_region
        %p181 = scmp.lt.s32.totalorder %s11, 1
        %s182 = scalar_select %p181, %s11, 1
        %s183 = smul.addr %s182, 54
        %s184 = smul.addr %s183, 4
        %s185 = scalar_lea.vmem %s0, %s184
      $region36: #{_forward_impl.7} parent=31 // pred_fallthru
        _
    $region32: #{_forward_impl.7} parent=5 // pred_fallthru
      _
    %p186 = scmp.le.s32.totalorder 1, %s11
    %p187 = scmp.lt.s32.totalorder %s11, 3
    %p188 = pnand %p186, %p187
    %p189 = pneg %p188
    // Predicated region
    $region37: #{_forward_impl.7} parent=5 // pred_check
      _
    $region38: #{_forward_impl.7} parent=5 // pred_check_branch
      %191 = sbr.rel (%p188) target = $region40
    $region39: #{_forward_impl.7} parent=5 // pred_region
      %s192 = ssub.s32 %s11, 1
      %p193 = scmp.lt.s32.totalorder %s16, 1
      %s194 = scalar_select %p193, %s16, 1
      %s195 = smul.addr %s194, 54
      %s196 = smul.addr %s195, 4
      %s197 = scalar_lea.vmem %s0, %s196
      %p198 = pneg %p37
      %p199 = pneg %p34
      %p200 = pneg %p58
      %p201 = pneg %p55
      %p202 = pneg %p79
      %p203 = pneg %p76
      %p204 = pneg %p100
      %p205 = pneg %p97
      %p206 = pneg %p121
      %p207 = pneg %p118
      %p208 = pneg %p147
      %p209 = pneg %p144
      %p210 = scmp.lt.s32.totalorder %s16, 1
      %s211 = scalar_select %p210, %s16, 1
      %s212 = smul.addr %s211, 32
      %s213 = smul.addr %s212, 8
      %s214 = scalar_lea.vmem %s5, %s213
      %p215 = scmp.lt.s32.totalorder %s16, 1
      %s216 = scalar_select %p215, %s16, 1
      %s217 = smul.addr %s216, 54
      %s218 = smul.addr %s217, 4
      %s219 = scalar_lea.vmem %s0, %s218
      %p220 = scmp.lt.s32.totalorder %s16, 1
      %s221 = scalar_select %p220, %s16, 1
      %s222 = smul.addr %s221, 32
      %s223 = smul.addr %s222, 8
      %s224 = scalar_lea.vmem %s5, %s223
      %v226 = vld [vmem:[%s219] sm:$0xf]
      %v227 = vld [vmem:[%s219 + $0x4] sm:$0xf]
      %v228 = vld [vmem:[%s219 + $0xc] sm:$0xf]
      %v229 = vld [vmem:[%s219 + $0x10] sm:$0xf]
      %v230 = vld [vmem:[%s219 + $0x18] sm:$0xf]
      %v231 = vld [vmem:[%s219 + $0x1c] sm:$0xf]
      %v232 = vld [vmem:[%s219 + $0x24] sm:$0xf]
      %v233 = vld [vmem:[%s219 + $0x28] sm:$0xf]
      %v234 = vld [vmem:[%s219 + $0x30] sm:$0xf]
      %v235 = vld [vmem:[%s219 + $0x34] sm:$0xf]
      %v236 = vld [vmem:[%s219 + $0x3c] sm:$0xf]
      %v237 = vld [vmem:[%s219 + $0x40] sm:$0xf]
      %v238 = vld [vmem:[%s219 + $0x48] sm:$0xf]
      %v239 = vld [vmem:[%s219 + $0x4c] sm:$0xf]
      %v240 = vld [vmem:[%s219 + $0x54] sm:$0xf]
      %v241 = vld [vmem:[%s219 + $0x58] sm:$0xf]
      %v242 = vld [vmem:[%s219 + $0x60] sm:$0xf]
      %v243 = vld [vmem:[%s219 + $0x64] sm:$0xf]
      %v244 = vld [vmem:[%s219 + $0x6c] sm:$0xf]
      %v245 = vld [vmem:[%s219 + $0x70] sm:$0xf]
      %v246 = vld [vmem:[%s219 + $0x78] sm:$0xf]
      %v247 = vld [vmem:[%s219 + $0x7c] sm:$0xf]
      %v248 = vld [vmem:[%s219 + $0x84] sm:$0xf]
      %v249 = vld [vmem:[%s219 + $0x88] sm:$0xf]
      %v250 = vld [vmem:[%s219 + $0x90] sm:$0xf]
      %v251 = vld [vmem:[%s219 + $0x94] sm:$0xf]
      %v252 = vld [vmem:[%s219 + $0x9c] sm:$0xf]
      %v253 = vld [vmem:[%s219 + $0xa0] sm:$0xf]
      %v254 = vld [vmem:[%s219 + $0xa8] sm:$0xf]
      %v255 = vld [vmem:[%s219 + $0xac] sm:$0xf]
      %v256 = vld [vmem:[%s219 + $0xb4] sm:$0xf]
      %v257 = vld [vmem:[%s219 + $0xb8] sm:$0xf]
      %v258 = vld [vmem:[%s219 + $0x8] sm:$0x1]
      %v259 = vld [vmem:[%s219 + $0x14] sm:$0x1]
      %v260 = vld [vmem:[%s219 + $0x20] sm:$0x1]
      %v261 = vld [vmem:[%s219 + $0x2c] sm:$0x1]
      %v262 = vld [vmem:[%s219 + $0x38] sm:$0x1]
      %v263 = vld [vmem:[%s219 + $0x44] sm:$0x1]
      %v264 = vld [vmem:[%s219 + $0x50] sm:$0x1]
      %v265 = vld [vmem:[%s219 + $0x5c] sm:$0x1]
      %v266 = vld [vmem:[%s219 + $0x68] sm:$0x1]
      %v267 = vld [vmem:[%s219 + $0x74] sm:$0x1]
      %v268 = vld [vmem:[%s219 + $0x80] sm:$0x1]
      %v269 = vld [vmem:[%s219 + $0x8c] sm:$0x1]
      %v270 = vld [vmem:[%s219 + $0x98] sm:$0x1]
      %v271 = vld [vmem:[%s219 + $0xa4] sm:$0x1]
      %v272 = vld [vmem:[%s219 + $0xb0] sm:$0x1]
      %v273 = vld [vmem:[%s219 + $0xbc] sm:$0x1]
      %vm274 = vsmask.f32 3328
      %vm275 = vsmask.f32 7440
      %vm276 = vmor %vm274, %vm275
      %v278 = vshrl.u32 %v226, 16
      %v280 = vrot.slane %v278, 4
      %v281 = vshll.u32 %v226, 16
      %v283 = vrot.slane %v281, 5
      %v284 = vor.u32 %v280, %v283
      %v285 = vrot.slane %v284, 4
      %v287 = vshll.u32 %v227, 16
      %v289 = vrot.slane %v287, 5
      %v290 = vsel %vm276, %v285, %v289
      %v291 = vshrl.u32 %v227, 16
      %v293 = vrot.slane %v291, 4
      %v294 = vor.u32 %v293, %v289
      %v295 = vrot.slane %v294, 4
      %v297 = vshll.u32 %v258, 16
      %v299 = vrot.slane %v297, 5
      %v300 = vsel %vm276, %v295, %v299
      %v302 = vshrl.u32 %v228, 16
      %v304 = vrot.slane %v302, 4
      %v305 = vshll.u32 %v228, 16
      %v307 = vrot.slane %v305, 5
      %v308 = vor.u32 %v304, %v307
      %v309 = vrot.slane %v308, 4
      %v311 = vshll.u32 %v229, 16
      %v313 = vrot.slane %v311, 5
      %v314 = vsel %vm276, %v309, %v313
      %v315 = vshrl.u32 %v229, 16
      %v317 = vrot.slane %v315, 4
      %v318 = vor.u32 %v317, %v313
      %v319 = vrot.slane %v318, 4
      %v321 = vshll.u32 %v259, 16
      %v323 = vrot.slane %v321, 5
      %v324 = vsel %vm276, %v319, %v323
      %v326 = vshrl.u32 %v230, 16
      %v328 = vrot.slane %v326, 4
      %v329 = vshll.u32 %v230, 16
      %v331 = vrot.slane %v329, 5
      %v332 = vor.u32 %v328, %v331
      %v333 = vrot.slane %v332, 4
      %v335 = vshll.u32 %v231, 16
      %v337 = vrot.slane %v335, 5
      %v338 = vsel %vm276, %v333, %v337
      %v339 = vshrl.u32 %v231, 16
      %v341 = vrot.slane %v339, 4
      %v342 = vor.u32 %v341, %v337
      %v343 = vrot.slane %v342, 4
      %v345 = vshll.u32 %v260, 16
      %v347 = vrot.slane %v345, 5
      %v348 = vsel %vm276, %v343, %v347
      %v350 = vshrl.u32 %v232, 16
      %v352 = vrot.slane %v350, 4
      %v353 = vshll.u32 %v232, 16
      %v355 = vrot.slane %v353, 5
      %v356 = vor.u32 %v352, %v355
      %v357 = vrot.slane %v356, 4
      %v359 = vshll.u32 %v233, 16
      %v361 = vrot.slane %v359, 5
      %v362 = vsel %vm276, %v357, %v361
      %v363 = vshrl.u32 %v233, 16
      %v365 = vrot.slane %v363, 4
      %v366 = vor.u32 %v365, %v361
      %v367 = vrot.slane %v366, 4
      %v369 = vshll.u32 %v261, 16
      %v371 = vrot.slane %v369, 5
      %v372 = vsel %vm276, %v367, %v371
      %v374 = vshrl.u32 %v234, 16
      %v376 = vrot.slane %v374, 4
      %v377 = vshll.u32 %v234, 16
      %v379 = vrot.slane %v377, 5
      %v380 = vor.u32 %v376, %v379
      %v381 = vrot.slane %v380, 4
      %v383 = vshll.u32 %v235, 16
      %v385 = vrot.slane %v383, 5
      %v386 = vsel %vm276, %v381, %v385
      %v387 = vshrl.u32 %v235, 16
      %v389 = vrot.slane %v387, 4
      %v390 = vor.u32 %v389, %v385
      %v391 = vrot.slane %v390, 4
      %v393 = vshll.u32 %v262, 16
      %v395 = vrot.slane %v393, 5
      %v396 = vsel %vm276, %v391, %v395
      %v398 = vshrl.u32 %v236, 16
      %v400 = vrot.slane %v398, 4
      %v401 = vshll.u32 %v236, 16
      %v403 = vrot.slane %v401, 5
      %v404 = vor.u32 %v400, %v403
      %v405 = vrot.slane %v404, 4
      %v407 = vshll.u32 %v237, 16
      %v409 = vrot.slane %v407, 5
      %v410 = vsel %vm276, %v405, %v409
      %v411 = vshrl.u32 %v237, 16
      %v413 = vrot.slane %v411, 4
      %v414 = vor.u32 %v413, %v409
      %v415 = vrot.slane %v414, 4
      %v417 = vshll.u32 %v263, 16
      %v419 = vrot.slane %v417, 5
      %v420 = vsel %vm276, %v415, %v419
      %v422 = vshrl.u32 %v238, 16
      %v424 = vrot.slane %v422, 4
      %v425 = vshll.u32 %v238, 16
      %v427 = vrot.slane %v425, 5
      %v428 = vor.u32 %v424, %v427
      %v429 = vrot.slane %v428, 4
      %v431 = vshll.u32 %v239, 16
      %v433 = vrot.slane %v431, 5
      %v434 = vsel %vm276, %v429, %v433
      %v435 = vshrl.u32 %v239, 16
      %v437 = vrot.slane %v435, 4
      %v438 = vor.u32 %v437, %v433
      %v439 = vrot.slane %v438, 4
      %v441 = vshll.u32 %v264, 16
      %v443 = vrot.slane %v441, 5
      %v444 = vsel %vm276, %v439, %v443
      %v446 = vshrl.u32 %v240, 16
      %v448 = vrot.slane %v446, 4
      %v449 = vshll.u32 %v240, 16
      %v451 = vrot.slane %v449, 5
      %v452 = vor.u32 %v448, %v451
      %v453 = vrot.slane %v452, 4
      %v455 = vshll.u32 %v241, 16
      %v457 = vrot.slane %v455, 5
      %v458 = vsel %vm276, %v453, %v457
      %v459 = vshrl.u32 %v241, 16
      %v461 = vrot.slane %v459, 4
      %v462 = vor.u32 %v461, %v457
      %v463 = vrot.slane %v462, 4
      %v465 = vshll.u32 %v265, 16
      %v467 = vrot.slane %v465, 5
      %v468 = vsel %vm276, %v463, %v467
      %v470 = vshrl.u32 %v242, 16
      %v472 = vrot.slane %v470, 4
      %v473 = vshll.u32 %v242, 16
      %v475 = vrot.slane %v473, 5
      %v476 = vor.u32 %v472, %v475
      %v477 = vrot.slane %v476, 4
      %v479 = vshll.u32 %v243, 16
      %v481 = vrot.slane %v479, 5
      %v482 = vsel %vm276, %v477, %v481
      %v483 = vshrl.u32 %v243, 16
      %v485 = vrot.slane %v483, 4
      %v486 = vor.u32 %v485, %v481
      %v487 = vrot.slane %v486, 4
      %v489 = vshll.u32 %v266, 16
      %v491 = vrot.slane %v489, 5
      %v492 = vsel %vm276, %v487, %v491
      %v494 = vshrl.u32 %v244, 16
      %v496 = vrot.slane %v494, 4
      %v497 = vshll.u32 %v244, 16
      %v499 = vrot.slane %v497, 5
      %v500 = vor.u32 %v496, %v499
      %v501 = vrot.slane %v500, 4
      %v503 = vshll.u32 %v245, 16
      %v505 = vrot.slane %v503, 5
      %v506 = vsel %vm276, %v501, %v505
      %v507 = vshrl.u32 %v245, 16
      %v509 = vrot.slane %v507, 4
      %v510 = vor.u32 %v509, %v505
      %v511 = vrot.slane %v510, 4
      %v513 = vshll.u32 %v267, 16
      %v515 = vrot.slane %v513, 5
      %v516 = vsel %vm276, %v511, %v515
      %v518 = vshrl.u32 %v246, 16
      %v520 = vrot.slane %v518, 4
      %v521 = vshll.u32 %v246, 16
      %v523 = vrot.slane %v521, 5
      %v524 = vor.u32 %v520, %v523
      %v525 = vrot.slane %v524, 4
      %v527 = vshll.u32 %v247, 16
      %v529 = vrot.slane %v527, 5
      %v530 = vsel %vm276, %v525, %v529
      %v531 = vshrl.u32 %v247, 16
      %v533 = vrot.slane %v531, 4
      %v534 = vor.u32 %v533, %v529
      %v535 = vrot.slane %v534, 4
      %v537 = vshll.u32 %v268, 16
      %v539 = vrot.slane %v537, 5
      %v540 = vsel %vm276, %v535, %v539
      %v542 = vshrl.u32 %v248, 16
      %v544 = vrot.slane %v542, 4
      %v545 = vshll.u32 %v248, 16
      %v547 = vrot.slane %v545, 5
      %v548 = vor.u32 %v544, %v547
      %v549 = vrot.slane %v548, 4
      %v551 = vshll.u32 %v249, 16
      %v553 = vrot.slane %v551, 5
      %v554 = vsel %vm276, %v549, %v553
      %v555 = vshrl.u32 %v249, 16
      %v557 = vrot.slane %v555, 4
      %v558 = vor.u32 %v557, %v553
      %v559 = vrot.slane %v558, 4
      %v561 = vshll.u32 %v269, 16
      %v563 = vrot.slane %v561, 5
      %v564 = vsel %vm276, %v559, %v563
      %v566 = vshrl.u32 %v250, 16
      %v568 = vrot.slane %v566, 4
      %v569 = vshll.u32 %v250, 16
      %v571 = vrot.slane %v569, 5
      %v572 = vor.u32 %v568, %v571
      %v573 = vrot.slane %v572, 4
      %v575 = vshll.u32 %v251, 16
      %v577 = vrot.slane %v575, 5
      %v578 = vsel %vm276, %v573, %v577
      %v579 = vshrl.u32 %v251, 16
      %v581 = vrot.slane %v579, 4
      %v582 = vor.u32 %v581, %v577
      %v583 = vrot.slane %v582, 4
      %v585 = vshll.u32 %v270, 16
      %v587 = vrot.slane %v585, 5
      %v588 = vsel %vm276, %v583, %v587
      %v590 = vshrl.u32 %v252, 16
      %v592 = vrot.slane %v590, 4
      %v593 = vshll.u32 %v252, 16
      %v595 = vrot.slane %v593, 5
      %v596 = vor.u32 %v592, %v595
      %v597 = vrot.slane %v596, 4
      %v599 = vshll.u32 %v253, 16
      %v601 = vrot.slane %v599, 5
      %v602 = vsel %vm276, %v597, %v601
      %v603 = vshrl.u32 %v253, 16
      %v605 = vrot.slane %v603, 4
      %v606 = vor.u32 %v605, %v601
      %v607 = vrot.slane %v606, 4
      %v609 = vshll.u32 %v271, 16
      %v611 = vrot.slane %v609, 5
      %v612 = vsel %vm276, %v607, %v611
      %v614 = vshrl.u32 %v254, 16
      %v616 = vrot.slane %v614, 4
      %v617 = vshll.u32 %v254, 16
      %v619 = vrot.slane %v617, 5
      %v620 = vor.u32 %v616, %v619
      %v621 = vrot.slane %v620, 4
      %v623 = vshll.u32 %v255, 16
      %v625 = vrot.slane %v623, 5
      %v626 = vsel %vm276, %v621, %v625
      %v627 = vshrl.u32 %v255, 16
      %v629 = vrot.slane %v627, 4
      %v630 = vor.u32 %v629, %v625
      %v631 = vrot.slane %v630, 4
      %v633 = vshll.u32 %v272, 16
      %v635 = vrot.slane %v633, 5
      %v636 = vsel %vm276, %v631, %v635
      %v638 = vshrl.u32 %v256, 16
      %v640 = vrot.slane %v638, 4
      %v641 = vshll.u32 %v256, 16
      %v643 = vrot.slane %v641, 5
      %v644 = vor.u32 %v640, %v643
      %v645 = vrot.slane %v644, 4
      %v647 = vshll.u32 %v257, 16
      %v649 = vrot.slane %v647, 5
      %v650 = vsel %vm276, %v645, %v649
      %v651 = vshrl.u32 %v257, 16
      %v653 = vrot.slane %v651, 4
      %v654 = vor.u32 %v653, %v649
      %v655 = vrot.slane %v654, 4
      %v657 = vshll.u32 %v273, 16
      %v659 = vrot.slane %v657, 5
      %v660 = vsel %vm276, %v655, %v659
      %v661 = vld [vmem:[%s219] sm:$0xe]
      %v662 = vld [vmem:[%s219 + $0xc] sm:$0xe]
      %v663 = vld [vmem:[%s219 + $0x18] sm:$0xe]
      %v664 = vld [vmem:[%s219 + $0x24] sm:$0xe]
      %v665 = vld [vmem:[%s219 + $0x30] sm:$0xe]
      %v666 = vld [vmem:[%s219 + $0x3c] sm:$0xe]
      %v667 = vld [vmem:[%s219 + $0x48] sm:$0xe]
      %v668 = vld [vmem:[%s219 + $0x54] sm:$0xe]
      %v669 = vld [vmem:[%s219 + $0x60] sm:$0xe]
      %v670 = vld [vmem:[%s219 + $0x6c] sm:$0xe]
      %v671 = vld [vmem:[%s219 + $0x78] sm:$0xe]
      %v672 = vld [vmem:[%s219 + $0x84] sm:$0xe]
      %v673 = vld [vmem:[%s219 + $0x90] sm:$0xe]
      %v674 = vld [vmem:[%s219 + $0x9c] sm:$0xe]
      %v675 = vld [vmem:[%s219 + $0xa8] sm:$0xe]
      %v676 = vld [vmem:[%s219 + $0xb4] sm:$0xe]
      %vm725 = vcmask 1042432
      %vm726 = vcmask 1046532
      %vm727 = vmor %vm725, %vm726
      %v728 = vrot.slane %v661, 5
      %v729 = vrot.slane %v728, 4
      %v730 = vrot.slane %v227, 5
      %v731 = vsel %vm727, %v729, %v730
      %v732 = vrot.slane %v730, 4
      %v733 = vrot.slane %v258, 5
      %v734 = vsel %vm727, %v732, %v733
      %v735 = vrot.slane %v662, 5
      %v736 = vrot.slane %v735, 4
      %v737 = vrot.slane %v229, 5
      %v738 = vsel %vm727, %v736, %v737
      %v739 = vrot.slane %v737, 4
      %v740 = vrot.slane %v259, 5
      %v741 = vsel %vm727, %v739, %v740
      %v742 = vrot.slane %v663, 5
      %v743 = vrot.slane %v742, 4
      %v744 = vrot.slane %v231, 5
      %v745 = vsel %vm727, %v743, %v744
      %v746 = vrot.slane %v744, 4
      %v747 = vrot.slane %v260, 5
      %v748 = vsel %vm727, %v746, %v747
      %v749 = vrot.slane %v664, 5
      %v750 = vrot.slane %v749, 4
      %v751 = vrot.slane %v233, 5
      %v752 = vsel %vm727, %v750, %v751
      %v753 = vrot.slane %v751, 4
      %v754 = vrot.slane %v261, 5
      %v755 = vsel %vm727, %v753, %v754
      %v756 = vrot.slane %v665, 5
      %v757 = vrot.slane %v756, 4
      %v758 = vrot.slane %v235, 5
      %v759 = vsel %vm727, %v757, %v758
      %v760 = vrot.slane %v758, 4
      %v761 = vrot.slane %v262, 5
      %v762 = vsel %vm727, %v760, %v761
      %v763 = vrot.slane %v666, 5
      %v764 = vrot.slane %v763, 4
      %v765 = vrot.slane %v237, 5
      %v766 = vsel %vm727, %v764, %v765
      %v767 = vrot.slane %v765, 4
      %v768 = vrot.slane %v263, 5
      %v769 = vsel %vm727, %v767, %v768
      %v770 = vrot.slane %v667, 5
      %v771 = vrot.slane %v770, 4
      %v772 = vrot.slane %v239, 5
      %v773 = vsel %vm727, %v771, %v772
      %v774 = vrot.slane %v772, 4
      %v775 = vrot.slane %v264, 5
      %v776 = vsel %vm727, %v774, %v775
      %v777 = vrot.slane %v668, 5
      %v778 = vrot.slane %v777, 4
      %v779 = vrot.slane %v241, 5
      %v780 = vsel %vm727, %v778, %v779
      %v781 = vrot.slane %v779, 4
      %v782 = vrot.slane %v265, 5
      %v783 = vsel %vm727, %v781, %v782
      %v784 = vrot.slane %v669, 5
      %v785 = vrot.slane %v784, 4
      %v786 = vrot.slane %v243, 5
      %v787 = vsel %vm727, %v785, %v786
      %v788 = vrot.slane %v786, 4
      %v789 = vrot.slane %v266, 5
      %v790 = vsel %vm727, %v788, %v789
      %v791 = vrot.slane %v670, 5
      %v792 = vrot.slane %v791, 4
      %v793 = vrot.slane %v245, 5
      %v794 = vsel %vm727, %v792, %v793
      %v795 = vrot.slane %v793, 4
      %v796 = vrot.slane %v267, 5
      %v797 = vsel %vm727, %v795, %v796
      %v798 = vrot.slane %v671, 5
      %v799 = vrot.slane %v798, 4
      %v800 = vrot.slane %v247, 5
      %v801 = vsel %vm727, %v799, %v800
      %v802 = vrot.slane %v800, 4
      %v803 = vrot.slane %v268, 5
      %v804 = vsel %vm727, %v802, %v803
      %v805 = vrot.slane %v672, 5
      %v806 = vrot.slane %v805, 4
      %v807 = vrot.slane %v249, 5
      %v808 = vsel %vm727, %v806, %v807
      %v809 = vrot.slane %v807, 4
      %v810 = vrot.slane %v269, 5
      %v811 = vsel %vm727, %v809, %v810
      %v812 = vrot.slane %v673, 5
      %v813 = vrot.slane %v812, 4
      %v814 = vrot.slane %v251, 5
      %v815 = vsel %vm727, %v813, %v814
      %v816 = vrot.slane %v814, 4
      %v817 = vrot.slane %v270, 5
      %v818 = vsel %vm727, %v816, %v817
      %v819 = vrot.slane %v674, 5
      %v820 = vrot.slane %v819, 4
      %v821 = vrot.slane %v253, 5
      %v822 = vsel %vm727, %v820, %v821
      %v823 = vrot.slane %v821, 4
      %v824 = vrot.slane %v271, 5
      %v825 = vsel %vm727, %v823, %v824
      %v826 = vrot.slane %v675, 5
      %v827 = vrot.slane %v826, 4
      %v828 = vrot.slane %v255, 5
      %v829 = vsel %vm727, %v827, %v828
      %v830 = vrot.slane %v828, 4
      %v831 = vrot.slane %v272, 5
      %v832 = vsel %vm727, %v830, %v831
      %v833 = vrot.slane %v676, 5
      %v834 = vrot.slane %v833, 4
      %v835 = vrot.slane %v257, 5
      %v836 = vsel %vm727, %v834, %v835
      %v837 = vrot.slane %v835, 4
      %v838 = vrot.slane %v273, 5
      %v839 = vsel %vm727, %v837, %v838
      %s840 = scalar_lea.vmem %s219, 12
      %v841 = vld [vmem:[%s840] sm:$0xf]
      %v842 = vld [vmem:[%s840 + $0x4] sm:$0xf]
      %v843 = vld [vmem:[%s840 + $0xc] sm:$0xf]
      %v844 = vld [vmem:[%s840 + $0x10] sm:$0xf]
      %v845 = vld [vmem:[%s840 + $0x18] sm:$0xf]
      %v846 = vld [vmem:[%s840 + $0x1c] sm:$0xf]
      %v847 = vld [vmem:[%s840 + $0x24] sm:$0xf]
      %v848 = vld [vmem:[%s840 + $0x28] sm:$0xf]
      %v849 = vld [vmem:[%s840 + $0x30] sm:$0xf]
      %v850 = vld [vmem:[%s840 + $0x34] sm:$0xf]
      %v851 = vld [vmem:[%s840 + $0x3c] sm:$0xf]
      %v852 = vld [vmem:[%s840 + $0x40] sm:$0xf]
      %v853 = vld [vmem:[%s840 + $0x48] sm:$0xf]
      %v854 = vld [vmem:[%s840 + $0x4c] sm:$0xf]
      %v855 = vld [vmem:[%s840 + $0x54] sm:$0xf]
      %v856 = vld [vmem:[%s840 + $0x58] sm:$0xf]
      %v857 = vld [vmem:[%s840 + $0x60] sm:$0xf]
      %v858 = vld [vmem:[%s840 + $0x64] sm:$0xf]
      %v859 = vld [vmem:[%s840 + $0x6c] sm:$0xf]
      %v860 = vld [vmem:[%s840 + $0x70] sm:$0xf]
      %v861 = vld [vmem:[%s840 + $0x78] sm:$0xf]
      %v862 = vld [vmem:[%s840 + $0x7c] sm:$0xf]
      %v863 = vld [vmem:[%s840 + $0x84] sm:$0xf]
      %v864 = vld [vmem:[%s840 + $0x88] sm:$0xf]
      %v865 = vld [vmem:[%s840 + $0x90] sm:$0xf]
      %v866 = vld [vmem:[%s840 + $0x94] sm:$0xf]
      %v867 = vld [vmem:[%s840 + $0x9c] sm:$0xf]
      %v868 = vld [vmem:[%s840 + $0xa0] sm:$0xf]
      %v869 = vld [vmem:[%s840 + $0xa8] sm:$0xf]
      %v870 = vld [vmem:[%s840 + $0xac] sm:$0xf]
      %v871 = vld [vmem:[%s840 + $0xb4] sm:$0xf]
      %v872 = vld [vmem:[%s840 + $0xb8] sm:$0xf]
      %v873 = vld [vmem:[%s840 + $0x8] sm:$0x1]
      %v874 = vld [vmem:[%s840 + $0x14] sm:$0x1]
      %v875 = vld [vmem:[%s840 + $0x20] sm:$0x1]
      %v876 = vld [vmem:[%s840 + $0x2c] sm:$0x1]
      %v877 = vld [vmem:[%s840 + $0x38] sm:$0x1]
      %v878 = vld [vmem:[%s840 + $0x44] sm:$0x1]
      %v879 = vld [vmem:[%s840 + $0x50] sm:$0x1]
      %v880 = vld [vmem:[%s840 + $0x5c] sm:$0x1]
      %v881 = vld [vmem:[%s840 + $0x68] sm:$0x1]
      %v882 = vld [vmem:[%s840 + $0x74] sm:$0x1]
      %v883 = vld [vmem:[%s840 + $0x80] sm:$0x1]
      %v884 = vld [vmem:[%s840 + $0x8c] sm:$0x1]
      %v885 = vld [vmem:[%s840 + $0x98] sm:$0x1]
      %v886 = vld [vmem:[%s840 + $0xa4] sm:$0x1]
      %v887 = vld [vmem:[%s840 + $0xb0] sm:$0x1]
      %v888 = vld [vmem:[%s840 + $0xbc] sm:$0x1]
      %v890 = vshrl.u32 %v841, 16
      %v892 = vrot.slane %v890, 4
      %v893 = vshll.u32 %v841, 16
      %v895 = vrot.slane %v893, 5
      %v896 = vor.u32 %v892, %v895
      %v897 = vrot.slane %v896, 4
      %v899 = vshll.u32 %v842, 16
      %v901 = vrot.slane %v899, 5
      %v902 = vsel %vm276, %v897, %v901
      %v903 = vshrl.u32 %v842, 16
      %v905 = vrot.slane %v903, 4
      %v906 = vor.u32 %v905, %v901
      %v907 = vrot.slane %v906, 4
      %v909 = vshll.u32 %v873, 16
      %v911 = vrot.slane %v909, 5
      %v912 = vsel %vm276, %v907, %v911
      %v914 = vshrl.u32 %v843, 16
      %v916 = vrot.slane %v914, 4
      %v917 = vshll.u32 %v843, 16
      %v919 = vrot.slane %v917, 5
      %v920 = vor.u32 %v916, %v919
      %v921 = vrot.slane %v920, 4
      %v923 = vshll.u32 %v844, 16
      %v925 = vrot.slane %v923, 5
      %v926 = vsel %vm276, %v921, %v925
      %v927 = vshrl.u32 %v844, 16
      %v929 = vrot.slane %v927, 4
      %v930 = vor.u32 %v929, %v925
      %v931 = vrot.slane %v930, 4
      %v933 = vshll.u32 %v874, 16
      %v935 = vrot.slane %v933, 5
      %v936 = vsel %vm276, %v931, %v935
      %v938 = vshrl.u32 %v845, 16
      %v940 = vrot.slane %v938, 4
      %v941 = vshll.u32 %v845, 16
      %v943 = vrot.slane %v941, 5
      %v944 = vor.u32 %v940, %v943
      %v945 = vrot.slane %v944, 4
      %v947 = vshll.u32 %v846, 16
      %v949 = vrot.slane %v947, 5
      %v950 = vsel %vm276, %v945, %v949
      %v951 = vshrl.u32 %v846, 16
      %v953 = vrot.slane %v951, 4
      %v954 = vor.u32 %v953, %v949
      %v955 = vrot.slane %v954, 4
      %v957 = vshll.u32 %v875, 16
      %v959 = vrot.slane %v957, 5
      %v960 = vsel %vm276, %v955, %v959
      %v962 = vshrl.u32 %v847, 16
      %v964 = vrot.slane %v962, 4
      %v965 = vshll.u32 %v847, 16
      %v967 = vrot.slane %v965, 5
      %v968 = vor.u32 %v964, %v967
      %v969 = vrot.slane %v968, 4
      %v971 = vshll.u32 %v848, 16
      %v973 = vrot.slane %v971, 5
      %v974 = vsel %vm276, %v969, %v973
      %v975 = vshrl.u32 %v848, 16
      %v977 = vrot.slane %v975, 4
      %v978 = vor.u32 %v977, %v973
      %v979 = vrot.slane %v978, 4
      %v981 = vshll.u32 %v876, 16
      %v983 = vrot.slane %v981, 5
      %v984 = vsel %vm276, %v979, %v983
      %v986 = vshrl.u32 %v849, 16
      %v988 = vrot.slane %v986, 4
      %v989 = vshll.u32 %v849, 16
      %v991 = vrot.slane %v989, 5
      %v992 = vor.u32 %v988, %v991
      %v993 = vrot.slane %v992, 4
      %v995 = vshll.u32 %v850, 16
      %v997 = vrot.slane %v995, 5
      %v998 = vsel %vm276, %v993, %v997
      %v999 = vshrl.u32 %v850, 16
      %v1001 = vrot.slane %v999, 4
      %v1002 = vor.u32 %v1001, %v997
      %v1003 = vrot.slane %v1002, 4
      %v1005 = vshll.u32 %v877, 16
      %v1007 = vrot.slane %v1005, 5
      %v1008 = vsel %vm276, %v1003, %v1007
      %v1010 = vshrl.u32 %v851, 16
      %v1012 = vrot.slane %v1010, 4
      %v1013 = vshll.u32 %v851, 16
      %v1015 = vrot.slane %v1013, 5
      %v1016 = vor.u32 %v1012, %v1015
      %v1017 = vrot.slane %v1016, 4
      %v1019 = vshll.u32 %v852, 16
      %v1021 = vrot.slane %v1019, 5
      %v1022 = vsel %vm276, %v1017, %v1021
      %v1023 = vshrl.u32 %v852, 16
      %v1025 = vrot.slane %v1023, 4
      %v1026 = vor.u32 %v1025, %v1021
      %v1027 = vrot.slane %v1026, 4
      %v1029 = vshll.u32 %v878, 16
      %v1031 = vrot.slane %v1029, 5
      %v1032 = vsel %vm276, %v1027, %v1031
      %v1034 = vshrl.u32 %v853, 16
      %v1036 = vrot.slane %v1034, 4
      %v1037 = vshll.u32 %v853, 16
      %v1039 = vrot.slane %v1037, 5
      %v1040 = vor.u32 %v1036, %v1039
      %v1041 = vrot.slane %v1040, 4
      %v1043 = vshll.u32 %v854, 16
      %v1045 = vrot.slane %v1043, 5
      %v1046 = vsel %vm276, %v1041, %v1045
      %v1047 = vshrl.u32 %v854, 16
      %v1049 = vrot.slane %v1047, 4
      %v1050 = vor.u32 %v1049, %v1045
      %v1051 = vrot.slane %v1050, 4
      %v1053 = vshll.u32 %v879, 16
      %v1055 = vrot.slane %v1053, 5
      %v1056 = vsel %vm276, %v1051, %v1055
      %v1058 = vshrl.u32 %v855, 16
      %v1060 = vrot.slane %v1058, 4
      %v1061 = vshll.u32 %v855, 16
      %v1063 = vrot.slane %v1061, 5
      %v1064 = vor.u32 %v1060, %v1063
      %v1065 = vrot.slane %v1064, 4
      %v1067 = vshll.u32 %v856, 16
      %v1069 = vrot.slane %v1067, 5
      %v1070 = vsel %vm276, %v1065, %v1069
      %v1071 = vshrl.u32 %v856, 16
      %v1073 = vrot.slane %v1071, 4
      %v1074 = vor.u32 %v1073, %v1069
      %v1075 = vrot.slane %v1074, 4
      %v1077 = vshll.u32 %v880, 16
      %v1079 = vrot.slane %v1077, 5
      %v1080 = vsel %vm276, %v1075, %v1079
      %v1082 = vshrl.u32 %v857, 16
      %v1084 = vrot.slane %v1082, 4
      %v1085 = vshll.u32 %v857, 16
      %v1087 = vrot.slane %v1085, 5
      %v1088 = vor.u32 %v1084, %v1087
      %v1089 = vrot.slane %v1088, 4
      %v1091 = vshll.u32 %v858, 16
      %v1093 = vrot.slane %v1091, 5
      %v1094 = vsel %vm276, %v1089, %v1093
      %v1095 = vshrl.u32 %v858, 16
      %v1097 = vrot.slane %v1095, 4
      %v1098 = vor.u32 %v1097, %v1093
      %v1099 = vrot.slane %v1098, 4
      %v1101 = vshll.u32 %v881, 16
      %v1103 = vrot.slane %v1101, 5
      %v1104 = vsel %vm276, %v1099, %v1103
      %v1106 = vshrl.u32 %v859, 16
      %v1108 = vrot.slane %v1106, 4
      %v1109 = vshll.u32 %v859, 16
      %v1111 = vrot.slane %v1109, 5
      %v1112 = vor.u32 %v1108, %v1111
      %v1113 = vrot.slane %v1112, 4
      %v1115 = vshll.u32 %v860, 16
      %v1117 = vrot.slane %v1115, 5
      %v1118 = vsel %vm276, %v1113, %v1117
      %v1119 = vshrl.u32 %v860, 16
      %v1121 = vrot.slane %v1119, 4
      %v1122 = vor.u32 %v1121, %v1117
      %v1123 = vrot.slane %v1122, 4
      %v1125 = vshll.u32 %v882, 16
      %v1127 = vrot.slane %v1125, 5
      %v1128 = vsel %vm276, %v1123, %v1127
      %v1130 = vshrl.u32 %v861, 16
      %v1132 = vrot.slane %v1130, 4
      %v1133 = vshll.u32 %v861, 16
      %v1135 = vrot.slane %v1133, 5
      %v1136 = vor.u32 %v1132, %v1135
      %v1137 = vrot.slane %v1136, 4
      %v1139 = vshll.u32 %v862, 16
      %v1141 = vrot.slane %v1139, 5
      %v1142 = vsel %vm276, %v1137, %v1141
      %v1143 = vshrl.u32 %v862, 16
      %v1145 = vrot.slane %v1143, 4
      %v1146 = vor.u32 %v1145, %v1141
      %v1147 = vrot.slane %v1146, 4
      %v1149 = vshll.u32 %v883, 16
      %v1151 = vrot.slane %v1149, 5
      %v1152 = vsel %vm276, %v1147, %v1151
      %v1154 = vshrl.u32 %v863, 16
      %v1156 = vrot.slane %v1154, 4
      %v1157 = vshll.u32 %v863, 16
      %v1159 = vrot.slane %v1157, 5
      %v1160 = vor.u32 %v1156, %v1159
      %v1161 = vrot.slane %v1160, 4
      %v1163 = vshll.u32 %v864, 16
      %v1165 = vrot.slane %v1163, 5
      %v1166 = vsel %vm276, %v1161, %v1165
      %v1167 = vshrl.u32 %v864, 16
      %v1169 = vrot.slane %v1167, 4
      %v1170 = vor.u32 %v1169, %v1165
      %v1171 = vrot.slane %v1170, 4
      %v1173 = vshll.u32 %v884, 16
      %v1175 = vrot.slane %v1173, 5
      %v1176 = vsel %vm276, %v1171, %v1175
      %v1178 = vshrl.u32 %v865, 16
      %v1180 = vrot.slane %v1178, 4
      %v1181 = vshll.u32 %v865, 16
      %v1183 = vrot.slane %v1181, 5
      %v1184 = vor.u32 %v1180, %v1183
      %v1185 = vrot.slane %v1184, 4
      %v1187 = vshll.u32 %v866, 16
      %v1189 = vrot.slane %v1187, 5
      %v1190 = vsel %vm276, %v1185, %v1189
      %v1191 = vshrl.u32 %v866, 16
      %v1193 = vrot.slane %v1191, 4
      %v1194 = vor.u32 %v1193, %v1189
      %v1195 = vrot.slane %v1194, 4
      %v1197 = vshll.u32 %v885, 16
      %v1199 = vrot.slane %v1197, 5
      %v1200 = vsel %vm276, %v1195, %v1199
      %v1202 = vshrl.u32 %v867, 16
      %v1204 = vrot.slane %v1202, 4
      %v1205 = vshll.u32 %v867, 16
      %v1207 = vrot.slane %v1205, 5
      %v1208 = vor.u32 %v1204, %v1207
      %v1209 = vrot.slane %v1208, 4
      %v1211 = vshll.u32 %v868, 16
      %v1213 = vrot.slane %v1211, 5
      %v1214 = vsel %vm276, %v1209, %v1213
      %v1215 = vshrl.u32 %v868, 16
      %v1217 = vrot.slane %v1215, 4
      %v1218 = vor.u32 %v1217, %v1213
      %v1219 = vrot.slane %v1218, 4
      %v1221 = vshll.u32 %v886, 16
      %v1223 = vrot.slane %v1221, 5
      %v1224 = vsel %vm276, %v1219, %v1223
      %v1226 = vshrl.u32 %v869, 16
      %v1228 = vrot.slane %v1226, 4
      %v1229 = vshll.u32 %v869, 16
      %v1231 = vrot.slane %v1229, 5
      %v1232 = vor.u32 %v1228, %v1231
      %v1233 = vrot.slane %v1232, 4
      %v1235 = vshll.u32 %v870, 16
      %v1237 = vrot.slane %v1235, 5
      %v1238 = vsel %vm276, %v1233, %v1237
      %v1239 = vshrl.u32 %v870, 16
      %v1241 = vrot.slane %v1239, 4
      %v1242 = vor.u32 %v1241, %v1237
      %v1243 = vrot.slane %v1242, 4
      %v1245 = vshll.u32 %v887, 16
      %v1247 = vrot.slane %v1245, 5
      %v1248 = vsel %vm276, %v1243, %v1247
      %v1250 = vshrl.u32 %v871, 16
      %v1252 = vrot.slane %v1250, 4
      %v1253 = vshll.u32 %v871, 16
      %v1255 = vrot.slane %v1253, 5
      %v1256 = vor.u32 %v1252, %v1255
      %v1257 = vrot.slane %v1256, 4
      %v1259 = vshll.u32 %v872, 16
      %v1261 = vrot.slane %v1259, 5
      %v1262 = vsel %vm276, %v1257, %v1261
      %v1263 = vshrl.u32 %v872, 16
      %v1265 = vrot.slane %v1263, 4
      %v1266 = vor.u32 %v1265, %v1261
      %v1267 = vrot.slane %v1266, 4
      %v1269 = vshll.u32 %v888, 16
      %v1271 = vrot.slane %v1269, 5
      %v1272 = vsel %vm276, %v1267, %v1271
      %v1273 = vld [vmem:[%s840] sm:$0xe]
      %v1274 = vld [vmem:[%s840 + $0xc] sm:$0xe]
      %v1275 = vld [vmem:[%s840 + $0x18] sm:$0xe]
      %v1276 = vld [vmem:[%s840 + $0x24] sm:$0xe]
      %v1277 = vld [vmem:[%s840 + $0x30] sm:$0xe]
      %v1278 = vld [vmem:[%s840 + $0x3c] sm:$0xe]
      %v1279 = vld [vmem:[%s840 + $0x48] sm:$0xe]
      %v1280 = vld [vmem:[%s840 + $0x54] sm:$0xe]
      %v1281 = vld [vmem:[%s840 + $0x60] sm:$0xe]
      %v1282 = vld [vmem:[%s840 + $0x6c] sm:$0xe]
      %v1283 = vld [vmem:[%s840 + $0x78] sm:$0xe]
      %v1284 = vld [vmem:[%s840 + $0x84] sm:$0xe]
      %v1285 = vld [vmem:[%s840 + $0x90] sm:$0xe]
      %v1286 = vld [vmem:[%s840 + $0x9c] sm:$0xe]
      %v1287 = vld [vmem:[%s840 + $0xa8] sm:$0xe]
      %v1288 = vld [vmem:[%s840 + $0xb4] sm:$0xe]
      %v1337 = vrot.slane %v1273, 5
      %v1338 = vrot.slane %v1337, 4
      %v1339 = vrot.slane %v842, 5
      %v1340 = vsel %vm727, %v1338, %v1339
      %v1341 = vrot.slane %v1339, 4
      %v1342 = vrot.slane %v873, 5
      %v1343 = vsel %vm727, %v1341, %v1342
      %v1344 = vrot.slane %v1274, 5
      %v1345 = vrot.slane %v1344, 4
      %v1346 = vrot.slane %v844, 5
      %v1347 = vsel %vm727, %v1345, %v1346
      %v1348 = vrot.slane %v1346, 4
      %v1349 = vrot.slane %v874, 5
      %v1350 = vsel %vm727, %v1348, %v1349
      %v1351 = vrot.slane %v1275, 5
      %v1352 = vrot.slane %v1351, 4
      %v1353 = vrot.slane %v846, 5
      %v1354 = vsel %vm727, %v1352, %v1353
      %v1355 = vrot.slane %v1353, 4
      %v1356 = vrot.slane %v875, 5
      %v1357 = vsel %vm727, %v1355, %v1356
      %v1358 = vrot.slane %v1276, 5
      %v1359 = vrot.slane %v1358, 4
      %v1360 = vrot.slane %v848, 5
      %v1361 = vsel %vm727, %v1359, %v1360
      %v1362 = vrot.slane %v1360, 4
      %v1363 = vrot.slane %v876, 5
      %v1364 = vsel %vm727, %v1362, %v1363
      %v1365 = vrot.slane %v1277, 5
      %v1366 = vrot.slane %v1365, 4
      %v1367 = vrot.slane %v850, 5
      %v1368 = vsel %vm727, %v1366, %v1367
      %v1369 = vrot.slane %v1367, 4
      %v1370 = vrot.slane %v877, 5
      %v1371 = vsel %vm727, %v1369, %v1370
      %v1372 = vrot.slane %v1278, 5
      %v1373 = vrot.slane %v1372, 4
      %v1374 = vrot.slane %v852, 5
      %v1375 = vsel %vm727, %v1373, %v1374
      %v1376 = vrot.slane %v1374, 4
      %v1377 = vrot.slane %v878, 5
      %v1378 = vsel %vm727, %v1376, %v1377
      %v1379 = vrot.slane %v1279, 5
      %v1380 = vrot.slane %v1379, 4
      %v1381 = vrot.slane %v854, 5
      %v1382 = vsel %vm727, %v1380, %v1381
      %v1383 = vrot.slane %v1381, 4
      %v1384 = vrot.slane %v879, 5
      %v1385 = vsel %vm727, %v1383, %v1384
      %v1386 = vrot.slane %v1280, 5
      %v1387 = vrot.slane %v1386, 4
      %v1388 = vrot.slane %v856, 5
      %v1389 = vsel %vm727, %v1387, %v1388
      %v1390 = vrot.slane %v1388, 4
      %v1391 = vrot.slane %v880, 5
      %v1392 = vsel %vm727, %v1390, %v1391
      %v1393 = vrot.slane %v1281, 5
      %v1394 = vrot.slane %v1393, 4
      %v1395 = vrot.slane %v858, 5
      %v1396 = vsel %vm727, %v1394, %v1395
      %v1397 = vrot.slane %v1395, 4
      %v1398 = vrot.slane %v881, 5
      %v1399 = vsel %vm727, %v1397, %v1398
      %v1400 = vrot.slane %v1282, 5
      %v1401 = vrot.slane %v1400, 4
      %v1402 = vrot.slane %v860, 5
      %v1403 = vsel %vm727, %v1401, %v1402
      %v1404 = vrot.slane %v1402, 4
      %v1405 = vrot.slane %v882, 5
      %v1406 = vsel %vm727, %v1404, %v1405
      %v1407 = vrot.slane %v1283, 5
      %v1408 = vrot.slane %v1407, 4
      %v1409 = vrot.slane %v862, 5
      %v1410 = vsel %vm727, %v1408, %v1409
      %v1411 = vrot.slane %v1409, 4
      %v1412 = vrot.slane %v883, 5
      %v1413 = vsel %vm727, %v1411, %v1412
      %v1414 = vrot.slane %v1284, 5
      %v1415 = vrot.slane %v1414, 4
      %v1416 = vrot.slane %v864, 5
      %v1417 = vsel %vm727, %v1415, %v1416
      %v1418 = vrot.slane %v1416, 4
      %v1419 = vrot.slane %v884, 5
      %v1420 = vsel %vm727, %v1418, %v1419
      %v1421 = vrot.slane %v1285, 5
      %v1422 = vrot.slane %v1421, 4
      %v1423 = vrot.slane %v866, 5
      %v1424 = vsel %vm727, %v1422, %v1423
      %v1425 = vrot.slane %v1423, 4
      %v1426 = vrot.slane %v885, 5
      %v1427 = vsel %vm727, %v1425, %v1426
      %v1428 = vrot.slane %v1286, 5
      %v1429 = vrot.slane %v1428, 4
      %v1430 = vrot.slane %v868, 5
      %v1431 = vsel %vm727, %v1429, %v1430
      %v1432 = vrot.slane %v1430, 4
      %v1433 = vrot.slane %v886, 5
      %v1434 = vsel %vm727, %v1432, %v1433
      %v1435 = vrot.slane %v1287, 5
      %v1436 = vrot.slane %v1435, 4
      %v1437 = vrot.slane %v870, 5
      %v1438 = vsel %vm727, %v1436, %v1437
      %v1439 = vrot.slane %v1437, 4
      %v1440 = vrot.slane %v887, 5
      %v1441 = vsel %vm727, %v1439, %v1440
      %v1442 = vrot.slane %v1288, 5
      %v1443 = vrot.slane %v1442, 4
      %v1444 = vrot.slane %v872, 5
      %v1445 = vsel %vm727, %v1443, %v1444
      %v1446 = vrot.slane %v1444, 4
      %v1447 = vrot.slane %v888, 5
      %v1448 = vsel %vm727, %v1446, %v1447
      %s1449 = scalar_lea.vmem %s219, 24
      %v1450 = vld [vmem:[%s1449] sm:$0xf]
      %v1451 = vld [vmem:[%s1449 + $0x4] sm:$0xf]
      %v1452 = vld [vmem:[%s1449 + $0xc] sm:$0xf]
      %v1453 = vld [vmem:[%s1449 + $0x10] sm:$0xf]
      %v1454 = vld [vmem:[%s1449 + $0x18] sm:$0xf]
      %v1455 = vld [vmem:[%s1449 + $0x1c] sm:$0xf]
      %v1456 = vld [vmem:[%s1449 + $0x24] sm:$0xf]
      %v1457 = vld [vmem:[%s1449 + $0x28] sm:$0xf]
      %v1458 = vld [vmem:[%s1449 + $0x30] sm:$0xf]
      %v1459 = vld [vmem:[%s1449 + $0x34] sm:$0xf]
      %v1460 = vld [vmem:[%s1449 + $0x3c] sm:$0xf]
      %v1461 = vld [vmem:[%s1449 + $0x40] sm:$0xf]
      %v1462 = vld [vmem:[%s1449 + $0x48] sm:$0xf]
      %v1463 = vld [vmem:[%s1449 + $0x4c] sm:$0xf]
      %v1464 = vld [vmem:[%s1449 + $0x54] sm:$0xf]
      %v1465 = vld [vmem:[%s1449 + $0x58] sm:$0xf]
      %v1466 = vld [vmem:[%s1449 + $0x60] sm:$0xf]
      %v1467 = vld [vmem:[%s1449 + $0x64] sm:$0xf]
      %v1468 = vld [vmem:[%s1449 + $0x6c] sm:$0xf]
      %v1469 = vld [vmem:[%s1449 + $0x70] sm:$0xf]
      %v1470 = vld [vmem:[%s1449 + $0x78] sm:$0xf]
      %v1471 = vld [vmem:[%s1449 + $0x7c] sm:$0xf]
      %v1472 = vld [vmem:[%s1449 + $0x84] sm:$0xf]
      %v1473 = vld [vmem:[%s1449 + $0x88] sm:$0xf]
      %v1474 = vld [vmem:[%s1449 + $0x90] sm:$0xf]
      %v1475 = vld [vmem:[%s1449 + $0x94] sm:$0xf]
      %v1476 = vld [vmem:[%s1449 + $0x9c] sm:$0xf]
      %v1477 = vld [vmem:[%s1449 + $0xa0] sm:$0xf]
      %v1478 = vld [vmem:[%s1449 + $0xa8] sm:$0xf]
      %v1479 = vld [vmem:[%s1449 + $0xac] sm:$0xf]
      %v1480 = vld [vmem:[%s1449 + $0xb4] sm:$0xf]
      %v1481 = vld [vmem:[%s1449 + $0xb8] sm:$0xf]
      %v1482 = vld [vmem:[%s1449 + $0x8] sm:$0x1]
      %v1483 = vld [vmem:[%s1449 + $0x14] sm:$0x1]
      %v1484 = vld [vmem:[%s1449 + $0x20] sm:$0x1]
      %v1485 = vld [vmem:[%s1449 + $0x2c] sm:$0x1]
      %v1486 = vld [vmem:[%s1449 + $0x38] sm:$0x1]
      %v1487 = vld [vmem:[%s1449 + $0x44] sm:$0x1]
      %v1488 = vld [vmem:[%s1449 + $0x50] sm:$0x1]
      %v1489 = vld [vmem:[%s1449 + $0x5c] sm:$0x1]
      %v1490 = vld [vmem:[%s1449 + $0x68] sm:$0x1]
      %v1491 = vld [vmem:[%s1449 + $0x74] sm:$0x1]
      %v1492 = vld [vmem:[%s1449 + $0x80] sm:$0x1]
      %v1493 = vld [vmem:[%s1449 + $0x8c] sm:$0x1]
      %v1494 = vld [vmem:[%s1449 + $0x98] sm:$0x1]
      %v1495 = vld [vmem:[%s1449 + $0xa4] sm:$0x1]
      %v1496 = vld [vmem:[%s1449 + $0xb0] sm:$0x1]
      %v1497 = vld [vmem:[%s1449 + $0xbc] sm:$0x1]
      %v1499 = vshrl.u32 %v1450, 16
      %v1501 = vrot.slane %v1499, 4
      %v1502 = vshll.u32 %v1450, 16
      %v1504 = vrot.slane %v1502, 5
      %v1505 = vor.u32 %v1501, %v1504
      %v1506 = vrot.slane %v1505, 4
      %v1508 = vshll.u32 %v1451, 16
      %v1510 = vrot.slane %v1508, 5
      %v1511 = vsel %vm276, %v1506, %v1510
      %v1512 = vshrl.u32 %v1451, 16
      %v1514 = vrot.slane %v1512, 4
      %v1515 = vor.u32 %v1514, %v1510
      %v1516 = vrot.slane %v1515, 4
      %v1518 = vshll.u32 %v1482, 16
      %v1520 = vrot.slane %v1518, 5
      %v1521 = vsel %vm276, %v1516, %v1520
      %v1523 = vshrl.u32 %v1452, 16
      %v1525 = vrot.slane %v1523, 4
      %v1526 = vshll.u32 %v1452, 16
      %v1528 = vrot.slane %v1526, 5
      %v1529 = vor.u32 %v1525, %v1528
      %v1530 = vrot.slane %v1529, 4
      %v1532 = vshll.u32 %v1453, 16
      %v1534 = vrot.slane %v1532, 5
      %v1535 = vsel %vm276, %v1530, %v1534
      %v1536 = vshrl.u32 %v1453, 16
      %v1538 = vrot.slane %v1536, 4
      %v1539 = vor.u32 %v1538, %v1534
      %v1540 = vrot.slane %v1539, 4
      %v1542 = vshll.u32 %v1483, 16
      %v1544 = vrot.slane %v1542, 5
      %v1545 = vsel %vm276, %v1540, %v1544
      %v1547 = vshrl.u32 %v1454, 16
      %v1549 = vrot.slane %v1547, 4
      %v1550 = vshll.u32 %v1454, 16
      %v1552 = vrot.slane %v1550, 5
      %v1553 = vor.u32 %v1549, %v1552
      %v1554 = vrot.slane %v1553, 4
      %v1556 = vshll.u32 %v1455, 16
      %v1558 = vrot.slane %v1556, 5
      %v1559 = vsel %vm276, %v1554, %v1558
      %v1560 = vshrl.u32 %v1455, 16
      %v1562 = vrot.slane %v1560, 4
      %v1563 = vor.u32 %v1562, %v1558
      %v1564 = vrot.slane %v1563, 4
      %v1566 = vshll.u32 %v1484, 16
      %v1568 = vrot.slane %v1566, 5
      %v1569 = vsel %vm276, %v1564, %v1568
      %v1571 = vshrl.u32 %v1456, 16
      %v1573 = vrot.slane %v1571, 4
      %v1574 = vshll.u32 %v1456, 16
      %v1576 = vrot.slane %v1574, 5
      %v1577 = vor.u32 %v1573, %v1576
      %v1578 = vrot.slane %v1577, 4
      %v1580 = vshll.u32 %v1457, 16
      %v1582 = vrot.slane %v1580, 5
      %v1583 = vsel %vm276, %v1578, %v1582
      %v1584 = vshrl.u32 %v1457, 16
      %v1586 = vrot.slane %v1584, 4
      %v1587 = vor.u32 %v1586, %v1582
      %v1588 = vrot.slane %v1587, 4
      %v1590 = vshll.u32 %v1485, 16
      %v1592 = vrot.slane %v1590, 5
      %v1593 = vsel %vm276, %v1588, %v1592
      %v1595 = vshrl.u32 %v1458, 16
      %v1597 = vrot.slane %v1595, 4
      %v1598 = vshll.u32 %v1458, 16
      %v1600 = vrot.slane %v1598, 5
      %v1601 = vor.u32 %v1597, %v1600
      %v1602 = vrot.slane %v1601, 4
      %v1604 = vshll.u32 %v1459, 16
      %v1606 = vrot.slane %v1604, 5
      %v1607 = vsel %vm276, %v1602, %v1606
      %v1608 = vshrl.u32 %v1459, 16
      %v1610 = vrot.slane %v1608, 4
      %v1611 = vor.u32 %v1610, %v1606
      %v1612 = vrot.slane %v1611, 4
      %v1614 = vshll.u32 %v1486, 16
      %v1616 = vrot.slane %v1614, 5
      %v1617 = vsel %vm276, %v1612, %v1616
      %v1619 = vshrl.u32 %v1460, 16
      %v1621 = vrot.slane %v1619, 4
      %v1622 = vshll.u32 %v1460, 16
      %v1624 = vrot.slane %v1622, 5
      %v1625 = vor.u32 %v1621, %v1624
      %v1626 = vrot.slane %v1625, 4
      %v1628 = vshll.u32 %v1461, 16
      %v1630 = vrot.slane %v1628, 5
      %v1631 = vsel %vm276, %v1626, %v1630
      %v1632 = vshrl.u32 %v1461, 16
      %v1634 = vrot.slane %v1632, 4
      %v1635 = vor.u32 %v1634, %v1630
      %v1636 = vrot.slane %v1635, 4
      %v1638 = vshll.u32 %v1487, 16
      %v1640 = vrot.slane %v1638, 5
      %v1641 = vsel %vm276, %v1636, %v1640
      %v1643 = vshrl.u32 %v1462, 16
      %v1645 = vrot.slane %v1643, 4
      %v1646 = vshll.u32 %v1462, 16
      %v1648 = vrot.slane %v1646, 5
      %v1649 = vor.u32 %v1645, %v1648
      %v1650 = vrot.slane %v1649, 4
      %v1652 = vshll.u32 %v1463, 16
      %v1654 = vrot.slane %v1652, 5
      %v1655 = vsel %vm276, %v1650, %v1654
      %v1656 = vshrl.u32 %v1463, 16
      %v1658 = vrot.slane %v1656, 4
      %v1659 = vor.u32 %v1658, %v1654
      %v1660 = vrot.slane %v1659, 4
      %v1662 = vshll.u32 %v1488, 16
      %v1664 = vrot.slane %v1662, 5
      %v1665 = vsel %vm276, %v1660, %v1664
      %v1667 = vshrl.u32 %v1464, 16
      %v1669 = vrot.slane %v1667, 4
      %v1670 = vshll.u32 %v1464, 16
      %v1672 = vrot.slane %v1670, 5
      %v1673 = vor.u32 %v1669, %v1672
      %v1674 = vrot.slane %v1673, 4
      %v1676 = vshll.u32 %v1465, 16
      %v1678 = vrot.slane %v1676, 5
      %v1679 = vsel %vm276, %v1674, %v1678
      %v1680 = vshrl.u32 %v1465, 16
      %v1682 = vrot.slane %v1680, 4
      %v1683 = vor.u32 %v1682, %v1678
      %v1684 = vrot.slane %v1683, 4
      %v1686 = vshll.u32 %v1489, 16
      %v1688 = vrot.slane %v1686, 5
      %v1689 = vsel %vm276, %v1684, %v1688
      %v1691 = vshrl.u32 %v1466, 16
      %v1693 = vrot.slane %v1691, 4
      %v1694 = vshll.u32 %v1466, 16
      %v1696 = vrot.slane %v1694, 5
      %v1697 = vor.u32 %v1693, %v1696
      %v1698 = vrot.slane %v1697, 4
      %v1700 = vshll.u32 %v1467, 16
      %v1702 = vrot.slane %v1700, 5
      %v1703 = vsel %vm276, %v1698, %v1702
      %v1704 = vshrl.u32 %v1467, 16
      %v1706 = vrot.slane %v1704, 4
      %v1707 = vor.u32 %v1706, %v1702
      %v1708 = vrot.slane %v1707, 4
      %v1710 = vshll.u32 %v1490, 16
      %v1712 = vrot.slane %v1710, 5
      %v1713 = vsel %vm276, %v1708, %v1712
      %v1715 = vshrl.u32 %v1468, 16
      %v1717 = vrot.slane %v1715, 4
      %v1718 = vshll.u32 %v1468, 16
      %v1720 = vrot.slane %v1718, 5
      %v1721 = vor.u32 %v1717, %v1720
      %v1722 = vrot.slane %v1721, 4
      %v1724 = vshll.u32 %v1469, 16
      %v1726 = vrot.slane %v1724, 5
      %v1727 = vsel %vm276, %v1722, %v1726
      %v1728 = vshrl.u32 %v1469, 16
      %v1730 = vrot.slane %v1728, 4
      %v1731 = vor.u32 %v1730, %v1726
      %v1732 = vrot.slane %v1731, 4
      %v1734 = vshll.u32 %v1491, 16
      %v1736 = vrot.slane %v1734, 5
      %v1737 = vsel %vm276, %v1732, %v1736
      %v1739 = vshrl.u32 %v1470, 16
      %v1741 = vrot.slane %v1739, 4
      %v1742 = vshll.u32 %v1470, 16
      %v1744 = vrot.slane %v1742, 5
      %v1745 = vor.u32 %v1741, %v1744
      %v1746 = vrot.slane %v1745, 4
      %v1748 = vshll.u32 %v1471, 16
      %v1750 = vrot.slane %v1748, 5
      %v1751 = vsel %vm276, %v1746, %v1750
      %v1752 = vshrl.u32 %v1471, 16
      %v1754 = vrot.slane %v1752, 4
      %v1755 = vor.u32 %v1754, %v1750
      %v1756 = vrot.slane %v1755, 4
      %v1758 = vshll.u32 %v1492, 16
      %v1760 = vrot.slane %v1758, 5
      %v1761 = vsel %vm276, %v1756, %v1760
      %v1763 = vshrl.u32 %v1472, 16
      %v1765 = vrot.slane %v1763, 4
      %v1766 = vshll.u32 %v1472, 16
      %v1768 = vrot.slane %v1766, 5
      %v1769 = vor.u32 %v1765, %v1768
      %v1770 = vrot.slane %v1769, 4
      %v1772 = vshll.u32 %v1473, 16
      %v1774 = vrot.slane %v1772, 5
      %v1775 = vsel %vm276, %v1770, %v1774
      %v1776 = vshrl.u32 %v1473, 16
      %v1778 = vrot.slane %v1776, 4
      %v1779 = vor.u32 %v1778, %v1774
      %v1780 = vrot.slane %v1779, 4
      %v1782 = vshll.u32 %v1493, 16
      %v1784 = vrot.slane %v1782, 5
      %v1785 = vsel %vm276, %v1780, %v1784
      %v1787 = vshrl.u32 %v1474, 16
      %v1789 = vrot.slane %v1787, 4
      %v1790 = vshll.u32 %v1474, 16
      %v1792 = vrot.slane %v1790, 5
      %v1793 = vor.u32 %v1789, %v1792
      %v1794 = vrot.slane %v1793, 4
      %v1796 = vshll.u32 %v1475, 16
      %v1798 = vrot.slane %v1796, 5
      %v1799 = vsel %vm276, %v1794, %v1798
      %v1800 = vshrl.u32 %v1475, 16
      %v1802 = vrot.slane %v1800, 4
      %v1803 = vor.u32 %v1802, %v1798
      %v1804 = vrot.slane %v1803, 4
      %v1806 = vshll.u32 %v1494, 16
      %v1808 = vrot.slane %v1806, 5
      %v1809 = vsel %vm276, %v1804, %v1808
      %v1811 = vshrl.u32 %v1476, 16
      %v1813 = vrot.slane %v1811, 4
      %v1814 = vshll.u32 %v1476, 16
      %v1816 = vrot.slane %v1814, 5
      %v1817 = vor.u32 %v1813, %v1816
      %v1818 = vrot.slane %v1817, 4
      %v1820 = vshll.u32 %v1477, 16
      %v1822 = vrot.slane %v1820, 5
      %v1823 = vsel %vm276, %v1818, %v1822
      %v1824 = vshrl.u32 %v1477, 16
      %v1826 = vrot.slane %v1824, 4
      %v1827 = vor.u32 %v1826, %v1822
      %v1828 = vrot.slane %v1827, 4
      %v1830 = vshll.u32 %v1495, 16
      %v1832 = vrot.slane %v1830, 5
      %v1833 = vsel %vm276, %v1828, %v1832
      %v1835 = vshrl.u32 %v1478, 16
      %v1837 = vrot.slane %v1835, 4
      %v1838 = vshll.u32 %v1478, 16
      %v1840 = vrot.slane %v1838, 5
      %v1841 = vor.u32 %v1837, %v1840
      %v1842 = vrot.slane %v1841, 4
      %v1844 = vshll.u32 %v1479, 16
      %v1846 = vrot.slane %v1844, 5
      %v1847 = vsel %vm276, %v1842, %v1846
      %v1848 = vshrl.u32 %v1479, 16
      %v1850 = vrot.slane %v1848, 4
      %v1851 = vor.u32 %v1850, %v1846
      %v1852 = vrot.slane %v1851, 4
      %v1854 = vshll.u32 %v1496, 16
      %v1856 = vrot.slane %v1854, 5
      %v1857 = vsel %vm276, %v1852, %v1856
      %v1859 = vshrl.u32 %v1480, 16
      %v1861 = vrot.slane %v1859, 4
      %v1862 = vshll.u32 %v1480, 16
      %v1864 = vrot.slane %v1862, 5
      %v1865 = vor.u32 %v1861, %v1864
      %v1866 = vrot.slane %v1865, 4
      %v1868 = vshll.u32 %v1481, 16
      %v1870 = vrot.slane %v1868, 5
      %v1871 = vsel %vm276, %v1866, %v1870
      %v1872 = vshrl.u32 %v1481, 16
      %v1874 = vrot.slane %v1872, 4
      %v1875 = vor.u32 %v1874, %v1870
      %v1876 = vrot.slane %v1875, 4
      %v1878 = vshll.u32 %v1497, 16
      %v1880 = vrot.slane %v1878, 5
      %v1881 = vsel %vm276, %v1876, %v1880
      %v1882 = vld [vmem:[%s1449] sm:$0xe]
      %v1883 = vld [vmem:[%s1449 + $0xc] sm:$0xe]
      %v1884 = vld [vmem:[%s1449 + $0x18] sm:$0xe]
      %v1885 = vld [vmem:[%s1449 + $0x24] sm:$0xe]
      %v1886 = vld [vmem:[%s1449 + $0x30] sm:$0xe]
      %v1887 = vld [vmem:[%s1449 + $0x3c] sm:$0xe]
      %v1888 = vld [vmem:[%s1449 + $0x48] sm:$0xe]
      %v1889 = vld [vmem:[%s1449 + $0x54] sm:$0xe]
      %v1890 = vld [vmem:[%s1449 + $0x60] sm:$0xe]
      %v1891 = vld [vmem:[%s1449 + $0x6c] sm:$0xe]
      %v1892 = vld [vmem:[%s1449 + $0x78] sm:$0xe]
      %v1893 = vld [vmem:[%s1449 + $0x84] sm:$0xe]
      %v1894 = vld [vmem:[%s1449 + $0x90] sm:$0xe]
      %v1895 = vld [vmem:[%s1449 + $0x9c] sm:$0xe]
      %v1896 = vld [vmem:[%s1449 + $0xa8] sm:$0xe]
      %v1897 = vld [vmem:[%s1449 + $0xb4] sm:$0xe]
      %v1946 = vrot.slane %v1882, 5
      %v1947 = vrot.slane %v1946, 4
      %v1948 = vrot.slane %v1451, 5
      %v1949 = vsel %vm727, %v1947, %v1948
      %v1950 = vrot.slane %v1948, 4
      %v1951 = vrot.slane %v1482, 5
      %v1952 = vsel %vm727, %v1950, %v1951
      %v1953 = vrot.slane %v1883, 5
      %v1954 = vrot.slane %v1953, 4
      %v1955 = vrot.slane %v1453, 5
      %v1956 = vsel %vm727, %v1954, %v1955
      %v1957 = vrot.slane %v1955, 4
      %v1958 = vrot.slane %v1483, 5
      %v1959 = vsel %vm727, %v1957, %v1958
      %v1960 = vrot.slane %v1884, 5
      %v1961 = vrot.slane %v1960, 4
      %v1962 = vrot.slane %v1455, 5
      %v1963 = vsel %vm727, %v1961, %v1962
      %v1964 = vrot.slane %v1962, 4
      %v1965 = vrot.slane %v1484, 5
      %v1966 = vsel %vm727, %v1964, %v1965
      %v1967 = vrot.slane %v1885, 5
      %v1968 = vrot.slane %v1967, 4
      %v1969 = vrot.slane %v1457, 5
      %v1970 = vsel %vm727, %v1968, %v1969
      %v1971 = vrot.slane %v1969, 4
      %v1972 = vrot.slane %v1485, 5
      %v1973 = vsel %vm727, %v1971, %v1972
      %v1974 = vrot.slane %v1886, 5
      %v1975 = vrot.slane %v1974, 4
      %v1976 = vrot.slane %v1459, 5
      %v1977 = vsel %vm727, %v1975, %v1976
      %v1978 = vrot.slane %v1976, 4
      %v1979 = vrot.slane %v1486, 5
      %v1980 = vsel %vm727, %v1978, %v1979
      %v1981 = vrot.slane %v1887, 5
      %v1982 = vrot.slane %v1981, 4
      %v1983 = vrot.slane %v1461, 5
      %v1984 = vsel %vm727, %v1982, %v1983
      %v1985 = vrot.slane %v1983, 4
      %v1986 = vrot.slane %v1487, 5
      %v1987 = vsel %vm727, %v1985, %v1986
      %v1988 = vrot.slane %v1888, 5
      %v1989 = vrot.slane %v1988, 4
      %v1990 = vrot.slane %v1463, 5
      %v1991 = vsel %vm727, %v1989, %v1990
      %v1992 = vrot.slane %v1990, 4
      %v1993 = vrot.slane %v1488, 5
      %v1994 = vsel %vm727, %v1992, %v1993
      %v1995 = vrot.slane %v1889, 5
      %v1996 = vrot.slane %v1995, 4
      %v1997 = vrot.slane %v1465, 5
      %v1998 = vsel %vm727, %v1996, %v1997
      %v1999 = vrot.slane %v1997, 4
      %v2000 = vrot.slane %v1489, 5
      %v2001 = vsel %vm727, %v1999, %v2000
      %v2002 = vrot.slane %v1890, 5
      %v2003 = vrot.slane %v2002, 4
      %v2004 = vrot.slane %v1467, 5
      %v2005 = vsel %vm727, %v2003, %v2004
      %v2006 = vrot.slane %v2004, 4
      %v2007 = vrot.slane %v1490, 5
      %v2008 = vsel %vm727, %v2006, %v2007
      %v2009 = vrot.slane %v1891, 5
      %v2010 = vrot.slane %v2009, 4
      %v2011 = vrot.slane %v1469, 5
      %v2012 = vsel %vm727, %v2010, %v2011
      %v2013 = vrot.slane %v2011, 4
      %v2014 = vrot.slane %v1491, 5
      %v2015 = vsel %vm727, %v2013, %v2014
      %v2016 = vrot.slane %v1892, 5
      %v2017 = vrot.slane %v2016, 4
      %v2018 = vrot.slane %v1471, 5
      %v2019 = vsel %vm727, %v2017, %v2018
      %v2020 = vrot.slane %v2018, 4
      %v2021 = vrot.slane %v1492, 5
      %v2022 = vsel %vm727, %v2020, %v2021
      %v2023 = vrot.slane %v1893, 5
      %v2024 = vrot.slane %v2023, 4
      %v2025 = vrot.slane %v1473, 5
      %v2026 = vsel %vm727, %v2024, %v2025
      %v2027 = vrot.slane %v2025, 4
      %v2028 = vrot.slane %v1493, 5
      %v2029 = vsel %vm727, %v2027, %v2028
      %v2030 = vrot.slane %v1894, 5
      %v2031 = vrot.slane %v2030, 4
      %v2032 = vrot.slane %v1475, 5
      %v2033 = vsel %vm727, %v2031, %v2032
      %v2034 = vrot.slane %v2032, 4
      %v2035 = vrot.slane %v1494, 5
      %v2036 = vsel %vm727, %v2034, %v2035
      %v2037 = vrot.slane %v1895, 5
      %v2038 = vrot.slane %v2037, 4
      %v2039 = vrot.slane %v1477, 5
      %v2040 = vsel %vm727, %v2038, %v2039
      %v2041 = vrot.slane %v2039, 4
      %v2042 = vrot.slane %v1495, 5
      %v2043 = vsel %vm727, %v2041, %v2042
      %v2044 = vrot.slane %v1896, 5
      %v2045 = vrot.slane %v2044, 4
      %v2046 = vrot.slane %v1479, 5
      %v2047 = vsel %vm727, %v2045, %v2046
      %v2048 = vrot.slane %v2046, 4
      %v2049 = vrot.slane %v1496, 5
      %v2050 = vsel %vm727, %v2048, %v2049
      %v2051 = vrot.slane %v1897, 5
      %v2052 = vrot.slane %v2051, 4
      %v2053 = vrot.slane %v1481, 5
      %v2054 = vsel %vm727, %v2052, %v2053
      %v2055 = vrot.slane %v2053, 4
      %v2056 = vrot.slane %v1497, 5
      %v2057 = vsel %vm727, %v2055, %v2056
      %v2074 = vunpack.c.l.b16 %v226
      %v2075 = vunpack.c.l.b16 %v227
      %v2076 = vunpack.c.l.b16 %v228
      %v2077 = vunpack.c.l.b16 %v229
      %v2078 = vunpack.c.l.b16 %v230
      %v2079 = vunpack.c.l.b16 %v231
      %v2080 = vunpack.c.l.b16 %v232
      %v2081 = vunpack.c.l.b16 %v233
      %v2082 = vunpack.c.l.b16 %v234
      %v2083 = vunpack.c.l.b16 %v235
      %v2084 = vunpack.c.l.b16 %v236
      %v2085 = vunpack.c.l.b16 %v237
      %v2086 = vunpack.c.l.b16 %v238
      %v2087 = vunpack.c.l.b16 %v239
      %v2088 = vunpack.c.l.b16 %v240
      %v2089 = vunpack.c.l.b16 %v241
      %v2090 = vunpack.c.l.b16 %v242
      %v2091 = vunpack.c.l.b16 %v243
      %v2092 = vunpack.c.l.b16 %v244
      %v2093 = vunpack.c.l.b16 %v245
      %v2094 = vunpack.c.l.b16 %v246
      %v2095 = vunpack.c.l.b16 %v247
      %v2096 = vunpack.c.l.b16 %v248
      %v2097 = vunpack.c.l.b16 %v249
      %v2098 = vunpack.c.l.b16 %v250
      %v2099 = vunpack.c.l.b16 %v251
      %v2100 = vunpack.c.l.b16 %v252
      %v2101 = vunpack.c.l.b16 %v253
      %v2102 = vunpack.c.l.b16 %v254
      %v2103 = vunpack.c.l.b16 %v255
      %v2104 = vunpack.c.l.b16 %v256
      %v2105 = vunpack.c.l.b16 %v257
      %v2106 = vpack.c.b16 %v2075, %v2074
      %v2107 = vpack.c.b16 %v2077, %v2076
      %v2108 = vpack.c.b16 %v2079, %v2078
      %v2109 = vpack.c.b16 %v2081, %v2080
      %v2110 = vpack.c.b16 %v2083, %v2082
      %v2111 = vpack.c.b16 %v2085, %v2084
      %v2112 = vpack.c.b16 %v2087, %v2086
      %v2113 = vpack.c.b16 %v2089, %v2088
      %v2114 = vpack.c.b16 %v2091, %v2090
      %v2115 = vpack.c.b16 %v2093, %v2092
      %v2116 = vpack.c.b16 %v2095, %v2094
      %v2117 = vpack.c.b16 %v2097, %v2096
      %v2118 = vpack.c.b16 %v2099, %v2098
      %v2119 = vpack.c.b16 %v2101, %v2100
      %v2120 = vpack.c.b16 %v2103, %v2102
      %v2121 = vpack.c.b16 %v2105, %v2104
      %v2122 = vunpack.c.l.b16 %v290
      %v2123 = vunpack.c.l.b16 %v300
      %v2124 = vunpack.c.l.b16 %v314
      %v2125 = vunpack.c.l.b16 %v324
      %v2126 = vunpack.c.l.b16 %v338
      %v2127 = vunpack.c.l.b16 %v348
      %v2128 = vunpack.c.l.b16 %v362
      %v2129 = vunpack.c.l.b16 %v372
      %v2130 = vunpack.c.l.b16 %v386
      %v2131 = vunpack.c.l.b16 %v396
      %v2132 = vunpack.c.l.b16 %v410
      %v2133 = vunpack.c.l.b16 %v420
      %v2134 = vunpack.c.l.b16 %v434
      %v2135 = vunpack.c.l.b16 %v444
      %v2136 = vunpack.c.l.b16 %v458
      %v2137 = vunpack.c.l.b16 %v468
      %v2138 = vunpack.c.l.b16 %v482
      %v2139 = vunpack.c.l.b16 %v492
      %v2140 = vunpack.c.l.b16 %v506
      %v2141 = vunpack.c.l.b16 %v516
      %v2142 = vunpack.c.l.b16 %v530
      %v2143 = vunpack.c.l.b16 %v540
      %v2144 = vunpack.c.l.b16 %v554
      %v2145 = vunpack.c.l.b16 %v564
      %v2146 = vunpack.c.l.b16 %v578
      %v2147 = vunpack.c.l.b16 %v588
      %v2148 = vunpack.c.l.b16 %v602
      %v2149 = vunpack.c.l.b16 %v612
      %v2150 = vunpack.c.l.b16 %v626
      %v2151 = vunpack.c.l.b16 %v636
      %v2152 = vunpack.c.l.b16 %v650
      %v2153 = vunpack.c.l.b16 %v660
      %v2154 = vpack.c.b16 %v2123, %v2122
      %v2155 = vpack.c.b16 %v2125, %v2124
      %v2156 = vpack.c.b16 %v2127, %v2126
      %v2157 = vpack.c.b16 %v2129, %v2128
      %v2158 = vpack.c.b16 %v2131, %v2130
      %v2159 = vpack.c.b16 %v2133, %v2132
      %v2160 = vpack.c.b16 %v2135, %v2134
      %v2161 = vpack.c.b16 %v2137, %v2136
      %v2162 = vpack.c.b16 %v2139, %v2138
      %v2163 = vpack.c.b16 %v2141, %v2140
      %v2164 = vpack.c.b16 %v2143, %v2142
      %v2165 = vpack.c.b16 %v2145, %v2144
      %v2166 = vpack.c.b16 %v2147, %v2146
      %v2167 = vpack.c.b16 %v2149, %v2148
      %v2168 = vpack.c.b16 %v2151, %v2150
      %v2169 = vpack.c.b16 %v2153, %v2152
      %2170 = vrot.lane.b32.xlu0 %v2154, 16
      %v2171 = vpop.permute.xlu0 %2170
      %2172 = vrot.lane.b32.xlu0 %v2155, 16
      %v2173 = vpop.permute.xlu0 %2172
      %2174 = vrot.lane.b32.xlu0 %v2156, 16
      %v2175 = vpop.permute.xlu0 %2174
      %2176 = vrot.lane.b32.xlu0 %v2157, 16
      %v2177 = vpop.permute.xlu0 %2176
      %2178 = vrot.lane.b32.xlu0 %v2158, 16
      %v2179 = vpop.permute.xlu0 %2178
      %2180 = vrot.lane.b32.xlu0 %v2159, 16
      %v2181 = vpop.permute.xlu0 %2180
      %2182 = vrot.lane.b32.xlu0 %v2160, 16
      %v2183 = vpop.permute.xlu0 %2182
      %2184 = vrot.lane.b32.xlu0 %v2161, 16
      %v2185 = vpop.permute.xlu0 %2184
      %2186 = vrot.lane.b32.xlu0 %v2162, 16
      %v2187 = vpop.permute.xlu0 %2186
      %2188 = vrot.lane.b32.xlu0 %v2163, 16
      %v2189 = vpop.permute.xlu0 %2188
      %2190 = vrot.lane.b32.xlu0 %v2164, 16
      %v2191 = vpop.permute.xlu0 %2190
      %2192 = vrot.lane.b32.xlu0 %v2165, 16
      %v2193 = vpop.permute.xlu0 %2192
      %2194 = vrot.lane.b32.xlu0 %v2166, 16
      %v2195 = vpop.permute.xlu0 %2194
      %2196 = vrot.lane.b32.xlu0 %v2167, 16
      %v2197 = vpop.permute.xlu0 %2196
      %2198 = vrot.lane.b32.xlu0 %v2168, 16
      %v2199 = vpop.permute.xlu0 %2198
      %2200 = vrot.lane.b32.xlu0 %v2169, 16
      %v2201 = vpop.permute.xlu0 %2200
      %v2202 = vunpack.c.l.b16 %v731
      %v2203 = vunpack.c.l.b16 %v734
      %v2204 = vunpack.c.l.b16 %v738
      %v2205 = vunpack.c.l.b16 %v741
      %v2206 = vunpack.c.l.b16 %v745
      %v2207 = vunpack.c.l.b16 %v748
      %v2208 = vunpack.c.l.b16 %v752
      %v2209 = vunpack.c.l.b16 %v755
      %v2210 = vunpack.c.l.b16 %v759
      %v2211 = vunpack.c.l.b16 %v762
      %v2212 = vunpack.c.l.b16 %v766
      %v2213 = vunpack.c.l.b16 %v769
      %v2214 = vunpack.c.l.b16 %v773
      %v2215 = vunpack.c.l.b16 %v776
      %v2216 = vunpack.c.l.b16 %v780
      %v2217 = vunpack.c.l.b16 %v783
      %v2218 = vunpack.c.l.b16 %v787
      %v2219 = vunpack.c.l.b16 %v790
      %v2220 = vunpack.c.l.b16 %v794
      %v2221 = vunpack.c.l.b16 %v797
      %v2222 = vunpack.c.l.b16 %v801
      %v2223 = vunpack.c.l.b16 %v804
      %v2224 = vunpack.c.l.b16 %v808
      %v2225 = vunpack.c.l.b16 %v811
      %v2226 = vunpack.c.l.b16 %v815
      %v2227 = vunpack.c.l.b16 %v818
      %v2228 = vunpack.c.l.b16 %v822
      %v2229 = vunpack.c.l.b16 %v825
      %v2230 = vunpack.c.l.b16 %v829
      %v2231 = vunpack.c.l.b16 %v832
      %v2232 = vunpack.c.l.b16 %v836
      %v2233 = vunpack.c.l.b16 %v839
      %v2234 = vpack.c.b16 %v2203, %v2202
      %v2235 = vpack.c.b16 %v2205, %v2204
      %v2236 = vpack.c.b16 %v2207, %v2206
      %v2237 = vpack.c.b16 %v2209, %v2208
      %v2238 = vpack.c.b16 %v2211, %v2210
      %v2239 = vpack.c.b16 %v2213, %v2212
      %v2240 = vpack.c.b16 %v2215, %v2214
      %v2241 = vpack.c.b16 %v2217, %v2216
      %v2242 = vpack.c.b16 %v2219, %v2218
      %v2243 = vpack.c.b16 %v2221, %v2220
      %v2244 = vpack.c.b16 %v2223, %v2222
      %v2245 = vpack.c.b16 %v2225, %v2224
      %v2246 = vpack.c.b16 %v2227, %v2226
      %v2247 = vpack.c.b16 %v2229, %v2228
      %v2248 = vpack.c.b16 %v2231, %v2230
      %v2249 = vpack.c.b16 %v2233, %v2232
      %2250 = vrot.lane.b32.xlu0 %v2234, 32
      %v2251 = vpop.permute.xlu0 %2250
      %2252 = vrot.lane.b32.xlu0 %v2235, 32
      %v2253 = vpop.permute.xlu0 %2252
      %2254 = vrot.lane.b32.xlu0 %v2236, 32
      %v2255 = vpop.permute.xlu0 %2254
      %2256 = vrot.lane.b32.xlu0 %v2237, 32
      %v2257 = vpop.permute.xlu0 %2256
      %2258 = vrot.lane.b32.xlu0 %v2238, 32
      %v2259 = vpop.permute.xlu0 %2258
      %2260 = vrot.lane.b32.xlu0 %v2239, 32
      %v2261 = vpop.permute.xlu0 %2260
      %2262 = vrot.lane.b32.xlu0 %v2240, 32
      %v2263 = vpop.permute.xlu0 %2262
      %2264 = vrot.lane.b32.xlu0 %v2241, 32
      %v2265 = vpop.permute.xlu0 %2264
      %2266 = vrot.lane.b32.xlu0 %v2242, 32
      %v2267 = vpop.permute.xlu0 %2266
      %2268 = vrot.lane.b32.xlu0 %v2243, 32
      %v2269 = vpop.permute.xlu0 %2268
      %2270 = vrot.lane.b32.xlu0 %v2244, 32
      %v2271 = vpop.permute.xlu0 %2270
      %2272 = vrot.lane.b32.xlu0 %v2245, 32
      %v2273 = vpop.permute.xlu0 %2272
      %2274 = vrot.lane.b32.xlu0 %v2246, 32
      %v2275 = vpop.permute.xlu0 %2274
      %2276 = vrot.lane.b32.xlu0 %v2247, 32
      %v2277 = vpop.permute.xlu0 %2276
      %2278 = vrot.lane.b32.xlu0 %v2248, 32
      %v2279 = vpop.permute.xlu0 %2278
      %2280 = vrot.lane.b32.xlu0 %v2249, 32
      %v2281 = vpop.permute.xlu0 %2280
      %v2298 = vunpack.c.l.b16 %v841
      %v2299 = vunpack.c.l.b16 %v842
      %v2300 = vunpack.c.l.b16 %v843
      %v2301 = vunpack.c.l.b16 %v844
      %v2302 = vunpack.c.l.b16 %v845
      %v2303 = vunpack.c.l.b16 %v846
      %v2304 = vunpack.c.l.b16 %v847
      %v2305 = vunpack.c.l.b16 %v848
      %v2306 = vunpack.c.l.b16 %v849
      %v2307 = vunpack.c.l.b16 %v850
      %v2308 = vunpack.c.l.b16 %v851
      %v2309 = vunpack.c.l.b16 %v852
      %v2310 = vunpack.c.l.b16 %v853
      %v2311 = vunpack.c.l.b16 %v854
      %v2312 = vunpack.c.l.b16 %v855
      %v2313 = vunpack.c.l.b16 %v856
      %v2314 = vunpack.c.l.b16 %v857
      %v2315 = vunpack.c.l.b16 %v858
      %v2316 = vunpack.c.l.b16 %v859
      %v2317 = vunpack.c.l.b16 %v860
      %v2318 = vunpack.c.l.b16 %v861
      %v2319 = vunpack.c.l.b16 %v862
      %v2320 = vunpack.c.l.b16 %v863
      %v2321 = vunpack.c.l.b16 %v864
      %v2322 = vunpack.c.l.b16 %v865
      %v2323 = vunpack.c.l.b16 %v866
      %v2324 = vunpack.c.l.b16 %v867
      %v2325 = vunpack.c.l.b16 %v868
      %v2326 = vunpack.c.l.b16 %v869
      %v2327 = vunpack.c.l.b16 %v870
      %v2328 = vunpack.c.l.b16 %v871
      %v2329 = vunpack.c.l.b16 %v872
      %v2330 = vpack.c.b16 %v2299, %v2298
      %v2331 = vpack.c.b16 %v2301, %v2300
      %v2332 = vpack.c.b16 %v2303, %v2302
      %v2333 = vpack.c.b16 %v2305, %v2304
      %v2334 = vpack.c.b16 %v2307, %v2306
      %v2335 = vpack.c.b16 %v2309, %v2308
      %v2336 = vpack.c.b16 %v2311, %v2310
      %v2337 = vpack.c.b16 %v2313, %v2312
      %v2338 = vpack.c.b16 %v2315, %v2314
      %v2339 = vpack.c.b16 %v2317, %v2316
      %v2340 = vpack.c.b16 %v2319, %v2318
      %v2341 = vpack.c.b16 %v2321, %v2320
      %v2342 = vpack.c.b16 %v2323, %v2322
      %v2343 = vpack.c.b16 %v2325, %v2324
      %v2344 = vpack.c.b16 %v2327, %v2326
      %v2345 = vpack.c.b16 %v2329, %v2328
      %2346 = vrot.lane.b32.xlu0 %v2330, 48
      %v2347 = vpop.permute.xlu0 %2346
      %2348 = vrot.lane.b32.xlu0 %v2331, 48
      %v2349 = vpop.permute.xlu0 %2348
      %2350 = vrot.lane.b32.xlu0 %v2332, 48
      %v2351 = vpop.permute.xlu0 %2350
      %2352 = vrot.lane.b32.xlu0 %v2333, 48
      %v2353 = vpop.permute.xlu0 %2352
      %2354 = vrot.lane.b32.xlu0 %v2334, 48
      %v2355 = vpop.permute.xlu0 %2354
      %2356 = vrot.lane.b32.xlu0 %v2335, 48
      %v2357 = vpop.permute.xlu0 %2356
      %2358 = vrot.lane.b32.xlu0 %v2336, 48
      %v2359 = vpop.permute.xlu0 %2358
      %2360 = vrot.lane.b32.xlu0 %v2337, 48
      %v2361 = vpop.permute.xlu0 %2360
      %2362 = vrot.lane.b32.xlu0 %v2338, 48
      %v2363 = vpop.permute.xlu0 %2362
      %2364 = vrot.lane.b32.xlu0 %v2339, 48
      %v2365 = vpop.permute.xlu0 %2364
      %2366 = vrot.lane.b32.xlu0 %v2340, 48
      %v2367 = vpop.permute.xlu0 %2366
      %2368 = vrot.lane.b32.xlu0 %v2341, 48
      %v2369 = vpop.permute.xlu0 %2368
      %2370 = vrot.lane.b32.xlu0 %v2342, 48
      %v2371 = vpop.permute.xlu0 %2370
      %2372 = vrot.lane.b32.xlu0 %v2343, 48
      %v2373 = vpop.permute.xlu0 %2372
      %2374 = vrot.lane.b32.xlu0 %v2344, 48
      %v2375 = vpop.permute.xlu0 %2374
      %2376 = vrot.lane.b32.xlu0 %v2345, 48
      %v2377 = vpop.permute.xlu0 %2376
      %v2378 = vunpack.c.l.b16 %v902
      %v2379 = vunpack.c.l.b16 %v912
      %v2380 = vunpack.c.l.b16 %v926
      %v2381 = vunpack.c.l.b16 %v936
      %v2382 = vunpack.c.l.b16 %v950
      %v2383 = vunpack.c.l.b16 %v960
      %v2384 = vunpack.c.l.b16 %v974
      %v2385 = vunpack.c.l.b16 %v984
      %v2386 = vunpack.c.l.b16 %v998
      %v2387 = vunpack.c.l.b16 %v1008
      %v2388 = vunpack.c.l.b16 %v1022
      %v2389 = vunpack.c.l.b16 %v1032
      %v2390 = vunpack.c.l.b16 %v1046
      %v2391 = vunpack.c.l.b16 %v1056
      %v2392 = vunpack.c.l.b16 %v1070
      %v2393 = vunpack.c.l.b16 %v1080
      %v2394 = vunpack.c.l.b16 %v1094
      %v2395 = vunpack.c.l.b16 %v1104
      %v2396 = vunpack.c.l.b16 %v1118
      %v2397 = vunpack.c.l.b16 %v1128
      %v2398 = vunpack.c.l.b16 %v1142
      %v2399 = vunpack.c.l.b16 %v1152
      %v2400 = vunpack.c.l.b16 %v1166
      %v2401 = vunpack.c.l.b16 %v1176
      %v2402 = vunpack.c.l.b16 %v1190
      %v2403 = vunpack.c.l.b16 %v1200
      %v2404 = vunpack.c.l.b16 %v1214
      %v2405 = vunpack.c.l.b16 %v1224
      %v2406 = vunpack.c.l.b16 %v1238
      %v2407 = vunpack.c.l.b16 %v1248
      %v2408 = vunpack.c.l.b16 %v1262
      %v2409 = vunpack.c.l.b16 %v1272
      %v2410 = vpack.c.b16 %v2379, %v2378
      %v2411 = vpack.c.b16 %v2381, %v2380
      %v2412 = vpack.c.b16 %v2383, %v2382
      %v2413 = vpack.c.b16 %v2385, %v2384
      %v2414 = vpack.c.b16 %v2387, %v2386
      %v2415 = vpack.c.b16 %v2389, %v2388
      %v2416 = vpack.c.b16 %v2391, %v2390
      %v2417 = vpack.c.b16 %v2393, %v2392
      %v2418 = vpack.c.b16 %v2395, %v2394
      %v2419 = vpack.c.b16 %v2397, %v2396
      %v2420 = vpack.c.b16 %v2399, %v2398
      %v2421 = vpack.c.b16 %v2401, %v2400
      %v2422 = vpack.c.b16 %v2403, %v2402
      %v2423 = vpack.c.b16 %v2405, %v2404
      %v2424 = vpack.c.b16 %v2407, %v2406
      %v2425 = vpack.c.b16 %v2409, %v2408
      %2426 = vrot.lane.b32.xlu0 %v2410, 64
      %v2427 = vpop.permute.xlu0 %2426
      %2428 = vrot.lane.b32.xlu0 %v2411, 64
      %v2429 = vpop.permute.xlu0 %2428
      %2430 = vrot.lane.b32.xlu0 %v2412, 64
      %v2431 = vpop.permute.xlu0 %2430
      %2432 = vrot.lane.b32.xlu0 %v2413, 64
      %v2433 = vpop.permute.xlu0 %2432
      %2434 = vrot.lane.b32.xlu0 %v2414, 64
      %v2435 = vpop.permute.xlu0 %2434
      %2436 = vrot.lane.b32.xlu0 %v2415, 64
      %v2437 = vpop.permute.xlu0 %2436
      %2438 = vrot.lane.b32.xlu0 %v2416, 64
      %v2439 = vpop.permute.xlu0 %2438
      %2440 = vrot.lane.b32.xlu0 %v2417, 64
      %v2441 = vpop.permute.xlu0 %2440
      %2442 = vrot.lane.b32.xlu0 %v2418, 64
      %v2443 = vpop.permute.xlu0 %2442
      %2444 = vrot.lane.b32.xlu0 %v2419, 64
      %v2445 = vpop.permute.xlu0 %2444
      %2446 = vrot.lane.b32.xlu0 %v2420, 64
      %v2447 = vpop.permute.xlu0 %2446
      %2448 = vrot.lane.b32.xlu0 %v2421, 64
      %v2449 = vpop.permute.xlu0 %2448
      %2450 = vrot.lane.b32.xlu0 %v2422, 64
      %v2451 = vpop.permute.xlu0 %2450
      %2452 = vrot.lane.b32.xlu0 %v2423, 64
      %v2453 = vpop.permute.xlu0 %2452
      %2454 = vrot.lane.b32.xlu0 %v2424, 64
      %v2455 = vpop.permute.xlu0 %2454
      %2456 = vrot.lane.b32.xlu0 %v2425, 64
      %v2457 = vpop.permute.xlu0 %2456
      %v2458 = vunpack.c.l.b16 %v1340
      %v2459 = vunpack.c.l.b16 %v1343
      %v2460 = vunpack.c.l.b16 %v1347
      %v2461 = vunpack.c.l.b16 %v1350
      %v2462 = vunpack.c.l.b16 %v1354
      %v2463 = vunpack.c.l.b16 %v1357
      %v2464 = vunpack.c.l.b16 %v1361
      %v2465 = vunpack.c.l.b16 %v1364
      %v2466 = vunpack.c.l.b16 %v1368
      %v2467 = vunpack.c.l.b16 %v1371
      %v2468 = vunpack.c.l.b16 %v1375
      %v2469 = vunpack.c.l.b16 %v1378
      %v2470 = vunpack.c.l.b16 %v1382
      %v2471 = vunpack.c.l.b16 %v1385
      %v2472 = vunpack.c.l.b16 %v1389
      %v2473 = vunpack.c.l.b16 %v1392
      %v2474 = vunpack.c.l.b16 %v1396
      %v2475 = vunpack.c.l.b16 %v1399
      %v2476 = vunpack.c.l.b16 %v1403
      %v2477 = vunpack.c.l.b16 %v1406
      %v2478 = vunpack.c.l.b16 %v1410
      %v2479 = vunpack.c.l.b16 %v1413
      %v2480 = vunpack.c.l.b16 %v1417
      %v2481 = vunpack.c.l.b16 %v1420
      %v2482 = vunpack.c.l.b16 %v1424
      %v2483 = vunpack.c.l.b16 %v1427
      %v2484 = vunpack.c.l.b16 %v1431
      %v2485 = vunpack.c.l.b16 %v1434
      %v2486 = vunpack.c.l.b16 %v1438
      %v2487 = vunpack.c.l.b16 %v1441
      %v2488 = vunpack.c.l.b16 %v1445
      %v2489 = vunpack.c.l.b16 %v1448
      %v2490 = vpack.c.b16 %v2459, %v2458
      %v2491 = vpack.c.b16 %v2461, %v2460
      %v2492 = vpack.c.b16 %v2463, %v2462
      %v2493 = vpack.c.b16 %v2465, %v2464
      %v2494 = vpack.c.b16 %v2467, %v2466
      %v2495 = vpack.c.b16 %v2469, %v2468
      %v2496 = vpack.c.b16 %v2471, %v2470
      %v2497 = vpack.c.b16 %v2473, %v2472
      %v2498 = vpack.c.b16 %v2475, %v2474
      %v2499 = vpack.c.b16 %v2477, %v2476
      %v2500 = vpack.c.b16 %v2479, %v2478
      %v2501 = vpack.c.b16 %v2481, %v2480
      %v2502 = vpack.c.b16 %v2483, %v2482
      %v2503 = vpack.c.b16 %v2485, %v2484
      %v2504 = vpack.c.b16 %v2487, %v2486
      %v2505 = vpack.c.b16 %v2489, %v2488
      %2506 = vrot.lane.b32.xlu0 %v2490, 80
      %v2507 = vpop.permute.xlu0 %2506
      %2508 = vrot.lane.b32.xlu0 %v2491, 80
      %v2509 = vpop.permute.xlu0 %2508
      %2510 = vrot.lane.b32.xlu0 %v2492, 80
      %v2511 = vpop.permute.xlu0 %2510
      %2512 = vrot.lane.b32.xlu0 %v2493, 80
      %v2513 = vpop.permute.xlu0 %2512
      %2514 = vrot.lane.b32.xlu0 %v2494, 80
      %v2515 = vpop.permute.xlu0 %2514
      %2516 = vrot.lane.b32.xlu0 %v2495, 80
      %v2517 = vpop.permute.xlu0 %2516
      %2518 = vrot.lane.b32.xlu0 %v2496, 80
      %v2519 = vpop.permute.xlu0 %2518
      %2520 = vrot.lane.b32.xlu0 %v2497, 80
      %v2521 = vpop.permute.xlu0 %2520
      %2522 = vrot.lane.b32.xlu0 %v2498, 80
      %v2523 = vpop.permute.xlu0 %2522
      %2524 = vrot.lane.b32.xlu0 %v2499, 80
      %v2525 = vpop.permute.xlu0 %2524
      %2526 = vrot.lane.b32.xlu0 %v2500, 80
      %v2527 = vpop.permute.xlu0 %2526
      %2528 = vrot.lane.b32.xlu0 %v2501, 80
      %v2529 = vpop.permute.xlu0 %2528
      %2530 = vrot.lane.b32.xlu0 %v2502, 80
      %v2531 = vpop.permute.xlu0 %2530
      %2532 = vrot.lane.b32.xlu0 %v2503, 80
      %v2533 = vpop.permute.xlu0 %2532
      %2534 = vrot.lane.b32.xlu0 %v2504, 80
      %v2535 = vpop.permute.xlu0 %2534
      %2536 = vrot.lane.b32.xlu0 %v2505, 80
      %v2537 = vpop.permute.xlu0 %2536
      %v2554 = vunpack.c.l.b16 %v1450
      %v2555 = vunpack.c.l.b16 %v1451
      %v2556 = vunpack.c.l.b16 %v1452
      %v2557 = vunpack.c.l.b16 %v1453
      %v2558 = vunpack.c.l.b16 %v1454
      %v2559 = vunpack.c.l.b16 %v1455
      %v2560 = vunpack.c.l.b16 %v1456
      %v2561 = vunpack.c.l.b16 %v1457
      %v2562 = vunpack.c.l.b16 %v1458
      %v2563 = vunpack.c.l.b16 %v1459
      %v2564 = vunpack.c.l.b16 %v1460
      %v2565 = vunpack.c.l.b16 %v1461
      %v2566 = vunpack.c.l.b16 %v1462
      %v2567 = vunpack.c.l.b16 %v1463
      %v2568 = vunpack.c.l.b16 %v1464
      %v2569 = vunpack.c.l.b16 %v1465
      %v2570 = vunpack.c.l.b16 %v1466
      %v2571 = vunpack.c.l.b16 %v1467
      %v2572 = vunpack.c.l.b16 %v1468
      %v2573 = vunpack.c.l.b16 %v1469
      %v2574 = vunpack.c.l.b16 %v1470
      %v2575 = vunpack.c.l.b16 %v1471
      %v2576 = vunpack.c.l.b16 %v1472
      %v2577 = vunpack.c.l.b16 %v1473
      %v2578 = vunpack.c.l.b16 %v1474
      %v2579 = vunpack.c.l.b16 %v1475
      %v2580 = vunpack.c.l.b16 %v1476
      %v2581 = vunpack.c.l.b16 %v1477
      %v2582 = vunpack.c.l.b16 %v1478
      %v2583 = vunpack.c.l.b16 %v1479
      %v2584 = vunpack.c.l.b16 %v1480
      %v2585 = vunpack.c.l.b16 %v1481
      %v2586 = vpack.c.b16 %v2555, %v2554
      %v2587 = vpack.c.b16 %v2557, %v2556
      %v2588 = vpack.c.b16 %v2559, %v2558
      %v2589 = vpack.c.b16 %v2561, %v2560
      %v2590 = vpack.c.b16 %v2563, %v2562
      %v2591 = vpack.c.b16 %v2565, %v2564
      %v2592 = vpack.c.b16 %v2567, %v2566
      %v2593 = vpack.c.b16 %v2569, %v2568
      %v2594 = vpack.c.b16 %v2571, %v2570
      %v2595 = vpack.c.b16 %v2573, %v2572
      %v2596 = vpack.c.b16 %v2575, %v2574
      %v2597 = vpack.c.b16 %v2577, %v2576
      %v2598 = vpack.c.b16 %v2579, %v2578
      %v2599 = vpack.c.b16 %v2581, %v2580
      %v2600 = vpack.c.b16 %v2583, %v2582
      %v2601 = vpack.c.b16 %v2585, %v2584
      %2602 = vrot.lane.b32.xlu0 %v2586, 96
      %v2603 = vpop.permute.xlu0 %2602
      %2604 = vrot.lane.b32.xlu0 %v2587, 96
      %v2605 = vpop.permute.xlu0 %2604
      %2606 = vrot.lane.b32.xlu0 %v2588, 96
      %v2607 = vpop.permute.xlu0 %2606
      %2608 = vrot.lane.b32.xlu0 %v2589, 96
      %v2609 = vpop.permute.xlu0 %2608
      %2610 = vrot.lane.b32.xlu0 %v2590, 96
      %v2611 = vpop.permute.xlu0 %2610
      %2612 = vrot.lane.b32.xlu0 %v2591, 96
      %v2613 = vpop.permute.xlu0 %2612
      %2614 = vrot.lane.b32.xlu0 %v2592, 96
      %v2615 = vpop.permute.xlu0 %2614
      %2616 = vrot.lane.b32.xlu0 %v2593, 96
      %v2617 = vpop.permute.xlu0 %2616
      %2618 = vrot.lane.b32.xlu0 %v2594, 96
      %v2619 = vpop.permute.xlu0 %2618
      %2620 = vrot.lane.b32.xlu0 %v2595, 96
      %v2621 = vpop.permute.xlu0 %2620
      %2622 = vrot.lane.b32.xlu0 %v2596, 96
      %v2623 = vpop.permute.xlu0 %2622
      %2624 = vrot.lane.b32.xlu0 %v2597, 96
      %v2625 = vpop.permute.xlu0 %2624
      %2626 = vrot.lane.b32.xlu0 %v2598, 96
      %v2627 = vpop.permute.xlu0 %2626
      %2628 = vrot.lane.b32.xlu0 %v2599, 96
      %v2629 = vpop.permute.xlu0 %2628
      %2630 = vrot.lane.b32.xlu0 %v2600, 96
      %v2631 = vpop.permute.xlu0 %2630
      %2632 = vrot.lane.b32.xlu0 %v2601, 96
      %v2633 = vpop.permute.xlu0 %2632
      %v2634 = vunpack.c.l.b16 %v1511
      %v2635 = vunpack.c.l.b16 %v1521
      %v2636 = vunpack.c.l.b16 %v1535
      %v2637 = vunpack.c.l.b16 %v1545
      %v2638 = vunpack.c.l.b16 %v1559
      %v2639 = vunpack.c.l.b16 %v1569
      %v2640 = vunpack.c.l.b16 %v1583
      %v2641 = vunpack.c.l.b16 %v1593
      %v2642 = vunpack.c.l.b16 %v1607
      %v2643 = vunpack.c.l.b16 %v1617
      %v2644 = vunpack.c.l.b16 %v1631
      %v2645 = vunpack.c.l.b16 %v1641
      %v2646 = vunpack.c.l.b16 %v1655
      %v2647 = vunpack.c.l.b16 %v1665
      %v2648 = vunpack.c.l.b16 %v1679
      %v2649 = vunpack.c.l.b16 %v1689
      %v2650 = vunpack.c.l.b16 %v1703
      %v2651 = vunpack.c.l.b16 %v1713
      %v2652 = vunpack.c.l.b16 %v1727
      %v2653 = vunpack.c.l.b16 %v1737
      %v2654 = vunpack.c.l.b16 %v1751
      %v2655 = vunpack.c.l.b16 %v1761
      %v2656 = vunpack.c.l.b16 %v1775
      %v2657 = vunpack.c.l.b16 %v1785
      %v2658 = vunpack.c.l.b16 %v1799
      %v2659 = vunpack.c.l.b16 %v1809
      %v2660 = vunpack.c.l.b16 %v1823
      %v2661 = vunpack.c.l.b16 %v1833
      %v2662 = vunpack.c.l.b16 %v1847
      %v2663 = vunpack.c.l.b16 %v1857
      %v2664 = vunpack.c.l.b16 %v1871
      %v2665 = vunpack.c.l.b16 %v1881
      %v2666 = vpack.c.b16 %v2635, %v2634
      %v2667 = vpack.c.b16 %v2637, %v2636
      %v2668 = vpack.c.b16 %v2639, %v2638
      %v2669 = vpack.c.b16 %v2641, %v2640
      %v2670 = vpack.c.b16 %v2643, %v2642
      %v2671 = vpack.c.b16 %v2645, %v2644
      %v2672 = vpack.c.b16 %v2647, %v2646
      %v2673 = vpack.c.b16 %v2649, %v2648
      %v2674 = vpack.c.b16 %v2651, %v2650
      %v2675 = vpack.c.b16 %v2653, %v2652
      %v2676 = vpack.c.b16 %v2655, %v2654
      %v2677 = vpack.c.b16 %v2657, %v2656
      %v2678 = vpack.c.b16 %v2659, %v2658
      %v2679 = vpack.c.b16 %v2661, %v2660
      %v2680 = vpack.c.b16 %v2663, %v2662
      %v2681 = vpack.c.b16 %v2665, %v2664
      %2682 = vrot.lane.b32.xlu0 %v2666, 112
      %v2683 = vpop.permute.xlu0 %2682
      %2684 = vrot.lane.b32.xlu0 %v2667, 112
      %v2685 = vpop.permute.xlu0 %2684
      %2686 = vrot.lane.b32.xlu0 %v2668, 112
      %v2687 = vpop.permute.xlu0 %2686
      %2688 = vrot.lane.b32.xlu0 %v2669, 112
      %v2689 = vpop.permute.xlu0 %2688
      %2690 = vrot.lane.b32.xlu0 %v2670, 112
      %v2691 = vpop.permute.xlu0 %2690
      %2692 = vrot.lane.b32.xlu0 %v2671, 112
      %v2693 = vpop.permute.xlu0 %2692
      %2694 = vrot.lane.b32.xlu0 %v2672, 112
      %v2695 = vpop.permute.xlu0 %2694
      %2696 = vrot.lane.b32.xlu0 %v2673, 112
      %v2697 = vpop.permute.xlu0 %2696
      %2698 = vrot.lane.b32.xlu0 %v2674, 112
      %v2699 = vpop.permute.xlu0 %2698
      %2700 = vrot.lane.b32.xlu0 %v2675, 112
      %v2701 = vpop.permute.xlu0 %2700
      %2702 = vrot.lane.b32.xlu0 %v2676, 112
      %v2703 = vpop.permute.xlu0 %2702
      %2704 = vrot.lane.b32.xlu0 %v2677, 112
      %v2705 = vpop.permute.xlu0 %2704
      %2706 = vrot.lane.b32.xlu0 %v2678, 112
      %v2707 = vpop.permute.xlu0 %2706
      %2708 = vrot.lane.b32.xlu0 %v2679, 112
      %v2709 = vpop.permute.xlu0 %2708
      %2710 = vrot.lane.b32.xlu0 %v2680, 112
      %v2711 = vpop.permute.xlu0 %2710
      %2712 = vrot.lane.b32.xlu0 %v2681, 112
      %v2713 = vpop.permute.xlu0 %2712
      %v2714 = vunpack.c.l.b16 %v1949
      %v2715 = vunpack.c.l.b16 %v1952
      %v2716 = vunpack.c.l.b16 %v1956
      %v2717 = vunpack.c.l.b16 %v1959
      %v2718 = vunpack.c.l.b16 %v1963
      %v2719 = vunpack.c.l.b16 %v1966
      %v2720 = vunpack.c.l.b16 %v1970
      %v2721 = vunpack.c.l.b16 %v1973
      %v2722 = vunpack.c.l.b16 %v1977
      %v2723 = vunpack.c.l.b16 %v1980
      %v2724 = vunpack.c.l.b16 %v1984
      %v2725 = vunpack.c.l.b16 %v1987
      %v2726 = vunpack.c.l.b16 %v1991
      %v2727 = vunpack.c.l.b16 %v1994
      %v2728 = vunpack.c.l.b16 %v1998
      %v2729 = vunpack.c.l.b16 %v2001
      %v2730 = vunpack.c.l.b16 %v2005
      %v2731 = vunpack.c.l.b16 %v2008
      %v2732 = vunpack.c.l.b16 %v2012
      %v2733 = vunpack.c.l.b16 %v2015
      %v2734 = vunpack.c.l.b16 %v2019
      %v2735 = vunpack.c.l.b16 %v2022
      %v2736 = vunpack.c.l.b16 %v2026
      %v2737 = vunpack.c.l.b16 %v2029
      %v2738 = vunpack.c.l.b16 %v2033
      %v2739 = vunpack.c.l.b16 %v2036
      %v2740 = vunpack.c.l.b16 %v2040
      %v2741 = vunpack.c.l.b16 %v2043
      %v2742 = vunpack.c.l.b16 %v2047
      %v2743 = vunpack.c.l.b16 %v2050
      %v2744 = vunpack.c.l.b16 %v2054
      %v2745 = vunpack.c.l.b16 %v2057
      %v2746 = vpack.c.b16 %v2715, %v2714
      %v2747 = vpack.c.b16 %v2717, %v2716
      %v2748 = vpack.c.b16 %v2719, %v2718
      %v2749 = vpack.c.b16 %v2721, %v2720
      %v2750 = vpack.c.b16 %v2723, %v2722
      %v2751 = vpack.c.b16 %v2725, %v2724
      %v2752 = vpack.c.b16 %v2727, %v2726
      %v2753 = vpack.c.b16 %v2729, %v2728
      %v2754 = vpack.c.b16 %v2731, %v2730
      %v2755 = vpack.c.b16 %v2733, %v2732
      %v2756 = vpack.c.b16 %v2735, %v2734
      %v2757 = vpack.c.b16 %v2737, %v2736
      %v2758 = vpack.c.b16 %v2739, %v2738
      %v2759 = vpack.c.b16 %v2741, %v2740
      %v2760 = vpack.c.b16 %v2743, %v2742
      %v2761 = vpack.c.b16 %v2745, %v2744
      %vm2762 = vcmask 130048
      %v2765 = vsel %vm2762, %v2106, %v2171
      %v2768 = vsel %vm2762, %v2107, %v2173
      %v2771 = vsel %vm2762, %v2108, %v2175
      %v2774 = vsel %vm2762, %v2109, %v2177
      %v2777 = vsel %vm2762, %v2110, %v2179
      %v2780 = vsel %vm2762, %v2111, %v2181
      %v2783 = vsel %vm2762, %v2112, %v2183
      %v2786 = vsel %vm2762, %v2113, %v2185
      %v2789 = vsel %vm2762, %v2114, %v2187
      %v2792 = vsel %vm2762, %v2115, %v2189
      %v2795 = vsel %vm2762, %v2116, %v2191
      %v2798 = vsel %vm2762, %v2117, %v2193
      %v2801 = vsel %vm2762, %v2118, %v2195
      %v2804 = vsel %vm2762, %v2119, %v2197
      %v2807 = vsel %vm2762, %v2120, %v2199
      %v2810 = vsel %vm2762, %v2121, %v2201
      %vm2811 = vcmask 261120
      %v2813 = vsel %vm2811, %v2765, %v2251
      %v2815 = vsel %vm2811, %v2768, %v2253
      %v2817 = vsel %vm2811, %v2771, %v2255
      %v2819 = vsel %vm2811, %v2774, %v2257
      %v2821 = vsel %vm2811, %v2777, %v2259
      %v2823 = vsel %vm2811, %v2780, %v2261
      %v2825 = vsel %vm2811, %v2783, %v2263
      %v2827 = vsel %vm2811, %v2786, %v2265
      %v2829 = vsel %vm2811, %v2789, %v2267
      %v2831 = vsel %vm2811, %v2792, %v2269
      %v2833 = vsel %vm2811, %v2795, %v2271
      %v2835 = vsel %vm2811, %v2798, %v2273
      %v2837 = vsel %vm2811, %v2801, %v2275
      %v2839 = vsel %vm2811, %v2804, %v2277
      %v2841 = vsel %vm2811, %v2807, %v2279
      %v2843 = vsel %vm2811, %v2810, %v2281
      %vm2844 = vcmask 392192
      %v2846 = vsel %vm2844, %v2813, %v2347
      %v2848 = vsel %vm2844, %v2815, %v2349
      %v2850 = vsel %vm2844, %v2817, %v2351
      %v2852 = vsel %vm2844, %v2819, %v2353
      %v2854 = vsel %vm2844, %v2821, %v2355
      %v2856 = vsel %vm2844, %v2823, %v2357
      %v2858 = vsel %vm2844, %v2825, %v2359
      %v2860 = vsel %vm2844, %v2827, %v2361
      %v2862 = vsel %vm2844, %v2829, %v2363
      %v2864 = vsel %vm2844, %v2831, %v2365
      %v2866 = vsel %vm2844, %v2833, %v2367
      %v2868 = vsel %vm2844, %v2835, %v2369
      %v2870 = vsel %vm2844, %v2837, %v2371
      %v2872 = vsel %vm2844, %v2839, %v2373
      %v2874 = vsel %vm2844, %v2841, %v2375
      %v2876 = vsel %vm2844, %v2843, %v2377
      %vm2877 = vcmask 523264
      %v2879 = vsel %vm2877, %v2846, %v2427
      %v2881 = vsel %vm2877, %v2848, %v2429
      %v2883 = vsel %vm2877, %v2850, %v2431
      %v2885 = vsel %vm2877, %v2852, %v2433
      %v2887 = vsel %vm2877, %v2854, %v2435
      %v2889 = vsel %vm2877, %v2856, %v2437
      %v2891 = vsel %vm2877, %v2858, %v2439
      %v2893 = vsel %vm2877, %v2860, %v2441
      %v2895 = vsel %vm2877, %v2862, %v2443
      %v2897 = vsel %vm2877, %v2864, %v2445
      %v2899 = vsel %vm2877, %v2866, %v2447
      %v2901 = vsel %vm2877, %v2868, %v2449
      %v2903 = vsel %vm2877, %v2870, %v2451
      %v2905 = vsel %vm2877, %v2872, %v2453
      %v2907 = vsel %vm2877, %v2874, %v2455
      %v2909 = vsel %vm2877, %v2876, %v2457
      %vm2910 = vcmask 654336
      %v2912 = vsel %vm2910, %v2879, %v2507
      %v2914 = vsel %vm2910, %v2881, %v2509
      %v2916 = vsel %vm2910, %v2883, %v2511
      %v2918 = vsel %vm2910, %v2885, %v2513
      %v2920 = vsel %vm2910, %v2887, %v2515
      %v2922 = vsel %vm2910, %v2889, %v2517
      %v2924 = vsel %vm2910, %v2891, %v2519
      %v2926 = vsel %vm2910, %v2893, %v2521
      %v2928 = vsel %vm2910, %v2895, %v2523
      %v2930 = vsel %vm2910, %v2897, %v2525
      %v2932 = vsel %vm2910, %v2899, %v2527
      %v2934 = vsel %vm2910, %v2901, %v2529
      %v2936 = vsel %vm2910, %v2903, %v2531
      %v2938 = vsel %vm2910, %v2905, %v2533
      %v2940 = vsel %vm2910, %v2907, %v2535
      %v2942 = vsel %vm2910, %v2909, %v2537
      %vm2943 = vcmask 785408
      %v2945 = vsel %vm2943, %v2912, %v2603
      %v2947 = vsel %vm2943, %v2914, %v2605
      %v2949 = vsel %vm2943, %v2916, %v2607
      %v2951 = vsel %vm2943, %v2918, %v2609
      %v2953 = vsel %vm2943, %v2920, %v2611
      %v2955 = vsel %vm2943, %v2922, %v2613
      %v2957 = vsel %vm2943, %v2924, %v2615
      %v2959 = vsel %vm2943, %v2926, %v2617
      %v2961 = vsel %vm2943, %v2928, %v2619
      %v2963 = vsel %vm2943, %v2930, %v2621
      %v2965 = vsel %vm2943, %v2932, %v2623
      %v2967 = vsel %vm2943, %v2934, %v2625
      %v2969 = vsel %vm2943, %v2936, %v2627
      %v2971 = vsel %vm2943, %v2938, %v2629
      %v2973 = vsel %vm2943, %v2940, %v2631
      %v2975 = vsel %vm2943, %v2942, %v2633
      %vm2976 = vcmask 916480
      %v2978 = vsel %vm2976, %v2945, %v2683
      %v2981 = vsel %vm2976, %v2947, %v2685
      %v2984 = vsel %vm2976, %v2949, %v2687
      %v2987 = vsel %vm2976, %v2951, %v2689
      %v2990 = vsel %vm2976, %v2953, %v2691
      %v2993 = vsel %vm2976, %v2955, %v2693
      %v2996 = vsel %vm2976, %v2957, %v2695
      %v2999 = vsel %vm2976, %v2959, %v2697
      %v3002 = vsel %vm2976, %v2961, %v2699
      %v3005 = vsel %vm2976, %v2963, %v2701
      %v3008 = vsel %vm2976, %v2965, %v2703
      %v3011 = vsel %vm2976, %v2967, %v2705
      %v3014 = vsel %vm2976, %v2969, %v2707
      %v3017 = vsel %vm2976, %v2971, %v2709
      %v3020 = vsel %vm2976, %v2973, %v2711
      %v3023 = vsel %vm2976, %v2975, %v2713
      %v3025 = vld [vmem:[%s1] sm:$0xf]
      %v3026 = vld [vmem:[%s1 + $0x4] sm:$0xf]
      %v3027 = vld [vmem:[%s1 + $0x8] sm:$0xf]
      %v3028 = vld [vmem:[%s1 + $0xc] sm:$0xf]
      %v3029 = vld [vmem:[%s1 + $0x10] sm:$0xf]
      %v3030 = vld [vmem:[%s1 + $0x14] sm:$0xf]
      %v3031 = vld [vmem:[%s1 + $0x18] sm:$0xf]
      %v3032 = vld [vmem:[%s1 + $0x1c] sm:$0xf]
      %v3033 = vld [vmem:[%s1 + $0x20] sm:$0xf]
      %v3034 = vld [vmem:[%s1 + $0x24] sm:$0xf]
      %v3035 = vld [vmem:[%s1 + $0x28] sm:$0xf]
      %v3036 = vld [vmem:[%s1 + $0x2c] sm:$0xf]
      %v3037 = vld [vmem:[%s1 + $0x30] sm:$0xf]
      %v3038 = vld [vmem:[%s1 + $0x34] sm:$0xf]
      %v3039 = vld [vmem:[%s1 + $0x38] sm:$0xf]
      %v3040 = vld [vmem:[%s1 + $0x3c] sm:$0xf]
      %v3041 = vld [vmem:[%s1 + $0x40] sm:$0xf]
      %v3042 = vld [vmem:[%s1 + $0x44] sm:$0xf]
      %v3043 = vld [vmem:[%s2] sm:$0x1]
      %v3045 = vlaneseq
      %v3046 = vshrl.u32 %v3045, 7
      %v3047 = vsub.s32 0, %v3046
      %v3048 = vrot.slane %v3043, %v3047
      %v3068 = vunpack.c.l.b16 %v3025
      %v3069 = vunpack.c.l.b16 %v3026
      %v3070 = vunpack.c.l.b16 %v3027
      %v3071 = vunpack.c.l.b16 %v3028
      %v3072 = vunpack.c.l.b16 %v3029
      %v3073 = vunpack.c.l.b16 %v3030
      %v3074 = vunpack.c.l.b16 %v3031
      %v3075 = vunpack.c.l.b16 %v3032
      %v3076 = vunpack.c.l.b16 %v3033
      %v3077 = vunpack.c.l.b16 %v3034
      %v3078 = vunpack.c.l.b16 %v3035
      %v3079 = vunpack.c.l.b16 %v3036
      %v3080 = vunpack.c.l.b16 %v3037
      %v3081 = vunpack.c.l.b16 %v3038
      %v3082 = vunpack.c.l.b16 %v3039
      %v3083 = vunpack.c.l.b16 %v3040
      %v3084 = vunpack.c.l.b16 %v3041
      %v3085 = vunpack.c.l.b16 %v3042
      %v3086 = vpack.c.b16 %v3069, %v3068
      %v3087 = vpack.c.b16 %v3071, %v3070
      %v3088 = vpack.c.b16 %v3073, %v3072
      %v3089 = vpack.c.b16 %v3075, %v3074
      %v3090 = vpack.c.b16 %v3077, %v3076
      %v3091 = vpack.c.b16 %v3079, %v3078
      %v3092 = vpack.c.b16 %v3081, %v3080
      %v3093 = vpack.c.b16 %v3083, %v3082
      %v3094 = vpack.c.b16 %v3085, %v3084
      %v3105 = vsel %vm2762, %v2746, 0
      %v3108 = vsel %vm2762, %v2747, 0
      %v3111 = vsel %vm2762, %v2748, 0
      %v3114 = vsel %vm2762, %v2749, 0
      %v3117 = vsel %vm2762, %v2750, 0
      %v3120 = vsel %vm2762, %v2751, 0
      %v3123 = vsel %vm2762, %v2752, 0
      %v3126 = vsel %vm2762, %v2753, 0
      %v3129 = vsel %vm2762, %v2754, 0
      %v3132 = vsel %vm2762, %v2755, 0
      %v3135 = vsel %vm2762, %v2756, 0
      %v3138 = vsel %vm2762, %v2757, 0
      %v3141 = vsel %vm2762, %v2758, 0
      %v3144 = vsel %vm2762, %v2759, 0
      %v3147 = vsel %vm2762, %v2760, 0
      %v3150 = vsel %vm2762, %v2761, 0
      %3152 = vmatprep.subr.bf16.mxu0 0
      %3153 = vmatpush1.bf16.msra.mxu0 %v3086
      %3154 = vmatprep.subr.bf16.mxu0 0
      %3155 = vmatpush1.bf16.msra.mxu0 %v3087
      %3156 = vmatprep.subr.bf16.mxu0 0
      %3157 = vmatpush1.bf16.msra.mxu0 %v3088
      %3158 = vmatprep.subr.bf16.mxu0 0
      %3159 = vmatpush1.bf16.msra.mxu0 %v3089
      %3160 = vmatprep.subr.bf16.mxu0 0
      %3161 = vmatpush1.bf16.msra.mxu0 %v3090
      %3162 = vmatprep.subr.bf16.mxu0 0
      %3163 = vmatpush1.bf16.msra.mxu0 %v3091
      %3164 = vmatprep.subr.bf16.mxu0 0
      %3165 = vmatpush1.bf16.msra.mxu0 %v3092
      %3166 = vmatprep.subr.bf16.mxu0 0
      %3167 = vmatpush1.bf16.msra.mxu0 %v3093
      %3168 = vmatprep.subr.bf16.mxu0 0
      %3169 = vmatpush1.bf16.msra.mxu0 %v3094
      %3170 = vmatprep.subr.bf16.mxu0 0
      %3171 = vmatpush1.bf16.msra.mxu0 0
      %3172 = vmatprep.subr.bf16.mxu0 0
      %3173 = vmatpush1.bf16.msra.mxu0 0
      %3174 = vmatprep.subr.bf16.mxu0 0
      %3175 = vmatpush1.bf16.msra.mxu0 0
      %3176 = vmatprep.subr.bf16.mxu0 0
      %3177 = vmatpush1.bf16.msra.mxu0 0
      %3178 = vmatprep.subr.bf16.mxu0 0
      %3179 = vmatpush1.bf16.msra.mxu0 0
      %3180 = vmatprep.subr.bf16.mxu0 0
      %3181 = vmatpush1.bf16.msra.mxu0 0
      %3182 = vmatprep.subr.bf16.mxu0 0
      %3183 = vmatpush1.bf16.msra.mxu0 0
      %3184 = vmatprep.mubr.bf16.mxu0 %v3105
      %3185 = vmatmul.mubr.bf16.gmra.mrb[0].mxu0 %v2978
      %v3186 = vpop.f32.mrb[0].mxu0
      %v3187 = vadd.f32 %v3048, %v3186
      %v3188 = vpop.f32.mrb[0].mxu0
      %v3189 = vpop.f32.mrb[0].mxu0
      %v3190 = vadd.f32 %v3048, %v3189
      %v3191 = vpop.f32.mrb[0].mxu0
      %3192 = vmatprep.mubr.bf16.mxu0 %v3108
      %3193 = vmatmul.mubr.bf16.gmra.mrb[0].mxu0 %v2981
      %v3194 = vpop.f32.mrb[0].mxu0
      %v3195 = vadd.f32 %v3048, %v3194
      %v3196 = vpop.f32.mrb[0].mxu0
      %v3197 = vpop.f32.mrb[0].mxu0
      %v3198 = vadd.f32 %v3048, %v3197
      %v3199 = vpop.f32.mrb[0].mxu0
      %3200 = vmatprep.mubr.bf16.mxu0 %v3111
      %3201 = vmatmul.mubr.bf16.gmra.mrb[0].mxu0 %v2984
      %v3202 = vpop.f32.mrb[0].mxu0
      %v3203 = vadd.f32 %v3048, %v3202
      %v3204 = vpop.f32.mrb[0].mxu0
      %v3205 = vpop.f32.mrb[0].mxu0
      %v3206 = vadd.f32 %v3048, %v3205
      %v3207 = vpop.f32.mrb[0].mxu0
      %3208 = vmatprep.mubr.bf16.mxu0 %v3114
      %3209 = vmatmul.mubr.bf16.gmra.mrb[0].mxu0 %v2987
      %v3210 = vpop.f32.mrb[0].mxu0
      %v3211 = vadd.f32 %v3048, %v3210
      %v3212 = vpop.f32.mrb[0].mxu0
      %v3213 = vpop.f32.mrb[0].mxu0
      %v3214 = vadd.f32 %v3048, %v3213
      %v3215 = vpop.f32.mrb[0].mxu0
      %3216 = vmatprep.mubr.bf16.mxu0 %v3117
      %3217 = vmatmul.mubr.bf16.gmra.mrb[0].mxu0 %v2990
      %v3218 = vpop.f32.mrb[0].mxu0
      %v3219 = vadd.f32 %v3048, %v3218
      %v3220 = vpop.f32.mrb[0].mxu0
      %v3221 = vpop.f32.mrb[0].mxu0
      %v3222 = vadd.f32 %v3048, %v3221
      %v3223 = vpop.f32.mrb[0].mxu0
      %3224 = vmatprep.mubr.bf16.mxu0 %v3120
      %3225 = vmatmul.mubr.bf16.gmra.mrb[0].mxu0 %v2993
      %v3226 = vpop.f32.mrb[0].mxu0
      %v3227 = vadd.f32 %v3048, %v3226
      %v3228 = vpop.f32.mrb[0].mxu0
      %v3229 = vpop.f32.mrb[0].mxu0
      %v3230 = vadd.f32 %v3048, %v3229
      %v3231 = vpop.f32.mrb[0].mxu0
      %3232 = vmatprep.mubr.bf16.mxu0 %v3123
      %3233 = vmatmul.mubr.bf16.gmra.mrb[0].mxu0 %v2996
      %v3234 = vpop.f32.mrb[0].mxu0
      %v3235 = vadd.f32 %v3048, %v3234
      %v3236 = vpop.f32.mrb[0].mxu0
      %v3237 = vpop.f32.mrb[0].mxu0
      %v3238 = vadd.f32 %v3048, %v3237
      %v3239 = vpop.f32.mrb[0].mxu0
      %3240 = vmatprep.mubr.bf16.mxu0 %v3126
      %3241 = vmatmul.mubr.bf16.gmra.mrb[0].mxu0 %v2999
      %v3242 = vpop.f32.mrb[0].mxu0
      %v3243 = vadd.f32 %v3048, %v3242
      %v3244 = vpop.f32.mrb[0].mxu0
      %v3245 = vpop.f32.mrb[0].mxu0
      %v3246 = vadd.f32 %v3048, %v3245
      %v3247 = vpop.f32.mrb[0].mxu0
      %3248 = vmatprep.mubr.bf16.mxu0 %v3129
      %3249 = vmatmul.mubr.bf16.gmra.mrb[0].mxu0 %v3002
      %v3250 = vpop.f32.mrb[0].mxu0
      %v3251 = vadd.f32 %v3048, %v3250
      %v3252 = vpop.f32.mrb[0].mxu0
      %v3253 = vpop.f32.mrb[0].mxu0
      %v3254 = vadd.f32 %v3048, %v3253
      %v3255 = vpop.f32.mrb[0].mxu0
      %3256 = vmatprep.mubr.bf16.mxu0 %v3132
      %3257 = vmatmul.mubr.bf16.gmra.mrb[0].mxu0 %v3005
      %v3258 = vpop.f32.mrb[0].mxu0
      %v3259 = vadd.f32 %v3048, %v3258
      %v3260 = vpop.f32.mrb[0].mxu0
      %v3261 = vpop.f32.mrb[0].mxu0
      %v3262 = vadd.f32 %v3048, %v3261
      %v3263 = vpop.f32.mrb[0].mxu0
      %3264 = vmatprep.mubr.bf16.mxu0 %v3135
      %3265 = vmatmul.mubr.bf16.gmra.mrb[0].mxu0 %v3008
      %v3266 = vpop.f32.mrb[0].mxu0
      %v3267 = vadd.f32 %v3048, %v3266
      %v3268 = vpop.f32.mrb[0].mxu0
      %v3269 = vpop.f32.mrb[0].mxu0
      %v3270 = vadd.f32 %v3048, %v3269
      %v3271 = vpop.f32.mrb[0].mxu0
      %3272 = vmatprep.mubr.bf16.mxu0 %v3138
      %3273 = vmatmul.mubr.bf16.gmra.mrb[0].mxu0 %v3011
      %v3274 = vpop.f32.mrb[0].mxu0
      %v3275 = vadd.f32 %v3048, %v3274
      %v3276 = vpop.f32.mrb[0].mxu0
      %v3277 = vpop.f32.mrb[0].mxu0
      %v3278 = vadd.f32 %v3048, %v3277
      %v3279 = vpop.f32.mrb[0].mxu0
      %3280 = vmatprep.mubr.bf16.mxu0 %v3141
      %3281 = vmatmul.mubr.bf16.gmra.mrb[0].mxu0 %v3014
      %v3282 = vpop.f32.mrb[0].mxu0
      %v3283 = vadd.f32 %v3048, %v3282
      %v3284 = vpop.f32.mrb[0].mxu0
      %v3285 = vpop.f32.mrb[0].mxu0
      %v3286 = vadd.f32 %v3048, %v3285
      %v3287 = vpop.f32.mrb[0].mxu0
      %3288 = vmatprep.mubr.bf16.mxu0 %v3144
      %3289 = vmatmul.mubr.bf16.gmra.mrb[0].mxu0 %v3017
      %v3290 = vpop.f32.mrb[0].mxu0
      %v3291 = vadd.f32 %v3048, %v3290
      %v3292 = vpop.f32.mrb[0].mxu0
      %v3293 = vpop.f32.mrb[0].mxu0
      %v3294 = vadd.f32 %v3048, %v3293
      %v3295 = vpop.f32.mrb[0].mxu0
      %3296 = vmatprep.mubr.bf16.mxu0 %v3147
      %3297 = vmatmul.mubr.bf16.gmra.mrb[0].mxu0 %v3020
      %v3298 = vpop.f32.mrb[0].mxu0
      %v3299 = vadd.f32 %v3048, %v3298
      %v3300 = vpop.f32.mrb[0].mxu0
      %v3301 = vpop.f32.mrb[0].mxu0
      %v3302 = vadd.f32 %v3048, %v3301
      %v3303 = vpop.f32.mrb[0].mxu0
      %3304 = vmatprep.mubr.bf16.mxu0 %v3150
      %3305 = vmatmul.mubr.bf16.gmra.mrb[0].mxu0 %v3023
      %v3306 = vpop.f32.mrb[0].mxu0
      %v3307 = vadd.f32 %v3048, %v3306
      %v3308 = vpop.f32.mrb[0].mxu0
      %v3309 = vpop.f32.mrb[0].mxu0
      %v3310 = vadd.f32 %v3048, %v3309
      %v3311 = vpop.f32.mrb[0].mxu0
      %3312 = vdwg.mxu0
      %v3313 = vmax.f32 %v3187, 0.0
      %v3314 = vmax.f32 %v3190, 0.0
      %v3315 = vmax.f32 %v3195, 0.0
      %v3316 = vmax.f32 %v3198, 0.0
      %v3317 = vmax.f32 %v3203, 0.0
      %v3318 = vmax.f32 %v3206, 0.0
      %v3319 = vmax.f32 %v3211, 0.0
      %v3320 = vmax.f32 %v3214, 0.0
      %v3321 = vmax.f32 %v3219, 0.0
      %v3322 = vmax.f32 %v3222, 0.0
      %v3323 = vmax.f32 %v3227, 0.0
      %v3324 = vmax.f32 %v3230, 0.0
      %v3325 = vmax.f32 %v3235, 0.0
      %v3326 = vmax.f32 %v3238, 0.0
      %v3327 = vmax.f32 %v3243, 0.0
      %v3328 = vmax.f32 %v3246, 0.0
      %v3329 = vmax.f32 %v3251, 0.0
      %v3330 = vmax.f32 %v3254, 0.0
      %v3331 = vmax.f32 %v3259, 0.0
      %v3332 = vmax.f32 %v3262, 0.0
      %v3333 = vmax.f32 %v3267, 0.0
      %v3334 = vmax.f32 %v3270, 0.0
      %v3335 = vmax.f32 %v3275, 0.0
      %v3336 = vmax.f32 %v3278, 0.0
      %v3337 = vmax.f32 %v3283, 0.0
      %v3338 = vmax.f32 %v3286, 0.0
      %v3339 = vmax.f32 %v3291, 0.0
      %v3340 = vmax.f32 %v3294, 0.0
      %v3341 = vmax.f32 %v3299, 0.0
      %v3342 = vmax.f32 %v3302, 0.0
      %v3343 = vmax.f32 %v3307, 0.0
      %v3344 = vmax.f32 %v3310, 0.0
      %v3345 = vpack.c.bf16 %v3314, %v3313
      %v3346 = vpack.c.bf16 %v3316, %v3315
      %v3347 = vpack.c.bf16 %v3318, %v3317
      %v3348 = vpack.c.bf16 %v3320, %v3319
      %v3349 = vpack.c.bf16 %v3322, %v3321
      %v3350 = vpack.c.bf16 %v3324, %v3323
      %v3351 = vpack.c.bf16 %v3326, %v3325
      %v3352 = vpack.c.bf16 %v3328, %v3327
      %v3353 = vpack.c.bf16 %v3330, %v3329
      %v3354 = vpack.c.bf16 %v3332, %v3331
      %v3355 = vpack.c.bf16 %v3334, %v3333
      %v3356 = vpack.c.bf16 %v3336, %v3335
      %v3357 = vpack.c.bf16 %v3338, %v3337
      %v3358 = vpack.c.bf16 %v3340, %v3339
      %v3359 = vpack.c.bf16 %v3342, %v3341
      %v3360 = vpack.c.bf16 %v3344, %v3343
      %v3361 = vld [vmem:[%s3] sm:$0xf]
      %v3362 = vld [vmem:[%s3 + $0x4] sm:$0xf]
      %v3363 = vld [vmem:[%s4] sm:$0x1]
      %v3365 = vlaneseq
      %v3366 = vshrl.u32 %v3365, 7
      %v3367 = vsub.s32 0, %v3366
      %v3368 = vrot.slane %v3363, %v3367
      %v3372 = vunpack.c.l.b16 %v3361
      %v3373 = vunpack.c.l.b16 %v3362
      %v3374 = vpack.c.b16 %v3373, %v3372
      %v3377 = vsel %vm2762, %v3345, 0
      %v3380 = vsel %vm2762, %v3346, 0
      %v3383 = vsel %vm2762, %v3347, 0
      %v3386 = vsel %vm2762, %v3348, 0
      %v3389 = vsel %vm2762, %v3349, 0
      %v3392 = vsel %vm2762, %v3350, 0
      %v3395 = vsel %vm2762, %v3351, 0
      %v3398 = vsel %vm2762, %v3352, 0
      %v3401 = vsel %vm2762, %v3353, 0
      %v3404 = vsel %vm2762, %v3354, 0
      %v3407 = vsel %vm2762, %v3355, 0
      %v3410 = vsel %vm2762, %v3356, 0
      %v3413 = vsel %vm2762, %v3357, 0
      %v3416 = vsel %vm2762, %v3358, 0
      %v3419 = vsel %vm2762, %v3359, 0
      %v3422 = vsel %vm2762, %v3360, 0
      %3424 = vmatprep.subr.bf16.mxu0 0
      %3425 = vmatpush1.bf16.msra.mxu0 %v3374
      %3426 = vmatprep.subr.bf16.mxu0 0
      %3427 = vmatpush1.bf16.msra.mxu0 0
      %3428 = vmatprep.subr.bf16.mxu0 0
      %3429 = vmatpush1.bf16.msra.mxu0 0
      %3430 = vmatprep.subr.bf16.mxu0 0
      %3431 = vmatpush1.bf16.msra.mxu0 0
      %3432 = vmatprep.subr.bf16.mxu0 0
      %3433 = vmatpush1.bf16.msra.mxu0 0
      %3434 = vmatprep.subr.bf16.mxu0 0
      %3435 = vmatpush1.bf16.msra.mxu0 0
      %3436 = vmatprep.subr.bf16.mxu0 0
      %3437 = vmatpush1.bf16.msra.mxu0 0
      %3438 = vmatprep.subr.bf16.mxu0 0
      %3439 = vmatpush1.bf16.msra.mxu0 0
      %3440 = vmatprep.subr.bf16.mxu0 0
      %3441 = vmatpush1.bf16.msra.mxu0 0
      %3442 = vmatprep.subr.bf16.mxu0 0
      %3443 = vmatpush1.bf16.msra.mxu0 0
      %3444 = vmatprep.subr.bf16.mxu0 0
      %3445 = vmatpush1.bf16.msra.mxu0 0
      %3446 = vmatprep.subr.bf16.mxu0 0
      %3447 = vmatpush1.bf16.msra.mxu0 0
      %3448 = vmatprep.subr.bf16.mxu0 0
      %3449 = vmatpush1.bf16.msra.mxu0 0
      %3450 = vmatprep.subr.bf16.mxu0 0
      %3451 = vmatpush1.bf16.msra.mxu0 0
      %3452 = vmatprep.subr.bf16.mxu0 0
      %3453 = vmatpush1.bf16.msra.mxu0 0
      %3454 = vmatprep.subr.bf16.mxu0 0
      %3455 = vmatpush1.bf16.msra.mxu0 0
      %3456 = vmatprep.mubr.bf16.mxu0 0
      %3457 = vmatmul.mubr.bf16.gmra.mrb[0].mxu0 %v3377
      %v3458 = vpop.f32.mrb[0].mxu0
      %v3459 = vadd.f32 %v3368, %v3458
      %v3460 = vpop.f32.mrb[0].mxu0
      %v3461 = vpop.f32.mrb[0].mxu0
      %v3462 = vadd.f32 %v3368, %v3461
      %v3463 = vpop.f32.mrb[0].mxu0
      %3464 = vmatprep.mubr.bf16.mxu0 0
      %3465 = vmatmul.mubr.bf16.gmra.mrb[0].mxu0 %v3380
      %v3466 = vpop.f32.mrb[0].mxu0
      %v3467 = vadd.f32 %v3368, %v3466
      %v3468 = vpop.f32.mrb[0].mxu0
      %v3469 = vpop.f32.mrb[0].mxu0
      %v3470 = vadd.f32 %v3368, %v3469
      %v3471 = vpop.f32.mrb[0].mxu0
      %3472 = vmatprep.mubr.bf16.mxu0 0
      %3473 = vmatmul.mubr.bf16.gmra.mrb[0].mxu0 %v3383
      %v3474 = vpop.f32.mrb[0].mxu0
      %v3475 = vadd.f32 %v3368, %v3474
      %v3476 = vpop.f32.mrb[0].mxu0
      %v3477 = vpop.f32.mrb[0].mxu0
      %v3478 = vadd.f32 %v3368, %v3477
      %v3479 = vpop.f32.mrb[0].mxu0
      %3480 = vmatprep.mubr.bf16.mxu0 0
      %3481 = vmatmul.mubr.bf16.gmra.mrb[0].mxu0 %v3386
      %v3482 = vpop.f32.mrb[0].mxu0
      %v3483 = vadd.f32 %v3368, %v3482
      %v3484 = vpop.f32.mrb[0].mxu0
      %v3485 = vpop.f32.mrb[0].mxu0
      %v3486 = vadd.f32 %v3368, %v3485
      %v3487 = vpop.f32.mrb[0].mxu0
      %3488 = vmatprep.mubr.bf16.mxu0 0
      %3489 = vmatmul.mubr.bf16.gmra.mrb[0].mxu0 %v3389
      %v3490 = vpop.f32.mrb[0].mxu0
      %v3491 = vadd.f32 %v3368, %v3490
      %v3492 = vpop.f32.mrb[0].mxu0
      %v3493 = vpop.f32.mrb[0].mxu0
      %v3494 = vadd.f32 %v3368, %v3493
      %v3495 = vpop.f32.mrb[0].mxu0
      %3496 = vmatprep.mubr.bf16.mxu0 0
      %3497 = vmatmul.mubr.bf16.gmra.mrb[0].mxu0 %v3392
      %v3498 = vpop.f32.mrb[0].mxu0
      %v3499 = vadd.f32 %v3368, %v3498
      %v3500 = vpop.f32.mrb[0].mxu0
      %v3501 = vpop.f32.mrb[0].mxu0
      %v3502 = vadd.f32 %v3368, %v3501
      %v3503 = vpop.f32.mrb[0].mxu0
      %3504 = vmatprep.mubr.bf16.mxu0 0
      %3505 = vmatmul.mubr.bf16.gmra.mrb[0].mxu0 %v3395
      %v3506 = vpop.f32.mrb[0].mxu0
      %v3507 = vadd.f32 %v3368, %v3506
      %v3508 = vpop.f32.mrb[0].mxu0
      %v3509 = vpop.f32.mrb[0].mxu0
      %v3510 = vadd.f32 %v3368, %v3509
      %v3511 = vpop.f32.mrb[0].mxu0
      %3512 = vmatprep.mubr.bf16.mxu0 0
      %3513 = vmatmul.mubr.bf16.gmra.mrb[0].mxu0 %v3398
      %v3514 = vpop.f32.mrb[0].mxu0
      %v3515 = vadd.f32 %v3368, %v3514
      %v3516 = vpop.f32.mrb[0].mxu0
      %v3517 = vpop.f32.mrb[0].mxu0
      %v3518 = vadd.f32 %v3368, %v3517
      %v3519 = vpop.f32.mrb[0].mxu0
      %3520 = vmatprep.mubr.bf16.mxu0 0
      %3521 = vmatmul.mubr.bf16.gmra.mrb[0].mxu0 %v3401
      %v3522 = vpop.f32.mrb[0].mxu0
      %v3523 = vadd.f32 %v3368, %v3522
      %v3524 = vpop.f32.mrb[0].mxu0
      %v3525 = vpop.f32.mrb[0].mxu0
      %v3526 = vadd.f32 %v3368, %v3525
      %v3527 = vpop.f32.mrb[0].mxu0
      %3528 = vmatprep.mubr.bf16.mxu0 0
      %3529 = vmatmul.mubr.bf16.gmra.mrb[0].mxu0 %v3404
      %v3530 = vpop.f32.mrb[0].mxu0
      %v3531 = vadd.f32 %v3368, %v3530
      %v3532 = vpop.f32.mrb[0].mxu0
      %v3533 = vpop.f32.mrb[0].mxu0
      %v3534 = vadd.f32 %v3368, %v3533
      %v3535 = vpop.f32.mrb[0].mxu0
      %3536 = vmatprep.mubr.bf16.mxu0 0
      %3537 = vmatmul.mubr.bf16.gmra.mrb[0].mxu0 %v3407
      %v3538 = vpop.f32.mrb[0].mxu0
      %v3539 = vadd.f32 %v3368, %v3538
      %v3540 = vpop.f32.mrb[0].mxu0
      %v3541 = vpop.f32.mrb[0].mxu0
      %v3542 = vadd.f32 %v3368, %v3541
      %v3543 = vpop.f32.mrb[0].mxu0
      %3544 = vmatprep.mubr.bf16.mxu0 0
      %3545 = vmatmul.mubr.bf16.gmra.mrb[0].mxu0 %v3410
      %v3546 = vpop.f32.mrb[0].mxu0
      %v3547 = vadd.f32 %v3368, %v3546
      %v3548 = vpop.f32.mrb[0].mxu0
      %v3549 = vpop.f32.mrb[0].mxu0
      %v3550 = vadd.f32 %v3368, %v3549
      %v3551 = vpop.f32.mrb[0].mxu0
      %3552 = vmatprep.mubr.bf16.mxu0 0
      %3553 = vmatmul.mubr.bf16.gmra.mrb[0].mxu0 %v3413
      %v3554 = vpop.f32.mrb[0].mxu0
      %v3555 = vadd.f32 %v3368, %v3554
      %v3556 = vpop.f32.mrb[0].mxu0
      %v3557 = vpop.f32.mrb[0].mxu0
      %v3558 = vadd.f32 %v3368, %v3557
      %v3559 = vpop.f32.mrb[0].mxu0
      %3560 = vmatprep.mubr.bf16.mxu0 0
      %3561 = vmatmul.mubr.bf16.gmra.mrb[0].mxu0 %v3416
      %v3562 = vpop.f32.mrb[0].mxu0
      %v3563 = vadd.f32 %v3368, %v3562
      %v3564 = vpop.f32.mrb[0].mxu0
      %v3565 = vpop.f32.mrb[0].mxu0
      %v3566 = vadd.f32 %v3368, %v3565
      %v3567 = vpop.f32.mrb[0].mxu0
      %3568 = vmatprep.mubr.bf16.mxu0 0
      %3569 = vmatmul.mubr.bf16.gmra.mrb[0].mxu0 %v3419
      %v3570 = vpop.f32.mrb[0].mxu0
      %v3571 = vadd.f32 %v3368, %v3570
      %v3572 = vpop.f32.mrb[0].mxu0
      %v3573 = vpop.f32.mrb[0].mxu0
      %v3574 = vadd.f32 %v3368, %v3573
      %v3575 = vpop.f32.mrb[0].mxu0
      %3576 = vmatprep.mubr.bf16.mxu0 0
      %3577 = vmatmul.mubr.bf16.gmra.mrb[0].mxu0 %v3422
      %v3578 = vpop.f32.mrb[0].mxu0
      %v3579 = vadd.f32 %v3368, %v3578
      %v3580 = vpop.f32.mrb[0].mxu0
      %v3581 = vpop.f32.mrb[0].mxu0
      %v3582 = vadd.f32 %v3368, %v3581
      %v3583 = vpop.f32.mrb[0].mxu0
      %3584 = vdwg.mxu0
      %3585 = vst [vmem:[%s224] sm:$0xff] %v3459
      %3586 = vst [vmem:[%s224 + $0x8] sm:$0xff] %v3462
      %3587 = vst [vmem:[%s224 + $0x10] sm:$0xff] %v3467
      %3588 = vst [vmem:[%s224 + $0x18] sm:$0xff] %v3470
      %3589 = vst [vmem:[%s224 + $0x20] sm:$0xff] %v3475
      %3590 = vst [vmem:[%s224 + $0x28] sm:$0xff] %v3478
      %3591 = vst [vmem:[%s224 + $0x30] sm:$0xff] %v3483
      %3592 = vst [vmem:[%s224 + $0x38] sm:$0xff] %v3486
      %3593 = vst [vmem:[%s224 + $0x40] sm:$0xff] %v3491
      %3594 = vst [vmem:[%s224 + $0x48] sm:$0xff] %v3494
      %3595 = vst [vmem:[%s224 + $0x50] sm:$0xff] %v3499
      %3596 = vst [vmem:[%s224 + $0x58] sm:$0xff] %v3502
      %3597 = vst [vmem:[%s224 + $0x60] sm:$0xff] %v3507
      %3598 = vst [vmem:[%s224 + $0x68] sm:$0xff] %v3510
      %3599 = vst [vmem:[%s224 + $0x70] sm:$0xff] %v3515
      %3600 = vst [vmem:[%s224 + $0x78] sm:$0xff] %v3518
      %3601 = vst [vmem:[%s224 + $0x80] sm:$0xff] %v3523
      %3602 = vst [vmem:[%s224 + $0x88] sm:$0xff] %v3526
      %3603 = vst [vmem:[%s224 + $0x90] sm:$0xff] %v3531
      %3604 = vst [vmem:[%s224 + $0x98] sm:$0xff] %v3534
      %3605 = vst [vmem:[%s224 + $0xa0] sm:$0xff] %v3539
      %3606 = vst [vmem:[%s224 + $0xa8] sm:$0xff] %v3542
      %3607 = vst [vmem:[%s224 + $0xb0] sm:$0xff] %v3547
      %3608 = vst [vmem:[%s224 + $0xb8] sm:$0xff] %v3550
      %3609 = vst [vmem:[%s224 + $0xc0] sm:$0xff] %v3555
      %3610 = vst [vmem:[%s224 + $0xc8] sm:$0xff] %v3558
      %3611 = vst [vmem:[%s224 + $0xd0] sm:$0xff] %v3563
      %3612 = vst [vmem:[%s224 + $0xd8] sm:$0xff] %v3566
      %3613 = vst [vmem:[%s224 + $0xe0] sm:$0xff] %v3571
      %3614 = vst [vmem:[%s224 + $0xe8] sm:$0xff] %v3574
      %3615 = vst [vmem:[%s224 + $0xf0] sm:$0xff] %v3579
      %3616 = vst [vmem:[%s224 + $0xf8] sm:$0xff] %v3582
      %p3617 = scmp.lt.s32.totalorder %s16, 1
      %s3618 = scalar_select %p3617, %s16, 1
      %s3619 = smul.addr %s3618, 32
      %s3620 = smul.addr %s3619, 8
      %s3621 = scalar_lea.vmem %s5, %s3620
      // Predicated region
      $region41: #{_forward_impl.7} parent=39 // pred_check
        %p3622 = pneg %p144
      $region42: #{_forward_impl.7} parent=39 // pred_check_branch
        %3624 = sbr.rel (%p3622) target = $region44
      $region43: #{_forward_impl.7} parent=39 // pred_region
        _
      $region44: #{_forward_impl.7} parent=39 // pred_fallthru
        _
    $region40: #{_forward_impl.7} parent=5 // pred_fallthru
      _
    %p3625 = scmp.le.s32.totalorder 2, %s11
    // Predicated region
    $region45: #{_forward_impl.7} parent=5 // pred_check
      %p3626 = pneg %p3625
    $region46: #{_forward_impl.7} parent=5 // pred_check_branch
      %3628 = sbr.rel (%p3626) target = $region48
    $region47: #{_forward_impl.7} parent=5 // pred_region
      %s3629 = ssub.s32 %s11, 2
      // Predicated region
      $region49: #{_forward_impl.7} parent=47 // pred_check
        %p3630 = pneg %p150
      $region50: #{_forward_impl.7} parent=47 // pred_check_branch
        %3632 = sbr.rel (%p3630) target = $region52
      $region51: #{_forward_impl.7} parent=47 // pred_region
        %p3633 = scmp.lt.s32.totalorder %s17, 1
        %s3634 = scalar_select %p3633, %s17, 1
        %s3635 = smul.addr %s3634, 32
        %s3636 = smul.addr %s3635, 8
        %s3637 = scalar_lea.vmem %s5, %s3636
      $region52: #{_forward_impl.7} parent=47 // pred_fallthru
        _
    $region48: #{_forward_impl.7} parent=5 // pred_fallthru
      _
  $region6: #{_forward_impl.7} parent=0 // loop_footer
    %s15 = sadd.s32 1, %s11
  $region7: #{_forward_impl.7} parent=0 // loop_footer_branch
    %10 = sbr.rel target = $region3
  $region8: #{_forward_impl.7} parent=0 // loop_exit
    _

// kernel: _forward_impl.8
$region0: #{_forward_impl.8}
  #allocation0 [shape = 'u32[]', space=smem, size = 0x4, offset = 0x4, fixed_abs, tag = 'smem constant byte address 0x4 - core index']
  #allocation1 [shape = 'u32[144,128]{1,0:T(1,128)}', space=vmem, size = 0x12000, scoped, tag = 'internal scratch']
  %s0 = inlined_call_operand.vmem [shape: bf16[2,896,256], index: 0, kind: input, shape index: {}]
  %s1 = inlined_call_operand.vmem [shape: bf16[2,256,16], index: 1, kind: input, shape index: {}]
  %s2 = inlined_call_operand.vmem [shape: bf16[2,896,16], index: 2, kind: output, shape index: {}]
  %s3 = sld [smem:[#allocation0]]
  $region41: #{_forward_impl.8} parent=0
    _
  %s5 = ssub.s32 1, %s3
  %s6 = scalar_select 0, %s5, %s3
  loop: start=0, step=1, limit=4
  $region2: #{_forward_impl.8} parent=0 // loop_pre_header
    _
  $region3: #{_forward_impl.8} parent=0 // loop_header
    %s8 = sphi 0, %s12
    %p9 = scmp.ge.s32.totalorder %s8, 4
    %s18 = sphi 0, %s20
    %s21 = sphi 0, %s18
    %s22 = sphi 0, %s21
    %s38 = sphi 0, %s22
    %s44 = sphi 0, %s46
    %s47 = sphi 0, %s44
    %s48 = sphi 0, %s47
    %s64 = sphi 0, %s48
    %s70 = sphi 0, %s72
    %s73 = sphi 0, %s70
    %s74 = sphi 0, %s73
    %s90 = sphi 0, %s74
  $region4: #{_forward_impl.8} parent=0 // loop_header_branch
    %11 = sbr.rel (%p9) target = $region8
  $region5: #{_forward_impl.8} parent=0 // loop_body
    %s13 = ssub.s32 %s8, 1
    %s14 = ssub.s32 %s8, 2
    %s15 = sadd.s32 %s8, 1
    %s16 = ssub.s32 %s8, %s15
    %p17 = scmp.eq.s32.totalorder %s16, 0
    %s19 = sadd.s32 %s18, 1
    %s20 = scalar_select %p17, %s18, %s19
    %p23 = pneg %p17
    %p24 = scmp.eq.s32.totalorder %s8, 1
    %p25 = por %p23, %p24
    %p26 = scmp.ne.s32.totalorder %s18, %s21
    %p27 = scmp.eq.s32.totalorder %s8, 0
    %p28 = por %p26, %p27
    %p29 = scmp.ne.s32.totalorder %s18, %s21
    %p30 = scmp.eq.s32.totalorder %s13, 1
    %p31 = por %p29, %p30
    %p32 = scmp.ne.s32.totalorder %s21, %s22
    %p33 = scmp.eq.s32.totalorder %s13, 0
    %p34 = por %p32, %p33
    %p35 = scmp.ne.s32.totalorder %s21, %s22
    %p36 = scmp.eq.s32.totalorder %s14, 1
    %p37 = por %p35, %p36
    %p39 = scmp.ne.s32.totalorder %s22, %s38
    %p40 = scmp.eq.s32.totalorder %s14, 0
    %p41 = por %p39, %p40
    %s42 = ssub.s32 %s8, %s15
    %p43 = scmp.eq.s32.totalorder %s42, 0
    %s45 = sadd.s32 %s44, 1
    %s46 = scalar_select %p43, %s44, %s45
    %p49 = pneg %p43
    %p50 = scmp.eq.s32.totalorder %s8, 1
    %p51 = por %p49, %p50
    %p52 = scmp.ne.s32.totalorder %s44, %s47
    %p53 = scmp.eq.s32.totalorder %s8, 0
    %p54 = por %p52, %p53
    %p55 = scmp.ne.s32.totalorder %s44, %s47
    %p56 = scmp.eq.s32.totalorder %s13, 1
    %p57 = por %p55, %p56
    %p58 = scmp.ne.s32.totalorder %s47, %s48
    %p59 = scmp.eq.s32.totalorder %s13, 0
    %p60 = por %p58, %p59
    %p61 = scmp.ne.s32.totalorder %s47, %s48
    %p62 = scmp.eq.s32.totalorder %s14, 1
    %p63 = por %p61, %p62
    %p65 = scmp.ne.s32.totalorder %s48, %s64
    %p66 = scmp.eq.s32.totalorder %s14, 0
    %p67 = por %p65, %p66
    %s68 = ssub.s32 %s8, %s15
    %p69 = scmp.eq.s32.totalorder %s68, 0
    %s71 = sadd.s32 %s70, 1
    %s72 = scalar_select %p69, %s70, %s71
    %p75 = pneg %p69
    %p76 = scmp.eq.s32.totalorder %s8, 1
    %p77 = por %p75, %p76
    %p78 = scmp.ne.s32.totalorder %s70, %s73
    %p79 = scmp.eq.s32.totalorder %s8, 0
    %p80 = por %p78, %p79
    %p81 = scmp.ne.s32.totalorder %s70, %s73
    %p82 = scmp.eq.s32.totalorder %s13, 1
    %p83 = por %p81, %p82
    %p84 = scmp.ne.s32.totalorder %s73, %s74
    %p85 = scmp.eq.s32.totalorder %s13, 0
    %p86 = por %p84, %p85
    %p87 = scmp.ne.s32.totalorder %s73, %s74
    %p88 = scmp.eq.s32.totalorder %s14, 1
    %p89 = por %p87, %p88
    %p91 = scmp.ne.s32.totalorder %s74, %s90
    %p92 = scmp.eq.s32.totalorder %s14, 0
    %p93 = por %p91, %p92
    %p94 = scmp.le.s32.totalorder 1, %s8
    %p95 = scmp.lt.s32.totalorder %s8, 3
    %p96 = pnand %p94, %p95
    %p97 = pneg %p96
    // Predicated region
    $region9: #{_forward_impl.8} parent=5 // pred_check
      _
    $region10: #{_forward_impl.8} parent=5 // pred_check_branch
      %99 = sbr.rel (%p96) target = $region12
    $region11: #{_forward_impl.8} parent=5 // pred_region
      %s100 = ssub.s32 %s8, 1
    $region12: #{_forward_impl.8} parent=5 // pred_fallthru
      _
    %p101 = scmp.lt.s32.totalorder %s8, 2
    // Predicated region
    $region13: #{_forward_impl.8} parent=5 // pred_check
      %p102 = pneg %p101
    $region14: #{_forward_impl.8} parent=5 // pred_check_branch
      %104 = sbr.rel (%p102) target = $region16
    $region15: #{_forward_impl.8} parent=5 // pred_region
      // Predicated region
      $region17: #{_forward_impl.8} parent=15 // pred_check
        %p105 = pneg %p28
      $region18: #{_forward_impl.8} parent=15 // pred_check_branch
        %107 = sbr.rel (%p105) target = $region20
      $region19: #{_forward_impl.8} parent=15 // pred_region
        %p108 = scmp.lt.s32.totalorder %s8, 1
        %s109 = scalar_select %p108, %s8, 1
        %s110 = smul.addr %s109, 224
        %s111 = smul.addr %s110, 4
        %s112 = scalar_lea.vmem %s0, %s111
      $region20: #{_forward_impl.8} parent=15 // pred_fallthru
        _
      // Predicated region
      $region21: #{_forward_impl.8} parent=15 // pred_check
        %p113 = pneg %p54
      $region22: #{_forward_impl.8} parent=15 // pred_check_branch
        %115 = sbr.rel (%p113) target = $region24
      $region23: #{_forward_impl.8} parent=15 // pred_region
        %p116 = scmp.lt.s32.totalorder %s8, 1
        %s117 = scalar_select %p116, %s8, 1
        %s118 = smul.addr %s117, 32
        %s119 = smul.addr %s118, 4
        %s120 = scalar_lea.vmem %s1, %s119
      $region24: #{_forward_impl.8} parent=15 // pred_fallthru
        _
    $region16: #{_forward_impl.8} parent=5 // pred_fallthru
      _
    %p121 = scmp.le.s32.totalorder 1, %s8
    %p122 = scmp.lt.s32.totalorder %s8, 3
    %p123 = pnand %p121, %p122
    %p124 = pneg %p123
    // Predicated region
    $region25: #{_forward_impl.8} parent=5 // pred_check
      _
    $region26: #{_forward_impl.8} parent=5 // pred_check_branch
      %126 = sbr.rel (%p123) target = $region28
    $region27: #{_forward_impl.8} parent=5 // pred_region
      %s127 = ssub.s32 %s8, 1
      %p128 = scmp.lt.s32.totalorder %s13, 1
      %s129 = scalar_select %p128, %s13, 1
      %s130 = smul.addr %s129, 224
      %s131 = smul.addr %s130, 4
      %s132 = scalar_lea.vmem %s0, %s131
      %p133 = pneg %p34
      %p134 = pneg %p31
      %p135 = scmp.lt.s32.totalorder %s13, 1
      %s136 = scalar_select %p135, %s13, 1
      %s137 = smul.addr %s136, 32
      %s138 = smul.addr %s137, 4
      %s139 = scalar_lea.vmem %s1, %s138
      %p140 = pneg %p60
      %p141 = pneg %p57
      %p142 = pneg %p86
      %p143 = pneg %p83
      %p144 = scmp.lt.s32.totalorder %s13, 1
      %s145 = scalar_select %p144, %s13, 1
      %s146 = smul.addr %s145, 112
      %s147 = smul.addr %s146, 4
      %s148 = scalar_lea.vmem %s2, %s147
      %p149 = scmp.lt.s32.totalorder %s13, 1
      %s150 = scalar_select %p149, %s13, 1
      %s151 = smul.addr %s150, 224
      %s152 = smul.addr %s151, 4
      %s153 = scalar_lea.vmem %s0, %s152
      %p154 = scmp.lt.s32.totalorder %s13, 1
      %s155 = scalar_select %p154, %s13, 1
      %s156 = smul.addr %s155, 32
      %s157 = smul.addr %s156, 4
      %s158 = scalar_lea.vmem %s1, %s157
      %p159 = scmp.lt.s32.totalorder %s13, 1
      %s160 = scalar_select %p159, %s13, 1
      %s161 = smul.addr %s160, 112
      %s162 = smul.addr %s161, 4
      %s163 = scalar_lea.vmem %s2, %s162
      %v165 = vld [vmem:[%s153] sm:$0xff]
      %v166 = vld [vmem:[%s153 + $0x8] sm:$0xff]
      %v167 = vld [vmem:[%s153 + $0x10] sm:$0xff]
      %v168 = vld [vmem:[%s153 + $0x18] sm:$0xff]
      %v169 = vld [vmem:[%s153 + $0x20] sm:$0xff]
      %v170 = vld [vmem:[%s153 + $0x28] sm:$0xff]
      %v171 = vld [vmem:[%s153 + $0x30] sm:$0xff]
      %v172 = vld [vmem:[%s153 + $0x38] sm:$0xff]
      %v173 = vld [vmem:[%s153 + $0x40] sm:$0xff]
      %v174 = vld [vmem:[%s153 + $0x48] sm:$0xff]
      %v175 = vld [vmem:[%s153 + $0x50] sm:$0xff]
      %v176 = vld [vmem:[%s153 + $0x58] sm:$0xff]
      %v177 = vld [vmem:[%s153 + $0x60] sm:$0xff]
      %v178 = vld [vmem:[%s153 + $0x68] sm:$0xff]
      %v179 = vld [vmem:[%s153 + $0x70] sm:$0xff]
      %v180 = vld [vmem:[%s153 + $0x78] sm:$0xff]
      %v181 = vld [vmem:[%s153 + $0x80] sm:$0xff]
      %v182 = vld [vmem:[%s153 + $0x88] sm:$0xff]
      %v183 = vld [vmem:[%s153 + $0x90] sm:$0xff]
      %v184 = vld [vmem:[%s153 + $0x98] sm:$0xff]
      %v185 = vld [vmem:[%s153 + $0xa0] sm:$0xff]
      %v186 = vld [vmem:[%s153 + $0xa8] sm:$0xff]
      %v187 = vld [vmem:[%s153 + $0xb0] sm:$0xff]
      %v188 = vld [vmem:[%s153 + $0xb8] sm:$0xff]
      %v189 = vld [vmem:[%s153 + $0xc0] sm:$0xff]
      %v190 = vld [vmem:[%s153 + $0xc8] sm:$0xff]
      %v191 = vld [vmem:[%s153 + $0xd0] sm:$0xff]
      %v192 = vld [vmem:[%s153 + $0xd8] sm:$0xff]
      %v193 = vld [vmem:[%s153 + $0xe0] sm:$0xff]
      %v194 = vld [vmem:[%s153 + $0xe8] sm:$0xff]
      %v195 = vld [vmem:[%s153 + $0xf0] sm:$0xff]
      %v196 = vld [vmem:[%s153 + $0xf8] sm:$0xff]
      %v197 = vld [vmem:[%s153 + $0x100] sm:$0xff]
      %v198 = vld [vmem:[%s153 + $0x108] sm:$0xff]
      %v199 = vld [vmem:[%s153 + $0x110] sm:$0xff]
      %v200 = vld [vmem:[%s153 + $0x118] sm:$0xff]
      %v201 = vld [vmem:[%s153 + $0x120] sm:$0xff]
      %v202 = vld [vmem:[%s153 + $0x128] sm:$0xff]
      %v203 = vld [vmem:[%s153 + $0x130] sm:$0xff]
      %v204 = vld [vmem:[%s153 + $0x138] sm:$0xff]
      %v205 = vld [vmem:[%s153 + $0x140] sm:$0xff]
      %v206 = vld [vmem:[%s153 + $0x148] sm:$0xff]
      %v207 = vld [vmem:[%s153 + $0x150] sm:$0xff]
      %v208 = vld [vmem:[%s153 + $0x158] sm:$0xff]
      %v209 = vld [vmem:[%s153 + $0x160] sm:$0xff]
      %v210 = vld [vmem:[%s153 + $0x168] sm:$0xff]
      %v211 = vld [vmem:[%s153 + $0x170] sm:$0xff]
      %v212 = vld [vmem:[%s153 + $0x178] sm:$0xff]
      %v213 = vld [vmem:[%s153 + $0x180] sm:$0xff]
      %v214 = vld [vmem:[%s153 + $0x188] sm:$0xff]
      %v215 = vld [vmem:[%s153 + $0x190] sm:$0xff]
      %v216 = vld [vmem:[%s153 + $0x198] sm:$0xff]
      %v217 = vld [vmem:[%s153 + $0x1a0] sm:$0xff]
      %v218 = vld [vmem:[%s153 + $0x1a8] sm:$0xff]
      %v219 = vld [vmem:[%s153 + $0x1b0] sm:$0xff]
      %v220 = vld [vmem:[%s153 + $0x1b8] sm:$0xff]
      %v221 = vld [vmem:[%s153 + $0x1c0] sm:$0xff]
      %v222 = vld [vmem:[%s153 + $0x1c8] sm:$0xff]
      %v223 = vld [vmem:[%s153 + $0x1d0] sm:$0xff]
      %v224 = vld [vmem:[%s153 + $0x1d8] sm:$0xff]
      %v225 = vld [vmem:[%s153 + $0x1e0] sm:$0xff]
      %v226 = vld [vmem:[%s153 + $0x1e8] sm:$0xff]
      %v227 = vld [vmem:[%s153 + $0x1f0] sm:$0xff]
      %v228 = vld [vmem:[%s153 + $0x1f8] sm:$0xff]
      %v229 = vld [vmem:[%s153 + $0x200] sm:$0xff]
      %v230 = vld [vmem:[%s153 + $0x208] sm:$0xff]
      %v231 = vld [vmem:[%s153 + $0x210] sm:$0xff]
      %v232 = vld [vmem:[%s153 + $0x218] sm:$0xff]
      %v233 = vld [vmem:[%s153 + $0x220] sm:$0xff]
      %v234 = vld [vmem:[%s153 + $0x228] sm:$0xff]
      %v235 = vld [vmem:[%s153 + $0x230] sm:$0xff]
      %v236 = vld [vmem:[%s153 + $0x238] sm:$0xff]
      %v237 = vld [vmem:[%s153 + $0x240] sm:$0xff]
      %v238 = vld [vmem:[%s153 + $0x248] sm:$0xff]
      %v239 = vld [vmem:[%s153 + $0x250] sm:$0xff]
      %v240 = vld [vmem:[%s153 + $0x258] sm:$0xff]
      %v241 = vld [vmem:[%s153 + $0x260] sm:$0xff]
      %v242 = vld [vmem:[%s153 + $0x268] sm:$0xff]
      %v243 = vld [vmem:[%s153 + $0x270] sm:$0xff]
      %v244 = vld [vmem:[%s153 + $0x278] sm:$0xff]
      %v245 = vld [vmem:[%s153 + $0x280] sm:$0xff]
      %v246 = vld [vmem:[%s153 + $0x288] sm:$0xff]
      %v247 = vld [vmem:[%s153 + $0x290] sm:$0xff]
      %v248 = vld [vmem:[%s153 + $0x298] sm:$0xff]
      %v249 = vld [vmem:[%s153 + $0x2a0] sm:$0xff]
      %v250 = vld [vmem:[%s153 + $0x2a8] sm:$0xff]
      %v251 = vld [vmem:[%s153 + $0x2b0] sm:$0xff]
      %v252 = vld [vmem:[%s153 + $0x2b8] sm:$0xff]
      %v253 = vld [vmem:[%s153 + $0x2c0] sm:$0xff]
      %v254 = vld [vmem:[%s153 + $0x2c8] sm:$0xff]
      %v255 = vld [vmem:[%s153 + $0x2d0] sm:$0xff]
      %v256 = vld [vmem:[%s153 + $0x2d8] sm:$0xff]
      %v257 = vld [vmem:[%s153 + $0x2e0] sm:$0xff]
      %v258 = vld [vmem:[%s153 + $0x2e8] sm:$0xff]
      %v259 = vld [vmem:[%s153 + $0x2f0] sm:$0xff]
      %v260 = vld [vmem:[%s153 + $0x2f8] sm:$0xff]
      %v261 = vld [vmem:[%s153 + $0x300] sm:$0xff]
      %v262 = vld [vmem:[%s153 + $0x308] sm:$0xff]
      %v263 = vld [vmem:[%s153 + $0x310] sm:$0xff]
      %v264 = vld [vmem:[%s153 + $0x318] sm:$0xff]
      %v265 = vld [vmem:[%s153 + $0x320] sm:$0xff]
      %v266 = vld [vmem:[%s153 + $0x328] sm:$0xff]
      %v267 = vld [vmem:[%s153 + $0x330] sm:$0xff]
      %v268 = vld [vmem:[%s153 + $0x338] sm:$0xff]
      %v269 = vld [vmem:[%s153 + $0x340] sm:$0xff]
      %v270 = vld [vmem:[%s153 + $0x348] sm:$0xff]
      %v271 = vld [vmem:[%s153 + $0x350] sm:$0xff]
      %v272 = vld [vmem:[%s153 + $0x358] sm:$0xff]
      %v273 = vld [vmem:[%s153 + $0x360] sm:$0xff]
      %v274 = vld [vmem:[%s153 + $0x368] sm:$0xff]
      %v275 = vld [vmem:[%s153 + $0x370] sm:$0xff]
      %v276 = vld [vmem:[%s153 + $0x378] sm:$0xff]
      %v277 = vld [vmem:[%s158] sm:$0xf]
      %v278 = vld [vmem:[%s158 + $0x4] sm:$0xf]
      %v279 = vld [vmem:[%s158 + $0x8] sm:$0xf]
      %v280 = vld [vmem:[%s158 + $0xc] sm:$0xf]
      %v281 = vld [vmem:[%s158 + $0x10] sm:$0xf]
      %v282 = vld [vmem:[%s158 + $0x14] sm:$0xf]
      %v283 = vld [vmem:[%s158 + $0x18] sm:$0xf]
      %v284 = vld [vmem:[%s158 + $0x1c] sm:$0xf]
      %v285 = vld [vmem:[%s158 + $0x20] sm:$0xf]
      %v286 = vld [vmem:[%s158 + $0x24] sm:$0xf]
      %v287 = vld [vmem:[%s158 + $0x28] sm:$0xf]
      %v288 = vld [vmem:[%s158 + $0x2c] sm:$0xf]
      %v289 = vld [vmem:[%s158 + $0x30] sm:$0xf]
      %v290 = vld [vmem:[%s158 + $0x34] sm:$0xf]
      %v291 = vld [vmem:[%s158 + $0x38] sm:$0xf]
      %v292 = vld [vmem:[%s158 + $0x3c] sm:$0xf]
      %v293 = vld [vmem:[%s158 + $0x40] sm:$0xf]
      %v294 = vld [vmem:[%s158 + $0x44] sm:$0xf]
      %v295 = vld [vmem:[%s158 + $0x48] sm:$0xf]
      %v296 = vld [vmem:[%s158 + $0x4c] sm:$0xf]
      %v297 = vld [vmem:[%s158 + $0x50] sm:$0xf]
      %v298 = vld [vmem:[%s158 + $0x54] sm:$0xf]
      %v299 = vld [vmem:[%s158 + $0x58] sm:$0xf]
      %v300 = vld [vmem:[%s158 + $0x5c] sm:$0xf]
      %v301 = vld [vmem:[%s158 + $0x60] sm:$0xf]
      %v302 = vld [vmem:[%s158 + $0x64] sm:$0xf]
      %v303 = vld [vmem:[%s158 + $0x68] sm:$0xf]
      %v304 = vld [vmem:[%s158 + $0x6c] sm:$0xf]
      %v305 = vld [vmem:[%s158 + $0x70] sm:$0xf]
      %v306 = vld [vmem:[%s158 + $0x74] sm:$0xf]
      %v307 = vld [vmem:[%s158 + $0x78] sm:$0xf]
      %v308 = vld [vmem:[%s158 + $0x7c] sm:$0xf]
      %v421 = vunpack.c.l.b16 %v165
      %v422 = vunpack.c.h.b16 %v165
      %v423 = vunpack.c.l.b16 %v166
      %v424 = vunpack.c.h.b16 %v166
      %v425 = vunpack.c.l.b16 %v167
      %v426 = vunpack.c.h.b16 %v167
      %v427 = vunpack.c.l.b16 %v168
      %v428 = vunpack.c.h.b16 %v168
      %v429 = vunpack.c.l.b16 %v169
      %v430 = vunpack.c.h.b16 %v169
      %v431 = vunpack.c.l.b16 %v170
      %v432 = vunpack.c.h.b16 %v170
      %v433 = vunpack.c.l.b16 %v171
      %v434 = vunpack.c.h.b16 %v171
      %v435 = vunpack.c.l.b16 %v172
      %v436 = vunpack.c.h.b16 %v172
      %v437 = vunpack.c.l.b16 %v173
      %v438 = vunpack.c.h.b16 %v173
      %v439 = vunpack.c.l.b16 %v174
      %v440 = vunpack.c.h.b16 %v174
      %v441 = vunpack.c.l.b16 %v175
      %v442 = vunpack.c.h.b16 %v175
      %v443 = vunpack.c.l.b16 %v176
      %v444 = vunpack.c.h.b16 %v176
      %v445 = vunpack.c.l.b16 %v177
      %v446 = vunpack.c.h.b16 %v177
      %v447 = vunpack.c.l.b16 %v178
      %v448 = vunpack.c.h.b16 %v178
      %v449 = vunpack.c.l.b16 %v179
      %v450 = vunpack.c.h.b16 %v179
      %v451 = vunpack.c.l.b16 %v180
      %v452 = vunpack.c.h.b16 %v180
      %v453 = vunpack.c.l.b16 %v181
      %v454 = vunpack.c.h.b16 %v181
      %v455 = vunpack.c.l.b16 %v182
      %v456 = vunpack.c.h.b16 %v182
      %v457 = vunpack.c.l.b16 %v183
      %v458 = vunpack.c.h.b16 %v183
      %v459 = vunpack.c.l.b16 %v184
      %v460 = vunpack.c.h.b16 %v184
      %v461 = vunpack.c.l.b16 %v185
      %v462 = vunpack.c.h.b16 %v185
      %v463 = vunpack.c.l.b16 %v186
      %v464 = vunpack.c.h.b16 %v186
      %v465 = vunpack.c.l.b16 %v187
      %v466 = vunpack.c.h.b16 %v187
      %v467 = vunpack.c.l.b16 %v188
      %v468 = vunpack.c.h.b16 %v188
      %v469 = vunpack.c.l.b16 %v189
      %v470 = vunpack.c.h.b16 %v189
      %v471 = vunpack.c.l.b16 %v190
      %v472 = vunpack.c.h.b16 %v190
      %v473 = vunpack.c.l.b16 %v191
      %v474 = vunpack.c.h.b16 %v191
      %v475 = vunpack.c.l.b16 %v192
      %v476 = vunpack.c.h.b16 %v192
      %v477 = vunpack.c.l.b16 %v193
      %v478 = vunpack.c.h.b16 %v193
      %v479 = vunpack.c.l.b16 %v194
      %v480 = vunpack.c.h.b16 %v194
      %v481 = vunpack.c.l.b16 %v195
      %v482 = vunpack.c.h.b16 %v195
      %v483 = vunpack.c.l.b16 %v196
      %v484 = vunpack.c.h.b16 %v196
      %v485 = vunpack.c.l.b16 %v197
      %v486 = vunpack.c.h.b16 %v197
      %v487 = vunpack.c.l.b16 %v198
      %v488 = vunpack.c.h.b16 %v198
      %v489 = vunpack.c.l.b16 %v199
      %v490 = vunpack.c.h.b16 %v199
      %v491 = vunpack.c.l.b16 %v200
      %v492 = vunpack.c.h.b16 %v200
      %v493 = vunpack.c.l.b16 %v201
      %v494 = vunpack.c.h.b16 %v201
      %v495 = vunpack.c.l.b16 %v202
      %v496 = vunpack.c.h.b16 %v202
      %v497 = vunpack.c.l.b16 %v203
      %v498 = vunpack.c.h.b16 %v203
      %v499 = vunpack.c.l.b16 %v204
      %v500 = vunpack.c.h.b16 %v204
      %v501 = vunpack.c.l.b16 %v205
      %v502 = vunpack.c.h.b16 %v205
      %v503 = vunpack.c.l.b16 %v206
      %v504 = vunpack.c.h.b16 %v206
      %v505 = vunpack.c.l.b16 %v207
      %v506 = vunpack.c.h.b16 %v207
      %v507 = vunpack.c.l.b16 %v208
      %v508 = vunpack.c.h.b16 %v208
      %v509 = vunpack.c.l.b16 %v209
      %v510 = vunpack.c.h.b16 %v209
      %v511 = vunpack.c.l.b16 %v210
      %v512 = vunpack.c.h.b16 %v210
      %v513 = vunpack.c.l.b16 %v211
      %v514 = vunpack.c.h.b16 %v211
      %v515 = vunpack.c.l.b16 %v212
      %v516 = vunpack.c.h.b16 %v212
      %v517 = vunpack.c.l.b16 %v213
      %v518 = vunpack.c.h.b16 %v213
      %v519 = vunpack.c.l.b16 %v214
      %v520 = vunpack.c.h.b16 %v214
      %v521 = vunpack.c.l.b16 %v215
      %v522 = vunpack.c.h.b16 %v215
      %v523 = vunpack.c.l.b16 %v216
      %v524 = vunpack.c.h.b16 %v216
      %v525 = vunpack.c.l.b16 %v217
      %v526 = vunpack.c.h.b16 %v217
      %v527 = vunpack.c.l.b16 %v218
      %v528 = vunpack.c.h.b16 %v218
      %v529 = vunpack.c.l.b16 %v219
      %v530 = vunpack.c.h.b16 %v219
      %v531 = vunpack.c.l.b16 %v220
      %v532 = vunpack.c.h.b16 %v220
      %v533 = vunpack.c.l.b16 %v221
      %v534 = vunpack.c.h.b16 %v221
      %v535 = vunpack.c.l.b16 %v222
      %v536 = vunpack.c.h.b16 %v222
      %v537 = vunpack.c.l.b16 %v223
      %v538 = vunpack.c.h.b16 %v223
      %v539 = vunpack.c.l.b16 %v224
      %v540 = vunpack.c.h.b16 %v224
      %v541 = vunpack.c.l.b16 %v225
      %v542 = vunpack.c.h.b16 %v225
      %v543 = vunpack.c.l.b16 %v226
      %v544 = vunpack.c.h.b16 %v226
      %v545 = vunpack.c.l.b16 %v227
      %v546 = vunpack.c.h.b16 %v227
      %v547 = vunpack.c.l.b16 %v228
      %v548 = vunpack.c.h.b16 %v228
      %v549 = vunpack.c.l.b16 %v229
      %v550 = vunpack.c.h.b16 %v229
      %v551 = vunpack.c.l.b16 %v230
      %v552 = vunpack.c.h.b16 %v230
      %v553 = vunpack.c.l.b16 %v231
      %v554 = vunpack.c.h.b16 %v231
      %v555 = vunpack.c.l.b16 %v232
      %v556 = vunpack.c.h.b16 %v232
      %v557 = vunpack.c.l.b16 %v233
      %v558 = vunpack.c.h.b16 %v233
      %v559 = vunpack.c.l.b16 %v234
      %v560 = vunpack.c.h.b16 %v234
      %v561 = vunpack.c.l.b16 %v235
      %v562 = vunpack.c.h.b16 %v235
      %v563 = vunpack.c.l.b16 %v236
      %v564 = vunpack.c.h.b16 %v236
      %v565 = vunpack.c.l.b16 %v237
      %v566 = vunpack.c.h.b16 %v237
      %v567 = vunpack.c.l.b16 %v238
      %v568 = vunpack.c.h.b16 %v238
      %v569 = vunpack.c.l.b16 %v239
      %v570 = vunpack.c.h.b16 %v239
      %v571 = vunpack.c.l.b16 %v240
      %v572 = vunpack.c.h.b16 %v240
      %v573 = vunpack.c.l.b16 %v241
      %v574 = vunpack.c.h.b16 %v241
      %v575 = vunpack.c.l.b16 %v242
      %v576 = vunpack.c.h.b16 %v242
      %v577 = vunpack.c.l.b16 %v243
      %v578 = vunpack.c.h.b16 %v243
      %v579 = vunpack.c.l.b16 %v244
      %v580 = vunpack.c.h.b16 %v244
      %v581 = vunpack.c.l.b16 %v245
      %v582 = vunpack.c.h.b16 %v245
      %v583 = vunpack.c.l.b16 %v246
      %v584 = vunpack.c.h.b16 %v246
      %v585 = vunpack.c.l.b16 %v247
      %v586 = vunpack.c.h.b16 %v247
      %v587 = vunpack.c.l.b16 %v248
      %v588 = vunpack.c.h.b16 %v248
      %v589 = vunpack.c.l.b16 %v249
      %v590 = vunpack.c.h.b16 %v249
      %v591 = vunpack.c.l.b16 %v250
      %v592 = vunpack.c.h.b16 %v250
      %v593 = vunpack.c.l.b16 %v251
      %v594 = vunpack.c.h.b16 %v251
      %v595 = vunpack.c.l.b16 %v252
      %v596 = vunpack.c.h.b16 %v252
      %v597 = vunpack.c.l.b16 %v253
      %v598 = vunpack.c.h.b16 %v253
      %v599 = vunpack.c.l.b16 %v254
      %v600 = vunpack.c.h.b16 %v254
      %v601 = vunpack.c.l.b16 %v255
      %v602 = vunpack.c.h.b16 %v255
      %v603 = vunpack.c.l.b16 %v256
      %v604 = vunpack.c.h.b16 %v256
      %v605 = vunpack.c.l.b16 %v257
      %v606 = vunpack.c.h.b16 %v257
      %v607 = vunpack.c.l.b16 %v258
      %v608 = vunpack.c.h.b16 %v258
      %v609 = vunpack.c.l.b16 %v259
      %v610 = vunpack.c.h.b16 %v259
      %v611 = vunpack.c.l.b16 %v260
      %v612 = vunpack.c.h.b16 %v260
      %v613 = vunpack.c.l.b16 %v261
      %v614 = vunpack.c.h.b16 %v261
      %v615 = vunpack.c.l.b16 %v262
      %v616 = vunpack.c.h.b16 %v262
      %v617 = vunpack.c.l.b16 %v263
      %v618 = vunpack.c.h.b16 %v263
      %v619 = vunpack.c.l.b16 %v264
      %v620 = vunpack.c.h.b16 %v264
      %v621 = vunpack.c.l.b16 %v265
      %v622 = vunpack.c.h.b16 %v265
      %v623 = vunpack.c.l.b16 %v266
      %v624 = vunpack.c.h.b16 %v266
      %v625 = vunpack.c.l.b16 %v267
      %v626 = vunpack.c.h.b16 %v267
      %v627 = vunpack.c.l.b16 %v268
      %v628 = vunpack.c.h.b16 %v268
      %v629 = vunpack.c.l.b16 %v269
      %v630 = vunpack.c.h.b16 %v269
      %v631 = vunpack.c.l.b16 %v270
      %v632 = vunpack.c.h.b16 %v270
      %v633 = vunpack.c.l.b16 %v271
      %v634 = vunpack.c.h.b16 %v271
      %v635 = vunpack.c.l.b16 %v272
      %v636 = vunpack.c.h.b16 %v272
      %v637 = vunpack.c.l.b16 %v273
      %v638 = vunpack.c.h.b16 %v273
      %v639 = vunpack.c.l.b16 %v274
      %v640 = vunpack.c.h.b16 %v274
      %v641 = vunpack.c.l.b16 %v275
      %v642 = vunpack.c.h.b16 %v275
      %v643 = vunpack.c.l.b16 %v276
      %v644 = vunpack.c.h.b16 %v276
      %v645 = vpack.c.b16 %v423, %v421
      %v646 = vpack.c.b16 %v424, %v422
      %v647 = vpack.c.b16 %v427, %v425
      %v648 = vpack.c.b16 %v428, %v426
      %v649 = vpack.c.b16 %v431, %v429
      %v650 = vpack.c.b16 %v432, %v430
      %v651 = vpack.c.b16 %v435, %v433
      %v652 = vpack.c.b16 %v436, %v434
      %v653 = vpack.c.b16 %v439, %v437
      %v654 = vpack.c.b16 %v440, %v438
      %v655 = vpack.c.b16 %v443, %v441
      %v656 = vpack.c.b16 %v444, %v442
      %v657 = vpack.c.b16 %v447, %v445
      %v658 = vpack.c.b16 %v448, %v446
      %v659 = vpack.c.b16 %v451, %v449
      %v660 = vpack.c.b16 %v452, %v450
      %v661 = vpack.c.b16 %v455, %v453
      %v662 = vpack.c.b16 %v456, %v454
      %v663 = vpack.c.b16 %v459, %v457
      %v664 = vpack.c.b16 %v460, %v458
      %v665 = vpack.c.b16 %v463, %v461
      %v666 = vpack.c.b16 %v464, %v462
      %v667 = vpack.c.b16 %v467, %v465
      %v668 = vpack.c.b16 %v468, %v466
      %v669 = vpack.c.b16 %v471, %v469
      %v670 = vpack.c.b16 %v472, %v470
      %v671 = vpack.c.b16 %v475, %v473
      %v672 = vpack.c.b16 %v476, %v474
      %v673 = vpack.c.b16 %v479, %v477
      %v674 = vpack.c.b16 %v480, %v478
      %v675 = vpack.c.b16 %v483, %v481
      %v676 = vpack.c.b16 %v484, %v482
      %v677 = vpack.c.b16 %v487, %v485
      %v678 = vpack.c.b16 %v488, %v486
      %v679 = vpack.c.b16 %v491, %v489
      %v680 = vpack.c.b16 %v492, %v490
      %v681 = vpack.c.b16 %v495, %v493
      %v682 = vpack.c.b16 %v496, %v494
      %v683 = vpack.c.b16 %v499, %v497
      %v684 = vpack.c.b16 %v500, %v498
      %v685 = vpack.c.b16 %v503, %v501
      %v686 = vpack.c.b16 %v504, %v502
      %v687 = vpack.c.b16 %v507, %v505
      %v688 = vpack.c.b16 %v508, %v506
      %v689 = vpack.c.b16 %v511, %v509
      %v690 = vpack.c.b16 %v512, %v510
      %v691 = vpack.c.b16 %v515, %v513
      %v692 = vpack.c.b16 %v516, %v514
      %v693 = vpack.c.b16 %v519, %v517
      %v694 = vpack.c.b16 %v520, %v518
      %v695 = vpack.c.b16 %v523, %v521
      %v696 = vpack.c.b16 %v524, %v522
      %v697 = vpack.c.b16 %v527, %v525
      %v698 = vpack.c.b16 %v528, %v526
      %v699 = vpack.c.b16 %v531, %v529
      %v700 = vpack.c.b16 %v532, %v530
      %v701 = vpack.c.b16 %v535, %v533
      %v702 = vpack.c.b16 %v536, %v534
      %v703 = vpack.c.b16 %v539, %v537
      %v704 = vpack.c.b16 %v540, %v538
      %v705 = vpack.c.b16 %v543, %v541
      %v706 = vpack.c.b16 %v544, %v542
      %v707 = vpack.c.b16 %v547, %v545
      %v708 = vpack.c.b16 %v548, %v546
      %v709 = vpack.c.b16 %v551, %v549
      %v710 = vpack.c.b16 %v552, %v550
      %v711 = vpack.c.b16 %v555, %v553
      %v712 = vpack.c.b16 %v556, %v554
      %v713 = vpack.c.b16 %v559, %v557
      %v714 = vpack.c.b16 %v560, %v558
      %v715 = vpack.c.b16 %v563, %v561
      %v716 = vpack.c.b16 %v564, %v562
      %v717 = vpack.c.b16 %v567, %v565
      %v718 = vpack.c.b16 %v568, %v566
      %v719 = vpack.c.b16 %v571, %v569
      %v720 = vpack.c.b16 %v572, %v570
      %v721 = vpack.c.b16 %v575, %v573
      %v722 = vpack.c.b16 %v576, %v574
      %v723 = vpack.c.b16 %v579, %v577
      %v724 = vpack.c.b16 %v580, %v578
      %v725 = vpack.c.b16 %v583, %v581
      %v726 = vpack.c.b16 %v584, %v582
      %v727 = vpack.c.b16 %v587, %v585
      %v728 = vpack.c.b16 %v588, %v586
      %v729 = vpack.c.b16 %v591, %v589
      %v730 = vpack.c.b16 %v592, %v590
      %v731 = vpack.c.b16 %v595, %v593
      %v732 = vpack.c.b16 %v596, %v594
      %v733 = vpack.c.b16 %v599, %v597
      %v734 = vpack.c.b16 %v600, %v598
      %v735 = vpack.c.b16 %v603, %v601
      %v736 = vpack.c.b16 %v604, %v602
      %v737 = vpack.c.b16 %v607, %v605
      %v738 = vpack.c.b16 %v608, %v606
      %v739 = vpack.c.b16 %v611, %v609
      %v740 = vpack.c.b16 %v612, %v610
      %v741 = vpack.c.b16 %v615, %v613
      %v742 = vpack.c.b16 %v616, %v614
      %v743 = vpack.c.b16 %v619, %v617
      %v744 = vpack.c.b16 %v620, %v618
      %v745 = vpack.c.b16 %v623, %v621
      %v746 = vpack.c.b16 %v624, %v622
      %v747 = vpack.c.b16 %v627, %v625
      %v748 = vpack.c.b16 %v628, %v626
      %v749 = vpack.c.b16 %v631, %v629
      %v750 = vpack.c.b16 %v632, %v630
      %v751 = vpack.c.b16 %v635, %v633
      %v752 = vpack.c.b16 %v636, %v634
      %v753 = vpack.c.b16 %v639, %v637
      %v754 = vpack.c.b16 %v640, %v638
      %v755 = vpack.c.b16 %v643, %v641
      %v756 = vpack.c.b16 %v644, %v642
      %v901 = vunpack.c.l.b16 %v277
      %v902 = vunpack.c.l.b16 %v278
      %v903 = vunpack.c.l.b16 %v279
      %v904 = vunpack.c.l.b16 %v280
      %v905 = vunpack.c.l.b16 %v281
      %v906 = vunpack.c.l.b16 %v282
      %v907 = vunpack.c.l.b16 %v283
      %v908 = vunpack.c.l.b16 %v284
      %v909 = vunpack.c.l.b16 %v285
      %v910 = vunpack.c.l.b16 %v286
      %v911 = vunpack.c.l.b16 %v287
      %v912 = vunpack.c.l.b16 %v288
      %v913 = vunpack.c.l.b16 %v289
      %v914 = vunpack.c.l.b16 %v290
      %v915 = vunpack.c.l.b16 %v291
      %v916 = vunpack.c.l.b16 %v292
      %v917 = vunpack.c.l.b16 %v293
      %v918 = vunpack.c.l.b16 %v294
      %v919 = vunpack.c.l.b16 %v295
      %v920 = vunpack.c.l.b16 %v296
      %v921 = vunpack.c.l.b16 %v297
      %v922 = vunpack.c.l.b16 %v298
      %v923 = vunpack.c.l.b16 %v299
      %v924 = vunpack.c.l.b16 %v300
      %v925 = vunpack.c.l.b16 %v301
      %v926 = vunpack.c.l.b16 %v302
      %v927 = vunpack.c.l.b16 %v303
      %v928 = vunpack.c.l.b16 %v304
      %v929 = vunpack.c.l.b16 %v305
      %v930 = vunpack.c.l.b16 %v306
      %v931 = vunpack.c.l.b16 %v307
      %v932 = vunpack.c.l.b16 %v308
      %v933 = vpack.c.b16 %v902, %v901
      %v934 = vpack.c.b16 %v904, %v903
      %v935 = vpack.c.b16 %v906, %v905
      %v936 = vpack.c.b16 %v908, %v907
      %v937 = vpack.c.b16 %v910, %v909
      %v938 = vpack.c.b16 %v912, %v911
      %v939 = vpack.c.b16 %v914, %v913
      %v940 = vpack.c.b16 %v916, %v915
      %v941 = vpack.c.b16 %v918, %v917
      %v942 = vpack.c.b16 %v920, %v919
      %v943 = vpack.c.b16 %v922, %v921
      %v944 = vpack.c.b16 %v924, %v923
      %v945 = vpack.c.b16 %v926, %v925
      %v946 = vpack.c.b16 %v928, %v927
      %v947 = vpack.c.b16 %v930, %v929
      %v948 = vpack.c.b16 %v932, %v931
      %965 = vmatprep.subr.bf16.mxu0 0
      %966 = vmatpush1.bf16.msra.mxu0 %v933
      %967 = vmatprep.subr.bf16.mxu0 0
      %968 = vmatpush1.bf16.msra.mxu0 %v934
      %969 = vmatprep.subr.bf16.mxu0 0
      %970 = vmatpush1.bf16.msra.mxu0 %v935
      %971 = vmatprep.subr.bf16.mxu0 0
      %972 = vmatpush1.bf16.msra.mxu0 %v936
      %973 = vmatprep.subr.bf16.mxu0 0
      %974 = vmatpush1.bf16.msra.mxu0 %v937
      %975 = vmatprep.subr.bf16.mxu0 0
      %976 = vmatpush1.bf16.msra.mxu0 %v938
      %977 = vmatprep.subr.bf16.mxu0 0
      %978 = vmatpush1.bf16.msra.mxu0 %v939
      %979 = vmatprep.subr.bf16.mxu0 0
      %980 = vmatpush1.bf16.msra.mxu0 %v940
      %981 = vmatprep.subr.bf16.mxu0 0
      %982 = vmatpush1.bf16.msra.mxu0 %v941
      %983 = vmatprep.subr.bf16.mxu0 0
      %984 = vmatpush1.bf16.msra.mxu0 %v942
      %985 = vmatprep.subr.bf16.mxu0 0
      %986 = vmatpush1.bf16.msra.mxu0 %v943
      %987 = vmatprep.subr.bf16.mxu0 0
      %988 = vmatpush1.bf16.msra.mxu0 %v944
      %989 = vmatprep.subr.bf16.mxu0 0
      %990 = vmatpush1.bf16.msra.mxu0 %v945
      %991 = vmatprep.subr.bf16.mxu0 0
      %992 = vmatpush1.bf16.msra.mxu0 %v946
      %993 = vmatprep.subr.bf16.mxu0 0
      %994 = vmatpush1.bf16.msra.mxu0 %v947
      %995 = vmatprep.subr.bf16.mxu0 0
      %996 = vmatpush1.bf16.msra.mxu0 %v948
      %997 = vmatprep.mubr.bf16.mxu0 %v646
      %998 = vmatmul.mubr.bf16.gmra.mrb[0].mxu0 %v645
      %v999 = vpop.f32.mrb[0].mxu0
      %v1000 = vadd.f32 0.0, %v999
      %v1001 = vpop.f32.mrb[0].mxu0
      %v1002 = vpop.f32.mrb[0].mxu0
      %v1003 = vadd.f32 0.0, %v1002
      %v1004 = vpop.f32.mrb[0].mxu0
      %1005 = vmatprep.mubr.bf16.mxu0 %v648
      %1006 = vmatmul.mubr.bf16.gmra.mrb[0].mxu0 %v647
      %v1007 = vpop.f32.mrb[0].mxu0
      %v1008 = vadd.f32 0.0, %v1007
      %v1009 = vpop.f32.mrb[0].mxu0
      %v1010 = vpop.f32.mrb[0].mxu0
      %v1011 = vadd.f32 0.0, %v1010
      %v1012 = vpop.f32.mrb[0].mxu0
      %1013 = vmatprep.mubr.bf16.mxu0 %v650
      %1014 = vmatmul.mubr.bf16.gmra.mrb[0].mxu0 %v649
      %v1015 = vpop.f32.mrb[0].mxu0
      %v1016 = vadd.f32 0.0, %v1015
      %v1017 = vpop.f32.mrb[0].mxu0
      %v1018 = vpop.f32.mrb[0].mxu0
      %v1019 = vadd.f32 0.0, %v1018
      %v1020 = vpop.f32.mrb[0].mxu0
      %1021 = vmatprep.mubr.bf16.mxu0 %v652
      %1022 = vmatmul.mubr.bf16.gmra.mrb[0].mxu0 %v651
      %v1023 = vpop.f32.mrb[0].mxu0
      %v1024 = vadd.f32 0.0, %v1023
      %v1025 = vpop.f32.mrb[0].mxu0
      %v1026 = vpop.f32.mrb[0].mxu0
      %v1027 = vadd.f32 0.0, %v1026
      %v1028 = vpop.f32.mrb[0].mxu0
      %1029 = vmatprep.mubr.bf16.mxu0 %v654
      %1030 = vmatmul.mubr.bf16.gmra.mrb[0].mxu0 %v653
      %v1031 = vpop.f32.mrb[0].mxu0
      %v1032 = vadd.f32 0.0, %v1031
      %v1033 = vpop.f32.mrb[0].mxu0
      %v1034 = vpop.f32.mrb[0].mxu0
      %v1035 = vadd.f32 0.0, %v1034
      %v1036 = vpop.f32.mrb[0].mxu0
      %1037 = vmatprep.mubr.bf16.mxu0 %v656
      %1038 = vmatmul.mubr.bf16.gmra.mrb[0].mxu0 %v655
      %v1039 = vpop.f32.mrb[0].mxu0
      %v1040 = vadd.f32 0.0, %v1039
      %v1041 = vpop.f32.mrb[0].mxu0
      %v1042 = vpop.f32.mrb[0].mxu0
      %v1043 = vadd.f32 0.0, %v1042
      %v1044 = vpop.f32.mrb[0].mxu0
      %1045 = vmatprep.mubr.bf16.mxu0 %v658
      %1046 = vmatmul.mubr.bf16.gmra.mrb[0].mxu0 %v657
      %v1047 = vpop.f32.mrb[0].mxu0
      %v1048 = vadd.f32 0.0, %v1047
      %v1049 = vpop.f32.mrb[0].mxu0
      %v1050 = vpop.f32.mrb[0].mxu0
      %v1051 = vadd.f32 0.0, %v1050
      %v1052 = vpop.f32.mrb[0].mxu0
      %1053 = vmatprep.mubr.bf16.mxu0 %v660
      %1054 = vmatmul.mubr.bf16.gmra.mrb[0].mxu0 %v659
      %v1055 = vpop.f32.mrb[0].mxu0
      %v1056 = vadd.f32 0.0, %v1055
      %v1057 = vpop.f32.mrb[0].mxu0
      %v1058 = vpop.f32.mrb[0].mxu0
      %v1059 = vadd.f32 0.0, %v1058
      %v1060 = vpop.f32.mrb[0].mxu0
      %1061 = vmatprep.mubr.bf16.mxu0 %v662
      %1062 = vmatmul.mubr.bf16.gmra.mrb[0].mxu0 %v661
      %v1063 = vpop.f32.mrb[0].mxu0
      %v1064 = vadd.f32 0.0, %v1063
      %v1065 = vpop.f32.mrb[0].mxu0
      %v1066 = vpop.f32.mrb[0].mxu0
      %v1067 = vadd.f32 0.0, %v1066
      %v1068 = vpop.f32.mrb[0].mxu0
      %1069 = vmatprep.mubr.bf16.mxu0 %v664
      %1070 = vmatmul.mubr.bf16.gmra.mrb[0].mxu0 %v663
      %v1071 = vpop.f32.mrb[0].mxu0
      %v1072 = vadd.f32 0.0, %v1071
      %v1073 = vpop.f32.mrb[0].mxu0
      %v1074 = vpop.f32.mrb[0].mxu0
      %v1075 = vadd.f32 0.0, %v1074
      %v1076 = vpop.f32.mrb[0].mxu0
      %1077 = vmatprep.mubr.bf16.mxu0 %v666
      %1078 = vmatmul.mubr.bf16.gmra.mrb[0].mxu0 %v665
      %v1079 = vpop.f32.mrb[0].mxu0
      %v1080 = vadd.f32 0.0, %v1079
      %v1081 = vpop.f32.mrb[0].mxu0
      %v1082 = vpop.f32.mrb[0].mxu0
      %v1083 = vadd.f32 0.0, %v1082
      %v1084 = vpop.f32.mrb[0].mxu0
      %1085 = vmatprep.mubr.bf16.mxu0 %v668
      %1086 = vmatmul.mubr.bf16.gmra.mrb[0].mxu0 %v667
      %v1087 = vpop.f32.mrb[0].mxu0
      %v1088 = vadd.f32 0.0, %v1087
      %v1089 = vpop.f32.mrb[0].mxu0
      %v1090 = vpop.f32.mrb[0].mxu0
      %v1091 = vadd.f32 0.0, %v1090
      %v1092 = vpop.f32.mrb[0].mxu0
      %1093 = vmatprep.mubr.bf16.mxu0 %v670
      %1094 = vmatmul.mubr.bf16.gmra.mrb[0].mxu0 %v669
      %v1095 = vpop.f32.mrb[0].mxu0
      %v1096 = vadd.f32 0.0, %v1095
      %v1097 = vpop.f32.mrb[0].mxu0
      %v1098 = vpop.f32.mrb[0].mxu0
      %v1099 = vadd.f32 0.0, %v1098
      %v1100 = vpop.f32.mrb[0].mxu0
      %1101 = vmatprep.mubr.bf16.mxu0 %v672
      %1102 = vmatmul.mubr.bf16.gmra.mrb[0].mxu0 %v671
      %v1103 = vpop.f32.mrb[0].mxu0
      %v1104 = vadd.f32 0.0, %v1103
      %v1105 = vpop.f32.mrb[0].mxu0
      %v1106 = vpop.f32.mrb[0].mxu0
      %v1107 = vadd.f32 0.0, %v1106
      %v1108 = vpop.f32.mrb[0].mxu0
      %1109 = vmatprep.mubr.bf16.mxu0 %v674
      %1110 = vmatmul.mubr.bf16.gmra.mrb[0].mxu0 %v673
      %v1111 = vpop.f32.mrb[0].mxu0
      %v1112 = vadd.f32 0.0, %v1111
      %v1113 = vpop.f32.mrb[0].mxu0
      %v1114 = vpop.f32.mrb[0].mxu0
      %v1115 = vadd.f32 0.0, %v1114
      %v1116 = vpop.f32.mrb[0].mxu0
      %1117 = vmatprep.mubr.bf16.mxu0 %v676
      %1118 = vmatmul.mubr.bf16.gmra.mrb[0].mxu0 %v675
      %v1119 = vpop.f32.mrb[0].mxu0
      %v1120 = vadd.f32 0.0, %v1119
      %v1121 = vpop.f32.mrb[0].mxu0
      %v1122 = vpop.f32.mrb[0].mxu0
      %v1123 = vadd.f32 0.0, %v1122
      %v1124 = vpop.f32.mrb[0].mxu0
      %1125 = vmatprep.mubr.bf16.mxu0 %v678
      %1126 = vmatmul.mubr.bf16.gmra.mrb[0].mxu0 %v677
      %v1127 = vpop.f32.mrb[0].mxu0
      %v1128 = vadd.f32 0.0, %v1127
      %v1129 = vpop.f32.mrb[0].mxu0
      %v1130 = vpop.f32.mrb[0].mxu0
      %v1131 = vadd.f32 0.0, %v1130
      %v1132 = vpop.f32.mrb[0].mxu0
      %1133 = vmatprep.mubr.bf16.mxu0 %v680
      %1134 = vmatmul.mubr.bf16.gmra.mrb[0].mxu0 %v679
      %v1135 = vpop.f32.mrb[0].mxu0
      %v1136 = vadd.f32 0.0, %v1135
      %v1137 = vpop.f32.mrb[0].mxu0
      %v1138 = vpop.f32.mrb[0].mxu0
      %v1139 = vadd.f32 0.0, %v1138
      %v1140 = vpop.f32.mrb[0].mxu0
      %1141 = vmatprep.mubr.bf16.mxu0 %v682
      %1142 = vmatmul.mubr.bf16.gmra.mrb[0].mxu0 %v681
      %v1143 = vpop.f32.mrb[0].mxu0
      %v1144 = vadd.f32 0.0, %v1143
      %v1145 = vpop.f32.mrb[0].mxu0
      %v1146 = vpop.f32.mrb[0].mxu0
      %v1147 = vadd.f32 0.0, %v1146
      %v1148 = vpop.f32.mrb[0].mxu0
      %1149 = vmatprep.mubr.bf16.mxu0 %v684
      %1150 = vmatmul.mubr.bf16.gmra.mrb[0].mxu0 %v683
      %v1151 = vpop.f32.mrb[0].mxu0
      %v1152 = vadd.f32 0.0, %v1151
      %v1153 = vpop.f32.mrb[0].mxu0
      %v1154 = vpop.f32.mrb[0].mxu0
      %v1155 = vadd.f32 0.0, %v1154
      %v1156 = vpop.f32.mrb[0].mxu0
      %1157 = vmatprep.mubr.bf16.mxu0 %v686
      %1158 = vmatmul.mubr.bf16.gmra.mrb[0].mxu0 %v685
      %v1159 = vpop.f32.mrb[0].mxu0
      %v1160 = vadd.f32 0.0, %v1159
      %v1161 = vpop.f32.mrb[0].mxu0
      %v1162 = vpop.f32.mrb[0].mxu0
      %v1163 = vadd.f32 0.0, %v1162
      %v1164 = vpop.f32.mrb[0].mxu0
      %1165 = vmatprep.mubr.bf16.mxu0 %v688
      %1166 = vmatmul.mubr.bf16.gmra.mrb[0].mxu0 %v687
      %v1167 = vpop.f32.mrb[0].mxu0
      %v1168 = vadd.f32 0.0, %v1167
      %v1169 = vpop.f32.mrb[0].mxu0
      %v1170 = vpop.f32.mrb[0].mxu0
      %v1171 = vadd.f32 0.0, %v1170
      %v1172 = vpop.f32.mrb[0].mxu0
      %1173 = vmatprep.mubr.bf16.mxu0 %v690
      %1174 = vmatmul.mubr.bf16.gmra.mrb[0].mxu0 %v689
      %v1175 = vpop.f32.mrb[0].mxu0
      %v1176 = vadd.f32 0.0, %v1175
      %v1177 = vpop.f32.mrb[0].mxu0
      %v1178 = vpop.f32.mrb[0].mxu0
      %v1179 = vadd.f32 0.0, %v1178
      %v1180 = vpop.f32.mrb[0].mxu0
      %1181 = vmatprep.mubr.bf16.mxu0 %v692
      %1182 = vmatmul.mubr.bf16.gmra.mrb[0].mxu0 %v691
      %v1183 = vpop.f32.mrb[0].mxu0
      %v1184 = vadd.f32 0.0, %v1183
      %v1185 = vpop.f32.mrb[0].mxu0
      %v1186 = vpop.f32.mrb[0].mxu0
      %v1187 = vadd.f32 0.0, %v1186
      %v1188 = vpop.f32.mrb[0].mxu0
      %1189 = vmatprep.mubr.bf16.mxu0 %v694
      %1190 = vmatmul.mubr.bf16.gmra.mrb[0].mxu0 %v693
      %v1191 = vpop.f32.mrb[0].mxu0
      %v1192 = vadd.f32 0.0, %v1191
      %v1193 = vpop.f32.mrb[0].mxu0
      %v1194 = vpop.f32.mrb[0].mxu0
      %v1195 = vadd.f32 0.0, %v1194
      %v1196 = vpop.f32.mrb[0].mxu0
      %1197 = vmatprep.mubr.bf16.mxu0 %v696
      %1198 = vmatmul.mubr.bf16.gmra.mrb[0].mxu0 %v695
      %v1199 = vpop.f32.mrb[0].mxu0
      %v1200 = vadd.f32 0.0, %v1199
      %v1201 = vpop.f32.mrb[0].mxu0
      %v1202 = vpop.f32.mrb[0].mxu0
      %v1203 = vadd.f32 0.0, %v1202
      %v1204 = vpop.f32.mrb[0].mxu0
      %1205 = vmatprep.mubr.bf16.mxu0 %v698
      %1206 = vmatmul.mubr.bf16.gmra.mrb[0].mxu0 %v697
      %v1207 = vpop.f32.mrb[0].mxu0
      %v1208 = vadd.f32 0.0, %v1207
      %v1209 = vpop.f32.mrb[0].mxu0
      %v1210 = vpop.f32.mrb[0].mxu0
      %v1211 = vadd.f32 0.0, %v1210
      %v1212 = vpop.f32.mrb[0].mxu0
      %1213 = vmatprep.mubr.bf16.mxu0 %v700
      %1214 = vmatmul.mubr.bf16.gmra.mrb[0].mxu0 %v699
      %v1215 = vpop.f32.mrb[0].mxu0
      %v1216 = vadd.f32 0.0, %v1215
      %v1217 = vpop.f32.mrb[0].mxu0
      %v1218 = vpop.f32.mrb[0].mxu0
      %v1219 = vadd.f32 0.0, %v1218
      %v1220 = vpop.f32.mrb[0].mxu0
      %1221 = vmatprep.mubr.bf16.mxu0 %v702
      %1222 = vmatmul.mubr.bf16.gmra.mrb[0].mxu0 %v701
      %v1223 = vpop.f32.mrb[0].mxu0
      %v1224 = vadd.f32 0.0, %v1223
      %v1225 = vpop.f32.mrb[0].mxu0
      %v1226 = vpop.f32.mrb[0].mxu0
      %v1227 = vadd.f32 0.0, %v1226
      %v1228 = vpop.f32.mrb[0].mxu0
      %1229 = vmatprep.mubr.bf16.mxu0 %v704
      %1230 = vmatmul.mubr.bf16.gmra.mrb[0].mxu0 %v703
      %v1231 = vpop.f32.mrb[0].mxu0
      %v1232 = vadd.f32 0.0, %v1231
      %v1233 = vpop.f32.mrb[0].mxu0
      %v1234 = vpop.f32.mrb[0].mxu0
      %v1235 = vadd.f32 0.0, %v1234
      %v1236 = vpop.f32.mrb[0].mxu0
      %1237 = vmatprep.mubr.bf16.mxu0 %v706
      %1238 = vmatmul.mubr.bf16.gmra.mrb[0].mxu0 %v705
      %v1239 = vpop.f32.mrb[0].mxu0
      %v1240 = vadd.f32 0.0, %v1239
      %v1241 = vpop.f32.mrb[0].mxu0
      %v1242 = vpop.f32.mrb[0].mxu0
      %v1243 = vadd.f32 0.0, %v1242
      %v1244 = vpop.f32.mrb[0].mxu0
      %1245 = vmatprep.mubr.bf16.mxu0 %v708
      %1246 = vmatmul.mubr.bf16.gmra.mrb[0].mxu0 %v707
      %v1247 = vpop.f32.mrb[0].mxu0
      %v1248 = vadd.f32 0.0, %v1247
      %v1249 = vpop.f32.mrb[0].mxu0
      %v1250 = vpop.f32.mrb[0].mxu0
      %v1251 = vadd.f32 0.0, %v1250
      %v1252 = vpop.f32.mrb[0].mxu0
      %1253 = vmatprep.mubr.bf16.mxu0 %v710
      %1254 = vmatmul.mubr.bf16.gmra.mrb[0].mxu0 %v709
      %v1255 = vpop.f32.mrb[0].mxu0
      %v1256 = vadd.f32 0.0, %v1255
      %v1257 = vpop.f32.mrb[0].mxu0
      %v1258 = vpop.f32.mrb[0].mxu0
      %v1259 = vadd.f32 0.0, %v1258
      %v1260 = vpop.f32.mrb[0].mxu0
      %1261 = vmatprep.mubr.bf16.mxu0 %v712
      %1262 = vmatmul.mubr.bf16.gmra.mrb[0].mxu0 %v711
      %v1263 = vpop.f32.mrb[0].mxu0
      %v1264 = vadd.f32 0.0, %v1263
      %v1265 = vpop.f32.mrb[0].mxu0
      %v1266 = vpop.f32.mrb[0].mxu0
      %v1267 = vadd.f32 0.0, %v1266
      %v1268 = vpop.f32.mrb[0].mxu0
      %1269 = vmatprep.mubr.bf16.mxu0 %v714
      %1270 = vmatmul.mubr.bf16.gmra.mrb[0].mxu0 %v713
      %v1271 = vpop.f32.mrb[0].mxu0
      %v1272 = vadd.f32 0.0, %v1271
      %v1273 = vpop.f32.mrb[0].mxu0
      %v1274 = vpop.f32.mrb[0].mxu0
      %v1275 = vadd.f32 0.0, %v1274
      %v1276 = vpop.f32.mrb[0].mxu0
      %1277 = vmatprep.mubr.bf16.mxu0 %v716
      %1278 = vmatmul.mubr.bf16.gmra.mrb[0].mxu0 %v715
      %v1279 = vpop.f32.mrb[0].mxu0
      %v1280 = vadd.f32 0.0, %v1279
      %v1281 = vpop.f32.mrb[0].mxu0
      %v1282 = vpop.f32.mrb[0].mxu0
      %v1283 = vadd.f32 0.0, %v1282
      %v1284 = vpop.f32.mrb[0].mxu0
      %1285 = vmatprep.mubr.bf16.mxu0 %v718
      %1286 = vmatmul.mubr.bf16.gmra.mrb[0].mxu0 %v717
      %v1287 = vpop.f32.mrb[0].mxu0
      %v1288 = vadd.f32 0.0, %v1287
      %v1289 = vpop.f32.mrb[0].mxu0
      %v1290 = vpop.f32.mrb[0].mxu0
      %v1291 = vadd.f32 0.0, %v1290
      %v1292 = vpop.f32.mrb[0].mxu0
      %1293 = vmatprep.mubr.bf16.mxu0 %v720
      %1294 = vmatmul.mubr.bf16.gmra.mrb[0].mxu0 %v719
      %v1295 = vpop.f32.mrb[0].mxu0
      %v1296 = vadd.f32 0.0, %v1295
      %v1297 = vpop.f32.mrb[0].mxu0
      %v1298 = vpop.f32.mrb[0].mxu0
      %v1299 = vadd.f32 0.0, %v1298
      %v1300 = vpop.f32.mrb[0].mxu0
      %1301 = vmatprep.mubr.bf16.mxu0 %v722
      %1302 = vmatmul.mubr.bf16.gmra.mrb[0].mxu0 %v721
      %v1303 = vpop.f32.mrb[0].mxu0
      %v1304 = vadd.f32 0.0, %v1303
      %v1305 = vpop.f32.mrb[0].mxu0
      %v1306 = vpop.f32.mrb[0].mxu0
      %v1307 = vadd.f32 0.0, %v1306
      %v1308 = vpop.f32.mrb[0].mxu0
      %1309 = vmatprep.mubr.bf16.mxu0 %v724
      %1310 = vmatmul.mubr.bf16.gmra.mrb[0].mxu0 %v723
      %v1311 = vpop.f32.mrb[0].mxu0
      %v1312 = vadd.f32 0.0, %v1311
      %v1313 = vpop.f32.mrb[0].mxu0
      %v1314 = vpop.f32.mrb[0].mxu0
      %v1315 = vadd.f32 0.0, %v1314
      %v1316 = vpop.f32.mrb[0].mxu0
      %1317 = vmatprep.mubr.bf16.mxu0 %v726
      %1318 = vmatmul.mubr.bf16.gmra.mrb[0].mxu0 %v725
      %v1319 = vpop.f32.mrb[0].mxu0
      %v1320 = vadd.f32 0.0, %v1319
      %v1321 = vpop.f32.mrb[0].mxu0
      %v1322 = vpop.f32.mrb[0].mxu0
      %v1323 = vadd.f32 0.0, %v1322
      %v1324 = vpop.f32.mrb[0].mxu0
      %1325 = vmatprep.mubr.bf16.mxu0 %v728
      %1326 = vmatmul.mubr.bf16.gmra.mrb[0].mxu0 %v727
      %v1327 = vpop.f32.mrb[0].mxu0
      %v1328 = vadd.f32 0.0, %v1327
      %v1329 = vpop.f32.mrb[0].mxu0
      %v1330 = vpop.f32.mrb[0].mxu0
      %v1331 = vadd.f32 0.0, %v1330
      %v1332 = vpop.f32.mrb[0].mxu0
      %1333 = vmatprep.mubr.bf16.mxu0 %v730
      %1334 = vmatmul.mubr.bf16.gmra.mrb[0].mxu0 %v729
      %v1335 = vpop.f32.mrb[0].mxu0
      %v1336 = vadd.f32 0.0, %v1335
      %v1337 = vpop.f32.mrb[0].mxu0
      %v1338 = vpop.f32.mrb[0].mxu0
      %v1339 = vadd.f32 0.0, %v1338
      %v1340 = vpop.f32.mrb[0].mxu0
      %1341 = vmatprep.mubr.bf16.mxu0 %v732
      %1342 = vmatmul.mubr.bf16.gmra.mrb[0].mxu0 %v731
      %v1343 = vpop.f32.mrb[0].mxu0
      %v1344 = vadd.f32 0.0, %v1343
      %v1345 = vpop.f32.mrb[0].mxu0
      %v1346 = vpop.f32.mrb[0].mxu0
      %v1347 = vadd.f32 0.0, %v1346
      %v1348 = vpop.f32.mrb[0].mxu0
      %1349 = vmatprep.mubr.bf16.mxu0 %v734
      %1350 = vmatmul.mubr.bf16.gmra.mrb[0].mxu0 %v733
      %v1351 = vpop.f32.mrb[0].mxu0
      %v1352 = vadd.f32 0.0, %v1351
      %v1353 = vpop.f32.mrb[0].mxu0
      %v1354 = vpop.f32.mrb[0].mxu0
      %v1355 = vadd.f32 0.0, %v1354
      %v1356 = vpop.f32.mrb[0].mxu0
      %1357 = vmatprep.mubr.bf16.mxu0 %v736
      %1358 = vmatmul.mubr.bf16.gmra.mrb[0].mxu0 %v735
      %v1359 = vpop.f32.mrb[0].mxu0
      %v1360 = vadd.f32 0.0, %v1359
      %v1361 = vpop.f32.mrb[0].mxu0
      %v1362 = vpop.f32.mrb[0].mxu0
      %v1363 = vadd.f32 0.0, %v1362
      %v1364 = vpop.f32.mrb[0].mxu0
      %1365 = vmatprep.mubr.bf16.mxu0 %v738
      %1366 = vmatmul.mubr.bf16.gmra.mrb[0].mxu0 %v737
      %v1367 = vpop.f32.mrb[0].mxu0
      %v1368 = vadd.f32 0.0, %v1367
      %v1369 = vpop.f32.mrb[0].mxu0
      %v1370 = vpop.f32.mrb[0].mxu0
      %v1371 = vadd.f32 0.0, %v1370
      %v1372 = vpop.f32.mrb[0].mxu0
      %1373 = vmatprep.mubr.bf16.mxu0 %v740
      %1374 = vmatmul.mubr.bf16.gmra.mrb[0].mxu0 %v739
      %v1375 = vpop.f32.mrb[0].mxu0
      %v1376 = vadd.f32 0.0, %v1375
      %v1377 = vpop.f32.mrb[0].mxu0
      %v1378 = vpop.f32.mrb[0].mxu0
      %v1379 = vadd.f32 0.0, %v1378
      %v1380 = vpop.f32.mrb[0].mxu0
      %1381 = vmatprep.mubr.bf16.mxu0 %v742
      %1382 = vmatmul.mubr.bf16.gmra.mrb[0].mxu0 %v741
      %v1383 = vpop.f32.mrb[0].mxu0
      %v1384 = vadd.f32 0.0, %v1383
      %v1385 = vpop.f32.mrb[0].mxu0
      %v1386 = vpop.f32.mrb[0].mxu0
      %v1387 = vadd.f32 0.0, %v1386
      %v1388 = vpop.f32.mrb[0].mxu0
      %1389 = vmatprep.mubr.bf16.mxu0 %v744
      %1390 = vmatmul.mubr.bf16.gmra.mrb[0].mxu0 %v743
      %v1391 = vpop.f32.mrb[0].mxu0
      %v1392 = vadd.f32 0.0, %v1391
      %v1393 = vpop.f32.mrb[0].mxu0
      %v1394 = vpop.f32.mrb[0].mxu0
      %v1395 = vadd.f32 0.0, %v1394
      %v1396 = vpop.f32.mrb[0].mxu0
      %1397 = vmatprep.mubr.bf16.mxu0 %v746
      %1398 = vmatmul.mubr.bf16.gmra.mrb[0].mxu0 %v745
      %v1399 = vpop.f32.mrb[0].mxu0
      %v1400 = vadd.f32 0.0, %v1399
      %v1401 = vpop.f32.mrb[0].mxu0
      %v1402 = vpop.f32.mrb[0].mxu0
      %v1403 = vadd.f32 0.0, %v1402
      %v1404 = vpop.f32.mrb[0].mxu0
      %1405 = vmatprep.mubr.bf16.mxu0 %v748
      %1406 = vmatmul.mubr.bf16.gmra.mrb[0].mxu0 %v747
      %v1407 = vpop.f32.mrb[0].mxu0
      %v1408 = vadd.f32 0.0, %v1407
      %v1409 = vpop.f32.mrb[0].mxu0
      %v1410 = vpop.f32.mrb[0].mxu0
      %v1411 = vadd.f32 0.0, %v1410
      %v1412 = vpop.f32.mrb[0].mxu0
      %1413 = vmatprep.mubr.bf16.mxu0 %v750
      %1414 = vmatmul.mubr.bf16.gmra.mrb[0].mxu0 %v749
      %v1415 = vpop.f32.mrb[0].mxu0
      %v1416 = vadd.f32 0.0, %v1415
      %v1417 = vpop.f32.mrb[0].mxu0
      %v1418 = vpop.f32.mrb[0].mxu0
      %v1419 = vadd.f32 0.0, %v1418
      %v1420 = vpop.f32.mrb[0].mxu0
      %1421 = vmatprep.mubr.bf16.mxu0 %v752
      %1422 = vmatmul.mubr.bf16.gmra.mrb[0].mxu0 %v751
      %v1423 = vpop.f32.mrb[0].mxu0
      %v1424 = vadd.f32 0.0, %v1423
      %v1425 = vpop.f32.mrb[0].mxu0
      %v1426 = vpop.f32.mrb[0].mxu0
      %v1427 = vadd.f32 0.0, %v1426
      %v1428 = vpop.f32.mrb[0].mxu0
      %1429 = vmatprep.mubr.bf16.mxu0 %v754
      %1430 = vmatmul.mubr.bf16.gmra.mrb[0].mxu0 %v753
      %v1431 = vpop.f32.mrb[0].mxu0
      %v1432 = vadd.f32 0.0, %v1431
      %v1433 = vpop.f32.mrb[0].mxu0
      %v1434 = vpop.f32.mrb[0].mxu0
      %v1435 = vadd.f32 0.0, %v1434
      %v1436 = vpop.f32.mrb[0].mxu0
      %1437 = vmatprep.mubr.bf16.mxu0 %v756
      %1438 = vmatmul.mubr.bf16.gmra.mrb[0].mxu0 %v755
      %v1439 = vpop.f32.mrb[0].mxu0
      %v1440 = vadd.f32 0.0, %v1439
      %v1441 = vpop.f32.mrb[0].mxu0
      %v1442 = vpop.f32.mrb[0].mxu0
      %v1443 = vadd.f32 0.0, %v1442
      %v1444 = vpop.f32.mrb[0].mxu0
      %1445 = vdwg.mxu0
      %v1446 = vpack.c.bf16 %v1003, %v1000
      %v1447 = vpack.c.bf16 %v1011, %v1008
      %v1448 = vpack.c.bf16 %v1019, %v1016
      %v1449 = vpack.c.bf16 %v1027, %v1024
      %v1450 = vpack.c.bf16 %v1035, %v1032
      %v1451 = vpack.c.bf16 %v1043, %v1040
      %v1452 = vpack.c.bf16 %v1051, %v1048
      %v1453 = vpack.c.bf16 %v1059, %v1056
      %v1454 = vpack.c.bf16 %v1067, %v1064
      %v1455 = vpack.c.bf16 %v1075, %v1072
      %v1456 = vpack.c.bf16 %v1083, %v1080
      %v1457 = vpack.c.bf16 %v1091, %v1088
      %v1458 = vpack.c.bf16 %v1099, %v1096
      %v1459 = vpack.c.bf16 %v1107, %v1104
      %v1460 = vpack.c.bf16 %v1115, %v1112
      %v1461 = vpack.c.bf16 %v1123, %v1120
      %v1462 = vpack.c.bf16 %v1131, %v1128
      %v1463 = vpack.c.bf16 %v1139, %v1136
      %v1464 = vpack.c.bf16 %v1147, %v1144
      %v1465 = vpack.c.bf16 %v1155, %v1152
      %v1466 = vpack.c.bf16 %v1163, %v1160
      %v1467 = vpack.c.bf16 %v1171, %v1168
      %v1468 = vpack.c.bf16 %v1179, %v1176
      %v1469 = vpack.c.bf16 %v1187, %v1184
      %v1470 = vpack.c.bf16 %v1195, %v1192
      %v1471 = vpack.c.bf16 %v1203, %v1200
      %v1472 = vpack.c.bf16 %v1211, %v1208
      %v1473 = vpack.c.bf16 %v1219, %v1216
      %v1474 = vpack.c.bf16 %v1227, %v1224
      %v1475 = vpack.c.bf16 %v1235, %v1232
      %v1476 = vpack.c.bf16 %v1243, %v1240
      %v1477 = vpack.c.bf16 %v1251, %v1248
      %v1478 = vpack.c.bf16 %v1259, %v1256
      %v1479 = vpack.c.bf16 %v1267, %v1264
      %v1480 = vpack.c.bf16 %v1275, %v1272
      %v1481 = vpack.c.bf16 %v1283, %v1280
      %v1482 = vpack.c.bf16 %v1291, %v1288
      %v1483 = vpack.c.bf16 %v1299, %v1296
      %v1484 = vpack.c.bf16 %v1307, %v1304
      %v1485 = vpack.c.bf16 %v1315, %v1312
      %v1486 = vpack.c.bf16 %v1323, %v1320
      %v1487 = vpack.c.bf16 %v1331, %v1328
      %v1488 = vpack.c.bf16 %v1339, %v1336
      %v1489 = vpack.c.bf16 %v1347, %v1344
      %v1490 = vpack.c.bf16 %v1355, %v1352
      %v1491 = vpack.c.bf16 %v1363, %v1360
      %v1492 = vpack.c.bf16 %v1371, %v1368
      %v1493 = vpack.c.bf16 %v1379, %v1376
      %v1494 = vpack.c.bf16 %v1387, %v1384
      %v1495 = vpack.c.bf16 %v1395, %v1392
      %v1496 = vpack.c.bf16 %v1403, %v1400
      %v1497 = vpack.c.bf16 %v1411, %v1408
      %v1498 = vpack.c.bf16 %v1419, %v1416
      %v1499 = vpack.c.bf16 %v1427, %v1424
      %v1500 = vpack.c.bf16 %v1435, %v1432
      %v1501 = vpack.c.bf16 %v1443, %v1440
      %v1558 = vunpack.c.l.b16 %v1446
      %v1559 = vunpack.c.h.b16 %v1446
      %v1560 = vunpack.c.l.b16 %v1447
      %v1561 = vunpack.c.h.b16 %v1447
      %v1562 = vunpack.c.l.b16 %v1448
      %v1563 = vunpack.c.h.b16 %v1448
      %v1564 = vunpack.c.l.b16 %v1449
      %v1565 = vunpack.c.h.b16 %v1449
      %v1566 = vunpack.c.l.b16 %v1450
      %v1567 = vunpack.c.h.b16 %v1450
      %v1568 = vunpack.c.l.b16 %v1451
      %v1569 = vunpack.c.h.b16 %v1451
      %v1570 = vunpack.c.l.b16 %v1452
      %v1571 = vunpack.c.h.b16 %v1452
      %v1572 = vunpack.c.l.b16 %v1453
      %v1573 = vunpack.c.h.b16 %v1453
      %v1574 = vunpack.c.l.b16 %v1454
      %v1575 = vunpack.c.h.b16 %v1454
      %v1576 = vunpack.c.l.b16 %v1455
      %v1577 = vunpack.c.h.b16 %v1455
      %v1578 = vunpack.c.l.b16 %v1456
      %v1579 = vunpack.c.h.b16 %v1456
      %v1580 = vunpack.c.l.b16 %v1457
      %v1581 = vunpack.c.h.b16 %v1457
      %v1582 = vunpack.c.l.b16 %v1458
      %v1583 = vunpack.c.h.b16 %v1458
      %v1584 = vunpack.c.l.b16 %v1459
      %v1585 = vunpack.c.h.b16 %v1459
      %v1586 = vunpack.c.l.b16 %v1460
      %v1587 = vunpack.c.h.b16 %v1460
      %v1588 = vunpack.c.l.b16 %v1461
      %v1589 = vunpack.c.h.b16 %v1461
      %v1590 = vunpack.c.l.b16 %v1462
      %v1591 = vunpack.c.h.b16 %v1462
      %v1592 = vunpack.c.l.b16 %v1463
      %v1593 = vunpack.c.h.b16 %v1463
      %v1594 = vunpack.c.l.b16 %v1464
      %v1595 = vunpack.c.h.b16 %v1464
      %v1596 = vunpack.c.l.b16 %v1465
      %v1597 = vunpack.c.h.b16 %v1465
      %v1598 = vunpack.c.l.b16 %v1466
      %v1599 = vunpack.c.h.b16 %v1466
      %v1600 = vunpack.c.l.b16 %v1467
      %v1601 = vunpack.c.h.b16 %v1467
      %v1602 = vunpack.c.l.b16 %v1468
      %v1603 = vunpack.c.h.b16 %v1468
      %v1604 = vunpack.c.l.b16 %v1469
      %v1605 = vunpack.c.h.b16 %v1469
      %v1606 = vunpack.c.l.b16 %v1470
      %v1607 = vunpack.c.h.b16 %v1470
      %v1608 = vunpack.c.l.b16 %v1471
      %v1609 = vunpack.c.h.b16 %v1471
      %v1610 = vunpack.c.l.b16 %v1472
      %v1611 = vunpack.c.h.b16 %v1472
      %v1612 = vunpack.c.l.b16 %v1473
      %v1613 = vunpack.c.h.b16 %v1473
      %v1614 = vunpack.c.l.b16 %v1474
      %v1615 = vunpack.c.h.b16 %v1474
      %v1616 = vunpack.c.l.b16 %v1475
      %v1617 = vunpack.c.h.b16 %v1475
      %v1618 = vunpack.c.l.b16 %v1476
      %v1619 = vunpack.c.h.b16 %v1476
      %v1620 = vunpack.c.l.b16 %v1477
      %v1621 = vunpack.c.h.b16 %v1477
      %v1622 = vunpack.c.l.b16 %v1478
      %v1623 = vunpack.c.h.b16 %v1478
      %v1624 = vunpack.c.l.b16 %v1479
      %v1625 = vunpack.c.h.b16 %v1479
      %v1626 = vunpack.c.l.b16 %v1480
      %v1627 = vunpack.c.h.b16 %v1480
      %v1628 = vunpack.c.l.b16 %v1481
      %v1629 = vunpack.c.h.b16 %v1481
      %v1630 = vunpack.c.l.b16 %v1482
      %v1631 = vunpack.c.h.b16 %v1482
      %v1632 = vunpack.c.l.b16 %v1483
      %v1633 = vunpack.c.h.b16 %v1483
      %v1634 = vunpack.c.l.b16 %v1484
      %v1635 = vunpack.c.h.b16 %v1484
      %v1636 = vunpack.c.l.b16 %v1485
      %v1637 = vunpack.c.h.b16 %v1485
      %v1638 = vunpack.c.l.b16 %v1486
      %v1639 = vunpack.c.h.b16 %v1486
      %v1640 = vunpack.c.l.b16 %v1487
      %v1641 = vunpack.c.h.b16 %v1487
      %v1642 = vunpack.c.l.b16 %v1488
      %v1643 = vunpack.c.h.b16 %v1488
      %v1644 = vunpack.c.l.b16 %v1489
      %v1645 = vunpack.c.h.b16 %v1489
      %v1646 = vunpack.c.l.b16 %v1490
      %v1647 = vunpack.c.h.b16 %v1490
      %v1648 = vunpack.c.l.b16 %v1491
      %v1649 = vunpack.c.h.b16 %v1491
      %v1650 = vunpack.c.l.b16 %v1492
      %v1651 = vunpack.c.h.b16 %v1492
      %v1652 = vunpack.c.l.b16 %v1493
      %v1653 = vunpack.c.h.b16 %v1493
      %v1654 = vunpack.c.l.b16 %v1494
      %v1655 = vunpack.c.h.b16 %v1494
      %v1656 = vunpack.c.l.b16 %v1495
      %v1657 = vunpack.c.h.b16 %v1495
      %v1658 = vunpack.c.l.b16 %v1496
      %v1659 = vunpack.c.h.b16 %v1496
      %v1660 = vunpack.c.l.b16 %v1497
      %v1661 = vunpack.c.h.b16 %v1497
      %v1662 = vunpack.c.l.b16 %v1498
      %v1663 = vunpack.c.h.b16 %v1498
      %v1664 = vunpack.c.l.b16 %v1499
      %v1665 = vunpack.c.h.b16 %v1499
      %v1666 = vunpack.c.l.b16 %v1500
      %v1667 = vunpack.c.h.b16 %v1500
      %v1668 = vunpack.c.l.b16 %v1501
      %v1669 = vunpack.c.h.b16 %v1501
      %v1670 = vpack.c.b16 %v1558, %v1558
      %v1671 = vpack.c.b16 %v1559, %v1559
      %v1672 = vpack.c.b16 %v1560, %v1560
      %v1673 = vpack.c.b16 %v1561, %v1561
      %v1674 = vpack.c.b16 %v1562, %v1562
      %v1675 = vpack.c.b16 %v1563, %v1563
      %v1676 = vpack.c.b16 %v1564, %v1564
      %v1677 = vpack.c.b16 %v1565, %v1565
      %v1678 = vpack.c.b16 %v1566, %v1566
      %v1679 = vpack.c.b16 %v1567, %v1567
      %v1680 = vpack.c.b16 %v1568, %v1568
      %v1681 = vpack.c.b16 %v1569, %v1569
      %v1682 = vpack.c.b16 %v1570, %v1570
      %v1683 = vpack.c.b16 %v1571, %v1571
      %v1684 = vpack.c.b16 %v1572, %v1572
      %v1685 = vpack.c.b16 %v1573, %v1573
      %v1686 = vpack.c.b16 %v1574, %v1574
      %v1687 = vpack.c.b16 %v1575, %v1575
      %v1688 = vpack.c.b16 %v1576, %v1576
      %v1689 = vpack.c.b16 %v1577, %v1577
      %v1690 = vpack.c.b16 %v1578, %v1578
      %v1691 = vpack.c.b16 %v1579, %v1579
      %v1692 = vpack.c.b16 %v1580, %v1580
      %v1693 = vpack.c.b16 %v1581, %v1581
      %v1694 = vpack.c.b16 %v1582, %v1582
      %v1695 = vpack.c.b16 %v1583, %v1583
      %v1696 = vpack.c.b16 %v1584, %v1584
      %v1697 = vpack.c.b16 %v1585, %v1585
      %v1698 = vpack.c.b16 %v1586, %v1586
      %v1699 = vpack.c.b16 %v1587, %v1587
      %v1700 = vpack.c.b16 %v1588, %v1588
      %v1701 = vpack.c.b16 %v1589, %v1589
      %v1702 = vpack.c.b16 %v1590, %v1590
      %v1703 = vpack.c.b16 %v1591, %v1591
      %v1704 = vpack.c.b16 %v1592, %v1592
      %v1705 = vpack.c.b16 %v1593, %v1593
      %v1706 = vpack.c.b16 %v1594, %v1594
      %v1707 = vpack.c.b16 %v1595, %v1595
      %v1708 = vpack.c.b16 %v1596, %v1596
      %v1709 = vpack.c.b16 %v1597, %v1597
      %v1710 = vpack.c.b16 %v1598, %v1598
      %v1711 = vpack.c.b16 %v1599, %v1599
      %v1712 = vpack.c.b16 %v1600, %v1600
      %v1713 = vpack.c.b16 %v1601, %v1601
      %v1714 = vpack.c.b16 %v1602, %v1602
      %v1715 = vpack.c.b16 %v1603, %v1603
      %v1716 = vpack.c.b16 %v1604, %v1604
      %v1717 = vpack.c.b16 %v1605, %v1605
      %v1718 = vpack.c.b16 %v1606, %v1606
      %v1719 = vpack.c.b16 %v1607, %v1607
      %v1720 = vpack.c.b16 %v1608, %v1608
      %v1721 = vpack.c.b16 %v1609, %v1609
      %v1722 = vpack.c.b16 %v1610, %v1610
      %v1723 = vpack.c.b16 %v1611, %v1611
      %v1724 = vpack.c.b16 %v1612, %v1612
      %v1725 = vpack.c.b16 %v1613, %v1613
      %v1726 = vpack.c.b16 %v1614, %v1614
      %v1727 = vpack.c.b16 %v1615, %v1615
      %v1728 = vpack.c.b16 %v1616, %v1616
      %v1729 = vpack.c.b16 %v1617, %v1617
      %v1730 = vpack.c.b16 %v1618, %v1618
      %v1731 = vpack.c.b16 %v1619, %v1619
      %v1732 = vpack.c.b16 %v1620, %v1620
      %v1733 = vpack.c.b16 %v1621, %v1621
      %v1734 = vpack.c.b16 %v1622, %v1622
      %v1735 = vpack.c.b16 %v1623, %v1623
      %v1736 = vpack.c.b16 %v1624, %v1624
      %v1737 = vpack.c.b16 %v1625, %v1625
      %v1738 = vpack.c.b16 %v1626, %v1626
      %v1739 = vpack.c.b16 %v1627, %v1627
      %v1740 = vpack.c.b16 %v1628, %v1628
      %v1741 = vpack.c.b16 %v1629, %v1629
      %v1742 = vpack.c.b16 %v1630, %v1630
      %v1743 = vpack.c.b16 %v1631, %v1631
      %v1744 = vpack.c.b16 %v1632, %v1632
      %v1745 = vpack.c.b16 %v1633, %v1633
      %v1746 = vpack.c.b16 %v1634, %v1634
      %v1747 = vpack.c.b16 %v1635, %v1635
      %v1748 = vpack.c.b16 %v1636, %v1636
      %v1749 = vpack.c.b16 %v1637, %v1637
      %v1750 = vpack.c.b16 %v1638, %v1638
      %v1751 = vpack.c.b16 %v1639, %v1639
      %v1752 = vpack.c.b16 %v1640, %v1640
      %v1753 = vpack.c.b16 %v1641, %v1641
      %v1754 = vpack.c.b16 %v1642, %v1642
      %v1755 = vpack.c.b16 %v1643, %v1643
      %v1756 = vpack.c.b16 %v1644, %v1644
      %v1757 = vpack.c.b16 %v1645, %v1645
      %v1758 = vpack.c.b16 %v1646, %v1646
      %v1759 = vpack.c.b16 %v1647, %v1647
      %v1760 = vpack.c.b16 %v1648, %v1648
      %v1761 = vpack.c.b16 %v1649, %v1649
      %v1762 = vpack.c.b16 %v1650, %v1650
      %v1763 = vpack.c.b16 %v1651, %v1651
      %v1764 = vpack.c.b16 %v1652, %v1652
      %v1765 = vpack.c.b16 %v1653, %v1653
      %v1766 = vpack.c.b16 %v1654, %v1654
      %v1767 = vpack.c.b16 %v1655, %v1655
      %v1768 = vpack.c.b16 %v1656, %v1656
      %v1769 = vpack.c.b16 %v1657, %v1657
      %v1770 = vpack.c.b16 %v1658, %v1658
      %v1771 = vpack.c.b16 %v1659, %v1659
      %v1772 = vpack.c.b16 %v1660, %v1660
      %v1773 = vpack.c.b16 %v1661, %v1661
      %v1774 = vpack.c.b16 %v1662, %v1662
      %v1775 = vpack.c.b16 %v1663, %v1663
      %v1776 = vpack.c.b16 %v1664, %v1664
      %v1777 = vpack.c.b16 %v1665, %v1665
      %v1778 = vpack.c.b16 %v1666, %v1666
      %v1779 = vpack.c.b16 %v1667, %v1667
      %v1780 = vpack.c.b16 %v1668, %v1668
      %v1781 = vpack.c.b16 %v1669, %v1669
      %vm1894 = vcmask 125952
      %1895 = vst.msk [vmem:[%s163] sm:$0xf] %vm1894, %v1670
      %1896 = vst.msk [vmem:[%s163 + $0x4] sm:$0xf] %vm1894, %v1671
      %1897 = vst.msk [vmem:[%s163 + $0x8] sm:$0xf] %vm1894, %v1672
      %1898 = vst.msk [vmem:[%s163 + $0xc] sm:$0xf] %vm1894, %v1673
      %1899 = vst.msk [vmem:[%s163 + $0x10] sm:$0xf] %vm1894, %v1674
      %1900 = vst.msk [vmem:[%s163 + $0x14] sm:$0xf] %vm1894, %v1675
      %1901 = vst.msk [vmem:[%s163 + $0x18] sm:$0xf] %vm1894, %v1676
      %1902 = vst.msk [vmem:[%s163 + $0x1c] sm:$0xf] %vm1894, %v1677
      %1903 = vst.msk [vmem:[%s163 + $0x20] sm:$0xf] %vm1894, %v1678
      %1904 = vst.msk [vmem:[%s163 + $0x24] sm:$0xf] %vm1894, %v1679
      %1905 = vst.msk [vmem:[%s163 + $0x28] sm:$0xf] %vm1894, %v1680
      %1906 = vst.msk [vmem:[%s163 + $0x2c] sm:$0xf] %vm1894, %v1681
      %1907 = vst.msk [vmem:[%s163 + $0x30] sm:$0xf] %vm1894, %v1682
      %1908 = vst.msk [vmem:[%s163 + $0x34] sm:$0xf] %vm1894, %v1683
      %1909 = vst.msk [vmem:[%s163 + $0x38] sm:$0xf] %vm1894, %v1684
      %1910 = vst.msk [vmem:[%s163 + $0x3c] sm:$0xf] %vm1894, %v1685
      %1911 = vst.msk [vmem:[%s163 + $0x40] sm:$0xf] %vm1894, %v1686
      %1912 = vst.msk [vmem:[%s163 + $0x44] sm:$0xf] %vm1894, %v1687
      %1913 = vst.msk [vmem:[%s163 + $0x48] sm:$0xf] %vm1894, %v1688
      %1914 = vst.msk [vmem:[%s163 + $0x4c] sm:$0xf] %vm1894, %v1689
      %1915 = vst.msk [vmem:[%s163 + $0x50] sm:$0xf] %vm1894, %v1690
      %1916 = vst.msk [vmem:[%s163 + $0x54] sm:$0xf] %vm1894, %v1691
      %1917 = vst.msk [vmem:[%s163 + $0x58] sm:$0xf] %vm1894, %v1692
      %1918 = vst.msk [vmem:[%s163 + $0x5c] sm:$0xf] %vm1894, %v1693
      %1919 = vst.msk [vmem:[%s163 + $0x60] sm:$0xf] %vm1894, %v1694
      %1920 = vst.msk [vmem:[%s163 + $0x64] sm:$0xf] %vm1894, %v1695
      %1921 = vst.msk [vmem:[%s163 + $0x68] sm:$0xf] %vm1894, %v1696
      %1922 = vst.msk [vmem:[%s163 + $0x6c] sm:$0xf] %vm1894, %v1697
      %1923 = vst.msk [vmem:[%s163 + $0x70] sm:$0xf] %vm1894, %v1698
      %1924 = vst.msk [vmem:[%s163 + $0x74] sm:$0xf] %vm1894, %v1699
      %1925 = vst.msk [vmem:[%s163 + $0x78] sm:$0xf] %vm1894, %v1700
      %1926 = vst.msk [vmem:[%s163 + $0x7c] sm:$0xf] %vm1894, %v1701
      %1927 = vst.msk [vmem:[%s163 + $0x80] sm:$0xf] %vm1894, %v1702
      %1928 = vst.msk [vmem:[%s163 + $0x84] sm:$0xf] %vm1894, %v1703
      %1929 = vst.msk [vmem:[%s163 + $0x88] sm:$0xf] %vm1894, %v1704
      %1930 = vst.msk [vmem:[%s163 + $0x8c] sm:$0xf] %vm1894, %v1705
      %1931 = vst.msk [vmem:[%s163 + $0x90] sm:$0xf] %vm1894, %v1706
      %1932 = vst.msk [vmem:[%s163 + $0x94] sm:$0xf] %vm1894, %v1707
      %1933 = vst.msk [vmem:[%s163 + $0x98] sm:$0xf] %vm1894, %v1708
      %1934 = vst.msk [vmem:[%s163 + $0x9c] sm:$0xf] %vm1894, %v1709
      %1935 = vst.msk [vmem:[%s163 + $0xa0] sm:$0xf] %vm1894, %v1710
      %1936 = vst.msk [vmem:[%s163 + $0xa4] sm:$0xf] %vm1894, %v1711
      %1937 = vst.msk [vmem:[%s163 + $0xa8] sm:$0xf] %vm1894, %v1712
      %1938 = vst.msk [vmem:[%s163 + $0xac] sm:$0xf] %vm1894, %v1713
      %1939 = vst.msk [vmem:[%s163 + $0xb0] sm:$0xf] %vm1894, %v1714
      %1940 = vst.msk [vmem:[%s163 + $0xb4] sm:$0xf] %vm1894, %v1715
      %1941 = vst.msk [vmem:[%s163 + $0xb8] sm:$0xf] %vm1894, %v1716
      %1942 = vst.msk [vmem:[%s163 + $0xbc] sm:$0xf] %vm1894, %v1717
      %1943 = vst.msk [vmem:[%s163 + $0xc0] sm:$0xf] %vm1894, %v1718
      %1944 = vst.msk [vmem:[%s163 + $0xc4] sm:$0xf] %vm1894, %v1719
      %1945 = vst.msk [vmem:[%s163 + $0xc8] sm:$0xf] %vm1894, %v1720
      %1946 = vst.msk [vmem:[%s163 + $0xcc] sm:$0xf] %vm1894, %v1721
      %1947 = vst.msk [vmem:[%s163 + $0xd0] sm:$0xf] %vm1894, %v1722
      %1948 = vst.msk [vmem:[%s163 + $0xd4] sm:$0xf] %vm1894, %v1723
      %1949 = vst.msk [vmem:[%s163 + $0xd8] sm:$0xf] %vm1894, %v1724
      %1950 = vst.msk [vmem:[%s163 + $0xdc] sm:$0xf] %vm1894, %v1725
      %1951 = vst.msk [vmem:[%s163 + $0xe0] sm:$0xf] %vm1894, %v1726
      %1952 = vst.msk [vmem:[%s163 + $0xe4] sm:$0xf] %vm1894, %v1727
      %1953 = vst.msk [vmem:[%s163 + $0xe8] sm:$0xf] %vm1894, %v1728
      %1954 = vst.msk [vmem:[%s163 + $0xec] sm:$0xf] %vm1894, %v1729
      %1955 = vst.msk [vmem:[%s163 + $0xf0] sm:$0xf] %vm1894, %v1730
      %1956 = vst.msk [vmem:[%s163 + $0xf4] sm:$0xf] %vm1894, %v1731
      %1957 = vst.msk [vmem:[%s163 + $0xf8] sm:$0xf] %vm1894, %v1732
      %1958 = vst.msk [vmem:[%s163 + $0xfc] sm:$0xf] %vm1894, %v1733
      %1959 = vst.msk [vmem:[%s163 + $0x100] sm:$0xf] %vm1894, %v1734
      %1960 = vst.msk [vmem:[%s163 + $0x104] sm:$0xf] %vm1894, %v1735
      %1961 = vst.msk [vmem:[%s163 + $0x108] sm:$0xf] %vm1894, %v1736
      %1962 = vst.msk [vmem:[%s163 + $0x10c] sm:$0xf] %vm1894, %v1737
      %1963 = vst.msk [vmem:[%s163 + $0x110] sm:$0xf] %vm1894, %v1738
      %1964 = vst.msk [vmem:[%s163 + $0x114] sm:$0xf] %vm1894, %v1739
      %1965 = vst.msk [vmem:[%s163 + $0x118] sm:$0xf] %vm1894, %v1740
      %1966 = vst.msk [vmem:[%s163 + $0x11c] sm:$0xf] %vm1894, %v1741
      %1967 = vst.msk [vmem:[%s163 + $0x120] sm:$0xf] %vm1894, %v1742
      %1968 = vst.msk [vmem:[%s163 + $0x124] sm:$0xf] %vm1894, %v1743
      %1969 = vst.msk [vmem:[%s163 + $0x128] sm:$0xf] %vm1894, %v1744
      %1970 = vst.msk [vmem:[%s163 + $0x12c] sm:$0xf] %vm1894, %v1745
      %1971 = vst.msk [vmem:[%s163 + $0x130] sm:$0xf] %vm1894, %v1746
      %1972 = vst.msk [vmem:[%s163 + $0x134] sm:$0xf] %vm1894, %v1747
      %1973 = vst.msk [vmem:[%s163 + $0x138] sm:$0xf] %vm1894, %v1748
      %1974 = vst.msk [vmem:[%s163 + $0x13c] sm:$0xf] %vm1894, %v1749
      %1975 = vst.msk [vmem:[%s163 + $0x140] sm:$0xf] %vm1894, %v1750
      %1976 = vst.msk [vmem:[%s163 + $0x144] sm:$0xf] %vm1894, %v1751
      %1977 = vst.msk [vmem:[%s163 + $0x148] sm:$0xf] %vm1894, %v1752
      %1978 = vst.msk [vmem:[%s163 + $0x14c] sm:$0xf] %vm1894, %v1753
      %1979 = vst.msk [vmem:[%s163 + $0x150] sm:$0xf] %vm1894, %v1754
      %1980 = vst.msk [vmem:[%s163 + $0x154] sm:$0xf] %vm1894, %v1755
      %1981 = vst.msk [vmem:[%s163 + $0x158] sm:$0xf] %vm1894, %v1756
      %1982 = vst.msk [vmem:[%s163 + $0x15c] sm:$0xf] %vm1894, %v1757
      %1983 = vst.msk [vmem:[%s163 + $0x160] sm:$0xf] %vm1894, %v1758
      %1984 = vst.msk [vmem:[%s163 + $0x164] sm:$0xf] %vm1894, %v1759
      %1985 = vst.msk [vmem:[%s163 + $0x168] sm:$0xf] %vm1894, %v1760
      %1986 = vst.msk [vmem:[%s163 + $0x16c] sm:$0xf] %vm1894, %v1761
      %1987 = vst.msk [vmem:[%s163 + $0x170] sm:$0xf] %vm1894, %v1762
      %1988 = vst.msk [vmem:[%s163 + $0x174] sm:$0xf] %vm1894, %v1763
      %1989 = vst.msk [vmem:[%s163 + $0x178] sm:$0xf] %vm1894, %v1764
      %1990 = vst.msk [vmem:[%s163 + $0x17c] sm:$0xf] %vm1894, %v1765
      %1991 = vst.msk [vmem:[%s163 + $0x180] sm:$0xf] %vm1894, %v1766
      %1992 = vst.msk [vmem:[%s163 + $0x184] sm:$0xf] %vm1894, %v1767
      %1993 = vst.msk [vmem:[%s163 + $0x188] sm:$0xf] %vm1894, %v1768
      %1994 = vst.msk [vmem:[%s163 + $0x18c] sm:$0xf] %vm1894, %v1769
      %1995 = vst.msk [vmem:[%s163 + $0x190] sm:$0xf] %vm1894, %v1770
      %1996 = vst.msk [vmem:[%s163 + $0x194] sm:$0xf] %vm1894, %v1771
      %1997 = vst.msk [vmem:[%s163 + $0x198] sm:$0xf] %vm1894, %v1772
      %1998 = vst.msk [vmem:[%s163 + $0x19c] sm:$0xf] %vm1894, %v1773
      %1999 = vst.msk [vmem:[%s163 + $0x1a0] sm:$0xf] %vm1894, %v1774
      %2000 = vst.msk [vmem:[%s163 + $0x1a4] sm:$0xf] %vm1894, %v1775
      %2001 = vst.msk [vmem:[%s163 + $0x1a8] sm:$0xf] %vm1894, %v1776
      %2002 = vst.msk [vmem:[%s163 + $0x1ac] sm:$0xf] %vm1894, %v1777
      %2003 = vst.msk [vmem:[%s163 + $0x1b0] sm:$0xf] %vm1894, %v1778
      %2004 = vst.msk [vmem:[%s163 + $0x1b4] sm:$0xf] %vm1894, %v1779
      %2005 = vst.msk [vmem:[%s163 + $0x1b8] sm:$0xf] %vm1894, %v1780
      %2006 = vst.msk [vmem:[%s163 + $0x1bc] sm:$0xf] %vm1894, %v1781
      %p2007 = scmp.lt.s32.totalorder %s13, 1
      %s2008 = scalar_select %p2007, %s13, 1
      %s2009 = smul.addr %s2008, 112
      %s2010 = smul.addr %s2009, 4
      %s2011 = scalar_lea.vmem %s2, %s2010
      // Predicated region
      $region29: #{_forward_impl.8} parent=27 // pred_check
        %p2012 = pneg %p83
      $region30: #{_forward_impl.8} parent=27 // pred_check_branch
        %2014 = sbr.rel (%p2012) target = $region32
      $region31: #{_forward_impl.8} parent=27 // pred_region
        _
      $region32: #{_forward_impl.8} parent=27 // pred_fallthru
        _
    $region28: #{_forward_impl.8} parent=5 // pred_fallthru
      _
    %p2015 = scmp.le.s32.totalorder 2, %s8
    // Predicated region
    $region33: #{_forward_impl.8} parent=5 // pred_check
      %p2016 = pneg %p2015
    $region34: #{_forward_impl.8} parent=5 // pred_check_branch
      %2018 = sbr.rel (%p2016) target = $region36
    $region35: #{_forward_impl.8} parent=5 // pred_region
      %s2019 = ssub.s32 %s8, 2
      // Predicated region
      $region37: #{_forward_impl.8} parent=35 // pred_check
        %p2020 = pneg %p89
      $region38: #{_forward_impl.8} parent=35 // pred_check_branch
        %2022 = sbr.rel (%p2020) target = $region40
      $region39: #{_forward_impl.8} parent=35 // pred_region
        %p2023 = scmp.lt.s32.totalorder %s14, 1
        %s2024 = scalar_select %p2023, %s14, 1
        %s2025 = smul.addr %s2024, 112
        %s2026 = smul.addr %s2025, 4
        %s2027 = scalar_lea.vmem %s2, %s2026
      $region40: #{_forward_impl.8} parent=35 // pred_fallthru
        _
    $region36: #{_forward_impl.8} parent=5 // pred_fallthru
      _
  $region6: #{_forward_impl.8} parent=0 // loop_footer
    %s12 = sadd.s32 1, %s8
  $region7: #{_forward_impl.8} parent=0 // loop_footer_branch
    %7 = sbr.rel target = $region3
  $region8: #{_forward_impl.8} parent=0 // loop_exit
    _

// kernel: _forward_impl.9
$region0: #{_forward_impl.9}
  #allocation0 [shape = 'u32[]', space=smem, size = 0x4, offset = 0x4, fixed_abs, tag = 'smem constant byte address 0x4 - core index']
  #allocation1 [shape = 'u32[144,128]{1,0:T(1,128)}', space=vmem, size = 0x12000, scoped, tag = 'internal scratch']
  %s0 = inlined_call_operand.vmem [shape: bf16[32,896], index: 0, kind: input, shape index: {}]
  %s1 = inlined_call_operand.vmem [shape: bf16[896,64], index: 1, kind: input, shape index: {}]
  %s2 = inlined_call_operand.vmem [shape: f32[1,64], index: 2, kind: input, shape index: {}, may-alias: {2,4}]
  %s3 = inlined_call_operand.vmem [shape: bf16[64,64], index: 3, kind: input, shape index: {}]
  %s4 = inlined_call_operand.vmem [shape: f32[1,64], index: 4, kind: input, shape index: {}, may-alias: {2,4}]
  %s5 = inlined_call_operand.vmem [shape: bf16[64,128], index: 5, kind: input, shape index: {}]
  %s6 = inlined_call_operand.vmem [shape: f32[1,128], index: 6, kind: input, shape index: {}]
  %s7 = inlined_call_operand.vmem [shape: f32[32,128], index: 7, kind: output, shape index: {}]
  %s8 = sld [smem:[#allocation0]]
  $region61: #{_forward_impl.9} parent=0
    _
  %s10 = ssub.s32 1, %s8
  %s11 = scalar_select 0, %s10, %s8
  loop: start=0, step=1, limit=4
  $region2: #{_forward_impl.9} parent=0 // loop_pre_header
    _
  $region3: #{_forward_impl.9} parent=0 // loop_header
    %s13 = sphi 0, %s17
    %p14 = scmp.ge.s32.totalorder %s13, 4
    %s23 = sphi 0, %s25
    %s26 = sphi 0, %s23
    %s27 = sphi 0, %s26
    %s43 = sphi 0, %s27
    %s47 = sphi 0, %s47
    %s49 = sphi 0, %s47
    %s50 = sphi 0, %s49
    %s64 = sphi 0, %s50
    %s68 = sphi 0, %s68
    %s70 = sphi 0, %s68
    %s71 = sphi 0, %s70
    %s85 = sphi 0, %s71
    %s89 = sphi 0, %s89
    %s91 = sphi 0, %s89
    %s92 = sphi 0, %s91
    %s106 = sphi 0, %s92
    %s110 = sphi 0, %s110
    %s112 = sphi 0, %s110
    %s113 = sphi 0, %s112
    %s127 = sphi 0, %s113
    %s131 = sphi 0, %s131
    %s133 = sphi 0, %s131
    %s134 = sphi 0, %s133
    %s148 = sphi 0, %s134
    %s152 = sphi 0, %s152
    %s154 = sphi 0, %s152
    %s155 = sphi 0, %s154
    %s169 = sphi 0, %s155
    %s175 = sphi 0, %s177
    %s178 = sphi 0, %s175
    %s179 = sphi 0, %s178
    %s195 = sphi 0, %s179
  $region4: #{_forward_impl.9} parent=0 // loop_header_branch
    %16 = sbr.rel (%p14) target = $region8
  $region5: #{_forward_impl.9} parent=0 // loop_body
    %s18 = ssub.s32 %s13, 1
    %s19 = ssub.s32 %s13, 2
    %s20 = sadd.s32 %s13, 1
    %s21 = ssub.s32 %s13, %s20
    %p22 = scmp.eq.s32.totalorder %s21, 0
    %s24 = sadd.s32 %s23, 1
    %s25 = scalar_select %p22, %s23, %s24
    %p28 = pneg %p22
    %p29 = scmp.eq.s32.totalorder %s13, 1
    %p30 = por %p28, %p29
    %p31 = scmp.ne.s32.totalorder %s23, %s26
    %p32 = scmp.eq.s32.totalorder %s13, 0
    %p33 = por %p31, %p32
    %p34 = scmp.ne.s32.totalorder %s23, %s26
    %p35 = scmp.eq.s32.totalorder %s18, 1
    %p36 = por %p34, %p35
    %p37 = scmp.ne.s32.totalorder %s26, %s27
    %p38 = scmp.eq.s32.totalorder %s18, 0
    %p39 = por %p37, %p38
    %p40 = scmp.ne.s32.totalorder %s26, %s27
    %p41 = scmp.eq.s32.totalorder %s19, 1
    %p42 = por %p40, %p41
    %p44 = scmp.ne.s32.totalorder %s27, %s43
    %p45 = scmp.eq.s32.totalorder %s19, 0
    %p46 = por %p44, %p45
    %s48 = sadd.s32 %s47, 1
    %p51 = scmp.eq.s32.totalorder %s13, 1
    %p52 = scmp.ne.s32.totalorder %s47, %s49
    %p53 = scmp.eq.s32.totalorder %s13, 0
    %p54 = por %p52, %p53
    %p55 = scmp.ne.s32.totalorder %s47, %s49
    %p56 = scmp.eq.s32.totalorder %s18, 1
    %p57 = por %p55, %p56
    %p58 = scmp.ne.s32.totalorder %s49, %s50
    %p59 = scmp.eq.s32.totalorder %s18, 0
    %p60 = por %p58, %p59
    %p61 = scmp.ne.s32.totalorder %s49, %s50
    %p62 = scmp.eq.s32.totalorder %s19, 1
    %p63 = por %p61, %p62
    %p65 = scmp.ne.s32.totalorder %s50, %s64
    %p66 = scmp.eq.s32.totalorder %s19, 0
    %p67 = por %p65, %p66
    %s69 = sadd.s32 %s68, 1
    %p72 = scmp.eq.s32.totalorder %s13, 1
    %p73 = scmp.ne.s32.totalorder %s68, %s70
    %p74 = scmp.eq.s32.totalorder %s13, 0
    %p75 = por %p73, %p74
    %p76 = scmp.ne.s32.totalorder %s68, %s70
    %p77 = scmp.eq.s32.totalorder %s18, 1
    %p78 = por %p76, %p77
    %p79 = scmp.ne.s32.totalorder %s70, %s71
    %p80 = scmp.eq.s32.totalorder %s18, 0
    %p81 = por %p79, %p80
    %p82 = scmp.ne.s32.totalorder %s70, %s71
    %p83 = scmp.eq.s32.totalorder %s19, 1
    %p84 = por %p82, %p83
    %p86 = scmp.ne.s32.totalorder %s71, %s85
    %p87 = scmp.eq.s32.totalorder %s19, 0
    %p88 = por %p86, %p87
    %s90 = sadd.s32 %s89, 1
    %p93 = scmp.eq.s32.totalorder %s13, 1
    %p94 = scmp.ne.s32.totalorder %s89, %s91
    %p95 = scmp.eq.s32.totalorder %s13, 0
    %p96 = por %p94, %p95
    %p97 = scmp.ne.s32.totalorder %s89, %s91
    %p98 = scmp.eq.s32.totalorder %s18, 1
    %p99 = por %p97, %p98
    %p100 = scmp.ne.s32.totalorder %s91, %s92
    %p101 = scmp.eq.s32.totalorder %s18, 0
    %p102 = por %p100, %p101
    %p103 = scmp.ne.s32.totalorder %s91, %s92
    %p104 = scmp.eq.s32.totalorder %s19, 1
    %p105 = por %p103, %p104
    %p107 = scmp.ne.s32.totalorder %s92, %s106
    %p108 = scmp.eq.s32.totalorder %s19, 0
    %p109 = por %p107, %p108
    %s111 = sadd.s32 %s110, 1
    %p114 = scmp.eq.s32.totalorder %s13, 1
    %p115 = scmp.ne.s32.totalorder %s110, %s112
    %p116 = scmp.eq.s32.totalorder %s13, 0
    %p117 = por %p115, %p116
    %p118 = scmp.ne.s32.totalorder %s110, %s112
    %p119 = scmp.eq.s32.totalorder %s18, 1
    %p120 = por %p118, %p119
    %p121 = scmp.ne.s32.totalorder %s112, %s113
    %p122 = scmp.eq.s32.totalorder %s18, 0
    %p123 = por %p121, %p122
    %p124 = scmp.ne.s32.totalorder %s112, %s113
    %p125 = scmp.eq.s32.totalorder %s19, 1
    %p126 = por %p124, %p125
    %p128 = scmp.ne.s32.totalorder %s113, %s127
    %p129 = scmp.eq.s32.totalorder %s19, 0
    %p130 = por %p128, %p129
    %s132 = sadd.s32 %s131, 1
    %p135 = scmp.eq.s32.totalorder %s13, 1
    %p136 = scmp.ne.s32.totalorder %s131, %s133
    %p137 = scmp.eq.s32.totalorder %s13, 0
    %p138 = por %p136, %p137
    %p139 = scmp.ne.s32.totalorder %s131, %s133
    %p140 = scmp.eq.s32.totalorder %s18, 1
    %p141 = por %p139, %p140
    %p142 = scmp.ne.s32.totalorder %s133, %s134
    %p143 = scmp.eq.s32.totalorder %s18, 0
    %p144 = por %p142, %p143
    %p145 = scmp.ne.s32.totalorder %s133, %s134
    %p146 = scmp.eq.s32.totalorder %s19, 1
    %p147 = por %p145, %p146
    %p149 = scmp.ne.s32.totalorder %s134, %s148
    %p150 = scmp.eq.s32.totalorder %s19, 0
    %p151 = por %p149, %p150
    %s153 = sadd.s32 %s152, 1
    %p156 = scmp.eq.s32.totalorder %s13, 1
    %p157 = scmp.ne.s32.totalorder %s152, %s154
    %p158 = scmp.eq.s32.totalorder %s13, 0
    %p159 = por %p157, %p158
    %p160 = scmp.ne.s32.totalorder %s152, %s154
    %p161 = scmp.eq.s32.totalorder %s18, 1
    %p162 = por %p160, %p161
    %p163 = scmp.ne.s32.totalorder %s154, %s155
    %p164 = scmp.eq.s32.totalorder %s18, 0
    %p165 = por %p163, %p164
    %p166 = scmp.ne.s32.totalorder %s154, %s155
    %p167 = scmp.eq.s32.totalorder %s19, 1
    %p168 = por %p166, %p167
    %p170 = scmp.ne.s32.totalorder %s155, %s169
    %p171 = scmp.eq.s32.totalorder %s19, 0
    %p172 = por %p170, %p171
    %s173 = ssub.s32 %s13, %s20
    %p174 = scmp.eq.s32.totalorder %s173, 0
    %s176 = sadd.s32 %s175, 1
    %s177 = scalar_select %p174, %s175, %s176
    %p180 = pneg %p174
    %p181 = scmp.eq.s32.totalorder %s13, 1
    %p182 = por %p180, %p181
    %p183 = scmp.ne.s32.totalorder %s175, %s178
    %p184 = scmp.eq.s32.totalorder %s13, 0
    %p185 = por %p183, %p184
    %p186 = scmp.ne.s32.totalorder %s175, %s178
    %p187 = scmp.eq.s32.totalorder %s18, 1
    %p188 = por %p186, %p187
    %p189 = scmp.ne.s32.totalorder %s178, %s179
    %p190 = scmp.eq.s32.totalorder %s18, 0
    %p191 = por %p189, %p190
    %p192 = scmp.ne.s32.totalorder %s178, %s179
    %p193 = scmp.eq.s32.totalorder %s19, 1
    %p194 = por %p192, %p193
    %p196 = scmp.ne.s32.totalorder %s179, %s195
    %p197 = scmp.eq.s32.totalorder %s19, 0
    %p198 = por %p196, %p197
    %p199 = scmp.le.s32.totalorder 1, %s13
    %p200 = scmp.lt.s32.totalorder %s13, 3
    %p201 = pnand %p199, %p200
    %p202 = pneg %p201
    // Predicated region
    $region9: #{_forward_impl.9} parent=5 // pred_check
      _
    $region10: #{_forward_impl.9} parent=5 // pred_check_branch
      %204 = sbr.rel (%p201) target = $region12
    $region11: #{_forward_impl.9} parent=5 // pred_region
      %s205 = ssub.s32 %s13, 1
      // Predicated region
      $region13: #{_forward_impl.9} parent=11 // pred_check
        %p206 = pneg %p60
      $region14: #{_forward_impl.9} parent=11 // pred_check_branch
        %208 = sbr.rel (%p206) target = $region16
      $region15: #{_forward_impl.9} parent=11 // pred_region
        _
      $region16: #{_forward_impl.9} parent=11 // pred_fallthru
        _
      // Predicated region
      $region17: #{_forward_impl.9} parent=11 // pred_check
        %p209 = pneg %p81
      $region18: #{_forward_impl.9} parent=11 // pred_check_branch
        %211 = sbr.rel (%p209) target = $region20
      $region19: #{_forward_impl.9} parent=11 // pred_region
        _
      $region20: #{_forward_impl.9} parent=11 // pred_fallthru
        _
      // Predicated region
      $region21: #{_forward_impl.9} parent=11 // pred_check
        %p212 = pneg %p102
      $region22: #{_forward_impl.9} parent=11 // pred_check_branch
        %214 = sbr.rel (%p212) target = $region24
      $region23: #{_forward_impl.9} parent=11 // pred_region
        _
      $region24: #{_forward_impl.9} parent=11 // pred_fallthru
        _
      // Predicated region
      $region25: #{_forward_impl.9} parent=11 // pred_check
        %p215 = pneg %p123
      $region26: #{_forward_impl.9} parent=11 // pred_check_branch
        %217 = sbr.rel (%p215) target = $region28
      $region27: #{_forward_impl.9} parent=11 // pred_region
        _
      $region28: #{_forward_impl.9} parent=11 // pred_fallthru
        _
      // Predicated region
      $region29: #{_forward_impl.9} parent=11 // pred_check
        %p218 = pneg %p144
      $region30: #{_forward_impl.9} parent=11 // pred_check_branch
        %220 = sbr.rel (%p218) target = $region32
      $region31: #{_forward_impl.9} parent=11 // pred_region
        _
      $region32: #{_forward_impl.9} parent=11 // pred_fallthru
        _
      // Predicated region
      $region33: #{_forward_impl.9} parent=11 // pred_check
        %p221 = pneg %p165
      $region34: #{_forward_impl.9} parent=11 // pred_check_branch
        %223 = sbr.rel (%p221) target = $region36
      $region35: #{_forward_impl.9} parent=11 // pred_region
        _
      $region36: #{_forward_impl.9} parent=11 // pred_fallthru
        _
    $region12: #{_forward_impl.9} parent=5 // pred_fallthru
      _
    %p224 = scmp.lt.s32.totalorder %s13, 2
    // Predicated region
    $region37: #{_forward_impl.9} parent=5 // pred_check
      %p225 = pneg %p224
    $region38: #{_forward_impl.9} parent=5 // pred_check_branch
      %227 = sbr.rel (%p225) target = $region40
    $region39: #{_forward_impl.9} parent=5 // pred_region
      // Predicated region
      $region41: #{_forward_impl.9} parent=39 // pred_check
        %p228 = pneg %p33
      $region42: #{_forward_impl.9} parent=39 // pred_check_branch
        %230 = sbr.rel (%p228) target = $region44
      $region43: #{_forward_impl.9} parent=39 // pred_region
        %s231 = smul.u32 2, %s13
        %p232 = scmp.lt.s32.totalorder %s231, 3
        %s233 = scalar_select %p232, %s231, 3
        %s234 = smul.addr %s233, 7
        %s235 = smul.addr %s234, 4
        %s236 = scalar_lea.vmem %s0, %s235
        %s237 = smul.u32 2, %s13
      $region44: #{_forward_impl.9} parent=39 // pred_fallthru
        _
    $region40: #{_forward_impl.9} parent=5 // pred_fallthru
      _
    %p238 = scmp.le.s32.totalorder 1, %s13
    %p239 = scmp.lt.s32.totalorder %s13, 3
    %p240 = pnand %p238, %p239
    %p241 = pneg %p240
    // Predicated region
    $region45: #{_forward_impl.9} parent=5 // pred_check
      _
    $region46: #{_forward_impl.9} parent=5 // pred_check_branch
      %243 = sbr.rel (%p240) target = $region48
    $region47: #{_forward_impl.9} parent=5 // pred_region
      %s244 = ssub.s32 %s13, 1
      %s245 = smul.u32 2, %s18
      %p246 = scmp.lt.s32.totalorder %s245, 3
      %s247 = scalar_select %p246, %s245, 3
      %s248 = smul.addr %s247, 7
      %s249 = smul.addr %s248, 4
      %s250 = scalar_lea.vmem %s0, %s249
      %p251 = pneg %p39
      %p252 = pneg %p36
      %p253 = pneg %p60
      %p254 = pneg %p57
      %p255 = pneg %p81
      %p256 = pneg %p78
      %p257 = pneg %p102
      %p258 = pneg %p99
      %p259 = pneg %p123
      %p260 = pneg %p120
      %p261 = pneg %p144
      %p262 = pneg %p141
      %p263 = pneg %p165
      %p264 = pneg %p162
      %p265 = pneg %p191
      %p266 = pneg %p188
      %s267 = smul.u32 2, %s18
      %p268 = scmp.lt.s32.totalorder %s267, 3
      %s269 = scalar_select %p268, %s267, 3
      %s270 = smul.addr %s269, 8
      %s271 = scalar_lea.vmem %s7, %s270
      %s272 = smul.u32 2, %s18
      %p273 = scmp.lt.s32.totalorder %s272, 3
      %s274 = scalar_select %p273, %s272, 3
      %s275 = smul.addr %s274, 7
      %s276 = smul.addr %s275, 4
      %s277 = scalar_lea.vmem %s0, %s276
      %s278 = smul.u32 2, %s18
      %s279 = smul.u32 2, %s18
      %p280 = scmp.lt.s32.totalorder %s279, 3
      %s281 = scalar_select %p280, %s279, 3
      %s282 = smul.addr %s281, 8
      %s283 = scalar_lea.vmem %s7, %s282
      %s284 = smul.u32 2, %s18
      %v286 = vld [vmem:[%s277] sm:$0xff]
      %v287 = vld [vmem:[%s277 + $0x8] sm:$0xff]
      %v288 = vld [vmem:[%s277 + $0x10] sm:$0xff]
      %v289 = vld [vmem:[%s277 + $0x18] sm:$0xf]
      %v290 = vld [vmem:[%s277 + $0x1c] sm:$0xff]
      %v291 = vld [vmem:[%s277 + $0x24] sm:$0xff]
      %v292 = vld [vmem:[%s277 + $0x2c] sm:$0xff]
      %v293 = vld [vmem:[%s277 + $0x34] sm:$0xf]
      %v294 = vld [vmem:[%s1] sm:$0xf]
      %v295 = vld [vmem:[%s1 + $0x4] sm:$0xf]
      %v296 = vld [vmem:[%s1 + $0x8] sm:$0xf]
      %v297 = vld [vmem:[%s1 + $0xc] sm:$0xf]
      %v298 = vld [vmem:[%s1 + $0x10] sm:$0xf]
      %v299 = vld [vmem:[%s1 + $0x14] sm:$0xf]
      %v300 = vld [vmem:[%s1 + $0x18] sm:$0xf]
      %v301 = vld [vmem:[%s1 + $0x1c] sm:$0xf]
      %v302 = vld [vmem:[%s1 + $0x20] sm:$0xf]
      %v303 = vld [vmem:[%s1 + $0x24] sm:$0xf]
      %v304 = vld [vmem:[%s1 + $0x28] sm:$0xf]
      %v305 = vld [vmem:[%s1 + $0x2c] sm:$0xf]
      %v306 = vld [vmem:[%s1 + $0x30] sm:$0xf]
      %v307 = vld [vmem:[%s1 + $0x34] sm:$0xf]
      %v308 = vld [vmem:[%s1 + $0x38] sm:$0xf]
      %v309 = vld [vmem:[%s1 + $0x3c] sm:$0xf]
      %v310 = vld [vmem:[%s1 + $0x40] sm:$0xf]
      %v311 = vld [vmem:[%s1 + $0x44] sm:$0xf]
      %v312 = vld [vmem:[%s1 + $0x48] sm:$0xf]
      %v313 = vld [vmem:[%s1 + $0x4c] sm:$0xf]
      %v314 = vld [vmem:[%s1 + $0x50] sm:$0xf]
      %v315 = vld [vmem:[%s1 + $0x54] sm:$0xf]
      %v316 = vld [vmem:[%s1 + $0x58] sm:$0xf]
      %v317 = vld [vmem:[%s1 + $0x5c] sm:$0xf]
      %v318 = vld [vmem:[%s1 + $0x60] sm:$0xf]
      %v319 = vld [vmem:[%s1 + $0x64] sm:$0xf]
      %v320 = vld [vmem:[%s1 + $0x68] sm:$0xf]
      %v321 = vld [vmem:[%s1 + $0x6c] sm:$0xf]
      %v322 = vld [vmem:[%s1 + $0x70] sm:$0xf]
      %v323 = vld [vmem:[%s1 + $0x74] sm:$0xf]
      %v324 = vld [vmem:[%s1 + $0x78] sm:$0xf]
      %v325 = vld [vmem:[%s1 + $0x7c] sm:$0xf]
      %v326 = vld [vmem:[%s1 + $0x80] sm:$0xf]
      %v327 = vld [vmem:[%s1 + $0x84] sm:$0xf]
      %v328 = vld [vmem:[%s1 + $0x88] sm:$0xf]
      %v329 = vld [vmem:[%s1 + $0x8c] sm:$0xf]
      %v330 = vld [vmem:[%s1 + $0x90] sm:$0xf]
      %v331 = vld [vmem:[%s1 + $0x94] sm:$0xf]
      %v332 = vld [vmem:[%s1 + $0x98] sm:$0xf]
      %v333 = vld [vmem:[%s1 + $0x9c] sm:$0xf]
      %v334 = vld [vmem:[%s1 + $0xa0] sm:$0xf]
      %v335 = vld [vmem:[%s1 + $0xa4] sm:$0xf]
      %v336 = vld [vmem:[%s1 + $0xa8] sm:$0xf]
      %v337 = vld [vmem:[%s1 + $0xac] sm:$0xf]
      %v338 = vld [vmem:[%s1 + $0xb0] sm:$0xf]
      %v339 = vld [vmem:[%s1 + $0xb4] sm:$0xf]
      %v340 = vld [vmem:[%s1 + $0xb8] sm:$0xf]
      %v341 = vld [vmem:[%s1 + $0xbc] sm:$0xf]
      %v342 = vld [vmem:[%s1 + $0xc0] sm:$0xf]
      %v343 = vld [vmem:[%s1 + $0xc4] sm:$0xf]
      %v344 = vld [vmem:[%s1 + $0xc8] sm:$0xf]
      %v345 = vld [vmem:[%s1 + $0xcc] sm:$0xf]
      %v346 = vld [vmem:[%s1 + $0xd0] sm:$0xf]
      %v347 = vld [vmem:[%s1 + $0xd4] sm:$0xf]
      %v348 = vld [vmem:[%s1 + $0xd8] sm:$0xf]
      %v349 = vld [vmem:[%s1 + $0xdc] sm:$0xf]
      %v350 = vld [vmem:[%s1 + $0xe0] sm:$0xf]
      %v351 = vld [vmem:[%s1 + $0xe4] sm:$0xf]
      %v352 = vld [vmem:[%s1 + $0xe8] sm:$0xf]
      %v353 = vld [vmem:[%s1 + $0xec] sm:$0xf]
      %v354 = vld [vmem:[%s1 + $0xf0] sm:$0xf]
      %v355 = vld [vmem:[%s1 + $0xf4] sm:$0xf]
      %v356 = vld [vmem:[%s1 + $0xf8] sm:$0xf]
      %v357 = vld [vmem:[%s1 + $0xfc] sm:$0xf]
      %v358 = vld [vmem:[%s1 + $0x100] sm:$0xf]
      %v359 = vld [vmem:[%s1 + $0x104] sm:$0xf]
      %v360 = vld [vmem:[%s1 + $0x108] sm:$0xf]
      %v361 = vld [vmem:[%s1 + $0x10c] sm:$0xf]
      %v362 = vld [vmem:[%s1 + $0x110] sm:$0xf]
      %v363 = vld [vmem:[%s1 + $0x114] sm:$0xf]
      %v364 = vld [vmem:[%s1 + $0x118] sm:$0xf]
      %v365 = vld [vmem:[%s1 + $0x11c] sm:$0xf]
      %v366 = vld [vmem:[%s1 + $0x120] sm:$0xf]
      %v367 = vld [vmem:[%s1 + $0x124] sm:$0xf]
      %v368 = vld [vmem:[%s1 + $0x128] sm:$0xf]
      %v369 = vld [vmem:[%s1 + $0x12c] sm:$0xf]
      %v370 = vld [vmem:[%s1 + $0x130] sm:$0xf]
      %v371 = vld [vmem:[%s1 + $0x134] sm:$0xf]
      %v372 = vld [vmem:[%s1 + $0x138] sm:$0xf]
      %v373 = vld [vmem:[%s1 + $0x13c] sm:$0xf]
      %v374 = vld [vmem:[%s1 + $0x140] sm:$0xf]
      %v375 = vld [vmem:[%s1 + $0x144] sm:$0xf]
      %v376 = vld [vmem:[%s1 + $0x148] sm:$0xf]
      %v377 = vld [vmem:[%s1 + $0x14c] sm:$0xf]
      %v378 = vld [vmem:[%s1 + $0x150] sm:$0xf]
      %v379 = vld [vmem:[%s1 + $0x154] sm:$0xf]
      %v380 = vld [vmem:[%s1 + $0x158] sm:$0xf]
      %v381 = vld [vmem:[%s1 + $0x15c] sm:$0xf]
      %v382 = vld [vmem:[%s1 + $0x160] sm:$0xf]
      %v383 = vld [vmem:[%s1 + $0x164] sm:$0xf]
      %v384 = vld [vmem:[%s1 + $0x168] sm:$0xf]
      %v385 = vld [vmem:[%s1 + $0x16c] sm:$0xf]
      %v386 = vld [vmem:[%s1 + $0x170] sm:$0xf]
      %v387 = vld [vmem:[%s1 + $0x174] sm:$0xf]
      %v388 = vld [vmem:[%s1 + $0x178] sm:$0xf]
      %v389 = vld [vmem:[%s1 + $0x17c] sm:$0xf]
      %v390 = vld [vmem:[%s1 + $0x180] sm:$0xf]
      %v391 = vld [vmem:[%s1 + $0x184] sm:$0xf]
      %v392 = vld [vmem:[%s1 + $0x188] sm:$0xf]
      %v393 = vld [vmem:[%s1 + $0x18c] sm:$0xf]
      %v394 = vld [vmem:[%s1 + $0x190] sm:$0xf]
      %v395 = vld [vmem:[%s1 + $0x194] sm:$0xf]
      %v396 = vld [vmem:[%s1 + $0x198] sm:$0xf]
      %v397 = vld [vmem:[%s1 + $0x19c] sm:$0xf]
      %v398 = vld [vmem:[%s1 + $0x1a0] sm:$0xf]
      %v399 = vld [vmem:[%s1 + $0x1a4] sm:$0xf]
      %v400 = vld [vmem:[%s1 + $0x1a8] sm:$0xf]
      %v401 = vld [vmem:[%s1 + $0x1ac] sm:$0xf]
      %v402 = vld [vmem:[%s1 + $0x1b0] sm:$0xf]
      %v403 = vld [vmem:[%s1 + $0x1b4] sm:$0xf]
      %v404 = vld [vmem:[%s1 + $0x1b8] sm:$0xf]
      %v405 = vld [vmem:[%s1 + $0x1bc] sm:$0xf]
      %v406 = vld [vmem:[%s2] sm:$0x1]
      %v408 = vlaneseq
      %v409 = vshrl.u32 %v408, 7
      %v410 = vsub.s32 0, %v409
      %v411 = vrot.slane %v406, %v410
      %v421 = vunpack.c.l.b16 %v286
      %v422 = vunpack.c.h.b16 %v286
      %v423 = vunpack.c.l.b16 %v287
      %v424 = vunpack.c.h.b16 %v287
      %v425 = vunpack.c.l.b16 %v288
      %v426 = vunpack.c.h.b16 %v288
      %v427 = vunpack.c.l.b16 %v289
      %v428 = vunpack.c.l.b16 %v290
      %v429 = vunpack.c.h.b16 %v290
      %v430 = vunpack.c.l.b16 %v291
      %v431 = vunpack.c.h.b16 %v291
      %v432 = vunpack.c.l.b16 %v292
      %v433 = vunpack.c.h.b16 %v292
      %v434 = vunpack.c.l.b16 %v293
      %v435 = vpack.c.b16 %v428, %v421
      %v436 = vpack.c.b16 %v429, %v422
      %v437 = vpack.c.b16 %v430, %v423
      %v438 = vpack.c.b16 %v431, %v424
      %v439 = vpack.c.b16 %v432, %v425
      %v440 = vpack.c.b16 %v433, %v426
      %v441 = vpack.c.b16 %v434, %v427
      %v561 = vunpack.c.l.b16 %v294
      %v562 = vunpack.c.l.b16 %v295
      %v563 = vunpack.c.l.b16 %v296
      %v564 = vunpack.c.l.b16 %v297
      %v565 = vunpack.c.l.b16 %v298
      %v566 = vunpack.c.l.b16 %v299
      %v567 = vunpack.c.l.b16 %v300
      %v568 = vunpack.c.l.b16 %v301
      %v569 = vunpack.c.l.b16 %v302
      %v570 = vunpack.c.l.b16 %v303
      %v571 = vunpack.c.l.b16 %v304
      %v572 = vunpack.c.l.b16 %v305
      %v573 = vunpack.c.l.b16 %v306
      %v574 = vunpack.c.l.b16 %v307
      %v575 = vunpack.c.l.b16 %v308
      %v576 = vunpack.c.l.b16 %v309
      %v577 = vunpack.c.l.b16 %v310
      %v578 = vunpack.c.l.b16 %v311
      %v579 = vunpack.c.l.b16 %v312
      %v580 = vunpack.c.l.b16 %v313
      %v581 = vunpack.c.l.b16 %v314
      %v582 = vunpack.c.l.b16 %v315
      %v583 = vunpack.c.l.b16 %v316
      %v584 = vunpack.c.l.b16 %v317
      %v585 = vunpack.c.l.b16 %v318
      %v586 = vunpack.c.l.b16 %v319
      %v587 = vunpack.c.l.b16 %v320
      %v588 = vunpack.c.l.b16 %v321
      %v589 = vunpack.c.l.b16 %v322
      %v590 = vunpack.c.l.b16 %v323
      %v591 = vunpack.c.l.b16 %v324
      %v592 = vunpack.c.l.b16 %v325
      %v593 = vunpack.c.l.b16 %v326
      %v594 = vunpack.c.l.b16 %v327
      %v595 = vunpack.c.l.b16 %v328
      %v596 = vunpack.c.l.b16 %v329
      %v597 = vunpack.c.l.b16 %v330
      %v598 = vunpack.c.l.b16 %v331
      %v599 = vunpack.c.l.b16 %v332
      %v600 = vunpack.c.l.b16 %v333
      %v601 = vunpack.c.l.b16 %v334
      %v602 = vunpack.c.l.b16 %v335
      %v603 = vunpack.c.l.b16 %v336
      %v604 = vunpack.c.l.b16 %v337
      %v605 = vunpack.c.l.b16 %v338
      %v606 = vunpack.c.l.b16 %v339
      %v607 = vunpack.c.l.b16 %v340
      %v608 = vunpack.c.l.b16 %v341
      %v609 = vunpack.c.l.b16 %v342
      %v610 = vunpack.c.l.b16 %v343
      %v611 = vunpack.c.l.b16 %v344
      %v612 = vunpack.c.l.b16 %v345
      %v613 = vunpack.c.l.b16 %v346
      %v614 = vunpack.c.l.b16 %v347
      %v615 = vunpack.c.l.b16 %v348
      %v616 = vunpack.c.l.b16 %v349
      %v617 = vunpack.c.l.b16 %v350
      %v618 = vunpack.c.l.b16 %v351
      %v619 = vunpack.c.l.b16 %v352
      %v620 = vunpack.c.l.b16 %v353
      %v621 = vunpack.c.l.b16 %v354
      %v622 = vunpack.c.l.b16 %v355
      %v623 = vunpack.c.l.b16 %v356
      %v624 = vunpack.c.l.b16 %v357
      %v625 = vunpack.c.l.b16 %v358
      %v626 = vunpack.c.l.b16 %v359
      %v627 = vunpack.c.l.b16 %v360
      %v628 = vunpack.c.l.b16 %v361
      %v629 = vunpack.c.l.b16 %v362
      %v630 = vunpack.c.l.b16 %v363
      %v631 = vunpack.c.l.b16 %v364
      %v632 = vunpack.c.l.b16 %v365
      %v633 = vunpack.c.l.b16 %v366
      %v634 = vunpack.c.l.b16 %v367
      %v635 = vunpack.c.l.b16 %v368
      %v636 = vunpack.c.l.b16 %v369
      %v637 = vunpack.c.l.b16 %v370
      %v638 = vunpack.c.l.b16 %v371
      %v639 = vunpack.c.l.b16 %v372
      %v640 = vunpack.c.l.b16 %v373
      %v641 = vunpack.c.l.b16 %v374
      %v642 = vunpack.c.l.b16 %v375
      %v643 = vunpack.c.l.b16 %v376
      %v644 = vunpack.c.l.b16 %v377
      %v645 = vunpack.c.l.b16 %v378
      %v646 = vunpack.c.l.b16 %v379
      %v647 = vunpack.c.l.b16 %v380
      %v648 = vunpack.c.l.b16 %v381
      %v649 = vunpack.c.l.b16 %v382
      %v650 = vunpack.c.l.b16 %v383
      %v651 = vunpack.c.l.b16 %v384
      %v652 = vunpack.c.l.b16 %v385
      %v653 = vunpack.c.l.b16 %v386
      %v654 = vunpack.c.l.b16 %v387
      %v655 = vunpack.c.l.b16 %v388
      %v656 = vunpack.c.l.b16 %v389
      %v657 = vunpack.c.l.b16 %v390
      %v658 = vunpack.c.l.b16 %v391
      %v659 = vunpack.c.l.b16 %v392
      %v660 = vunpack.c.l.b16 %v393
      %v661 = vunpack.c.l.b16 %v394
      %v662 = vunpack.c.l.b16 %v395
      %v663 = vunpack.c.l.b16 %v396
      %v664 = vunpack.c.l.b16 %v397
      %v665 = vunpack.c.l.b16 %v398
      %v666 = vunpack.c.l.b16 %v399
      %v667 = vunpack.c.l.b16 %v400
      %v668 = vunpack.c.l.b16 %v401
      %v669 = vunpack.c.l.b16 %v402
      %v670 = vunpack.c.l.b16 %v403
      %v671 = vunpack.c.l.b16 %v404
      %v672 = vunpack.c.l.b16 %v405
      %v673 = vpack.c.b16 %v562, %v561
      %v674 = vpack.c.b16 %v564, %v563
      %v675 = vpack.c.b16 %v566, %v565
      %v676 = vpack.c.b16 %v568, %v567
      %v677 = vpack.c.b16 %v570, %v569
      %v678 = vpack.c.b16 %v572, %v571
      %v679 = vpack.c.b16 %v574, %v573
      %v680 = vpack.c.b16 %v576, %v575
      %v681 = vpack.c.b16 %v578, %v577
      %v682 = vpack.c.b16 %v580, %v579
      %v683 = vpack.c.b16 %v582, %v581
      %v684 = vpack.c.b16 %v584, %v583
      %v685 = vpack.c.b16 %v586, %v585
      %v686 = vpack.c.b16 %v588, %v587
      %v687 = vpack.c.b16 %v590, %v589
      %v688 = vpack.c.b16 %v592, %v591
      %v689 = vpack.c.b16 %v594, %v593
      %v690 = vpack.c.b16 %v596, %v595
      %v691 = vpack.c.b16 %v598, %v597
      %v692 = vpack.c.b16 %v600, %v599
      %v693 = vpack.c.b16 %v602, %v601
      %v694 = vpack.c.b16 %v604, %v603
      %v695 = vpack.c.b16 %v606, %v605
      %v696 = vpack.c.b16 %v608, %v607
      %v697 = vpack.c.b16 %v610, %v609
      %v698 = vpack.c.b16 %v612, %v611
      %v699 = vpack.c.b16 %v614, %v613
      %v700 = vpack.c.b16 %v616, %v615
      %v701 = vpack.c.b16 %v618, %v617
      %v702 = vpack.c.b16 %v620, %v619
      %v703 = vpack.c.b16 %v622, %v621
      %v704 = vpack.c.b16 %v624, %v623
      %v705 = vpack.c.b16 %v626, %v625
      %v706 = vpack.c.b16 %v628, %v627
      %v707 = vpack.c.b16 %v630, %v629
      %v708 = vpack.c.b16 %v632, %v631
      %v709 = vpack.c.b16 %v634, %v633
      %v710 = vpack.c.b16 %v636, %v635
      %v711 = vpack.c.b16 %v638, %v637
      %v712 = vpack.c.b16 %v640, %v639
      %v713 = vpack.c.b16 %v642, %v641
      %v714 = vpack.c.b16 %v644, %v643
      %v715 = vpack.c.b16 %v646, %v645
      %v716 = vpack.c.b16 %v648, %v647
      %v717 = vpack.c.b16 %v650, %v649
      %v718 = vpack.c.b16 %v652, %v651
      %v719 = vpack.c.b16 %v654, %v653
      %v720 = vpack.c.b16 %v656, %v655
      %v721 = vpack.c.b16 %v658, %v657
      %v722 = vpack.c.b16 %v660, %v659
      %v723 = vpack.c.b16 %v662, %v661
      %v724 = vpack.c.b16 %v664, %v663
      %v725 = vpack.c.b16 %v666, %v665
      %v726 = vpack.c.b16 %v668, %v667
      %v727 = vpack.c.b16 %v670, %v669
      %v728 = vpack.c.b16 %v672, %v671
      %785 = vmatprep.subr.bf16.mxu0 0
      %786 = vmatpush1.bf16.msra.mxu0 %v673
      %787 = vmatprep.subr.bf16.mxu0 0
      %788 = vmatpush1.bf16.msra.mxu0 %v674
      %789 = vmatprep.subr.bf16.mxu0 0
      %790 = vmatpush1.bf16.msra.mxu0 %v675
      %791 = vmatprep.subr.bf16.mxu0 0
      %792 = vmatpush1.bf16.msra.mxu0 %v676
      %793 = vmatprep.subr.bf16.mxu0 0
      %794 = vmatpush1.bf16.msra.mxu0 %v677
      %795 = vmatprep.subr.bf16.mxu0 0
      %796 = vmatpush1.bf16.msra.mxu0 %v678
      %797 = vmatprep.subr.bf16.mxu0 0
      %798 = vmatpush1.bf16.msra.mxu0 %v679
      %799 = vmatprep.subr.bf16.mxu0 0
      %800 = vmatpush1.bf16.msra.mxu0 %v680
      %801 = vmatprep.subr.bf16.mxu0 0
      %802 = vmatpush1.bf16.msra.mxu0 %v681
      %803 = vmatprep.subr.bf16.mxu0 0
      %804 = vmatpush1.bf16.msra.mxu0 %v682
      %805 = vmatprep.subr.bf16.mxu0 0
      %806 = vmatpush1.bf16.msra.mxu0 %v683
      %807 = vmatprep.subr.bf16.mxu0 0
      %808 = vmatpush1.bf16.msra.mxu0 %v684
      %809 = vmatprep.subr.bf16.mxu0 0
      %810 = vmatpush1.bf16.msra.mxu0 %v685
      %811 = vmatprep.subr.bf16.mxu0 0
      %812 = vmatpush1.bf16.msra.mxu0 %v686
      %813 = vmatprep.subr.bf16.mxu0 0
      %814 = vmatpush1.bf16.msra.mxu0 %v687
      %815 = vmatprep.subr.bf16.mxu0 0
      %816 = vmatpush1.bf16.msra.mxu0 %v688
      %817 = vmatprep.mubr.bf16.mxu0 %v436
      %818 = vmatmul.mubr.bf16.gmra.mrb[0].mxu0 %v435
      %v819 = vpop.f32.mrb[0].mxu0
      %v820 = vadd.f32 %v411, %v819
      %v821 = vpop.f32.mrb[0].mxu0
      %v822 = vpop.f32.mrb[0].mxu0
      %v823 = vadd.f32 %v411, %v822
      %v824 = vpop.f32.mrb[0].mxu0
      %825 = vdwg.mxu0
      %826 = vmatprep.subr.bf16.mxu0 0
      %827 = vmatpush1.bf16.msra.mxu0 %v689
      %828 = vmatprep.subr.bf16.mxu0 0
      %829 = vmatpush1.bf16.msra.mxu0 %v690
      %830 = vmatprep.subr.bf16.mxu0 0
      %831 = vmatpush1.bf16.msra.mxu0 %v691
      %832 = vmatprep.subr.bf16.mxu0 0
      %833 = vmatpush1.bf16.msra.mxu0 %v692
      %834 = vmatprep.subr.bf16.mxu0 0
      %835 = vmatpush1.bf16.msra.mxu0 %v693
      %836 = vmatprep.subr.bf16.mxu0 0
      %837 = vmatpush1.bf16.msra.mxu0 %v694
      %838 = vmatprep.subr.bf16.mxu0 0
      %839 = vmatpush1.bf16.msra.mxu0 %v695
      %840 = vmatprep.subr.bf16.mxu0 0
      %841 = vmatpush1.bf16.msra.mxu0 %v696
      %842 = vmatprep.subr.bf16.mxu0 0
      %843 = vmatpush1.bf16.msra.mxu0 %v697
      %844 = vmatprep.subr.bf16.mxu0 0
      %845 = vmatpush1.bf16.msra.mxu0 %v698
      %846 = vmatprep.subr.bf16.mxu0 0
      %847 = vmatpush1.bf16.msra.mxu0 %v699
      %848 = vmatprep.subr.bf16.mxu0 0
      %849 = vmatpush1.bf16.msra.mxu0 %v700
      %850 = vmatprep.subr.bf16.mxu0 0
      %851 = vmatpush1.bf16.msra.mxu0 %v701
      %852 = vmatprep.subr.bf16.mxu0 0
      %853 = vmatpush1.bf16.msra.mxu0 %v702
      %854 = vmatprep.subr.bf16.mxu0 0
      %855 = vmatpush1.bf16.msra.mxu0 %v703
      %856 = vmatprep.subr.bf16.mxu0 0
      %857 = vmatpush1.bf16.msra.mxu0 %v704
      %858 = vmatprep.mubr.bf16.mxu0 %v438
      %859 = vmatmul.mubr.bf16.gmra.mrb[0].mxu0 %v437
      %v860 = vpop.f32.mrb[0].mxu0
      %v861 = vadd.f32 %v820, %v860
      %v862 = vpop.f32.mrb[0].mxu0
      %v863 = vpop.f32.mrb[0].mxu0
      %v864 = vadd.f32 %v823, %v863
      %v865 = vpop.f32.mrb[0].mxu0
      %866 = vdwg.mxu0
      %867 = vmatprep.subr.bf16.mxu0 0
      %868 = vmatpush1.bf16.msra.mxu0 %v705
      %869 = vmatprep.subr.bf16.mxu0 0
      %870 = vmatpush1.bf16.msra.mxu0 %v706
      %871 = vmatprep.subr.bf16.mxu0 0
      %872 = vmatpush1.bf16.msra.mxu0 %v707
      %873 = vmatprep.subr.bf16.mxu0 0
      %874 = vmatpush1.bf16.msra.mxu0 %v708
      %875 = vmatprep.subr.bf16.mxu0 0
      %876 = vmatpush1.bf16.msra.mxu0 %v709
      %877 = vmatprep.subr.bf16.mxu0 0
      %878 = vmatpush1.bf16.msra.mxu0 %v710
      %879 = vmatprep.subr.bf16.mxu0 0
      %880 = vmatpush1.bf16.msra.mxu0 %v711
      %881 = vmatprep.subr.bf16.mxu0 0
      %882 = vmatpush1.bf16.msra.mxu0 %v712
      %883 = vmatprep.subr.bf16.mxu0 0
      %884 = vmatpush1.bf16.msra.mxu0 %v713
      %885 = vmatprep.subr.bf16.mxu0 0
      %886 = vmatpush1.bf16.msra.mxu0 %v714
      %887 = vmatprep.subr.bf16.mxu0 0
      %888 = vmatpush1.bf16.msra.mxu0 %v715
      %889 = vmatprep.subr.bf16.mxu0 0
      %890 = vmatpush1.bf16.msra.mxu0 %v716
      %891 = vmatprep.subr.bf16.mxu0 0
      %892 = vmatpush1.bf16.msra.mxu0 %v717
      %893 = vmatprep.subr.bf16.mxu0 0
      %894 = vmatpush1.bf16.msra.mxu0 %v718
      %895 = vmatprep.subr.bf16.mxu0 0
      %896 = vmatpush1.bf16.msra.mxu0 %v719
      %897 = vmatprep.subr.bf16.mxu0 0
      %898 = vmatpush1.bf16.msra.mxu0 %v720
      %899 = vmatprep.mubr.bf16.mxu0 %v440
      %900 = vmatmul.mubr.bf16.gmra.mrb[0].mxu0 %v439
      %v901 = vpop.f32.mrb[0].mxu0
      %v902 = vadd.f32 %v861, %v901
      %v903 = vpop.f32.mrb[0].mxu0
      %v904 = vpop.f32.mrb[0].mxu0
      %v905 = vadd.f32 %v864, %v904
      %v906 = vpop.f32.mrb[0].mxu0
      %907 = vdwg.mxu0
      %908 = vmatprep.subr.bf16.mxu0 0
      %909 = vmatpush1.bf16.msra.mxu0 %v721
      %910 = vmatprep.subr.bf16.mxu0 0
      %911 = vmatpush1.bf16.msra.mxu0 %v722
      %912 = vmatprep.subr.bf16.mxu0 0
      %913 = vmatpush1.bf16.msra.mxu0 %v723
      %914 = vmatprep.subr.bf16.mxu0 0
      %915 = vmatpush1.bf16.msra.mxu0 %v724
      %916 = vmatprep.subr.bf16.mxu0 0
      %917 = vmatpush1.bf16.msra.mxu0 %v725
      %918 = vmatprep.subr.bf16.mxu0 0
      %919 = vmatpush1.bf16.msra.mxu0 %v726
      %920 = vmatprep.subr.bf16.mxu0 0
      %921 = vmatpush1.bf16.msra.mxu0 %v727
      %922 = vmatprep.subr.bf16.mxu0 0
      %923 = vmatpush1.bf16.msra.mxu0 %v728
      %924 = vmatprep.subr.bf16.mxu0 0
      %925 = vmatpush1.bf16.msra.mxu0 0
      %926 = vmatprep.subr.bf16.mxu0 0
      %927 = vmatpush1.bf16.msra.mxu0 0
      %928 = vmatprep.subr.bf16.mxu0 0
      %929 = vmatpush1.bf16.msra.mxu0 0
      %930 = vmatprep.subr.bf16.mxu0 0
      %931 = vmatpush1.bf16.msra.mxu0 0
      %932 = vmatprep.subr.bf16.mxu0 0
      %933 = vmatpush1.bf16.msra.mxu0 0
      %934 = vmatprep.subr.bf16.mxu0 0
      %935 = vmatpush1.bf16.msra.mxu0 0
      %936 = vmatprep.subr.bf16.mxu0 0
      %937 = vmatpush1.bf16.msra.mxu0 0
      %938 = vmatprep.subr.bf16.mxu0 0
      %939 = vmatpush1.bf16.msra.mxu0 0
      %940 = vmatprep.mubr.bf16.mxu0 0
      %941 = vmatmul.mubr.bf16.gmra.mrb[0].mxu0 %v441
      %v942 = vpop.f32.mrb[0].mxu0
      %v943 = vadd.f32 %v902, %v942
      %v944 = vpop.f32.mrb[0].mxu0
      %v945 = vpop.f32.mrb[0].mxu0
      %v946 = vadd.f32 %v905, %v945
      %v947 = vpop.f32.mrb[0].mxu0
      %948 = vdwg.mxu0
      %v949 = vmax.f32 %v943, 0.0
      %v950 = vmax.f32 %v946, 0.0
      %v951 = vpack.c.bf16 %v950, %v949
      %v952 = vld [vmem:[%s3] sm:$0xf]
      %v953 = vld [vmem:[%s3 + $0x4] sm:$0xf]
      %v954 = vld [vmem:[%s3 + $0x8] sm:$0xf]
      %v955 = vld [vmem:[%s3 + $0xc] sm:$0xf]
      %v956 = vld [vmem:[%s3 + $0x10] sm:$0xf]
      %v957 = vld [vmem:[%s3 + $0x14] sm:$0xf]
      %v958 = vld [vmem:[%s3 + $0x18] sm:$0xf]
      %v959 = vld [vmem:[%s3 + $0x1c] sm:$0xf]
      %v960 = vld [vmem:[%s4] sm:$0x1]
      %v962 = vlaneseq
      %v963 = vshrl.u32 %v962, 7
      %v964 = vsub.s32 0, %v963
      %v965 = vrot.slane %v960, %v964
      %v975 = vunpack.c.l.b16 %v952
      %v976 = vunpack.c.l.b16 %v953
      %v977 = vunpack.c.l.b16 %v954
      %v978 = vunpack.c.l.b16 %v955
      %v979 = vunpack.c.l.b16 %v956
      %v980 = vunpack.c.l.b16 %v957
      %v981 = vunpack.c.l.b16 %v958
      %v982 = vunpack.c.l.b16 %v959
      %v983 = vpack.c.b16 %v976, %v975
      %v984 = vpack.c.b16 %v978, %v977
      %v985 = vpack.c.b16 %v980, %v979
      %v986 = vpack.c.b16 %v982, %v981
      %vm991 = vcmask 523264
      %v993 = vsel %vm991, %v951, 0
      %995 = vmatprep.subr.bf16.mxu0 0
      %996 = vmatpush1.bf16.msra.mxu0 %v983
      %997 = vmatprep.subr.bf16.mxu0 0
      %998 = vmatpush1.bf16.msra.mxu0 %v984
      %999 = vmatprep.subr.bf16.mxu0 0
      %1000 = vmatpush1.bf16.msra.mxu0 %v985
      %1001 = vmatprep.subr.bf16.mxu0 0
      %1002 = vmatpush1.bf16.msra.mxu0 %v986
      %1003 = vmatprep.subr.bf16.mxu0 0
      %1004 = vmatpush1.bf16.msra.mxu0 0
      %1005 = vmatprep.subr.bf16.mxu0 0
      %1006 = vmatpush1.bf16.msra.mxu0 0
      %1007 = vmatprep.subr.bf16.mxu0 0
      %1008 = vmatpush1.bf16.msra.mxu0 0
      %1009 = vmatprep.subr.bf16.mxu0 0
      %1010 = vmatpush1.bf16.msra.mxu0 0
      %1011 = vmatprep.subr.bf16.mxu0 0
      %1012 = vmatpush1.bf16.msra.mxu0 0
      %1013 = vmatprep.subr.bf16.mxu0 0
      %1014 = vmatpush1.bf16.msra.mxu0 0
      %1015 = vmatprep.subr.bf16.mxu0 0
      %1016 = vmatpush1.bf16.msra.mxu0 0
      %1017 = vmatprep.subr.bf16.mxu0 0
      %1018 = vmatpush1.bf16.msra.mxu0 0
      %1019 = vmatprep.subr.bf16.mxu0 0
      %1020 = vmatpush1.bf16.msra.mxu0 0
      %1021 = vmatprep.subr.bf16.mxu0 0
      %1022 = vmatpush1.bf16.msra.mxu0 0
      %1023 = vmatprep.subr.bf16.mxu0 0
      %1024 = vmatpush1.bf16.msra.mxu0 0
      %1025 = vmatprep.subr.bf16.mxu0 0
      %1026 = vmatpush1.bf16.msra.mxu0 0
      %1027 = vmatprep.mubr.bf16.mxu0 0
      %1028 = vmatmul.mubr.bf16.gmra.mrb[0].mxu0 %v993
      %v1029 = vpop.f32.mrb[0].mxu0
      %v1030 = vadd.f32 %v965, %v1029
      %v1031 = vpop.f32.mrb[0].mxu0
      %v1032 = vpop.f32.mrb[0].mxu0
      %v1033 = vadd.f32 %v965, %v1032
      %v1034 = vpop.f32.mrb[0].mxu0
      %1035 = vdwg.mxu0
      %v1036 = vmax.f32 %v1030, 0.0
      %v1037 = vmax.f32 %v1033, 0.0
      %v1038 = vpack.c.bf16 %v1037, %v1036
      %v1039 = vld [vmem:[%s5] sm:$0xf]
      %v1040 = vld [vmem:[%s5 + $0x4] sm:$0xf]
      %v1041 = vld [vmem:[%s5 + $0x8] sm:$0xf]
      %v1042 = vld [vmem:[%s5 + $0xc] sm:$0xf]
      %v1043 = vld [vmem:[%s5 + $0x10] sm:$0xf]
      %v1044 = vld [vmem:[%s5 + $0x14] sm:$0xf]
      %v1045 = vld [vmem:[%s5 + $0x18] sm:$0xf]
      %v1046 = vld [vmem:[%s5 + $0x1c] sm:$0xf]
      %v1047 = vld [vmem:[%s6] sm:$0x1]
      %v1049 = vlaneseq
      %v1050 = vshrl.u32 %v1049, 7
      %v1051 = vsub.s32 0, %v1050
      %v1052 = vrot.slane %v1047, %v1051
      %v1062 = vunpack.c.l.b16 %v1039
      %v1063 = vunpack.c.l.b16 %v1040
      %v1064 = vunpack.c.l.b16 %v1041
      %v1065 = vunpack.c.l.b16 %v1042
      %v1066 = vunpack.c.l.b16 %v1043
      %v1067 = vunpack.c.l.b16 %v1044
      %v1068 = vunpack.c.l.b16 %v1045
      %v1069 = vunpack.c.l.b16 %v1046
      %v1070 = vpack.c.b16 %v1063, %v1062
      %v1071 = vpack.c.b16 %v1065, %v1064
      %v1072 = vpack.c.b16 %v1067, %v1066
      %v1073 = vpack.c.b16 %v1069, %v1068
      %v1079 = vsel %vm991, %v1038, 0
      %1081 = vmatprep.subr.bf16.mxu0 0
      %1082 = vmatpush1.bf16.msra.mxu0 %v1070
      %1083 = vmatprep.subr.bf16.mxu0 0
      %1084 = vmatpush1.bf16.msra.mxu0 %v1071
      %1085 = vmatprep.subr.bf16.mxu0 0
      %1086 = vmatpush1.bf16.msra.mxu0 %v1072
      %1087 = vmatprep.subr.bf16.mxu0 0
      %1088 = vmatpush1.bf16.msra.mxu0 %v1073
      %1089 = vmatprep.subr.bf16.mxu0 0
      %1090 = vmatpush1.bf16.msra.mxu0 0
      %1091 = vmatprep.subr.bf16.mxu0 0
      %1092 = vmatpush1.bf16.msra.mxu0 0
      %1093 = vmatprep.subr.bf16.mxu0 0
      %1094 = vmatpush1.bf16.msra.mxu0 0
      %1095 = vmatprep.subr.bf16.mxu0 0
      %1096 = vmatpush1.bf16.msra.mxu0 0
      %1097 = vmatprep.subr.bf16.mxu0 0
      %1098 = vmatpush1.bf16.msra.mxu0 0
      %1099 = vmatprep.subr.bf16.mxu0 0
      %1100 = vmatpush1.bf16.msra.mxu0 0
      %1101 = vmatprep.subr.bf16.mxu0 0
      %1102 = vmatpush1.bf16.msra.mxu0 0
      %1103 = vmatprep.subr.bf16.mxu0 0
      %1104 = vmatpush1.bf16.msra.mxu0 0
      %1105 = vmatprep.subr.bf16.mxu0 0
      %1106 = vmatpush1.bf16.msra.mxu0 0
      %1107 = vmatprep.subr.bf16.mxu0 0
      %1108 = vmatpush1.bf16.msra.mxu0 0
      %1109 = vmatprep.subr.bf16.mxu0 0
      %1110 = vmatpush1.bf16.msra.mxu0 0
      %1111 = vmatprep.subr.bf16.mxu0 0
      %1112 = vmatpush1.bf16.msra.mxu0 0
      %1113 = vmatprep.mubr.bf16.mxu0 0
      %1114 = vmatmul.mubr.bf16.gmra.mrb[0].mxu0 %v1079
      %v1115 = vpop.f32.mrb[0].mxu0
      %v1116 = vadd.f32 %v1052, %v1115
      %v1117 = vpop.f32.mrb[0].mxu0
      %v1118 = vpop.f32.mrb[0].mxu0
      %v1119 = vadd.f32 %v1052, %v1118
      %v1120 = vpop.f32.mrb[0].mxu0
      %1121 = vdwg.mxu0
      %v1122 = vlaneseq
      %v1123 = vand.u32 %v1122, 127
      %vm1124 = vcmp.lt.s32.totalorder %v1123, 8
      %v1125 = vsel %vm1124, %v1116, -1e+30
      %v1126 = vsel %vm1124, %v1119, -1e+30
      %1127 = vmax.xlane.f32.xlu0 %v1125
      %v1128 = vpop.xlane.xlu0 %1127
      %1129 = vmax.xlane.f32.xlu0 %v1126
      %v1130 = vpop.xlane.xlu0 %1129
      %v1131 = vsub.f32 %v1116, %v1128
      %v1132 = vsub.f32 %v1119, %v1130
      %v1133 = vsel %vm1124, %v1131, -1e+30
      %v1134 = vsel %vm1124, %v1132, -1e+30
      %v1135 = vmul.f32 %v1133, 1.442695
      %v1136 = vpow.pop %v1135
      %v1137 = vmul.f32 %v1134, 1.442695
      %v1138 = vpow.pop %v1137
      %1139 = vadd.xlane.f32.xlu0 %v1136
      %v1140 = vpop.xlane.xlu0 %1139
      %1141 = vadd.xlane.f32.xlu0 %v1138
      %v1142 = vpop.xlane.xlu0 %1141
      %v1143 = vrcp.pop %v1140
      %v1144 = vrcp.pop %v1142
      %v1145 = vmul.f32 %v1136, %v1143
      %v1146 = vmul.f32 %v1138, %v1144
      %v1147 = vsel %vm1124, %v1145, %v1116
      %v1148 = vsel %vm1124, %v1146, %v1119
      %1149 = vst [vmem:[%s283] sm:$0xff] %v1147
      %1150 = vst [vmem:[%s283 + $0x8] sm:$0xff] %v1148
      %s1151 = smul.u32 2, %s18
      %p1152 = scmp.lt.s32.totalorder %s1151, 3
      %s1153 = scalar_select %p1152, %s1151, 3
      %s1154 = smul.addr %s1153, 8
      %s1155 = scalar_lea.vmem %s7, %s1154
      // Predicated region
      $region49: #{_forward_impl.9} parent=47 // pred_check
        %p1156 = pneg %p188
      $region50: #{_forward_impl.9} parent=47 // pred_check_branch
        %1158 = sbr.rel (%p1156) target = $region52
      $region51: #{_forward_impl.9} parent=47 // pred_region
        %s1159 = smul.u32 2, %s18
      $region52: #{_forward_impl.9} parent=47 // pred_fallthru
        _
    $region48: #{_forward_impl.9} parent=5 // pred_fallthru
      _
    %p1160 = scmp.le.s32.totalorder 2, %s13
    // Predicated region
    $region53: #{_forward_impl.9} parent=5 // pred_check
      %p1161 = pneg %p1160
    $region54: #{_forward_impl.9} parent=5 // pred_check_branch
      %1163 = sbr.rel (%p1161) target = $region56
    $region55: #{_forward_impl.9} parent=5 // pred_region
      %s1164 = ssub.s32 %s13, 2
      // Predicated region
      $region57: #{_forward_impl.9} parent=55 // pred_check
        %p1165 = pneg %p194
      $region58: #{_forward_impl.9} parent=55 // pred_check_branch
        %1167 = sbr.rel (%p1165) target = $region60
      $region59: #{_forward_impl.9} parent=55 // pred_region
        %s1168 = smul.u32 2, %s19
        %p1169 = scmp.lt.s32.totalorder %s1168, 3
        %s1170 = scalar_select %p1169, %s1168, 3
        %s1171 = smul.addr %s1170, 8
        %s1172 = scalar_lea.vmem %s7, %s1171
      $region60: #{_forward_impl.9} parent=55 // pred_fallthru
        _
    $region56: #{_forward_impl.9} parent=5 // pred_fallthru
      _
  $region6: #{_forward_impl.9} parent=0 // loop_footer
    %s17 = sadd.s32 1, %s13
  $region7: #{_forward_impl.9} parent=0 // loop_footer_branch
    %12 = sbr.rel target = $region3
  $region8: #{_forward_impl.9} parent=0 // loop_exit
    _

</llo_original>
